<compile_context>
chip_gen: v6e
topology: v6e:2x2x1
jax: 0.10.0
libtpu: 0.0.40
codegen_flags: <defaults>
</compile_context>

<pallas_src>
import functools

import jax
import jax.numpy as jnp
from jax.experimental import pallas as pl
from jax.experimental.pallas import tpu as pltpu

EPS = 1e-8          # GroupNorm eps (matches nn.GroupNorm(1, C, eps=1e-8))
PRELU_INIT = 0.25   # nn.PReLU() default initial slope (kept as a learnable param)


# ----------------------------- in-kernel helpers ----------------------------

def _prelu(x, a):
    return jnp.where(x >= 0, x, a * x)


def _gln(x, g, b):
    # GroupNorm(1, C): normalize over the full (C, L) slab, per-channel affine.
    m = jnp.mean(x)
    v = jnp.mean((x - m) ** 2)
    return (x - m) * jax.lax.rsqrt(v + EPS) * g + b


def _shift_time(y, s):
    # z[:, l] = y[:, l + s], zero outside [0, L).  `s` is a static python int.
    c, L = y.shape
    if s == 0:
        return y
    if abs(s) >= L:
        return jnp.zeros_like(y)
    rolled = pltpu.roll(y, (-s) % L, axis=1)     # rolled[:, l] = y[:, (l + s) % L]
    idx = jax.lax.broadcasted_iota(jnp.int32, (c, L), 1)
    if s > 0:
        return jnp.where(idx < L - s, rolled, 0.0)
    return jnp.where(idx >= -s, rolled, 0.0)


# ------------------------------ the fused kernel -----------------------------

def _tasnet_kernel(xh_ref, wlo_ref, whi_ref, g_ref, b_ref, bw_ref, bb_ref,
                   w1_ref, b1_ref, g1_ref, be1_ref, a1_ref,
                   wd_ref, bd_ref, g2_ref, be2_ref, a2_ref,
                   wr_ref, br_ref, ws_ref, bs_ref,
                   ow_ref, ob_ref, ao_ref, wdec_ref,
                   o_ref,
                   enc_scr, h_scr, s_scr,
                   *, dilations, num_spk):
    # grid = (B, stack).  enc_scr / h_scr / s_scr are VMEM-resident across the
    # stack axis; the output is written only on the last stack step (same block
    # index across the stack axis -> single writeback per batch item).
    s_idx = pl.program_id(1)
    N = enc_scr.shape[0]
    ksz = wd_ref.shape[3]
    half = o_ref.shape[1] // num_spk         # = stride = win // 2

    # ---- front-end (stack step 0): encoder conv + gLN + bottleneck 1x1 ----
    @pl.when(s_idx == 0)
    def _():
        xh = xh_ref[0]                        # (L+1, stride) half-frames
        lo = xh[:-1, :]                       # (L, stride)
        hi = xh[1:, :]                        # (L, stride)
        dn = (((1,), (1,)), ((), ()))         # A @ B^T (contract over the window)
        enc = (jax.lax.dot_general(wlo_ref[...], lo, dn,
                                   preferred_element_type=jnp.float32)
               + jax.lax.dot_general(whi_ref[...], hi, dn,
                                     preferred_element_type=jnp.float32))   # (N, L)
        enc_scr[...] = enc
        normed = _gln(enc, g_ref[...], b_ref[...])
        h_scr[...] = (jnp.dot(bw_ref[...], normed,
                              preferred_element_type=jnp.float32) + bb_ref[...])
        s_scr[...] = jnp.zeros_like(s_scr)

    # ---- all `layer` dilated depthwise blocks of this stack (static dils) ----
    for j, dil in enumerate(dilations):
        h = h_scr[...]
        # 1x1 conv -> PReLU -> gLN
        y = (jnp.dot(w1_ref[0, j], h, preferred_element_type=jnp.float32)
             + b1_ref[0, j])
        y = _prelu(y, a1_ref[0, j])
        y = _gln(y, g1_ref[0, j], be1_ref[0, j])
        # depthwise dilated conv ('same' padding) -> PReLU -> gLN
        wd = wd_ref[0, j]                     # (H, K)
        pad = dil * (ksz - 1) // 2
        acc = wd[:, 0:1] * _shift_time(y, -pad)
        for k in range(1, ksz):
            acc = acc + wd[:, k:k + 1] * _shift_time(y, k * dil - pad)
        y = acc + bd_ref[0, j]
        y = _prelu(y, a2_ref[0, j])
        y = _gln(y, g2_ref[0, j], be2_ref[0, j])
        # residual + skip accumulation, VMEM-resident
        h_scr[...] = h + (jnp.dot(wr_ref[0, j], y,
                                  preferred_element_type=jnp.float32)
                          + br_ref[0, j])
        s_scr[...] = s_scr[...] + (jnp.dot(ws_ref[0, j], y,
                                           preferred_element_type=jnp.float32)
                                   + bs_ref[0, j])

    # ---- head + masking + decoder overlap-add (last stack step) ----
    @pl.when(s_idx == pl.num_programs(1) - 1)
    def _():
        sk = _prelu(s_scr[...], ao_ref[...])
        tcn = (jnp.dot(ow_ref[...], sk, preferred_element_type=jnp.float32)
               + ob_ref[...])
        mask = jax.nn.sigmoid(tcn)            # (num_spk * N, L)
        enc = enc_scr[...]                    # (N, L)
        z = jnp.zeros((half, 1), jnp.float32)
        for s in range(num_spk):
            masked = enc * mask[s * N:(s + 1) * N, :]
            # ConvTranspose1d(N, 1, win, stride=win/2) = (win,N) @ (N,L) matmul
            frames = jnp.dot(wdec_ref[...], masked,
                             preferred_element_type=jnp.float32)   # (win, L)
            top = frames[:half, :]
            bot = frames[half:, :]
            o_ref[0, s * half:(s + 1) * half, :] = (
                jnp.concatenate([top, z], axis=1)
                + jnp.concatenate([z, bot], axis=1))               # (stride, L+1)


# --------------------------- pallas_call wrapper -----------------------------

def tasnet_forward(xh, w_lo, w_hi, p, tp, dec_w_t, dilations, num_spk):
    B, Lp1, stride = xh.shape
    L = Lp1 - 1
    N = w_lo.shape[0]
    BN = p["bn_w"].shape[0]
    stack = tp["w1"].shape[0]

    def sspec(x):   # per-stack stacked block weights (streamed over stack axis)
        return pl.BlockSpec((1,) + x.shape[1:], lambda b, s: (s, 0, 0, 0))

    def fspec(x):   # shared 2-D weight, fetched once (constant index map)
        return pl.BlockSpec(x.shape, lambda b, s: (0, 0))

    order = ["w1", "b1", "g1", "be1", "a1", "wd", "bd", "g2", "be2", "a2",
             "wr", "br", "ws", "bs"]
    in_specs = ([pl.BlockSpec((1, Lp1, stride), lambda b, s: (b, 0, 0)),
                 fspec(w_lo), fspec(w_hi),
                 fspec(p["ln_g"]), fspec(p["ln_b"]),
                 fspec(p["bn_w"]), fspec(p["bn_b"])]
                + [sspec(tp[k]) for k in order]
                + [fspec(tp["out_w"]), fspec(tp["out_b"]), fspec(tp["a_out"]),
                   fspec(dec_w_t)])
    args = ([xh, w_lo, w_hi, p["ln_g"], p["ln_b"], p["bn_w"], p["bn_b"]]
            + [tp[k] for k in order]
            + [tp["out_w"], tp["out_b"], tp["a_out"], dec_w_t])

    kern = functools.partial(_tasnet_kernel, dilations=dilations,
                             num_spk=num_spk)
    return pl.pallas_call(
        kern,
        out_shape=jax.ShapeDtypeStruct((B, num_spk * stride, L + 1),
                                       jnp.float32),
        grid=(B, stack),
        in_specs=in_specs,
        out_specs=pl.BlockSpec((1, num_spk * stride, L + 1),
                               lambda b, s: (b, 0, 0)),
        scratch_shapes=[pltpu.VMEM((N, L), jnp.float32),    # enc
                        pltpu.VMEM((BN, L), jnp.float32),   # residual h
                        pltpu.VMEM((BN, L), jnp.float32)],  # skip accumulator
        compiler_params=pltpu.CompilerParams(
            dimension_semantics=("parallel", "arbitrary")),
    )(*args)


# -------------------------------- the model ---------------------------------

class TasNetPallas:
    """Conv-TasNet forward (film_do=False, support_noise=False, masks_type='mul',
    masking_nonlinearity='sigmoid', causal=False, dilated TCN with skip conns)."""

    def __init__(self, enc_dim=64, feature_dim=32, sr=8000, win_ms=2, layer=2,
                 stack=1, kernel=3, num_spk=2, dilation_factor=2, seed=0):
        self.enc_dim = enc_dim
        self.feature_dim = feature_dim
        self.hidden_dim = feature_dim * 4
        self.num_spk = num_spk
        self.layer = layer
        self.stack = stack
        self.kernel = kernel
        self.win = int(sr * win_ms / 1000)
        self.stride = self.win // 2
        assert self.win == 2 * self.stride      # needed by the overlap-add
        self.dilations = tuple(dilation_factor ** j for j in range(layer))

        keys = iter(jax.random.split(jax.random.PRNGKey(seed), 256))

        def rnd(shape, scale=0.1):
            return (scale * jax.random.normal(next(keys), shape)).astype(jnp.float32)

        N, BN, H, K = enc_dim, feature_dim, self.hidden_dim, kernel
        enc_w = rnd((N, self.win))                    # Conv1d(1, N, win, bias=False)
        dec_w = rnd((N, self.win))                    # ConvTranspose1d(N, 1, win)
        self.w_lo = enc_w[:, :self.stride]            # first-half window taps
        self.w_hi = enc_w[:, self.stride:]            # second-half window taps
        self.dec_w_t = jnp.transpose(dec_w)           # (win, N)

        self.p = {
            "ln_g": 1.0 + rnd((N, 1)), "ln_b": rnd((N, 1)),   # GroupNorm(1, N)
            "bn_w": rnd((BN, N)), "bn_b": rnd((BN, 1)),       # bottleneck 1x1
        }

        def rnds(shape):
            return rnd((stack, layer) + shape)

        self.tcn = {
            "w1": rnds((H, BN)), "b1": rnds((H, 1)),
            "g1": 1.0 + rnds((H, 1)), "be1": rnds((H, 1)),
            "a1": jnp.full((stack, layer, 1, 1), PRELU_INIT, jnp.float32),
            "wd": rnds((H, K)), "bd": rnds((H, 1)),           # depthwise conv
            "g2": 1.0 + rnds((H, 1)), "be2": rnds((H, 1)),
            "a2": jnp.full((stack, layer, 1, 1), PRELU_INIT, jnp.float32),
            "wr": rnds((BN, H)), "br": rnds((BN, 1)),         # res_out
            "ws": rnds((BN, H)), "bs": rnds((BN, 1)),         # skip_out
            "out_w": rnd((num_spk * N, BN)),                  # output head 1x1
            "out_b": rnd((num_spk * N, 1)),
            "a_out": jnp.full((1, 1), PRELU_INIT, jnp.float32),
        }

    def __call__(self, x):
        # x: (B, T) raw waveform
        B, T = x.shape
        win, stride, spk = self.win, self.stride, self.num_spk

        # ---- pad_signal (same semantics as the PyTorch module; XLA glue) ----
        rest = win - (stride + T % win) % win
        if rest > 0:
            x = jnp.concatenate([x, jnp.zeros((B, rest), x.dtype)], axis=1)
        pad_aux = jnp.zeros((B, stride), x.dtype)
        xp = jnp.concatenate([pad_aux, x, pad_aux], axis=1)
        Tpad = xp.shape[1]
        L = Tpad // stride - 1

        # contiguous reshape into half-frames; no im2col HBM materialisation
        xh = xp.reshape(B, L + 1, stride).astype(jnp.float32)

        # ---- single fused kernel: encoder + gLN + bottleneck + TCN + head +
        #      sigmoid masking + decoder overlap-add ----
        oa = tasnet_forward(xh, self.w_lo, self.w_hi, self.p, self.tcn,
                            self.dec_w_t, self.dilations, spk)
        # oa: (B, spk*stride, L+1) with time frames on the lane axis
        oa = oa.reshape(B, spk, stride, L + 1)
        wav = jnp.transpose(oa, (0, 1, 3, 2)).reshape(B, spk, (L + 1) * stride)
        return wav[:, :, stride:-(rest + stride)]


if __name__ == "__main__":
    # small, shape-consistent config: win=16 samples, stride=8, enc_dim=64,
    # feature_dim=32, hidden=128, 1 stack x 2 layers, 2 speakers
    model = TasNetPallas(enc_dim=64, feature_dim=32, sr=8000, win_ms=2,
                         layer=2, stack=1, kernel=3, num_spk=2, seed=0)

    key = jax.random.PRNGKey(0)
    x = jax.random.normal(jax.random.fold_in(key, 123), (2, 160), dtype=jnp.float32)

    out = model(x)
    jax.block_until_ready(out)
    assert out.shape == (2, 2, 160), out.shape
    assert bool(jnp.all(jnp.isfinite(out)))
    print("KERNEL_OK")
</pallas_src>

<mosaic_0001>
module attributes {stable_mosaic.version = 11 : i64} {
  func.func @_tasnet_kernel(%arg0: i32, %arg1: i32, %arg2: memref<1x23x8xf32, #tpu.memory_space<vmem>>, %arg3: memref<64x8xf32, #tpu.memory_space<vmem>>, %arg4: memref<64x8xf32, #tpu.memory_space<vmem>>, %arg5: memref<64x1xf32, #tpu.memory_space<vmem>>, %arg6: memref<64x1xf32, #tpu.memory_space<vmem>>, %arg7: memref<32x64xf32, #tpu.memory_space<vmem>>, %arg8: memref<32x1xf32, #tpu.memory_space<vmem>>, %arg9: memref<1x2x128x32xf32, #tpu.memory_space<vmem>>, %arg10: memref<1x2x128x1xf32, #tpu.memory_space<vmem>>, %arg11: memref<1x2x128x1xf32, #tpu.memory_space<vmem>>, %arg12: memref<1x2x128x1xf32, #tpu.memory_space<vmem>>, %arg13: memref<1x2x1x1xf32, #tpu.memory_space<vmem>>, %arg14: memref<1x2x128x3xf32, #tpu.memory_space<vmem>>, %arg15: memref<1x2x128x1xf32, #tpu.memory_space<vmem>>, %arg16: memref<1x2x128x1xf32, #tpu.memory_space<vmem>>, %arg17: memref<1x2x128x1xf32, #tpu.memory_space<vmem>>, %arg18: memref<1x2x1x1xf32, #tpu.memory_space<vmem>>, %arg19: memref<1x2x32x128xf32, #tpu.memory_space<vmem>>, %arg20: memref<1x2x32x1xf32, #tpu.memory_space<vmem>>, %arg21: memref<1x2x32x128xf32, #tpu.memory_space<vmem>>, %arg22: memref<1x2x32x1xf32, #tpu.memory_space<vmem>>, %arg23: memref<128x32xf32, #tpu.memory_space<vmem>>, %arg24: memref<128x1xf32, #tpu.memory_space<vmem>>, %arg25: memref<1x1xf32, #tpu.memory_space<vmem>>, %arg26: memref<16x64xf32, #tpu.memory_space<vmem>>, %arg27: memref<1x16x23xf32, #tpu.memory_space<vmem>>, %arg28: memref<64x22xf32, #tpu.memory_space<vmem>>, %arg29: memref<32x22xf32, #tpu.memory_space<vmem>>, %arg30: memref<32x22xf32, #tpu.memory_space<vmem>>) attributes {dimension_semantics = [#tpu.dimension_semantics<parallel>, #tpu.dimension_semantics<arbitrary>], iteration_bounds = array<i64: 2, 1>, scalar_prefetch = 0 : i64, scratch_operands = 3 : i64, tpu.core_type = #tpu.core_type<tc>, window_params = [{transform_indices = @transform_0, window_bounds = array<i64: 1, 23, 8>}, {pipeline_mode = #tpu.pipeline_mode<synchronous>, transform_indices = @transform_1, window_bounds = array<i64: 64, 8>}, {pipeline_mode = #tpu.pipeline_mode<synchronous>, transform_indices = @transform_2, window_bounds = array<i64: 64, 8>}, {pipeline_mode = #tpu.pipeline_mode<synchronous>, transform_indices = @transform_3, window_bounds = array<i64: 64, 1>}, {pipeline_mode = #tpu.pipeline_mode<synchronous>, transform_indices = @transform_4, window_bounds = array<i64: 64, 1>}, {pipeline_mode = #tpu.pipeline_mode<synchronous>, transform_indices = @transform_5, window_bounds = array<i64: 32, 64>}, {pipeline_mode = #tpu.pipeline_mode<synchronous>, transform_indices = @transform_6, window_bounds = array<i64: 32, 1>}, {transform_indices = @transform_7, window_bounds = array<i64: 1, 2, 128, 32>}, {transform_indices = @transform_8, window_bounds = array<i64: 1, 2, 128, 1>}, {transform_indices = @transform_9, window_bounds = array<i64: 1, 2, 128, 1>}, {transform_indices = @transform_10, window_bounds = array<i64: 1, 2, 128, 1>}, {transform_indices = @transform_11, window_bounds = array<i64: 1, 2, 1, 1>}, {transform_indices = @transform_12, window_bounds = array<i64: 1, 2, 128, 3>}, {transform_indices = @transform_13, window_bounds = array<i64: 1, 2, 128, 1>}, {transform_indices = @transform_14, window_bounds = array<i64: 1, 2, 128, 1>}, {transform_indices = @transform_15, window_bounds = array<i64: 1, 2, 128, 1>}, {transform_indices = @transform_16, window_bounds = array<i64: 1, 2, 1, 1>}, {transform_indices = @transform_17, window_bounds = array<i64: 1, 2, 32, 128>}, {transform_indices = @transform_18, window_bounds = array<i64: 1, 2, 32, 1>}, {transform_indices = @transform_19, window_bounds = array<i64: 1, 2, 32, 128>}, {transform_indices = @transform_20, window_bounds = array<i64: 1, 2, 32, 1>}, {pipeline_mode = #tpu.pipeline_mode<synchronous>, transform_indices = @transform_21, window_bounds = array<i64: 128, 32>}, {pipeline_mode = #tpu.pipeline_mode<synchronous>, transform_indices = @transform_22, window_bounds = array<i64: 128, 1>}, {pipeline_mode = #tpu.pipeline_mode<synchronous>, transform_indices = @transform_23, window_bounds = array<i64: 1, 1>}, {pipeline_mode = #tpu.pipeline_mode<synchronous>, transform_indices = @transform_24, window_bounds = array<i64: 16, 64>}, {transform_indices = @transform_25, window_bounds = array<i64: 1, 16, 23>}]} {
    %c0_i32 = arith.constant 0 : i32
    %0 = arith.cmpi eq, %arg1, %c0_i32 : i32
    %1 = arith.extui %0 : i1 to i32
    %c0_i32_0 = arith.constant 0 : i32
    %2 = arith.cmpi ne, %1, %c0_i32_0 : i32
    scf.if %2 {
      %c0_166 = arith.constant 0 : index
      %c0_167 = arith.constant 0 : index
      %c0_168 = arith.constant 0 : index
      %254 = vector.load %arg2[%c0_166, %c0_167, %c0_168] : memref<1x23x8xf32, #tpu.memory_space<vmem>>, vector<1x23x8xf32>
      %255 = vector.shape_cast %254 : vector<1x23x8xf32> to vector<23x8xf32>
      %256 = vector.extract_strided_slice %255 {offsets = [0, 0], sizes = [22, 8], strides = [1, 1]} : vector<23x8xf32> to vector<22x8xf32>
      %257 = vector.extract_strided_slice %255 {offsets = [1, 0], sizes = [22, 8], strides = [1, 1]} : vector<23x8xf32> to vector<22x8xf32>
      %c0_169 = arith.constant 0 : index
      %c0_170 = arith.constant 0 : index
      %258 = vector.load %arg3[%c0_169, %c0_170] : memref<64x8xf32, #tpu.memory_space<vmem>>, vector<64x8xf32>
      %cst_171 = arith.constant dense<0.000000e+00> : vector<64x22xf32>
      %259 = tpu.matmul %258, %256, %cst_171 {dimension_numbers = #tpu.dot_dimension_numbers<[1], [1], [0], [0], [0, 0, 1, 0], [], []>} : vector<64x8xf32>, vector<22x8xf32>, vector<64x22xf32> -> vector<64x22xf32>
      %c0_172 = arith.constant 0 : index
      %c0_173 = arith.constant 0 : index
      %260 = vector.load %arg4[%c0_172, %c0_173] : memref<64x8xf32, #tpu.memory_space<vmem>>, vector<64x8xf32>
      %cst_174 = arith.constant dense<0.000000e+00> : vector<64x22xf32>
      %261 = tpu.matmul %260, %257, %cst_174 {dimension_numbers = #tpu.dot_dimension_numbers<[1], [1], [0], [0], [0, 0, 1, 0], [], []>} : vector<64x8xf32>, vector<22x8xf32>, vector<64x22xf32> -> vector<64x22xf32>
      %262 = arith.addf %259, %261 : vector<64x22xf32>
      %c0_175 = arith.constant 0 : index
      %c0_176 = arith.constant 0 : index
      %263 = vector.load %arg28[%c0_175, %c0_176] : memref<64x22xf32, #tpu.memory_space<vmem>>, vector<64x22xf32>
      tpu.vector_store %arg28[%c0_175, %c0_176], %262 {strides = array<i32>} : memref<64x22xf32, #tpu.memory_space<vmem>>, vector<64x22xf32>,
      %c0_177 = arith.constant 0 : index
      %c0_178 = arith.constant 0 : index
      %264 = vector.load %arg5[%c0_177, %c0_178] : memref<64x1xf32, #tpu.memory_space<vmem>>, vector<64x1xf32>
      %c0_179 = arith.constant 0 : index
      %c0_180 = arith.constant 0 : index
      %265 = vector.load %arg6[%c0_179, %c0_180] : memref<64x1xf32, #tpu.memory_space<vmem>>, vector<64x1xf32>
      %266 = vector.shape_cast %262 : vector<64x22xf32> to vector<1x64x22xf32>
      %cst_181 = arith.constant dense<0.000000e+00> : vector<1xf32>
      %267 = vector.multi_reduction <add>, %266, %cst_181 [1, 2] : vector<1x64x22xf32> to vector<1xf32>
      %268 = vector.shape_cast %267 : vector<1xf32> to vector<1x1x1xf32>
      %269 = vector.extract %268[0, 0, 0] : f32 from vector<1x1x1xf32>
      %cst_182 = arith.constant 1.408000e+03 : f32
      %270 = arith.divf %269, %cst_182 : f32
      %271 = vector.broadcast %270 : f32 to vector<64x22xf32>
      %272 = arith.subf %262, %271 : vector<64x22xf32>
      %273 = arith.mulf %272, %272 : vector<64x22xf32>
      %274 = vector.shape_cast %273 : vector<64x22xf32> to vector<1x64x22xf32>
      %cst_183 = arith.constant dense<0.000000e+00> : vector<1xf32>
      %275 = vector.multi_reduction <add>, %274, %cst_183 [1, 2] : vector<1x64x22xf32> to vector<1xf32>
      %276 = vector.shape_cast %275 : vector<1xf32> to vector<1x1x1xf32>
      %277 = vector.extract %276[0, 0, 0] : f32 from vector<1x1x1xf32>
      %cst_184 = arith.constant 1.408000e+03 : f32
      %278 = arith.divf %277, %cst_184 : f32
      %279 = vector.broadcast %270 : f32 to vector<64x22xf32>
      %280 = arith.subf %262, %279 : vector<64x22xf32>
      %cst_185 = arith.constant 9.99999993E-9 : f32
      %281 = arith.addf %278, %cst_185 : f32
      %282 = math.rsqrt %281 : f32
      %283 = vector.broadcast %282 : f32 to vector<64x22xf32>
      %284 = arith.mulf %280, %283 : vector<64x22xf32>
      %285 = vector.broadcast %264 : vector<64x1xf32> to vector<64x22xf32>
      %286 = arith.mulf %284, %285 : vector<64x22xf32>
      %287 = vector.broadcast %265 : vector<64x1xf32> to vector<64x22xf32>
      %288 = arith.addf %286, %287 : vector<64x22xf32>
      %c0_186 = arith.constant 0 : index
      %c0_187 = arith.constant 0 : index
      %289 = vector.load %arg7[%c0_186, %c0_187] : memref<32x64xf32, #tpu.memory_space<vmem>>, vector<32x64xf32>
      %cst_188 = arith.constant dense<0.000000e+00> : vector<32x22xf32>
      %290 = tpu.matmul %289, %288, %cst_188 {dimension_numbers = #tpu.dot_dimension_numbers<[1], [0], [0], [1], [0, 0, 1, 1], [], []>} : vector<32x64xf32>, vector<64x22xf32>, vector<32x22xf32> -> vector<32x22xf32>
      %c0_189 = arith.constant 0 : index
      %c0_190 = arith.constant 0 : index
      %291 = vector.load %arg8[%c0_189, %c0_190] : memref<32x1xf32, #tpu.memory_space<vmem>>, vector<32x1xf32>
      %292 = vector.broadcast %291 : vector<32x1xf32> to vector<32x22xf32>
      %293 = arith.addf %290, %292 : vector<32x22xf32>
      %c0_191 = arith.constant 0 : index
      %c0_192 = arith.constant 0 : index
      %294 = vector.load %arg29[%c0_191, %c0_192] : memref<32x22xf32, #tpu.memory_space<vmem>>, vector<32x22xf32>
      tpu.vector_store %arg29[%c0_191, %c0_192], %293 {strides = array<i32>} : memref<32x22xf32, #tpu.memory_space<vmem>>, vector<32x22xf32>,
      %cst_193 = arith.constant 0.000000e+00 : f32
      %295 = vector.broadcast %cst_193 : f32 to vector<32x22xf32>
      %c0_194 = arith.constant 0 : index
      %c0_195 = arith.constant 0 : index
      %296 = vector.load %arg30[%c0_194, %c0_195] : memref<32x22xf32, #tpu.memory_space<vmem>>, vector<32x22xf32>
      tpu.vector_store %arg30[%c0_194, %c0_195], %295 {strides = array<i32>} : memref<32x22xf32, #tpu.memory_space<vmem>>, vector<32x22xf32>,
    } else {
    }
    %c0 = arith.constant 0 : index
    %c0_1 = arith.constant 0 : index
    %3 = vector.load %arg29[%c0, %c0_1] : memref<32x22xf32, #tpu.memory_space<vmem>>, vector<32x22xf32>
    %c0_2 = arith.constant 0 : index
    %c0_3 = arith.constant 0 : index
    %c0_4 = arith.constant 0 : index
    %c0_5 = arith.constant 0 : index
    %4 = vector.load %arg9[%c0_2, %c0_3, %c0_4, %c0_5] : memref<1x2x128x32xf32, #tpu.memory_space<vmem>>, vector<1x1x128x32xf32>
    %5 = vector.shape_cast %4 : vector<1x1x128x32xf32> to vector<128x32xf32>
    %cst = arith.constant dense<0.000000e+00> : vector<128x22xf32>
    %6 = tpu.matmul %5, %3, %cst {dimension_numbers = #tpu.dot_dimension_numbers<[1], [0], [0], [1], [0, 0, 1, 1], [], []>} : vector<128x32xf32>, vector<32x22xf32>, vector<128x22xf32> -> vector<128x22xf32>
    %c0_6 = arith.constant 0 : index
    %c0_7 = arith.constant 0 : index
    %c0_8 = arith.constant 0 : index
    %c0_9 = arith.constant 0 : index
    %7 = vector.load %arg10[%c0_6, %c0_7, %c0_8, %c0_9] : memref<1x2x128x1xf32, #tpu.memory_space<vmem>>, vector<1x1x128x1xf32>
    %8 = vector.shape_cast %7 : vector<1x1x128x1xf32> to vector<128x1xf32>
    %9 = vector.broadcast %8 : vector<128x1xf32> to vector<128x22xf32>
    %10 = arith.addf %6, %9 : vector<128x22xf32>
    %c0_10 = arith.constant 0 : index
    %c0_11 = arith.constant 0 : index
    %c0_12 = arith.constant 0 : index
    %c0_13 = arith.constant 0 : index
    %11 = vector.load %arg13[%c0_10, %c0_11, %c0_12, %c0_13] : memref<1x2x1x1xf32, #tpu.memory_space<vmem>>, vector<1x1x1x1xf32>
    %12 = vector.shape_cast %11 : vector<1x1x1x1xf32> to vector<1x1xf32>
    %cst_14 = arith.constant 0.000000e+00 : f32
    %13 = vector.broadcast %cst_14 : f32 to vector<128x22xf32>
    %14 = arith.cmpf oge, %10, %13 : vector<128x22xf32>
    %15 = vector.broadcast %12 : vector<1x1xf32> to vector<128x22xf32>
    %16 = arith.mulf %15, %10 : vector<128x22xf32>
    %17 = arith.select %14, %10, %16 : vector<128x22xi1>, vector<128x22xf32>
    %c0_15 = arith.constant 0 : index
    %c0_16 = arith.constant 0 : index
    %c0_17 = arith.constant 0 : index
    %c0_18 = arith.constant 0 : index
    %18 = vector.load %arg11[%c0_15, %c0_16, %c0_17, %c0_18] : memref<1x2x128x1xf32, #tpu.memory_space<vmem>>, vector<1x1x128x1xf32>
    %19 = vector.shape_cast %18 : vector<1x1x128x1xf32> to vector<128x1xf32>
    %c0_19 = arith.constant 0 : index
    %c0_20 = arith.constant 0 : index
    %c0_21 = arith.constant 0 : index
    %c0_22 = arith.constant 0 : index
    %20 = vector.load %arg12[%c0_19, %c0_20, %c0_21, %c0_22] : memref<1x2x128x1xf32, #tpu.memory_space<vmem>>, vector<1x1x128x1xf32>
    %21 = vector.shape_cast %20 : vector<1x1x128x1xf32> to vector<128x1xf32>
    %22 = vector.shape_cast %17 : vector<128x22xf32> to vector<1x128x22xf32>
    %cst_23 = arith.constant dense<0.000000e+00> : vector<1xf32>
    %23 = vector.multi_reduction <add>, %22, %cst_23 [1, 2] : vector<1x128x22xf32> to vector<1xf32>
    %24 = vector.shape_cast %23 : vector<1xf32> to vector<1x1x1xf32>
    %25 = vector.extract %24[0, 0, 0] : f32 from vector<1x1x1xf32>
    %cst_24 = arith.constant 2.816000e+03 : f32
    %26 = arith.divf %25, %cst_24 : f32
    %27 = vector.broadcast %26 : f32 to vector<128x22xf32>
    %28 = arith.subf %17, %27 : vector<128x22xf32>
    %29 = arith.mulf %28, %28 : vector<128x22xf32>
    %30 = vector.shape_cast %29 : vector<128x22xf32> to vector<1x128x22xf32>
    %cst_25 = arith.constant dense<0.000000e+00> : vector<1xf32>
    %31 = vector.multi_reduction <add>, %30, %cst_25 [1, 2] : vector<1x128x22xf32> to vector<1xf32>
    %32 = vector.shape_cast %31 : vector<1xf32> to vector<1x1x1xf32>
    %33 = vector.extract %32[0, 0, 0] : f32 from vector<1x1x1xf32>
    %cst_26 = arith.constant 2.816000e+03 : f32
    %34 = arith.divf %33, %cst_26 : f32
    %35 = vector.broadcast %26 : f32 to vector<128x22xf32>
    %36 = arith.subf %17, %35 : vector<128x22xf32>
    %cst_27 = arith.constant 9.99999993E-9 : f32
    %37 = arith.addf %34, %cst_27 : f32
    %38 = math.rsqrt %37 : f32
    %39 = vector.broadcast %38 : f32 to vector<128x22xf32>
    %40 = arith.mulf %36, %39 : vector<128x22xf32>
    %41 = vector.broadcast %19 : vector<128x1xf32> to vector<128x22xf32>
    %42 = arith.mulf %40, %41 : vector<128x22xf32>
    %43 = vector.broadcast %21 : vector<128x1xf32> to vector<128x22xf32>
    %44 = arith.addf %42, %43 : vector<128x22xf32>
    %c0_28 = arith.constant 0 : index
    %c0_29 = arith.constant 0 : index
    %c0_30 = arith.constant 0 : index
    %c0_31 = arith.constant 0 : index
    %45 = vector.load %arg14[%c0_28, %c0_29, %c0_30, %c0_31] : memref<1x2x128x3xf32, #tpu.memory_space<vmem>>, vector<1x1x128x3xf32>
    %46 = vector.shape_cast %45 : vector<1x1x128x3xf32> to vector<128x3xf32>
    %47 = vector.extract_strided_slice %46 {offsets = [0, 0], sizes = [128, 1], strides = [1, 1]} : vector<128x3xf32> to vector<128x1xf32>
    %c1_i32 = arith.constant 1 : i32
    %48 = tpu.dynamic_rotate %44 by %c1_i32 dim 1 : vector<128x22xf32>, i32 -> vector<128x22xf32>
    %49 = tpu.iota {dimensions = array<i32: 1>} : vector<128x22xi32>
    %c1_i32_32 = arith.constant 1 : i32
    %50 = vector.broadcast %c1_i32_32 : i32 to vector<128x22xi32>
    %51 = arith.cmpi sge, %49, %50 : vector<128x22xi32>
    %cst_33 = arith.constant 0.000000e+00 : f32
    %52 = vector.broadcast %cst_33 : f32 to vector<128x22xf32>
    %53 = arith.select %51, %48, %52 : vector<128x22xi1>, vector<128x22xf32>
    %54 = vector.broadcast %47 : vector<128x1xf32> to vector<128x22xf32>
    %55 = arith.mulf %54, %53 : vector<128x22xf32>
    %56 = vector.extract_strided_slice %46 {offsets = [0, 1], sizes = [128, 1], strides = [1, 1]} : vector<128x3xf32> to vector<128x1xf32>
    %57 = vector.broadcast %56 : vector<128x1xf32> to vector<128x22xf32>
    %58 = arith.mulf %57, %44 : vector<128x22xf32>
    %59 = arith.addf %55, %58 : vector<128x22xf32>
    %60 = vector.extract_strided_slice %46 {offsets = [0, 2], sizes = [128, 1], strides = [1, 1]} : vector<128x3xf32> to vector<128x1xf32>
    %c21_i32 = arith.constant 21 : i32
    %61 = tpu.dynamic_rotate %44 by %c21_i32 dim 1 : vector<128x22xf32>, i32 -> vector<128x22xf32>
    %62 = tpu.iota {dimensions = array<i32: 1>} : vector<128x22xi32>
    %c21_i32_34 = arith.constant 21 : i32
    %63 = vector.broadcast %c21_i32_34 : i32 to vector<128x22xi32>
    %64 = arith.cmpi slt, %62, %63 : vector<128x22xi32>
    %cst_35 = arith.constant 0.000000e+00 : f32
    %65 = vector.broadcast %cst_35 : f32 to vector<128x22xf32>
    %66 = arith.select %64, %61, %65 : vector<128x22xi1>, vector<128x22xf32>
    %67 = vector.broadcast %60 : vector<128x1xf32> to vector<128x22xf32>
    %68 = arith.mulf %67, %66 : vector<128x22xf32>
    %69 = arith.addf %59, %68 : vector<128x22xf32>
    %c0_36 = arith.constant 0 : index
    %c0_37 = arith.constant 0 : index
    %c0_38 = arith.constant 0 : index
    %c0_39 = arith.constant 0 : index
    %70 = vector.load %arg15[%c0_36, %c0_37, %c0_38, %c0_39] : memref<1x2x128x1xf32, #tpu.memory_space<vmem>>, vector<1x1x128x1xf32>
    %71 = vector.shape_cast %70 : vector<1x1x128x1xf32> to vector<128x1xf32>
    %72 = vector.broadcast %71 : vector<128x1xf32> to vector<128x22xf32>
    %73 = arith.addf %69, %72 : vector<128x22xf32>
    %c0_40 = arith.constant 0 : index
    %c0_41 = arith.constant 0 : index
    %c0_42 = arith.constant 0 : index
    %c0_43 = arith.constant 0 : index
    %74 = vector.load %arg18[%c0_40, %c0_41, %c0_42, %c0_43] : memref<1x2x1x1xf32, #tpu.memory_space<vmem>>, vector<1x1x1x1xf32>
    %75 = vector.shape_cast %74 : vector<1x1x1x1xf32> to vector<1x1xf32>
    %cst_44 = arith.constant 0.000000e+00 : f32
    %76 = vector.broadcast %cst_44 : f32 to vector<128x22xf32>
    %77 = arith.cmpf oge, %73, %76 : vector<128x22xf32>
    %78 = vector.broadcast %75 : vector<1x1xf32> to vector<128x22xf32>
    %79 = arith.mulf %78, %73 : vector<128x22xf32>
    %80 = arith.select %77, %73, %79 : vector<128x22xi1>, vector<128x22xf32>
    %c0_45 = arith.constant 0 : index
    %c0_46 = arith.constant 0 : index
    %c0_47 = arith.constant 0 : index
    %c0_48 = arith.constant 0 : index
    %81 = vector.load %arg16[%c0_45, %c0_46, %c0_47, %c0_48] : memref<1x2x128x1xf32, #tpu.memory_space<vmem>>, vector<1x1x128x1xf32>
    %82 = vector.shape_cast %81 : vector<1x1x128x1xf32> to vector<128x1xf32>
    %c0_49 = arith.constant 0 : index
    %c0_50 = arith.constant 0 : index
    %c0_51 = arith.constant 0 : index
    %c0_52 = arith.constant 0 : index
    %83 = vector.load %arg17[%c0_49, %c0_50, %c0_51, %c0_52] : memref<1x2x128x1xf32, #tpu.memory_space<vmem>>, vector<1x1x128x1xf32>
    %84 = vector.shape_cast %83 : vector<1x1x128x1xf32> to vector<128x1xf32>
    %85 = vector.shape_cast %80 : vector<128x22xf32> to vector<1x128x22xf32>
    %cst_53 = arith.constant dense<0.000000e+00> : vector<1xf32>
    %86 = vector.multi_reduction <add>, %85, %cst_53 [1, 2] : vector<1x128x22xf32> to vector<1xf32>
    %87 = vector.shape_cast %86 : vector<1xf32> to vector<1x1x1xf32>
    %88 = vector.extract %87[0, 0, 0] : f32 from vector<1x1x1xf32>
    %cst_54 = arith.constant 2.816000e+03 : f32
    %89 = arith.divf %88, %cst_54 : f32
    %90 = vector.broadcast %89 : f32 to vector<128x22xf32>
    %91 = arith.subf %80, %90 : vector<128x22xf32>
    %92 = arith.mulf %91, %91 : vector<128x22xf32>
    %93 = vector.shape_cast %92 : vector<128x22xf32> to vector<1x128x22xf32>
    %cst_55 = arith.constant dense<0.000000e+00> : vector<1xf32>
    %94 = vector.multi_reduction <add>, %93, %cst_55 [1, 2] : vector<1x128x22xf32> to vector<1xf32>
    %95 = vector.shape_cast %94 : vector<1xf32> to vector<1x1x1xf32>
    %96 = vector.extract %95[0, 0, 0] : f32 from vector<1x1x1xf32>
    %cst_56 = arith.constant 2.816000e+03 : f32
    %97 = arith.divf %96, %cst_56 : f32
    %98 = vector.broadcast %89 : f32 to vector<128x22xf32>
    %99 = arith.subf %80, %98 : vector<128x22xf32>
    %cst_57 = arith.constant 9.99999993E-9 : f32
    %100 = arith.addf %97, %cst_57 : f32
    %101 = math.rsqrt %100 : f32
    %102 = vector.broadcast %101 : f32 to vector<128x22xf32>
    %103 = arith.mulf %99, %102 : vector<128x22xf32>
    %104 = vector.broadcast %82 : vector<128x1xf32> to vector<128x22xf32>
    %105 = arith.mulf %103, %104 : vector<128x22xf32>
    %106 = vector.broadcast %84 : vector<128x1xf32> to vector<128x22xf32>
    %107 = arith.addf %105, %106 : vector<128x22xf32>
    %c0_58 = arith.constant 0 : index
    %c0_59 = arith.constant 0 : index
    %c0_60 = arith.constant 0 : index
    %c0_61 = arith.constant 0 : index
    %108 = vector.load %arg19[%c0_58, %c0_59, %c0_60, %c0_61] : memref<1x2x32x128xf32, #tpu.memory_space<vmem>>, vector<1x1x32x128xf32>
    %109 = vector.shape_cast %108 : vector<1x1x32x128xf32> to vector<32x128xf32>
    %cst_62 = arith.constant dense<0.000000e+00> : vector<32x22xf32>
    %110 = tpu.matmul %109, %107, %cst_62 {dimension_numbers = #tpu.dot_dimension_numbers<[1], [0], [0], [1], [0, 0, 1, 1], [], []>} : vector<32x128xf32>, vector<128x22xf32>, vector<32x22xf32> -> vector<32x22xf32>
    %c0_63 = arith.constant 0 : index
    %c0_64 = arith.constant 0 : index
    %c0_65 = arith.constant 0 : index
    %c0_66 = arith.constant 0 : index
    %111 = vector.load %arg20[%c0_63, %c0_64, %c0_65, %c0_66] : memref<1x2x32x1xf32, #tpu.memory_space<vmem>>, vector<1x1x32x1xf32>
    %112 = vector.shape_cast %111 : vector<1x1x32x1xf32> to vector<32x1xf32>
    %113 = vector.broadcast %112 : vector<32x1xf32> to vector<32x22xf32>
    %114 = arith.addf %110, %113 : vector<32x22xf32>
    %115 = arith.addf %3, %114 : vector<32x22xf32>
    %c0_67 = arith.constant 0 : index
    %c0_68 = arith.constant 0 : index
    %116 = vector.load %arg29[%c0_67, %c0_68] : memref<32x22xf32, #tpu.memory_space<vmem>>, vector<32x22xf32>
    tpu.vector_store %arg29[%c0_67, %c0_68], %115 {strides = array<i32>} : memref<32x22xf32, #tpu.memory_space<vmem>>, vector<32x22xf32>,
    %c0_69 = arith.constant 0 : index
    %c0_70 = arith.constant 0 : index
    %117 = vector.load %arg30[%c0_69, %c0_70] : memref<32x22xf32, #tpu.memory_space<vmem>>, vector<32x22xf32>
    %c0_71 = arith.constant 0 : index
    %c0_72 = arith.constant 0 : index
    %c0_73 = arith.constant 0 : index
    %c0_74 = arith.constant 0 : index
    %118 = vector.load %arg21[%c0_71, %c0_72, %c0_73, %c0_74] : memref<1x2x32x128xf32, #tpu.memory_space<vmem>>, vector<1x1x32x128xf32>
    %119 = vector.shape_cast %118 : vector<1x1x32x128xf32> to vector<32x128xf32>
    %cst_75 = arith.constant dense<0.000000e+00> : vector<32x22xf32>
    %120 = tpu.matmul %119, %107, %cst_75 {dimension_numbers = #tpu.dot_dimension_numbers<[1], [0], [0], [1], [0, 0, 1, 1], [], []>} : vector<32x128xf32>, vector<128x22xf32>, vector<32x22xf32> -> vector<32x22xf32>
    %c0_76 = arith.constant 0 : index
    %c0_77 = arith.constant 0 : index
    %c0_78 = arith.constant 0 : index
    %c0_79 = arith.constant 0 : index
    %121 = vector.load %arg22[%c0_76, %c0_77, %c0_78, %c0_79] : memref<1x2x32x1xf32, #tpu.memory_space<vmem>>, vector<1x1x32x1xf32>
    %122 = vector.shape_cast %121 : vector<1x1x32x1xf32> to vector<32x1xf32>
    %123 = vector.broadcast %122 : vector<32x1xf32> to vector<32x22xf32>
    %124 = arith.addf %120, %123 : vector<32x22xf32>
    %125 = arith.addf %117, %124 : vector<32x22xf32>
    %c0_80 = arith.constant 0 : index
    %c0_81 = arith.constant 0 : index
    %126 = vector.load %arg30[%c0_80, %c0_81] : memref<32x22xf32, #tpu.memory_space<vmem>>, vector<32x22xf32>
    tpu.vector_store %arg30[%c0_80, %c0_81], %125 {strides = array<i32>} : memref<32x22xf32, #tpu.memory_space<vmem>>, vector<32x22xf32>,
    %c0_82 = arith.constant 0 : index
    %c0_83 = arith.constant 0 : index
    %127 = vector.load %arg29[%c0_82, %c0_83] : memref<32x22xf32, #tpu.memory_space<vmem>>, vector<32x22xf32>
    %c0_84 = arith.constant 0 : index
    %c1 = arith.constant 1 : index
    %c0_85 = arith.constant 0 : index
    %c0_86 = arith.constant 0 : index
    %128 = vector.load %arg9[%c0_84, %c1, %c0_85, %c0_86] : memref<1x2x128x32xf32, #tpu.memory_space<vmem>>, vector<1x1x128x32xf32>
    %129 = vector.shape_cast %128 : vector<1x1x128x32xf32> to vector<128x32xf32>
    %cst_87 = arith.constant dense<0.000000e+00> : vector<128x22xf32>
    %130 = tpu.matmul %129, %127, %cst_87 {dimension_numbers = #tpu.dot_dimension_numbers<[1], [0], [0], [1], [0, 0, 1, 1], [], []>} : vector<128x32xf32>, vector<32x22xf32>, vector<128x22xf32> -> vector<128x22xf32>
    %c0_88 = arith.constant 0 : index
    %c1_89 = arith.constant 1 : index
    %c0_90 = arith.constant 0 : index
    %c0_91 = arith.constant 0 : index
    %131 = vector.load %arg10[%c0_88, %c1_89, %c0_90, %c0_91] : memref<1x2x128x1xf32, #tpu.memory_space<vmem>>, vector<1x1x128x1xf32>
    %132 = vector.shape_cast %131 : vector<1x1x128x1xf32> to vector<128x1xf32>
    %133 = vector.broadcast %132 : vector<128x1xf32> to vector<128x22xf32>
    %134 = arith.addf %130, %133 : vector<128x22xf32>
    %c0_92 = arith.constant 0 : index
    %c1_93 = arith.constant 1 : index
    %c0_94 = arith.constant 0 : index
    %c0_95 = arith.constant 0 : index
    %135 = vector.load %arg13[%c0_92, %c1_93, %c0_94, %c0_95] : memref<1x2x1x1xf32, #tpu.memory_space<vmem>>, vector<1x1x1x1xf32>
    %136 = vector.shape_cast %135 : vector<1x1x1x1xf32> to vector<1x1xf32>
    %cst_96 = arith.constant 0.000000e+00 : f32
    %137 = vector.broadcast %cst_96 : f32 to vector<128x22xf32>
    %138 = arith.cmpf oge, %134, %137 : vector<128x22xf32>
    %139 = vector.broadcast %136 : vector<1x1xf32> to vector<128x22xf32>
    %140 = arith.mulf %139, %134 : vector<128x22xf32>
    %141 = arith.select %138, %134, %140 : vector<128x22xi1>, vector<128x22xf32>
    %c0_97 = arith.constant 0 : index
    %c1_98 = arith.constant 1 : index
    %c0_99 = arith.constant 0 : index
    %c0_100 = arith.constant 0 : index
    %142 = vector.load %arg11[%c0_97, %c1_98, %c0_99, %c0_100] : memref<1x2x128x1xf32, #tpu.memory_space<vmem>>, vector<1x1x128x1xf32>
    %143 = vector.shape_cast %142 : vector<1x1x128x1xf32> to vector<128x1xf32>
    %c0_101 = arith.constant 0 : index
    %c1_102 = arith.constant 1 : index
    %c0_103 = arith.constant 0 : index
    %c0_104 = arith.constant 0 : index
    %144 = vector.load %arg12[%c0_101, %c1_102, %c0_103, %c0_104] : memref<1x2x128x1xf32, #tpu.memory_space<vmem>>, vector<1x1x128x1xf32>
    %145 = vector.shape_cast %144 : vector<1x1x128x1xf32> to vector<128x1xf32>
    %146 = vector.shape_cast %141 : vector<128x22xf32> to vector<1x128x22xf32>
    %cst_105 = arith.constant dense<0.000000e+00> : vector<1xf32>
    %147 = vector.multi_reduction <add>, %146, %cst_105 [1, 2] : vector<1x128x22xf32> to vector<1xf32>
    %148 = vector.shape_cast %147 : vector<1xf32> to vector<1x1x1xf32>
    %149 = vector.extract %148[0, 0, 0] : f32 from vector<1x1x1xf32>
    %cst_106 = arith.constant 2.816000e+03 : f32
    %150 = arith.divf %149, %cst_106 : f32
    %151 = vector.broadcast %150 : f32 to vector<128x22xf32>
    %152 = arith.subf %141, %151 : vector<128x22xf32>
    %153 = arith.mulf %152, %152 : vector<128x22xf32>
    %154 = vector.shape_cast %153 : vector<128x22xf32> to vector<1x128x22xf32>
    %cst_107 = arith.constant dense<0.000000e+00> : vector<1xf32>
    %155 = vector.multi_reduction <add>, %154, %cst_107 [1, 2] : vector<1x128x22xf32> to vector<1xf32>
    %156 = vector.shape_cast %155 : vector<1xf32> to vector<1x1x1xf32>
    %157 = vector.extract %156[0, 0, 0] : f32 from vector<1x1x1xf32>
    %cst_108 = arith.constant 2.816000e+03 : f32
    %158 = arith.divf %157, %cst_108 : f32
    %159 = vector.broadcast %150 : f32 to vector<128x22xf32>
    %160 = arith.subf %141, %159 : vector<128x22xf32>
    %cst_109 = arith.constant 9.99999993E-9 : f32
    %161 = arith.addf %158, %cst_109 : f32
    %162 = math.rsqrt %161 : f32
    %163 = vector.broadcast %162 : f32 to vector<128x22xf32>
    %164 = arith.mulf %160, %163 : vector<128x22xf32>
    %165 = vector.broadcast %143 : vector<128x1xf32> to vector<128x22xf32>
    %166 = arith.mulf %164, %165 : vector<128x22xf32>
    %167 = vector.broadcast %145 : vector<128x1xf32> to vector<128x22xf32>
    %168 = arith.addf %166, %167 : vector<128x22xf32>
    %c0_110 = arith.constant 0 : index
    %c1_111 = arith.constant 1 : index
    %c0_112 = arith.constant 0 : index
    %c0_113 = arith.constant 0 : index
    %169 = vector.load %arg14[%c0_110, %c1_111, %c0_112, %c0_113] : memref<1x2x128x3xf32, #tpu.memory_space<vmem>>, vector<1x1x128x3xf32>
    %170 = vector.shape_cast %169 : vector<1x1x128x3xf32> to vector<128x3xf32>
    %171 = vector.extract_strided_slice %170 {offsets = [0, 0], sizes = [128, 1], strides = [1, 1]} : vector<128x3xf32> to vector<128x1xf32>
    %c2_i32 = arith.constant 2 : i32
    %172 = tpu.dynamic_rotate %168 by %c2_i32 dim 1 : vector<128x22xf32>, i32 -> vector<128x22xf32>
    %173 = tpu.iota {dimensions = array<i32: 1>} : vector<128x22xi32>
    %c2_i32_114 = arith.constant 2 : i32
    %174 = vector.broadcast %c2_i32_114 : i32 to vector<128x22xi32>
    %175 = arith.cmpi sge, %173, %174 : vector<128x22xi32>
    %cst_115 = arith.constant 0.000000e+00 : f32
    %176 = vector.broadcast %cst_115 : f32 to vector<128x22xf32>
    %177 = arith.select %175, %172, %176 : vector<128x22xi1>, vector<128x22xf32>
    %178 = vector.broadcast %171 : vector<128x1xf32> to vector<128x22xf32>
    %179 = arith.mulf %178, %177 : vector<128x22xf32>
    %180 = vector.extract_strided_slice %170 {offsets = [0, 1], sizes = [128, 1], strides = [1, 1]} : vector<128x3xf32> to vector<128x1xf32>
    %181 = vector.broadcast %180 : vector<128x1xf32> to vector<128x22xf32>
    %182 = arith.mulf %181, %168 : vector<128x22xf32>
    %183 = arith.addf %179, %182 : vector<128x22xf32>
    %184 = vector.extract_strided_slice %170 {offsets = [0, 2], sizes = [128, 1], strides = [1, 1]} : vector<128x3xf32> to vector<128x1xf32>
    %c20_i32 = arith.constant 20 : i32
    %185 = tpu.dynamic_rotate %168 by %c20_i32 dim 1 : vector<128x22xf32>, i32 -> vector<128x22xf32>
    %186 = tpu.iota {dimensions = array<i32: 1>} : vector<128x22xi32>
    %c20_i32_116 = arith.constant 20 : i32
    %187 = vector.broadcast %c20_i32_116 : i32 to vector<128x22xi32>
    %188 = arith.cmpi slt, %186, %187 : vector<128x22xi32>
    %cst_117 = arith.constant 0.000000e+00 : f32
    %189 = vector.broadcast %cst_117 : f32 to vector<128x22xf32>
    %190 = arith.select %188, %185, %189 : vector<128x22xi1>, vector<128x22xf32>
    %191 = vector.broadcast %184 : vector<128x1xf32> to vector<128x22xf32>
    %192 = arith.mulf %191, %190 : vector<128x22xf32>
    %193 = arith.addf %183, %192 : vector<128x22xf32>
    %c0_118 = arith.constant 0 : index
    %c1_119 = arith.constant 1 : index
    %c0_120 = arith.constant 0 : index
    %c0_121 = arith.constant 0 : index
    %194 = vector.load %arg15[%c0_118, %c1_119, %c0_120, %c0_121] : memref<1x2x128x1xf32, #tpu.memory_space<vmem>>, vector<1x1x128x1xf32>
    %195 = vector.shape_cast %194 : vector<1x1x128x1xf32> to vector<128x1xf32>
    %196 = vector.broadcast %195 : vector<128x1xf32> to vector<128x22xf32>
    %197 = arith.addf %193, %196 : vector<128x22xf32>
    %c0_122 = arith.constant 0 : index
    %c1_123 = arith.constant 1 : index
    %c0_124 = arith.constant 0 : index
    %c0_125 = arith.constant 0 : index
    %198 = vector.load %arg18[%c0_122, %c1_123, %c0_124, %c0_125] : memref<1x2x1x1xf32, #tpu.memory_space<vmem>>, vector<1x1x1x1xf32>
    %199 = vector.shape_cast %198 : vector<1x1x1x1xf32> to vector<1x1xf32>
    %cst_126 = arith.constant 0.000000e+00 : f32
    %200 = vector.broadcast %cst_126 : f32 to vector<128x22xf32>
    %201 = arith.cmpf oge, %197, %200 : vector<128x22xf32>
    %202 = vector.broadcast %199 : vector<1x1xf32> to vector<128x22xf32>
    %203 = arith.mulf %202, %197 : vector<128x22xf32>
    %204 = arith.select %201, %197, %203 : vector<128x22xi1>, vector<128x22xf32>
    %c0_127 = arith.constant 0 : index
    %c1_128 = arith.constant 1 : index
    %c0_129 = arith.constant 0 : index
    %c0_130 = arith.constant 0 : index
    %205 = vector.load %arg16[%c0_127, %c1_128, %c0_129, %c0_130] : memref<1x2x128x1xf32, #tpu.memory_space<vmem>>, vector<1x1x128x1xf32>
    %206 = vector.shape_cast %205 : vector<1x1x128x1xf32> to vector<128x1xf32>
    %c0_131 = arith.constant 0 : index
    %c1_132 = arith.constant 1 : index
    %c0_133 = arith.constant 0 : index
    %c0_134 = arith.constant 0 : index
    %207 = vector.load %arg17[%c0_131, %c1_132, %c0_133, %c0_134] : memref<1x2x128x1xf32, #tpu.memory_space<vmem>>, vector<1x1x128x1xf32>
    %208 = vector.shape_cast %207 : vector<1x1x128x1xf32> to vector<128x1xf32>
    %209 = vector.shape_cast %204 : vector<128x22xf32> to vector<1x128x22xf32>
    %cst_135 = arith.constant dense<0.000000e+00> : vector<1xf32>
    %210 = vector.multi_reduction <add>, %209, %cst_135 [1, 2] : vector<1x128x22xf32> to vector<1xf32>
    %211 = vector.shape_cast %210 : vector<1xf32> to vector<1x1x1xf32>
    %212 = vector.extract %211[0, 0, 0] : f32 from vector<1x1x1xf32>
    %cst_136 = arith.constant 2.816000e+03 : f32
    %213 = arith.divf %212, %cst_136 : f32
    %214 = vector.broadcast %213 : f32 to vector<128x22xf32>
    %215 = arith.subf %204, %214 : vector<128x22xf32>
    %216 = arith.mulf %215, %215 : vector<128x22xf32>
    %217 = vector.shape_cast %216 : vector<128x22xf32> to vector<1x128x22xf32>
    %cst_137 = arith.constant dense<0.000000e+00> : vector<1xf32>
    %218 = vector.multi_reduction <add>, %217, %cst_137 [1, 2] : vector<1x128x22xf32> to vector<1xf32>
    %219 = vector.shape_cast %218 : vector<1xf32> to vector<1x1x1xf32>
    %220 = vector.extract %219[0, 0, 0] : f32 from vector<1x1x1xf32>
    %cst_138 = arith.constant 2.816000e+03 : f32
    %221 = arith.divf %220, %cst_138 : f32
    %222 = vector.broadcast %213 : f32 to vector<128x22xf32>
    %223 = arith.subf %204, %222 : vector<128x22xf32>
    %cst_139 = arith.constant 9.99999993E-9 : f32
    %224 = arith.addf %221, %cst_139 : f32
    %225 = math.rsqrt %224 : f32
    %226 = vector.broadcast %225 : f32 to vector<128x22xf32>
    %227 = arith.mulf %223, %226 : vector<128x22xf32>
    %228 = vector.broadcast %206 : vector<128x1xf32> to vector<128x22xf32>
    %229 = arith.mulf %227, %228 : vector<128x22xf32>
    %230 = vector.broadcast %208 : vector<128x1xf32> to vector<128x22xf32>
    %231 = arith.addf %229, %230 : vector<128x22xf32>
    %c0_140 = arith.constant 0 : index
    %c1_141 = arith.constant 1 : index
    %c0_142 = arith.constant 0 : index
    %c0_143 = arith.constant 0 : index
    %232 = vector.load %arg19[%c0_140, %c1_141, %c0_142, %c0_143] : memref<1x2x32x128xf32, #tpu.memory_space<vmem>>, vector<1x1x32x128xf32>
    %233 = vector.shape_cast %232 : vector<1x1x32x128xf32> to vector<32x128xf32>
    %cst_144 = arith.constant dense<0.000000e+00> : vector<32x22xf32>
    %234 = tpu.matmul %233, %231, %cst_144 {dimension_numbers = #tpu.dot_dimension_numbers<[1], [0], [0], [1], [0, 0, 1, 1], [], []>} : vector<32x128xf32>, vector<128x22xf32>, vector<32x22xf32> -> vector<32x22xf32>
    %c0_145 = arith.constant 0 : index
    %c1_146 = arith.constant 1 : index
    %c0_147 = arith.constant 0 : index
    %c0_148 = arith.constant 0 : index
    %235 = vector.load %arg20[%c0_145, %c1_146, %c0_147, %c0_148] : memref<1x2x32x1xf32, #tpu.memory_space<vmem>>, vector<1x1x32x1xf32>
    %236 = vector.shape_cast %235 : vector<1x1x32x1xf32> to vector<32x1xf32>
    %237 = vector.broadcast %236 : vector<32x1xf32> to vector<32x22xf32>
    %238 = arith.addf %234, %237 : vector<32x22xf32>
    %239 = arith.addf %127, %238 : vector<32x22xf32>
    %c0_149 = arith.constant 0 : index
    %c0_150 = arith.constant 0 : index
    %240 = vector.load %arg29[%c0_149, %c0_150] : memref<32x22xf32, #tpu.memory_space<vmem>>, vector<32x22xf32>
    tpu.vector_store %arg29[%c0_149, %c0_150], %239 {strides = array<i32>} : memref<32x22xf32, #tpu.memory_space<vmem>>, vector<32x22xf32>,
    %c0_151 = arith.constant 0 : index
    %c0_152 = arith.constant 0 : index
    %241 = vector.load %arg30[%c0_151, %c0_152] : memref<32x22xf32, #tpu.memory_space<vmem>>, vector<32x22xf32>
    %c0_153 = arith.constant 0 : index
    %c1_154 = arith.constant 1 : index
    %c0_155 = arith.constant 0 : index
    %c0_156 = arith.constant 0 : index
    %242 = vector.load %arg21[%c0_153, %c1_154, %c0_155, %c0_156] : memref<1x2x32x128xf32, #tpu.memory_space<vmem>>, vector<1x1x32x128xf32>
    %243 = vector.shape_cast %242 : vector<1x1x32x128xf32> to vector<32x128xf32>
    %cst_157 = arith.constant dense<0.000000e+00> : vector<32x22xf32>
    %244 = tpu.matmul %243, %231, %cst_157 {dimension_numbers = #tpu.dot_dimension_numbers<[1], [0], [0], [1], [0, 0, 1, 1], [], []>} : vector<32x128xf32>, vector<128x22xf32>, vector<32x22xf32> -> vector<32x22xf32>
    %c0_158 = arith.constant 0 : index
    %c1_159 = arith.constant 1 : index
    %c0_160 = arith.constant 0 : index
    %c0_161 = arith.constant 0 : index
    %245 = vector.load %arg22[%c0_158, %c1_159, %c0_160, %c0_161] : memref<1x2x32x1xf32, #tpu.memory_space<vmem>>, vector<1x1x32x1xf32>
    %246 = vector.shape_cast %245 : vector<1x1x32x1xf32> to vector<32x1xf32>
    %247 = vector.broadcast %246 : vector<32x1xf32> to vector<32x22xf32>
    %248 = arith.addf %244, %247 : vector<32x22xf32>
    %249 = arith.addf %241, %248 : vector<32x22xf32>
    %c0_162 = arith.constant 0 : index
    %c0_163 = arith.constant 0 : index
    %250 = vector.load %arg30[%c0_162, %c0_163] : memref<32x22xf32, #tpu.memory_space<vmem>>, vector<32x22xf32>
    tpu.vector_store %arg30[%c0_162, %c0_163], %249 {strides = array<i32>} : memref<32x22xf32, #tpu.memory_space<vmem>>, vector<32x22xf32>,
    %c0_i32_164 = arith.constant 0 : i32
    %251 = arith.cmpi eq, %arg1, %c0_i32_164 : i32
    %252 = arith.extui %251 : i1 to i32
    %c0_i32_165 = arith.constant 0 : i32
    %253 = arith.cmpi ne, %252, %c0_i32_165 : i32
    scf.if %253 {
      %c0_166 = arith.constant 0 : index
      %c0_167 = arith.constant 0 : index
      %254 = vector.load %arg30[%c0_166, %c0_167] : memref<32x22xf32, #tpu.memory_space<vmem>>, vector<32x22xf32>
      %c0_168 = arith.constant 0 : index
      %c0_169 = arith.constant 0 : index
      %255 = vector.load %arg25[%c0_168, %c0_169] : memref<1x1xf32, #tpu.memory_space<vmem>>, vector<1x1xf32>
      %cst_170 = arith.constant 0.000000e+00 : f32
      %256 = vector.broadcast %cst_170 : f32 to vector<32x22xf32>
      %257 = arith.cmpf oge, %254, %256 : vector<32x22xf32>
      %258 = vector.broadcast %255 : vector<1x1xf32> to vector<32x22xf32>
      %259 = arith.mulf %258, %254 : vector<32x22xf32>
      %260 = arith.select %257, %254, %259 : vector<32x22xi1>, vector<32x22xf32>
      %c0_171 = arith.constant 0 : index
      %c0_172 = arith.constant 0 : index
      %261 = vector.load %arg23[%c0_171, %c0_172] : memref<128x32xf32, #tpu.memory_space<vmem>>, vector<128x32xf32>
      %cst_173 = arith.constant dense<0.000000e+00> : vector<128x22xf32>
      %262 = tpu.matmul %261, %260, %cst_173 {dimension_numbers = #tpu.dot_dimension_numbers<[1], [0], [0], [1], [0, 0, 1, 1], [], []>} : vector<128x32xf32>, vector<32x22xf32>, vector<128x22xf32> -> vector<128x22xf32>
      %c0_174 = arith.constant 0 : index
      %c0_175 = arith.constant 0 : index
      %263 = vector.load %arg24[%c0_174, %c0_175] : memref<128x1xf32, #tpu.memory_space<vmem>>, vector<128x1xf32>
      %264 = vector.broadcast %263 : vector<128x1xf32> to vector<128x22xf32>
      %265 = arith.addf %262, %264 : vector<128x22xf32>
      %266 = arith.negf %265 : vector<128x22xf32>
      %267 = math.exp %266 : vector<128x22xf32>
      %cst_176 = arith.constant 1.000000e+00 : f32
      %268 = vector.broadcast %cst_176 : f32 to vector<128x22xf32>
      %269 = arith.addf %268, %267 : vector<128x22xf32>
      %270 = arith.divf %268, %269 : vector<128x22xf32>
      %c0_177 = arith.constant 0 : index
      %c0_178 = arith.constant 0 : index
      %271 = vector.load %arg28[%c0_177, %c0_178] : memref<64x22xf32, #tpu.memory_space<vmem>>, vector<64x22xf32>
      %cst_179 = arith.constant 0.000000e+00 : f32
      %272 = vector.broadcast %cst_179 : f32 to vector<8x1xf32>
      %273 = vector.extract_strided_slice %270 {offsets = [0, 0], sizes = [64, 22], strides = [1, 1]} : vector<128x22xf32> to vector<64x22xf32>
      %274 = arith.mulf %271, %273 : vector<64x22xf32>
      %c0_180 = arith.constant 0 : index
      %c0_181 = arith.constant 0 : index
      %275 = vector.load %arg26[%c0_180, %c0_181] : memref<16x64xf32, #tpu.memory_space<vmem>>, vector<16x64xf32>
      %cst_182 = arith.constant dense<0.000000e+00> : vector<16x22xf32>
      %276 = tpu.matmul %275, %274, %cst_182 {dimension_numbers = #tpu.dot_dimension_numbers<[1], [0], [0], [1], [0, 0, 1, 1], [], []>} : vector<16x64xf32>, vector<64x22xf32>, vector<16x22xf32> -> vector<16x22xf32>
      %277 = vector.extract_strided_slice %276 {offsets = [0, 0], sizes = [8, 22], strides = [1, 1]} : vector<16x22xf32> to vector<8x22xf32>
      %278 = vector.extract_strided_slice %276 {offsets = [8, 0], sizes = [8, 22], strides = [1, 1]} : vector<16x22xf32> to vector<8x22xf32>
      %279 = tpu.concatenate %277, %272 in 1 : vector<8x22xf32>, vector<8x1xf32> -> vector<8x23xf32>
      %280 = tpu.concatenate %272, %278 in 1 : vector<8x1xf32>, vector<8x22xf32> -> vector<8x23xf32>
      %281 = arith.addf %279, %280 : vector<8x23xf32>
      %c0_183 = arith.constant 0 : index
      %c0_184 = arith.constant 0 : index
      %c0_185 = arith.constant 0 : index
      %282 = vector.load %arg27[%c0_183, %c0_184, %c0_185] : memref<1x16x23xf32, #tpu.memory_space<vmem>>, vector<1x8x23xf32>
      %283 = vector.shape_cast %282 : vector<1x8x23xf32> to vector<8x23xf32>
      %284 = vector.shape_cast %281 : vector<8x23xf32> to vector<1x8x23xf32>
      tpu.vector_store %arg27[%c0_183, %c0_184, %c0_185], %284 {strides = array<i32>} : memref<1x16x23xf32, #tpu.memory_space<vmem>>, vector<1x8x23xf32>,
      %285 = vector.extract_strided_slice %270 {offsets = [64, 0], sizes = [64, 22], strides = [1, 1]} : vector<128x22xf32> to vector<64x22xf32>
      %286 = arith.mulf %271, %285 : vector<64x22xf32>
      %c0_186 = arith.constant 0 : index
      %c0_187 = arith.constant 0 : index
      %287 = vector.load %arg26[%c0_186, %c0_187] : memref<16x64xf32, #tpu.memory_space<vmem>>, vector<16x64xf32>
      %cst_188 = arith.constant dense<0.000000e+00> : vector<16x22xf32>
      %288 = tpu.matmul %287, %286, %cst_188 {dimension_numbers = #tpu.dot_dimension_numbers<[1], [0], [0], [1], [0, 0, 1, 1], [], []>} : vector<16x64xf32>, vector<64x22xf32>, vector<16x22xf32> -> vector<16x22xf32>
      %289 = vector.extract_strided_slice %288 {offsets = [0, 0], sizes = [8, 22], strides = [1, 1]} : vector<16x22xf32> to vector<8x22xf32>
      %290 = vector.extract_strided_slice %288 {offsets = [8, 0], sizes = [8, 22], strides = [1, 1]} : vector<16x22xf32> to vector<8x22xf32>
      %291 = tpu.concatenate %289, %272 in 1 : vector<8x22xf32>, vector<8x1xf32> -> vector<8x23xf32>
      %292 = tpu.concatenate %272, %290 in 1 : vector<8x1xf32>, vector<8x22xf32> -> vector<8x23xf32>
      %293 = arith.addf %291, %292 : vector<8x23xf32>
      %c0_189 = arith.constant 0 : index
      %c8 = arith.constant 8 : index
      %c0_190 = arith.constant 0 : index
      %294 = vector.load %arg27[%c0_189, %c8, %c0_190] : memref<1x16x23xf32, #tpu.memory_space<vmem>>, vector<1x8x23xf32>
      %295 = vector.shape_cast %294 : vector<1x8x23xf32> to vector<8x23xf32>
      %296 = vector.shape_cast %293 : vector<8x23xf32> to vector<1x8x23xf32>
      tpu.vector_store %arg27[%c0_189, %c8, %c0_190], %296 {strides = array<i32>} : memref<1x16x23xf32, #tpu.memory_space<vmem>>, vector<1x8x23xf32>,
    } else {
    }
    return
  }
  func.func @transform_0(%arg0: i32, %arg1: i32) -> (i32, i32, i32) {
    %c0_i32 = arith.constant 0 : i32
    %c0_i32_0 = arith.constant 0 : i32
    %c0_i32_1 = arith.constant 0 : i32
    return %arg0, %c0_i32, %c0_i32_0 : i32, i32, i32
  }
  func.func @transform_1(%arg0: i32, %arg1: i32) -> (i32, i32) {
    %c0_i32 = arith.constant 0 : i32
    %c0_i32_0 = arith.constant 0 : i32
    %c0_i32_1 = arith.constant 0 : i32
    return %c0_i32, %c0_i32_0 : i32, i32
  }
  func.func @transform_2(%arg0: i32, %arg1: i32) -> (i32, i32) {
    %c0_i32 = arith.constant 0 : i32
    %c0_i32_0 = arith.constant 0 : i32
    %c0_i32_1 = arith.constant 0 : i32
    return %c0_i32, %c0_i32_0 : i32, i32
  }
  func.func @transform_3(%arg0: i32, %arg1: i32) -> (i32, i32) {
    %c0_i32 = arith.constant 0 : i32
    %c0_i32_0 = arith.constant 0 : i32
    %c0_i32_1 = arith.constant 0 : i32
    return %c0_i32, %c0_i32_0 : i32, i32
  }
  func.func @transform_4(%arg0: i32, %arg1: i32) -> (i32, i32) {
    %c0_i32 = arith.constant 0 : i32
    %c0_i32_0 = arith.constant 0 : i32
    %c0_i32_1 = arith.constant 0 : i32
    return %c0_i32, %c0_i32_0 : i32, i32
  }
  func.func @transform_5(%arg0: i32, %arg1: i32) -> (i32, i32) {
    %c0_i32 = arith.constant 0 : i32
    %c0_i32_0 = arith.constant 0 : i32
    %c0_i32_1 = arith.constant 0 : i32
    return %c0_i32, %c0_i32_0 : i32, i32
  }
  func.func @transform_6(%arg0: i32, %arg1: i32) -> (i32, i32) {
    %c0_i32 = arith.constant 0 : i32
    %c0_i32_0 = arith.constant 0 : i32
    %c0_i32_1 = arith.constant 0 : i32
    return %c0_i32, %c0_i32_0 : i32, i32
  }
  func.func @transform_7(%arg0: i32, %arg1: i32) -> (i32, i32, i32, i32) {
    %c0_i32 = arith.constant 0 : i32
    %c0_i32_0 = arith.constant 0 : i32
    %c0_i32_1 = arith.constant 0 : i32
    %c0_i32_2 = arith.constant 0 : i32
    return %arg1, %c0_i32, %c0_i32_0, %c0_i32_1 : i32, i32, i32, i32
  }
  func.func @transform_8(%arg0: i32, %arg1: i32) -> (i32, i32, i32, i32) {
    %c0_i32 = arith.constant 0 : i32
    %c0_i32_0 = arith.constant 0 : i32
    %c0_i32_1 = arith.constant 0 : i32
    %c0_i32_2 = arith.constant 0 : i32
    return %arg1, %c0_i32, %c0_i32_0, %c0_i32_1 : i32, i32, i32, i32
  }
  func.func @transform_9(%arg0: i32, %arg1: i32) -> (i32, i32, i32, i32) {
    %c0_i32 = arith.constant 0 : i32
    %c0_i32_0 = arith.constant 0 : i32
    %c0_i32_1 = arith.constant 0 : i32
    %c0_i32_2 = arith.constant 0 : i32
    return %arg1, %c0_i32, %c0_i32_0, %c0_i32_1 : i32, i32, i32, i32
  }
  func.func @transform_10(%arg0: i32, %arg1: i32) -> (i32, i32, i32, i32) {
    %c0_i32 = arith.constant 0 : i32
    %c0_i32_0 = arith.constant 0 : i32
    %c0_i32_1 = arith.constant 0 : i32
    %c0_i32_2 = arith.constant 0 : i32
    return %arg1, %c0_i32, %c0_i32_0, %c0_i32_1 : i32, i32, i32, i32
  }
  func.func @transform_11(%arg0: i32, %arg1: i32) -> (i32, i32, i32, i32) {
    %c0_i32 = arith.constant 0 : i32
    %c0_i32_0 = arith.constant 0 : i32
    %c0_i32_1 = arith.constant 0 : i32
    %c0_i32_2 = arith.constant 0 : i32
    return %arg1, %c0_i32, %c0_i32_0, %c0_i32_1 : i32, i32, i32, i32
  }
  func.func @transform_12(%arg0: i32, %arg1: i32) -> (i32, i32, i32, i32) {
    %c0_i32 = arith.constant 0 : i32
    %c0_i32_0 = arith.constant 0 : i32
    %c0_i32_1 = arith.constant 0 : i32
    %c0_i32_2 = arith.constant 0 : i32
    return %arg1, %c0_i32, %c0_i32_0, %c0_i32_1 : i32, i32, i32, i32
  }
  func.func @transform_13(%arg0: i32, %arg1: i32) -> (i32, i32, i32, i32) {
    %c0_i32 = arith.constant 0 : i32
    %c0_i32_0 = arith.constant 0 : i32
    %c0_i32_1 = arith.constant 0 : i32
    %c0_i32_2 = arith.constant 0 : i32
    return %arg1, %c0_i32, %c0_i32_0, %c0_i32_1 : i32, i32, i32, i32
  }
  func.func @transform_14(%arg0: i32, %arg1: i32) -> (i32, i32, i32, i32) {
    %c0_i32 = arith.constant 0 : i32
    %c0_i32_0 = arith.constant 0 : i32
    %c0_i32_1 = arith.constant 0 : i32
    %c0_i32_2 = arith.constant 0 : i32
    return %arg1, %c0_i32, %c0_i32_0, %c0_i32_1 : i32, i32, i32, i32
  }
  func.func @transform_15(%arg0: i32, %arg1: i32) -> (i32, i32, i32, i32) {
    %c0_i32 = arith.constant 0 : i32
    %c0_i32_0 = arith.constant 0 : i32
    %c0_i32_1 = arith.constant 0 : i32
    %c0_i32_2 = arith.constant 0 : i32
    return %arg1, %c0_i32, %c0_i32_0, %c0_i32_1 : i32, i32, i32, i32
  }
  func.func @transform_16(%arg0: i32, %arg1: i32) -> (i32, i32, i32, i32) {
    %c0_i32 = arith.constant 0 : i32
    %c0_i32_0 = arith.constant 0 : i32
    %c0_i32_1 = arith.constant 0 : i32
    %c0_i32_2 = arith.constant 0 : i32
    return %arg1, %c0_i32, %c0_i32_0, %c0_i32_1 : i32, i32, i32, i32
  }
  func.func @transform_17(%arg0: i32, %arg1: i32) -> (i32, i32, i32, i32) {
    %c0_i32 = arith.constant 0 : i32
    %c0_i32_0 = arith.constant 0 : i32
    %c0_i32_1 = arith.constant 0 : i32
    %c0_i32_2 = arith.constant 0 : i32
    return %arg1, %c0_i32, %c0_i32_0, %c0_i32_1 : i32, i32, i32, i32
  }
  func.func @transform_18(%arg0: i32, %arg1: i32) -> (i32, i32, i32, i32) {
    %c0_i32 = arith.constant 0 : i32
    %c0_i32_0 = arith.constant 0 : i32
    %c0_i32_1 = arith.constant 0 : i32
    %c0_i32_2 = arith.constant 0 : i32
    return %arg1, %c0_i32, %c0_i32_0, %c0_i32_1 : i32, i32, i32, i32
  }
  func.func @transform_19(%arg0: i32, %arg1: i32) -> (i32, i32, i32, i32) {
    %c0_i32 = arith.constant 0 : i32
    %c0_i32_0 = arith.constant 0 : i32
    %c0_i32_1 = arith.constant 0 : i32
    %c0_i32_2 = arith.constant 0 : i32
    return %arg1, %c0_i32, %c0_i32_0, %c0_i32_1 : i32, i32, i32, i32
  }
  func.func @transform_20(%arg0: i32, %arg1: i32) -> (i32, i32, i32, i32) {
    %c0_i32 = arith.constant 0 : i32
    %c0_i32_0 = arith.constant 0 : i32
    %c0_i32_1 = arith.constant 0 : i32
    %c0_i32_2 = arith.constant 0 : i32
    return %arg1, %c0_i32, %c0_i32_0, %c0_i32_1 : i32, i32, i32, i32
  }
  func.func @transform_21(%arg0: i32, %arg1: i32) -> (i32, i32) {
    %c0_i32 = arith.constant 0 : i32
    %c0_i32_0 = arith.constant 0 : i32
    %c0_i32_1 = arith.constant 0 : i32
    return %c0_i32, %c0_i32_0 : i32, i32
  }
  func.func @transform_22(%arg0: i32, %arg1: i32) -> (i32, i32) {
    %c0_i32 = arith.constant 0 : i32
    %c0_i32_0 = arith.constant 0 : i32
    %c0_i32_1 = arith.constant 0 : i32
    return %c0_i32, %c0_i32_0 : i32, i32
  }
  func.func @transform_23(%arg0: i32, %arg1: i32) -> (i32, i32) {
    %c0_i32 = arith.constant 0 : i32
    %c0_i32_0 = arith.constant 0 : i32
    %c0_i32_1 = arith.constant 0 : i32
    return %c0_i32, %c0_i32_0 : i32, i32
  }
  func.func @transform_24(%arg0: i32, %arg1: i32) -> (i32, i32) {
    %c0_i32 = arith.constant 0 : i32
    %c0_i32_0 = arith.constant 0 : i32
    %c0_i32_1 = arith.constant 0 : i32
    return %c0_i32, %c0_i32_0 : i32, i32
  }
  func.func @transform_25(%arg0: i32, %arg1: i32) -> (i32, i32, i32) {
    %c0_i32 = arith.constant 0 : i32
    %c0_i32_0 = arith.constant 0 : i32
    %c0_i32_1 = arith.constant 0 : i32
    return %arg0, %c0_i32, %c0_i32_0 : i32, i32, i32
  }
}

</mosaic_0001>

<llo_original>
// kernel: tpu_custom_call.1
$region0: #{tpu_custom_call.1}
  #allocation0 [shape = 'u32[]', space=smem, size = 0x4, offset = 0x4, fixed_abs, tag = 'smem constant byte address 0x4 - core index']
  #allocation1 [shape = 'u32[144,128]{1,0:T(1,128)}', space=vmem, size = 0x12000, scoped, tag = 'internal scratch']
  #allocation2 [shape = 'f32[64,22]{1,0:T(8,128)}', space=vmem, size = 0x8000, scoped, tag = 'scratch operand']
  #allocation3 [shape = 'f32[32,22]{1,0:T(8,128)}', space=vmem, size = 0x4000, scoped, tag = 'scratch operand']
  #allocation4 [shape = 'f32[32,22]{1,0:T(8,128)}', space=vmem, size = 0x4000, scoped, tag = 'scratch operand']
  #allocation5 [shape = 'f32[1,1]{1,0:T(1,128)S(1)}', space=vmem, size = 0x200, scoped, tag = 'scoped memory for tpu_custom_call.1']
  %s0 = inlined_call_operand.vmem [shape: f32[2,23,8], index: 0, kind: input, shape index: {}]
  %s1 = inlined_call_operand.vmem [shape: f32[64,8], index: 1, kind: input, shape index: {}]
  %s2 = inlined_call_operand.vmem [shape: f32[64,8], index: 2, kind: input, shape index: {}]
  %s3 = inlined_call_operand.vmem [shape: f32[64,1], index: 3, kind: input, shape index: {}]
  %s4 = inlined_call_operand.vmem [shape: f32[64,1], index: 4, kind: input, shape index: {}]
  %s5 = inlined_call_operand.vmem [shape: f32[32,64], index: 5, kind: input, shape index: {}]
  %s6 = inlined_call_operand.vmem [shape: f32[32,1], index: 6, kind: input, shape index: {}]
  %s7 = inlined_call_operand.vmem [shape: f32[1,2,128,32], index: 7, kind: input, shape index: {}]
  %s8 = inlined_call_operand.vmem [shape: f32[1,2,128,1], index: 8, kind: input, shape index: {}]
  %s9 = inlined_call_operand.vmem [shape: f32[1,2,128,1], index: 9, kind: input, shape index: {}]
  %s10 = inlined_call_operand.vmem [shape: f32[1,2,128,1], index: 10, kind: input, shape index: {}]
  %s11 = inlined_call_operand.vmem [shape: f32[1,2,1,1], index: 11, kind: input, shape index: {}]
  %s12 = inlined_call_operand.vmem [shape: f32[1,2,128,3], index: 12, kind: input, shape index: {}]
  %s13 = inlined_call_operand.vmem [shape: f32[1,2,128,1], index: 13, kind: input, shape index: {}]
  %s14 = inlined_call_operand.vmem [shape: f32[1,2,128,1], index: 14, kind: input, shape index: {}]
  %s15 = inlined_call_operand.vmem [shape: f32[1,2,128,1], index: 15, kind: input, shape index: {}]
  %s16 = inlined_call_operand.vmem [shape: f32[1,2,1,1], index: 16, kind: input, shape index: {}]
  %s17 = inlined_call_operand.vmem [shape: f32[1,2,32,128], index: 17, kind: input, shape index: {}]
  %s18 = inlined_call_operand.vmem [shape: f32[1,2,32,1], index: 18, kind: input, shape index: {}]
  %s19 = inlined_call_operand.vmem [shape: f32[1,2,32,128], index: 19, kind: input, shape index: {}]
  %s20 = inlined_call_operand.vmem [shape: f32[1,2,32,1], index: 20, kind: input, shape index: {}]
  %s21 = inlined_call_operand.vmem [shape: f32[128,32], index: 21, kind: input, shape index: {}]
  %s22 = inlined_call_operand.vmem [shape: f32[128,1], index: 22, kind: input, shape index: {}]
  %s23 = inlined_call_operand.<no memory space> [shape: f32[1,1], index: 23, kind: input, shape index: {}]
  %s24 = inlined_call_operand.vmem [shape: f32[16,64], index: 24, kind: input, shape index: {}]
  %s25 = inlined_call_operand.hbm [shape: f32[2,16,23], index: 25, kind: output, shape index: {}]
  %s26 = sld [smem:[#allocation0]]
  $region141: #{tpu_custom_call.1} parent=0
    _
  %s28 = ssub.s32 1, %s26
  %s29 = scalar_select 0, %s28, %s26
  %v30 = vstv %s23
  %31 = vst [vmem:[#allocation5] sm:$0x1] %v30
  $region1: #{tpu_custom_call.1} parent=0
    #allocation6 [shape = 'u8[16384]{0}', space=vmem, size = 0x4000, scoped, tag = 'output window, operand 0']
    #allocation7 [shape = 's32[2]{0}', space=sflag, size = 0x8, scoped, tag = 'scoped memory for tpu_custom_call.1']
    %32 = vsyncpa [#allocation7], 0
    %s33 = scalar_lea.sflag [#allocation7], 1
    %34 = vsyncpa %s33, 0
    loop: start=0, step=1, limit=4
    $region2: #{tpu_custom_call.1} parent=1 // loop_pre_header
      _
    $region3: #{tpu_custom_call.1} parent=1 // loop_header
      %s36 = sphi 0, %s40
      %p37 = scmp.ge.s32.totalorder %s36, 4
      %s43 = sphi 0, %s55
      %s44 = sphi 0, %s51
      %s45 = sphi 0, %s43
      %s46 = sphi 0, %s44
      %s47 = sphi 0, %s45
      %s48 = sphi 0, %s46
      %s58 = sphi 0, %s60
      %s61 = sphi 0, %s58
      %s62 = sphi 0, %s61
      %s78 = sphi 0, %s62
      %s82 = sphi 0, %s82
      %s84 = sphi 0, %s82
      %s85 = sphi 0, %s84
      %s99 = sphi 0, %s85
      %s103 = sphi 0, %s103
      %s105 = sphi 0, %s103
      %s106 = sphi 0, %s105
      %s120 = sphi 0, %s106
      %s124 = sphi 0, %s124
      %s126 = sphi 0, %s124
      %s127 = sphi 0, %s126
      %s141 = sphi 0, %s127
      %s145 = sphi 0, %s145
      %s147 = sphi 0, %s145
      %s148 = sphi 0, %s147
      %s162 = sphi 0, %s148
      %s166 = sphi 0, %s166
      %s168 = sphi 0, %s166
      %s169 = sphi 0, %s168
      %s183 = sphi 0, %s169
      %s187 = sphi 0, %s187
      %s189 = sphi 0, %s187
      %s190 = sphi 0, %s189
      %s204 = sphi 0, %s190
      %s210 = sphi 0, %s212
      %s213 = sphi 0, %s210
      %s214 = sphi 0, %s213
      %s230 = sphi 0, %s214
      %s236 = sphi 0, %s238
      %s239 = sphi 0, %s236
      %s240 = sphi 0, %s239
      %s256 = sphi 0, %s240
      %s262 = sphi 0, %s264
      %s265 = sphi 0, %s262
      %s266 = sphi 0, %s265
      %s282 = sphi 0, %s266
      %s288 = sphi 0, %s290
      %s291 = sphi 0, %s288
      %s292 = sphi 0, %s291
      %s308 = sphi 0, %s292
      %s314 = sphi 0, %s316
      %s317 = sphi 0, %s314
      %s318 = sphi 0, %s317
      %s334 = sphi 0, %s318
      %s340 = sphi 0, %s342
      %s343 = sphi 0, %s340
      %s344 = sphi 0, %s343
      %s360 = sphi 0, %s344
      %s366 = sphi 0, %s368
      %s369 = sphi 0, %s366
      %s370 = sphi 0, %s369
      %s386 = sphi 0, %s370
      %s392 = sphi 0, %s394
      %s395 = sphi 0, %s392
      %s396 = sphi 0, %s395
      %s412 = sphi 0, %s396
      %s418 = sphi 0, %s420
      %s421 = sphi 0, %s418
      %s422 = sphi 0, %s421
      %s438 = sphi 0, %s422
      %s444 = sphi 0, %s446
      %s447 = sphi 0, %s444
      %s448 = sphi 0, %s447
      %s464 = sphi 0, %s448
      %s470 = sphi 0, %s472
      %s473 = sphi 0, %s470
      %s474 = sphi 0, %s473
      %s490 = sphi 0, %s474
      %s496 = sphi 0, %s498
      %s499 = sphi 0, %s496
      %s500 = sphi 0, %s499
      %s516 = sphi 0, %s500
      %s522 = sphi 0, %s524
      %s525 = sphi 0, %s522
      %s526 = sphi 0, %s525
      %s542 = sphi 0, %s526
      %s548 = sphi 0, %s550
      %s551 = sphi 0, %s548
      %s552 = sphi 0, %s551
      %s568 = sphi 0, %s552
      %s572 = sphi 0, %s572
      %s574 = sphi 0, %s572
      %s575 = sphi 0, %s574
      %s589 = sphi 0, %s575
      %s593 = sphi 0, %s593
      %s595 = sphi 0, %s593
      %s596 = sphi 0, %s595
      %s610 = sphi 0, %s596
      %s614 = sphi 0, %s614
      %s616 = sphi 0, %s614
      %s617 = sphi 0, %s616
      %s631 = sphi 0, %s617
      %s635 = sphi 0, %s635
      %s637 = sphi 0, %s635
      %s638 = sphi 0, %s637
      %s652 = sphi 0, %s638
      %s658 = sphi 0, %s660
      %s661 = sphi 0, %s658
      %s662 = sphi 0, %s661
      %s678 = sphi 0, %s662
    $region4: #{tpu_custom_call.1} parent=1 // loop_header_branch
      %39 = sbr.rel (%p37) target = $region8
    $region5: #{tpu_custom_call.1} parent=1 // loop_body
      %s41 = ssub.s32 %s36, 1
      %s42 = ssub.s32 %s36, 2
      %s49 = sadd.s32 1, %s44
      %p50 = scmp.ge.s32.totalorder %s49, 1
      %s51 = scalar_select %p50, 0, %s49
      %s52 = sadd.s32 1, %s43
      %s53 = scalar_select %p50, %s52, %s43
      %p54 = scmp.ge.s32.totalorder %s53, 2
      %s55 = scalar_select %p54, 0, %s53
      %s56 = ssub.s32 %s43, %s55
      %p57 = scmp.eq.s32.totalorder %s56, 0
      %s59 = sadd.s32 %s58, 1
      %s60 = scalar_select %p57, %s58, %s59
      %p63 = pneg %p57
      %p64 = scmp.eq.s32.totalorder %s36, 1
      %p65 = por %p63, %p64
      %p66 = scmp.ne.s32.totalorder %s58, %s61
      %p67 = scmp.eq.s32.totalorder %s36, 0
      %p68 = por %p66, %p67
      %p69 = scmp.ne.s32.totalorder %s58, %s61
      %p70 = scmp.eq.s32.totalorder %s41, 1
      %p71 = por %p69, %p70
      %p72 = scmp.ne.s32.totalorder %s61, %s62
      %p73 = scmp.eq.s32.totalorder %s41, 0
      %p74 = por %p72, %p73
      %p75 = scmp.ne.s32.totalorder %s61, %s62
      %p76 = scmp.eq.s32.totalorder %s42, 1
      %p77 = por %p75, %p76
      %p79 = scmp.ne.s32.totalorder %s62, %s78
      %p80 = scmp.eq.s32.totalorder %s42, 0
      %p81 = por %p79, %p80
      %s83 = sadd.s32 %s82, 1
      %p86 = scmp.eq.s32.totalorder %s36, 1
      %p87 = scmp.ne.s32.totalorder %s82, %s84
      %p88 = scmp.eq.s32.totalorder %s36, 0
      %p89 = por %p87, %p88
      %p90 = scmp.ne.s32.totalorder %s82, %s84
      %p91 = scmp.eq.s32.totalorder %s41, 1
      %p92 = por %p90, %p91
      %p93 = scmp.ne.s32.totalorder %s84, %s85
      %p94 = scmp.eq.s32.totalorder %s41, 0
      %p95 = por %p93, %p94
      %p96 = scmp.ne.s32.totalorder %s84, %s85
      %p97 = scmp.eq.s32.totalorder %s42, 1
      %p98 = por %p96, %p97
      %p100 = scmp.ne.s32.totalorder %s85, %s99
      %p101 = scmp.eq.s32.totalorder %s42, 0
      %p102 = por %p100, %p101
      %s104 = sadd.s32 %s103, 1
      %p107 = scmp.eq.s32.totalorder %s36, 1
      %p108 = scmp.ne.s32.totalorder %s103, %s105
      %p109 = scmp.eq.s32.totalorder %s36, 0
      %p110 = por %p108, %p109
      %p111 = scmp.ne.s32.totalorder %s103, %s105
      %p112 = scmp.eq.s32.totalorder %s41, 1
      %p113 = por %p111, %p112
      %p114 = scmp.ne.s32.totalorder %s105, %s106
      %p115 = scmp.eq.s32.totalorder %s41, 0
      %p116 = por %p114, %p115
      %p117 = scmp.ne.s32.totalorder %s105, %s106
      %p118 = scmp.eq.s32.totalorder %s42, 1
      %p119 = por %p117, %p118
      %p121 = scmp.ne.s32.totalorder %s106, %s120
      %p122 = scmp.eq.s32.totalorder %s42, 0
      %p123 = por %p121, %p122
      %s125 = sadd.s32 %s124, 1
      %p128 = scmp.eq.s32.totalorder %s36, 1
      %p129 = scmp.ne.s32.totalorder %s124, %s126
      %p130 = scmp.eq.s32.totalorder %s36, 0
      %p131 = por %p129, %p130
      %p132 = scmp.ne.s32.totalorder %s124, %s126
      %p133 = scmp.eq.s32.totalorder %s41, 1
      %p134 = por %p132, %p133
      %p135 = scmp.ne.s32.totalorder %s126, %s127
      %p136 = scmp.eq.s32.totalorder %s41, 0
      %p137 = por %p135, %p136
      %p138 = scmp.ne.s32.totalorder %s126, %s127
      %p139 = scmp.eq.s32.totalorder %s42, 1
      %p140 = por %p138, %p139
      %p142 = scmp.ne.s32.totalorder %s127, %s141
      %p143 = scmp.eq.s32.totalorder %s42, 0
      %p144 = por %p142, %p143
      %s146 = sadd.s32 %s145, 1
      %p149 = scmp.eq.s32.totalorder %s36, 1
      %p150 = scmp.ne.s32.totalorder %s145, %s147
      %p151 = scmp.eq.s32.totalorder %s36, 0
      %p152 = por %p150, %p151
      %p153 = scmp.ne.s32.totalorder %s145, %s147
      %p154 = scmp.eq.s32.totalorder %s41, 1
      %p155 = por %p153, %p154
      %p156 = scmp.ne.s32.totalorder %s147, %s148
      %p157 = scmp.eq.s32.totalorder %s41, 0
      %p158 = por %p156, %p157
      %p159 = scmp.ne.s32.totalorder %s147, %s148
      %p160 = scmp.eq.s32.totalorder %s42, 1
      %p161 = por %p159, %p160
      %p163 = scmp.ne.s32.totalorder %s148, %s162
      %p164 = scmp.eq.s32.totalorder %s42, 0
      %p165 = por %p163, %p164
      %s167 = sadd.s32 %s166, 1
      %p170 = scmp.eq.s32.totalorder %s36, 1
      %p171 = scmp.ne.s32.totalorder %s166, %s168
      %p172 = scmp.eq.s32.totalorder %s36, 0
      %p173 = por %p171, %p172
      %p174 = scmp.ne.s32.totalorder %s166, %s168
      %p175 = scmp.eq.s32.totalorder %s41, 1
      %p176 = por %p174, %p175
      %p177 = scmp.ne.s32.totalorder %s168, %s169
      %p178 = scmp.eq.s32.totalorder %s41, 0
      %p179 = por %p177, %p178
      %p180 = scmp.ne.s32.totalorder %s168, %s169
      %p181 = scmp.eq.s32.totalorder %s42, 1
      %p182 = por %p180, %p181
      %p184 = scmp.ne.s32.totalorder %s169, %s183
      %p185 = scmp.eq.s32.totalorder %s42, 0
      %p186 = por %p184, %p185
      %s188 = sadd.s32 %s187, 1
      %p191 = scmp.eq.s32.totalorder %s36, 1
      %p192 = scmp.ne.s32.totalorder %s187, %s189
      %p193 = scmp.eq.s32.totalorder %s36, 0
      %p194 = por %p192, %p193
      %p195 = scmp.ne.s32.totalorder %s187, %s189
      %p196 = scmp.eq.s32.totalorder %s41, 1
      %p197 = por %p195, %p196
      %p198 = scmp.ne.s32.totalorder %s189, %s190
      %p199 = scmp.eq.s32.totalorder %s41, 0
      %p200 = por %p198, %p199
      %p201 = scmp.ne.s32.totalorder %s189, %s190
      %p202 = scmp.eq.s32.totalorder %s42, 1
      %p203 = por %p201, %p202
      %p205 = scmp.ne.s32.totalorder %s190, %s204
      %p206 = scmp.eq.s32.totalorder %s42, 0
      %p207 = por %p205, %p206
      %s208 = ssub.s32 %s44, %s51
      %p209 = scmp.eq.s32.totalorder %s208, 0
      %s211 = sadd.s32 %s210, 1
      %s212 = scalar_select %p209, %s210, %s211
      %p215 = pneg %p209
      %p216 = scmp.eq.s32.totalorder %s36, 1
      %p217 = por %p215, %p216
      %p218 = scmp.ne.s32.totalorder %s210, %s213
      %p219 = scmp.eq.s32.totalorder %s36, 0
      %p220 = por %p218, %p219
      %p221 = scmp.ne.s32.totalorder %s210, %s213
      %p222 = scmp.eq.s32.totalorder %s41, 1
      %p223 = por %p221, %p222
      %p224 = scmp.ne.s32.totalorder %s213, %s214
      %p225 = scmp.eq.s32.totalorder %s41, 0
      %p226 = por %p224, %p225
      %p227 = scmp.ne.s32.totalorder %s213, %s214
      %p228 = scmp.eq.s32.totalorder %s42, 1
      %p229 = por %p227, %p228
      %p231 = scmp.ne.s32.totalorder %s214, %s230
      %p232 = scmp.eq.s32.totalorder %s42, 0
      %p233 = por %p231, %p232
      %s234 = ssub.s32 %s44, %s51
      %p235 = scmp.eq.s32.totalorder %s234, 0
      %s237 = sadd.s32 %s236, 1
      %s238 = scalar_select %p235, %s236, %s237
      %p241 = pneg %p235
      %p242 = scmp.eq.s32.totalorder %s36, 1
      %p243 = por %p241, %p242
      %p244 = scmp.ne.s32.totalorder %s236, %s239
      %p245 = scmp.eq.s32.totalorder %s36, 0
      %p246 = por %p244, %p245
      %p247 = scmp.ne.s32.totalorder %s236, %s239
      %p248 = scmp.eq.s32.totalorder %s41, 1
      %p249 = por %p247, %p248
      %p250 = scmp.ne.s32.totalorder %s239, %s240
      %p251 = scmp.eq.s32.totalorder %s41, 0
      %p252 = por %p250, %p251
      %p253 = scmp.ne.s32.totalorder %s239, %s240
      %p254 = scmp.eq.s32.totalorder %s42, 1
      %p255 = por %p253, %p254
      %p257 = scmp.ne.s32.totalorder %s240, %s256
      %p258 = scmp.eq.s32.totalorder %s42, 0
      %p259 = por %p257, %p258
      %s260 = ssub.s32 %s44, %s51
      %p261 = scmp.eq.s32.totalorder %s260, 0
      %s263 = sadd.s32 %s262, 1
      %s264 = scalar_select %p261, %s262, %s263
      %p267 = pneg %p261
      %p268 = scmp.eq.s32.totalorder %s36, 1
      %p269 = por %p267, %p268
      %p270 = scmp.ne.s32.totalorder %s262, %s265
      %p271 = scmp.eq.s32.totalorder %s36, 0
      %p272 = por %p270, %p271
      %p273 = scmp.ne.s32.totalorder %s262, %s265
      %p274 = scmp.eq.s32.totalorder %s41, 1
      %p275 = por %p273, %p274
      %p276 = scmp.ne.s32.totalorder %s265, %s266
      %p277 = scmp.eq.s32.totalorder %s41, 0
      %p278 = por %p276, %p277
      %p279 = scmp.ne.s32.totalorder %s265, %s266
      %p280 = scmp.eq.s32.totalorder %s42, 1
      %p281 = por %p279, %p280
      %p283 = scmp.ne.s32.totalorder %s266, %s282
      %p284 = scmp.eq.s32.totalorder %s42, 0
      %p285 = por %p283, %p284
      %s286 = ssub.s32 %s44, %s51
      %p287 = scmp.eq.s32.totalorder %s286, 0
      %s289 = sadd.s32 %s288, 1
      %s290 = scalar_select %p287, %s288, %s289
      %p293 = pneg %p287
      %p294 = scmp.eq.s32.totalorder %s36, 1
      %p295 = por %p293, %p294
      %p296 = scmp.ne.s32.totalorder %s288, %s291
      %p297 = scmp.eq.s32.totalorder %s36, 0
      %p298 = por %p296, %p297
      %p299 = scmp.ne.s32.totalorder %s288, %s291
      %p300 = scmp.eq.s32.totalorder %s41, 1
      %p301 = por %p299, %p300
      %p302 = scmp.ne.s32.totalorder %s291, %s292
      %p303 = scmp.eq.s32.totalorder %s41, 0
      %p304 = por %p302, %p303
      %p305 = scmp.ne.s32.totalorder %s291, %s292
      %p306 = scmp.eq.s32.totalorder %s42, 1
      %p307 = por %p305, %p306
      %p309 = scmp.ne.s32.totalorder %s292, %s308
      %p310 = scmp.eq.s32.totalorder %s42, 0
      %p311 = por %p309, %p310
      %s312 = ssub.s32 %s44, %s51
      %p313 = scmp.eq.s32.totalorder %s312, 0
      %s315 = sadd.s32 %s314, 1
      %s316 = scalar_select %p313, %s314, %s315
      %p319 = pneg %p313
      %p320 = scmp.eq.s32.totalorder %s36, 1
      %p321 = por %p319, %p320
      %p322 = scmp.ne.s32.totalorder %s314, %s317
      %p323 = scmp.eq.s32.totalorder %s36, 0
      %p324 = por %p322, %p323
      %p325 = scmp.ne.s32.totalorder %s314, %s317
      %p326 = scmp.eq.s32.totalorder %s41, 1
      %p327 = por %p325, %p326
      %p328 = scmp.ne.s32.totalorder %s317, %s318
      %p329 = scmp.eq.s32.totalorder %s41, 0
      %p330 = por %p328, %p329
      %p331 = scmp.ne.s32.totalorder %s317, %s318
      %p332 = scmp.eq.s32.totalorder %s42, 1
      %p333 = por %p331, %p332
      %p335 = scmp.ne.s32.totalorder %s318, %s334
      %p336 = scmp.eq.s32.totalorder %s42, 0
      %p337 = por %p335, %p336
      %s338 = ssub.s32 %s44, %s51
      %p339 = scmp.eq.s32.totalorder %s338, 0
      %s341 = sadd.s32 %s340, 1
      %s342 = scalar_select %p339, %s340, %s341
      %p345 = pneg %p339
      %p346 = scmp.eq.s32.totalorder %s36, 1
      %p347 = por %p345, %p346
      %p348 = scmp.ne.s32.totalorder %s340, %s343
      %p349 = scmp.eq.s32.totalorder %s36, 0
      %p350 = por %p348, %p349
      %p351 = scmp.ne.s32.totalorder %s340, %s343
      %p352 = scmp.eq.s32.totalorder %s41, 1
      %p353 = por %p351, %p352
      %p354 = scmp.ne.s32.totalorder %s343, %s344
      %p355 = scmp.eq.s32.totalorder %s41, 0
      %p356 = por %p354, %p355
      %p357 = scmp.ne.s32.totalorder %s343, %s344
      %p358 = scmp.eq.s32.totalorder %s42, 1
      %p359 = por %p357, %p358
      %p361 = scmp.ne.s32.totalorder %s344, %s360
      %p362 = scmp.eq.s32.totalorder %s42, 0
      %p363 = por %p361, %p362
      %s364 = ssub.s32 %s44, %s51
      %p365 = scmp.eq.s32.totalorder %s364, 0
      %s367 = sadd.s32 %s366, 1
      %s368 = scalar_select %p365, %s366, %s367
      %p371 = pneg %p365
      %p372 = scmp.eq.s32.totalorder %s36, 1
      %p373 = por %p371, %p372
      %p374 = scmp.ne.s32.totalorder %s366, %s369
      %p375 = scmp.eq.s32.totalorder %s36, 0
      %p376 = por %p374, %p375
      %p377 = scmp.ne.s32.totalorder %s366, %s369
      %p378 = scmp.eq.s32.totalorder %s41, 1
      %p379 = por %p377, %p378
      %p380 = scmp.ne.s32.totalorder %s369, %s370
      %p381 = scmp.eq.s32.totalorder %s41, 0
      %p382 = por %p380, %p381
      %p383 = scmp.ne.s32.totalorder %s369, %s370
      %p384 = scmp.eq.s32.totalorder %s42, 1
      %p385 = por %p383, %p384
      %p387 = scmp.ne.s32.totalorder %s370, %s386
      %p388 = scmp.eq.s32.totalorder %s42, 0
      %p389 = por %p387, %p388
      %s390 = ssub.s32 %s44, %s51
      %p391 = scmp.eq.s32.totalorder %s390, 0
      %s393 = sadd.s32 %s392, 1
      %s394 = scalar_select %p391, %s392, %s393
      %p397 = pneg %p391
      %p398 = scmp.eq.s32.totalorder %s36, 1
      %p399 = por %p397, %p398
      %p400 = scmp.ne.s32.totalorder %s392, %s395
      %p401 = scmp.eq.s32.totalorder %s36, 0
      %p402 = por %p400, %p401
      %p403 = scmp.ne.s32.totalorder %s392, %s395
      %p404 = scmp.eq.s32.totalorder %s41, 1
      %p405 = por %p403, %p404
      %p406 = scmp.ne.s32.totalorder %s395, %s396
      %p407 = scmp.eq.s32.totalorder %s41, 0
      %p408 = por %p406, %p407
      %p409 = scmp.ne.s32.totalorder %s395, %s396
      %p410 = scmp.eq.s32.totalorder %s42, 1
      %p411 = por %p409, %p410
      %p413 = scmp.ne.s32.totalorder %s396, %s412
      %p414 = scmp.eq.s32.totalorder %s42, 0
      %p415 = por %p413, %p414
      %s416 = ssub.s32 %s44, %s51
      %p417 = scmp.eq.s32.totalorder %s416, 0
      %s419 = sadd.s32 %s418, 1
      %s420 = scalar_select %p417, %s418, %s419
      %p423 = pneg %p417
      %p424 = scmp.eq.s32.totalorder %s36, 1
      %p425 = por %p423, %p424
      %p426 = scmp.ne.s32.totalorder %s418, %s421
      %p427 = scmp.eq.s32.totalorder %s36, 0
      %p428 = por %p426, %p427
      %p429 = scmp.ne.s32.totalorder %s418, %s421
      %p430 = scmp.eq.s32.totalorder %s41, 1
      %p431 = por %p429, %p430
      %p432 = scmp.ne.s32.totalorder %s421, %s422
      %p433 = scmp.eq.s32.totalorder %s41, 0
      %p434 = por %p432, %p433
      %p435 = scmp.ne.s32.totalorder %s421, %s422
      %p436 = scmp.eq.s32.totalorder %s42, 1
      %p437 = por %p435, %p436
      %p439 = scmp.ne.s32.totalorder %s422, %s438
      %p440 = scmp.eq.s32.totalorder %s42, 0
      %p441 = por %p439, %p440
      %s442 = ssub.s32 %s44, %s51
      %p443 = scmp.eq.s32.totalorder %s442, 0
      %s445 = sadd.s32 %s444, 1
      %s446 = scalar_select %p443, %s444, %s445
      %p449 = pneg %p443
      %p450 = scmp.eq.s32.totalorder %s36, 1
      %p451 = por %p449, %p450
      %p452 = scmp.ne.s32.totalorder %s444, %s447
      %p453 = scmp.eq.s32.totalorder %s36, 0
      %p454 = por %p452, %p453
      %p455 = scmp.ne.s32.totalorder %s444, %s447
      %p456 = scmp.eq.s32.totalorder %s41, 1
      %p457 = por %p455, %p456
      %p458 = scmp.ne.s32.totalorder %s447, %s448
      %p459 = scmp.eq.s32.totalorder %s41, 0
      %p460 = por %p458, %p459
      %p461 = scmp.ne.s32.totalorder %s447, %s448
      %p462 = scmp.eq.s32.totalorder %s42, 1
      %p463 = por %p461, %p462
      %p465 = scmp.ne.s32.totalorder %s448, %s464
      %p466 = scmp.eq.s32.totalorder %s42, 0
      %p467 = por %p465, %p466
      %s468 = ssub.s32 %s44, %s51
      %p469 = scmp.eq.s32.totalorder %s468, 0
      %s471 = sadd.s32 %s470, 1
      %s472 = scalar_select %p469, %s470, %s471
      %p475 = pneg %p469
      %p476 = scmp.eq.s32.totalorder %s36, 1
      %p477 = por %p475, %p476
      %p478 = scmp.ne.s32.totalorder %s470, %s473
      %p479 = scmp.eq.s32.totalorder %s36, 0
      %p480 = por %p478, %p479
      %p481 = scmp.ne.s32.totalorder %s470, %s473
      %p482 = scmp.eq.s32.totalorder %s41, 1
      %p483 = por %p481, %p482
      %p484 = scmp.ne.s32.totalorder %s473, %s474
      %p485 = scmp.eq.s32.totalorder %s41, 0
      %p486 = por %p484, %p485
      %p487 = scmp.ne.s32.totalorder %s473, %s474
      %p488 = scmp.eq.s32.totalorder %s42, 1
      %p489 = por %p487, %p488
      %p491 = scmp.ne.s32.totalorder %s474, %s490
      %p492 = scmp.eq.s32.totalorder %s42, 0
      %p493 = por %p491, %p492
      %s494 = ssub.s32 %s44, %s51
      %p495 = scmp.eq.s32.totalorder %s494, 0
      %s497 = sadd.s32 %s496, 1
      %s498 = scalar_select %p495, %s496, %s497
      %p501 = pneg %p495
      %p502 = scmp.eq.s32.totalorder %s36, 1
      %p503 = por %p501, %p502
      %p504 = scmp.ne.s32.totalorder %s496, %s499
      %p505 = scmp.eq.s32.totalorder %s36, 0
      %p506 = por %p504, %p505
      %p507 = scmp.ne.s32.totalorder %s496, %s499
      %p508 = scmp.eq.s32.totalorder %s41, 1
      %p509 = por %p507, %p508
      %p510 = scmp.ne.s32.totalorder %s499, %s500
      %p511 = scmp.eq.s32.totalorder %s41, 0
      %p512 = por %p510, %p511
      %p513 = scmp.ne.s32.totalorder %s499, %s500
      %p514 = scmp.eq.s32.totalorder %s42, 1
      %p515 = por %p513, %p514
      %p517 = scmp.ne.s32.totalorder %s500, %s516
      %p518 = scmp.eq.s32.totalorder %s42, 0
      %p519 = por %p517, %p518
      %s520 = ssub.s32 %s44, %s51
      %p521 = scmp.eq.s32.totalorder %s520, 0
      %s523 = sadd.s32 %s522, 1
      %s524 = scalar_select %p521, %s522, %s523
      %p527 = pneg %p521
      %p528 = scmp.eq.s32.totalorder %s36, 1
      %p529 = por %p527, %p528
      %p530 = scmp.ne.s32.totalorder %s522, %s525
      %p531 = scmp.eq.s32.totalorder %s36, 0
      %p532 = por %p530, %p531
      %p533 = scmp.ne.s32.totalorder %s522, %s525
      %p534 = scmp.eq.s32.totalorder %s41, 1
      %p535 = por %p533, %p534
      %p536 = scmp.ne.s32.totalorder %s525, %s526
      %p537 = scmp.eq.s32.totalorder %s41, 0
      %p538 = por %p536, %p537
      %p539 = scmp.ne.s32.totalorder %s525, %s526
      %p540 = scmp.eq.s32.totalorder %s42, 1
      %p541 = por %p539, %p540
      %p543 = scmp.ne.s32.totalorder %s526, %s542
      %p544 = scmp.eq.s32.totalorder %s42, 0
      %p545 = por %p543, %p544
      %s546 = ssub.s32 %s44, %s51
      %p547 = scmp.eq.s32.totalorder %s546, 0
      %s549 = sadd.s32 %s548, 1
      %s550 = scalar_select %p547, %s548, %s549
      %p553 = pneg %p547
      %p554 = scmp.eq.s32.totalorder %s36, 1
      %p555 = por %p553, %p554
      %p556 = scmp.ne.s32.totalorder %s548, %s551
      %p557 = scmp.eq.s32.totalorder %s36, 0
      %p558 = por %p556, %p557
      %p559 = scmp.ne.s32.totalorder %s548, %s551
      %p560 = scmp.eq.s32.totalorder %s41, 1
      %p561 = por %p559, %p560
      %p562 = scmp.ne.s32.totalorder %s551, %s552
      %p563 = scmp.eq.s32.totalorder %s41, 0
      %p564 = por %p562, %p563
      %p565 = scmp.ne.s32.totalorder %s551, %s552
      %p566 = scmp.eq.s32.totalorder %s42, 1
      %p567 = por %p565, %p566
      %p569 = scmp.ne.s32.totalorder %s552, %s568
      %p570 = scmp.eq.s32.totalorder %s42, 0
      %p571 = por %p569, %p570
      %s573 = sadd.s32 %s572, 1
      %p576 = scmp.eq.s32.totalorder %s36, 1
      %p577 = scmp.ne.s32.totalorder %s572, %s574
      %p578 = scmp.eq.s32.totalorder %s36, 0
      %p579 = por %p577, %p578
      %p580 = scmp.ne.s32.totalorder %s572, %s574
      %p581 = scmp.eq.s32.totalorder %s41, 1
      %p582 = por %p580, %p581
      %p583 = scmp.ne.s32.totalorder %s574, %s575
      %p584 = scmp.eq.s32.totalorder %s41, 0
      %p585 = por %p583, %p584
      %p586 = scmp.ne.s32.totalorder %s574, %s575
      %p587 = scmp.eq.s32.totalorder %s42, 1
      %p588 = por %p586, %p587
      %p590 = scmp.ne.s32.totalorder %s575, %s589
      %p591 = scmp.eq.s32.totalorder %s42, 0
      %p592 = por %p590, %p591
      %s594 = sadd.s32 %s593, 1
      %p597 = scmp.eq.s32.totalorder %s36, 1
      %p598 = scmp.ne.s32.totalorder %s593, %s595
      %p599 = scmp.eq.s32.totalorder %s36, 0
      %p600 = por %p598, %p599
      %p601 = scmp.ne.s32.totalorder %s593, %s595
      %p602 = scmp.eq.s32.totalorder %s41, 1
      %p603 = por %p601, %p602
      %p604 = scmp.ne.s32.totalorder %s595, %s596
      %p605 = scmp.eq.s32.totalorder %s41, 0
      %p606 = por %p604, %p605
      %p607 = scmp.ne.s32.totalorder %s595, %s596
      %p608 = scmp.eq.s32.totalorder %s42, 1
      %p609 = por %p607, %p608
      %p611 = scmp.ne.s32.totalorder %s596, %s610
      %p612 = scmp.eq.s32.totalorder %s42, 0
      %p613 = por %p611, %p612
      %s615 = sadd.s32 %s614, 1
      %p618 = scmp.eq.s32.totalorder %s36, 1
      %p619 = scmp.ne.s32.totalorder %s614, %s616
      %p620 = scmp.eq.s32.totalorder %s36, 0
      %p621 = por %p619, %p620
      %p622 = scmp.ne.s32.totalorder %s614, %s616
      %p623 = scmp.eq.s32.totalorder %s41, 1
      %p624 = por %p622, %p623
      %p625 = scmp.ne.s32.totalorder %s616, %s617
      %p626 = scmp.eq.s32.totalorder %s41, 0
      %p627 = por %p625, %p626
      %p628 = scmp.ne.s32.totalorder %s616, %s617
      %p629 = scmp.eq.s32.totalorder %s42, 1
      %p630 = por %p628, %p629
      %p632 = scmp.ne.s32.totalorder %s617, %s631
      %p633 = scmp.eq.s32.totalorder %s42, 0
      %p634 = por %p632, %p633
      %s636 = sadd.s32 %s635, 1
      %p639 = scmp.eq.s32.totalorder %s36, 1
      %p640 = scmp.ne.s32.totalorder %s635, %s637
      %p641 = scmp.eq.s32.totalorder %s36, 0
      %p642 = por %p640, %p641
      %p643 = scmp.ne.s32.totalorder %s635, %s637
      %p644 = scmp.eq.s32.totalorder %s41, 1
      %p645 = por %p643, %p644
      %p646 = scmp.ne.s32.totalorder %s637, %s638
      %p647 = scmp.eq.s32.totalorder %s41, 0
      %p648 = por %p646, %p647
      %p649 = scmp.ne.s32.totalorder %s637, %s638
      %p650 = scmp.eq.s32.totalorder %s42, 1
      %p651 = por %p649, %p650
      %p653 = scmp.ne.s32.totalorder %s638, %s652
      %p654 = scmp.eq.s32.totalorder %s42, 0
      %p655 = por %p653, %p654
      %s656 = ssub.s32 %s43, %s55
      %p657 = scmp.eq.s32.totalorder %s656, 0
      %s659 = sadd.s32 %s658, 1
      %s660 = scalar_select %p657, %s658, %s659
      %p663 = pneg %p657
      %p664 = scmp.eq.s32.totalorder %s36, 1
      %p665 = por %p663, %p664
      %p666 = scmp.ne.s32.totalorder %s658, %s661
      %p667 = scmp.eq.s32.totalorder %s36, 0
      %p668 = por %p666, %p667
      %p669 = scmp.ne.s32.totalorder %s658, %s661
      %p670 = scmp.eq.s32.totalorder %s41, 1
      %p671 = por %p669, %p670
      %p672 = scmp.ne.s32.totalorder %s661, %s662
      %p673 = scmp.eq.s32.totalorder %s41, 0
      %p674 = por %p672, %p673
      %p675 = scmp.ne.s32.totalorder %s661, %s662
      %p676 = scmp.eq.s32.totalorder %s42, 1
      %p677 = por %p675, %p676
      %p679 = scmp.ne.s32.totalorder %s662, %s678
      %p680 = scmp.eq.s32.totalorder %s42, 0
      %p681 = por %p679, %p680
      %p682 = scmp.le.s32.totalorder 1, %s36
      %p683 = scmp.lt.s32.totalorder %s36, 3
      %p684 = pnand %p682, %p683
      %p685 = pneg %p684
      // Predicated region
      $region9: #{tpu_custom_call.1} parent=5 // pred_check
        _
      $region10: #{tpu_custom_call.1} parent=5 // pred_check_branch
        %687 = sbr.rel (%p684) target = $region12
      $region11: #{tpu_custom_call.1} parent=5 // pred_region
        %s688 = ssub.s32 %s36, 1
        // Predicated region
        $region13: #{tpu_custom_call.1} parent=11 // pred_check
          %p689 = pneg %p95
        $region14: #{tpu_custom_call.1} parent=11 // pred_check_branch
          %691 = sbr.rel (%p689) target = $region16
        $region15: #{tpu_custom_call.1} parent=11 // pred_region
          _
        $region16: #{tpu_custom_call.1} parent=11 // pred_fallthru
          _
        // Predicated region
        $region17: #{tpu_custom_call.1} parent=11 // pred_check
          %p692 = pneg %p116
        $region18: #{tpu_custom_call.1} parent=11 // pred_check_branch
          %694 = sbr.rel (%p692) target = $region20
        $region19: #{tpu_custom_call.1} parent=11 // pred_region
          _
        $region20: #{tpu_custom_call.1} parent=11 // pred_fallthru
          _
        // Predicated region
        $region21: #{tpu_custom_call.1} parent=11 // pred_check
          %p695 = pneg %p137
        $region22: #{tpu_custom_call.1} parent=11 // pred_check_branch
          %697 = sbr.rel (%p695) target = $region24
        $region23: #{tpu_custom_call.1} parent=11 // pred_region
          _
        $region24: #{tpu_custom_call.1} parent=11 // pred_fallthru
          _
        // Predicated region
        $region25: #{tpu_custom_call.1} parent=11 // pred_check
          %p698 = pneg %p158
        $region26: #{tpu_custom_call.1} parent=11 // pred_check_branch
          %700 = sbr.rel (%p698) target = $region28
        $region27: #{tpu_custom_call.1} parent=11 // pred_region
          _
        $region28: #{tpu_custom_call.1} parent=11 // pred_fallthru
          _
        // Predicated region
        $region29: #{tpu_custom_call.1} parent=11 // pred_check
          %p701 = pneg %p179
        $region30: #{tpu_custom_call.1} parent=11 // pred_check_branch
          %703 = sbr.rel (%p701) target = $region32
        $region31: #{tpu_custom_call.1} parent=11 // pred_region
          _
        $region32: #{tpu_custom_call.1} parent=11 // pred_fallthru
          _
        // Predicated region
        $region33: #{tpu_custom_call.1} parent=11 // pred_check
          %p704 = pneg %p200
        $region34: #{tpu_custom_call.1} parent=11 // pred_check_branch
          %706 = sbr.rel (%p704) target = $region36
        $region35: #{tpu_custom_call.1} parent=11 // pred_region
          _
        $region36: #{tpu_custom_call.1} parent=11 // pred_fallthru
          _
        // Predicated region
        $region37: #{tpu_custom_call.1} parent=11 // pred_check
          %p707 = pneg %p226
        $region38: #{tpu_custom_call.1} parent=11 // pred_check_branch
          %709 = sbr.rel (%p707) target = $region40
        $region39: #{tpu_custom_call.1} parent=11 // pred_region
          %p710 = scmp.lt.s32.totalorder %s46, 0
          %s711 = scalar_select %p710, %s46, 0
          %s712 = smul.addr %s711, 32
          %s713 = smul.addr %s712, 8
          %s714 = scalar_lea.vmem %s7, %s713
        $region40: #{tpu_custom_call.1} parent=11 // pred_fallthru
          _
        // Predicated region
        $region41: #{tpu_custom_call.1} parent=11 // pred_check
          %p715 = pneg %p252
        $region42: #{tpu_custom_call.1} parent=11 // pred_check_branch
          %717 = sbr.rel (%p715) target = $region44
        $region43: #{tpu_custom_call.1} parent=11 // pred_region
          %p718 = scmp.lt.s32.totalorder %s46, 0
          %s719 = scalar_select %p718, %s46, 0
          %s720 = smul.addr %s719, 32
          %s721 = smul.addr %s720, 8
          %s722 = scalar_lea.vmem %s8, %s721
        $region44: #{tpu_custom_call.1} parent=11 // pred_fallthru
          _
        // Predicated region
        $region45: #{tpu_custom_call.1} parent=11 // pred_check
          %p723 = pneg %p278
        $region46: #{tpu_custom_call.1} parent=11 // pred_check_branch
          %725 = sbr.rel (%p723) target = $region48
        $region47: #{tpu_custom_call.1} parent=11 // pred_region
          %p726 = scmp.lt.s32.totalorder %s46, 0
          %s727 = scalar_select %p726, %s46, 0
          %s728 = smul.addr %s727, 32
          %s729 = smul.addr %s728, 8
          %s730 = scalar_lea.vmem %s9, %s729
        $region48: #{tpu_custom_call.1} parent=11 // pred_fallthru
          _
        // Predicated region
        $region49: #{tpu_custom_call.1} parent=11 // pred_check
          %p731 = pneg %p304
        $region50: #{tpu_custom_call.1} parent=11 // pred_check_branch
          %733 = sbr.rel (%p731) target = $region52
        $region51: #{tpu_custom_call.1} parent=11 // pred_region
          %p734 = scmp.lt.s32.totalorder %s46, 0
          %s735 = scalar_select %p734, %s46, 0
          %s736 = smul.addr %s735, 32
          %s737 = smul.addr %s736, 8
          %s738 = scalar_lea.vmem %s10, %s737
        $region52: #{tpu_custom_call.1} parent=11 // pred_fallthru
          _
        // Predicated region
        $region53: #{tpu_custom_call.1} parent=11 // pred_check
          %p739 = pneg %p330
        $region54: #{tpu_custom_call.1} parent=11 // pred_check_branch
          %741 = sbr.rel (%p739) target = $region56
        $region55: #{tpu_custom_call.1} parent=11 // pred_region
          %p742 = scmp.lt.s32.totalorder %s46, 0
          %s743 = scalar_select %p742, %s46, 0
          %s744 = smul.addr %s743, 2
          %s745 = scalar_lea.vmem %s11, %s744
        $region56: #{tpu_custom_call.1} parent=11 // pred_fallthru
          _
        // Predicated region
        $region57: #{tpu_custom_call.1} parent=11 // pred_check
          %p746 = pneg %p356
        $region58: #{tpu_custom_call.1} parent=11 // pred_check_branch
          %748 = sbr.rel (%p746) target = $region60
        $region59: #{tpu_custom_call.1} parent=11 // pred_region
          %p749 = scmp.lt.s32.totalorder %s46, 0
          %s750 = scalar_select %p749, %s46, 0
          %s751 = smul.addr %s750, 32
          %s752 = smul.addr %s751, 8
          %s753 = scalar_lea.vmem %s12, %s752
        $region60: #{tpu_custom_call.1} parent=11 // pred_fallthru
          _
        // Predicated region
        $region61: #{tpu_custom_call.1} parent=11 // pred_check
          %p754 = pneg %p382
        $region62: #{tpu_custom_call.1} parent=11 // pred_check_branch
          %756 = sbr.rel (%p754) target = $region64
        $region63: #{tpu_custom_call.1} parent=11 // pred_region
          %p757 = scmp.lt.s32.totalorder %s46, 0
          %s758 = scalar_select %p757, %s46, 0
          %s759 = smul.addr %s758, 32
          %s760 = smul.addr %s759, 8
          %s761 = scalar_lea.vmem %s13, %s760
        $region64: #{tpu_custom_call.1} parent=11 // pred_fallthru
          _
        // Predicated region
        $region65: #{tpu_custom_call.1} parent=11 // pred_check
          %p762 = pneg %p408
        $region66: #{tpu_custom_call.1} parent=11 // pred_check_branch
          %764 = sbr.rel (%p762) target = $region68
        $region67: #{tpu_custom_call.1} parent=11 // pred_region
          %p765 = scmp.lt.s32.totalorder %s46, 0
          %s766 = scalar_select %p765, %s46, 0
          %s767 = smul.addr %s766, 32
          %s768 = smul.addr %s767, 8
          %s769 = scalar_lea.vmem %s14, %s768
        $region68: #{tpu_custom_call.1} parent=11 // pred_fallthru
          _
        // Predicated region
        $region69: #{tpu_custom_call.1} parent=11 // pred_check
          %p770 = pneg %p434
        $region70: #{tpu_custom_call.1} parent=11 // pred_check_branch
          %772 = sbr.rel (%p770) target = $region72
        $region71: #{tpu_custom_call.1} parent=11 // pred_region
          %p773 = scmp.lt.s32.totalorder %s46, 0
          %s774 = scalar_select %p773, %s46, 0
          %s775 = smul.addr %s774, 32
          %s776 = smul.addr %s775, 8
          %s777 = scalar_lea.vmem %s15, %s776
        $region72: #{tpu_custom_call.1} parent=11 // pred_fallthru
          _
        // Predicated region
        $region73: #{tpu_custom_call.1} parent=11 // pred_check
          %p778 = pneg %p460
        $region74: #{tpu_custom_call.1} parent=11 // pred_check_branch
          %780 = sbr.rel (%p778) target = $region76
        $region75: #{tpu_custom_call.1} parent=11 // pred_region
          %p781 = scmp.lt.s32.totalorder %s46, 0
          %s782 = scalar_select %p781, %s46, 0
          %s783 = smul.addr %s782, 2
          %s784 = scalar_lea.vmem %s16, %s783
        $region76: #{tpu_custom_call.1} parent=11 // pred_fallthru
          _
        // Predicated region
        $region77: #{tpu_custom_call.1} parent=11 // pred_check
          %p785 = pneg %p486
        $region78: #{tpu_custom_call.1} parent=11 // pred_check_branch
          %787 = sbr.rel (%p785) target = $region80
        $region79: #{tpu_custom_call.1} parent=11 // pred_region
          %p788 = scmp.lt.s32.totalorder %s46, 0
          %s789 = scalar_select %p788, %s46, 0
          %s790 = smul.addr %s789, 8
          %s791 = smul.addr %s790, 8
          %s792 = scalar_lea.vmem %s17, %s791
        $region80: #{tpu_custom_call.1} parent=11 // pred_fallthru
          _
        // Predicated region
        $region81: #{tpu_custom_call.1} parent=11 // pred_check
          %p793 = pneg %p512
        $region82: #{tpu_custom_call.1} parent=11 // pred_check_branch
          %795 = sbr.rel (%p793) target = $region84
        $region83: #{tpu_custom_call.1} parent=11 // pred_region
          %p796 = scmp.lt.s32.totalorder %s46, 0
          %s797 = scalar_select %p796, %s46, 0
          %s798 = smul.addr %s797, 8
          %s799 = smul.addr %s798, 8
          %s800 = scalar_lea.vmem %s18, %s799
        $region84: #{tpu_custom_call.1} parent=11 // pred_fallthru
          _
        // Predicated region
        $region85: #{tpu_custom_call.1} parent=11 // pred_check
          %p801 = pneg %p538
        $region86: #{tpu_custom_call.1} parent=11 // pred_check_branch
          %803 = sbr.rel (%p801) target = $region88
        $region87: #{tpu_custom_call.1} parent=11 // pred_region
          %p804 = scmp.lt.s32.totalorder %s46, 0
          %s805 = scalar_select %p804, %s46, 0
          %s806 = smul.addr %s805, 8
          %s807 = smul.addr %s806, 8
          %s808 = scalar_lea.vmem %s19, %s807
        $region88: #{tpu_custom_call.1} parent=11 // pred_fallthru
          _
        // Predicated region
        $region89: #{tpu_custom_call.1} parent=11 // pred_check
          %p809 = pneg %p564
        $region90: #{tpu_custom_call.1} parent=11 // pred_check_branch
          %811 = sbr.rel (%p809) target = $region92
        $region91: #{tpu_custom_call.1} parent=11 // pred_region
          %p812 = scmp.lt.s32.totalorder %s46, 0
          %s813 = scalar_select %p812, %s46, 0
          %s814 = smul.addr %s813, 8
          %s815 = smul.addr %s814, 8
          %s816 = scalar_lea.vmem %s20, %s815
        $region92: #{tpu_custom_call.1} parent=11 // pred_fallthru
          _
        // Predicated region
        $region93: #{tpu_custom_call.1} parent=11 // pred_check
          %p817 = pneg %p585
        $region94: #{tpu_custom_call.1} parent=11 // pred_check_branch
          %819 = sbr.rel (%p817) target = $region96
        $region95: #{tpu_custom_call.1} parent=11 // pred_region
          _
        $region96: #{tpu_custom_call.1} parent=11 // pred_fallthru
          _
        // Predicated region
        $region97: #{tpu_custom_call.1} parent=11 // pred_check
          %p820 = pneg %p606
        $region98: #{tpu_custom_call.1} parent=11 // pred_check_branch
          %822 = sbr.rel (%p820) target = $region100
        $region99: #{tpu_custom_call.1} parent=11 // pred_region
          _
        $region100: #{tpu_custom_call.1} parent=11 // pred_fallthru
          _
        // Predicated region
        $region101: #{tpu_custom_call.1} parent=11 // pred_check
          %p823 = pneg %p627
        $region102: #{tpu_custom_call.1} parent=11 // pred_check_branch
          %825 = sbr.rel (%p823) target = $region104
        $region103: #{tpu_custom_call.1} parent=11 // pred_region
          _
        $region104: #{tpu_custom_call.1} parent=11 // pred_fallthru
          _
        // Predicated region
        $region105: #{tpu_custom_call.1} parent=11 // pred_check
          %p826 = pneg %p648
        $region106: #{tpu_custom_call.1} parent=11 // pred_check_branch
          %828 = sbr.rel (%p826) target = $region108
        $region107: #{tpu_custom_call.1} parent=11 // pred_region
          _
        $region108: #{tpu_custom_call.1} parent=11 // pred_fallthru
          _
      $region12: #{tpu_custom_call.1} parent=5 // pred_fallthru
        _
      %p829 = scmp.lt.s32.totalorder %s36, 2
      // Predicated region
      $region109: #{tpu_custom_call.1} parent=5 // pred_check
        %p830 = pneg %p829
      $region110: #{tpu_custom_call.1} parent=5 // pred_check_branch
        %832 = sbr.rel (%p830) target = $region112
      $region111: #{tpu_custom_call.1} parent=5 // pred_region
        // Predicated region
        $region113: #{tpu_custom_call.1} parent=111 // pred_check
          %p833 = pneg %p68
        $region114: #{tpu_custom_call.1} parent=111 // pred_check_branch
          %835 = sbr.rel (%p833) target = $region116
        $region115: #{tpu_custom_call.1} parent=111 // pred_region
          %p836 = scmp.lt.s32.totalorder %s43, 1
          %s837 = scalar_select %p836, %s43, 1
          %s838 = smul.addr %s837, 3
          %s839 = smul.addr %s838, 8
          %s840 = scalar_lea.vmem %s0, %s839
        $region116: #{tpu_custom_call.1} parent=111 // pred_fallthru
          _
      $region112: #{tpu_custom_call.1} parent=5 // pred_fallthru
        _
      %p841 = scmp.le.s32.totalorder 1, %s36
      %p842 = scmp.lt.s32.totalorder %s36, 3
      %p843 = pnand %p841, %p842
      %p844 = pneg %p843
      // Predicated region
      $region117: #{tpu_custom_call.1} parent=5 // pred_check
        _
      $region118: #{tpu_custom_call.1} parent=5 // pred_check_branch
        %846 = sbr.rel (%p843) target = $region120
      $region119: #{tpu_custom_call.1} parent=5 // pred_region
        %s847 = ssub.s32 %s36, 1
        %p848 = scmp.lt.s32.totalorder %s45, 1
        %s849 = scalar_select %p848, %s45, 1
        %s850 = smul.addr %s849, 3
        %s851 = smul.addr %s850, 8
        %s852 = scalar_lea.vmem %s0, %s851
        %p853 = pneg %p74
        %p854 = pneg %p71
        %p855 = pneg %p95
        %p856 = pneg %p92
        %p857 = pneg %p116
        %p858 = pneg %p113
        %p859 = pneg %p137
        %p860 = pneg %p134
        %p861 = pneg %p158
        %p862 = pneg %p155
        %p863 = pneg %p179
        %p864 = pneg %p176
        %p865 = pneg %p200
        %p866 = pneg %p197
        %p867 = scmp.lt.s32.totalorder %s46, 0
        %s868 = scalar_select %p867, %s46, 0
        %s869 = smul.addr %s868, 32
        %s870 = smul.addr %s869, 8
        %s871 = scalar_lea.vmem %s7, %s870
        %p872 = pneg %p226
        %p873 = pneg %p223
        %p874 = scmp.lt.s32.totalorder %s46, 0
        %s875 = scalar_select %p874, %s46, 0
        %s876 = smul.addr %s875, 32
        %s877 = smul.addr %s876, 8
        %s878 = scalar_lea.vmem %s8, %s877
        %p879 = pneg %p252
        %p880 = pneg %p249
        %p881 = scmp.lt.s32.totalorder %s46, 0
        %s882 = scalar_select %p881, %s46, 0
        %s883 = smul.addr %s882, 32
        %s884 = smul.addr %s883, 8
        %s885 = scalar_lea.vmem %s9, %s884
        %p886 = pneg %p278
        %p887 = pneg %p275
        %p888 = scmp.lt.s32.totalorder %s46, 0
        %s889 = scalar_select %p888, %s46, 0
        %s890 = smul.addr %s889, 32
        %s891 = smul.addr %s890, 8
        %s892 = scalar_lea.vmem %s10, %s891
        %p893 = pneg %p304
        %p894 = pneg %p301
        %p895 = scmp.lt.s32.totalorder %s46, 0
        %s896 = scalar_select %p895, %s46, 0
        %s897 = smul.addr %s896, 2
        %s898 = scalar_lea.vmem %s11, %s897
        %p899 = pneg %p330
        %p900 = pneg %p327
        %p901 = scmp.lt.s32.totalorder %s46, 0
        %s902 = scalar_select %p901, %s46, 0
        %s903 = smul.addr %s902, 32
        %s904 = smul.addr %s903, 8
        %s905 = scalar_lea.vmem %s12, %s904
        %p906 = pneg %p356
        %p907 = pneg %p353
        %p908 = scmp.lt.s32.totalorder %s46, 0
        %s909 = scalar_select %p908, %s46, 0
        %s910 = smul.addr %s909, 32
        %s911 = smul.addr %s910, 8
        %s912 = scalar_lea.vmem %s13, %s911
        %p913 = pneg %p382
        %p914 = pneg %p379
        %p915 = scmp.lt.s32.totalorder %s46, 0
        %s916 = scalar_select %p915, %s46, 0
        %s917 = smul.addr %s916, 32
        %s918 = smul.addr %s917, 8
        %s919 = scalar_lea.vmem %s14, %s918
        %p920 = pneg %p408
        %p921 = pneg %p405
        %p922 = scmp.lt.s32.totalorder %s46, 0
        %s923 = scalar_select %p922, %s46, 0
        %s924 = smul.addr %s923, 32
        %s925 = smul.addr %s924, 8
        %s926 = scalar_lea.vmem %s15, %s925
        %p927 = pneg %p434
        %p928 = pneg %p431
        %p929 = scmp.lt.s32.totalorder %s46, 0
        %s930 = scalar_select %p929, %s46, 0
        %s931 = smul.addr %s930, 2
        %s932 = scalar_lea.vmem %s16, %s931
        %p933 = pneg %p460
        %p934 = pneg %p457
        %p935 = scmp.lt.s32.totalorder %s46, 0
        %s936 = scalar_select %p935, %s46, 0
        %s937 = smul.addr %s936, 8
        %s938 = smul.addr %s937, 8
        %s939 = scalar_lea.vmem %s17, %s938
        %p940 = pneg %p486
        %p941 = pneg %p483
        %p942 = scmp.lt.s32.totalorder %s46, 0
        %s943 = scalar_select %p942, %s46, 0
        %s944 = smul.addr %s943, 8
        %s945 = smul.addr %s944, 8
        %s946 = scalar_lea.vmem %s18, %s945
        %p947 = pneg %p512
        %p948 = pneg %p509
        %p949 = scmp.lt.s32.totalorder %s46, 0
        %s950 = scalar_select %p949, %s46, 0
        %s951 = smul.addr %s950, 8
        %s952 = smul.addr %s951, 8
        %s953 = scalar_lea.vmem %s19, %s952
        %p954 = pneg %p538
        %p955 = pneg %p535
        %p956 = scmp.lt.s32.totalorder %s46, 0
        %s957 = scalar_select %p956, %s46, 0
        %s958 = smul.addr %s957, 8
        %s959 = smul.addr %s958, 8
        %s960 = scalar_lea.vmem %s20, %s959
        %p961 = pneg %p564
        %p962 = pneg %p561
        %p963 = pneg %p585
        %p964 = pneg %p582
        %p965 = pneg %p606
        %p966 = pneg %p603
        %p967 = pneg %p627
        %p968 = pneg %p624
        %p969 = pneg %p648
        %p970 = pneg %p645
        %p971 = pneg %p674
        %p972 = pneg %p671
        %s973 = sand.u32 %s661, 1
        %s974 = scalar_lea.sflag [#allocation7], %s973
        %s975 = sand.u32 %s661, 1
        %s976 = smul.addr %s975, 16
        %s977 = scalar_lea.vmem [#allocation6], %s976
        %p978 = scmp.lt.s32.totalorder %s45, 1
        %s979 = scalar_select %p978, %s45, 1
        %s980 = smul.addr %s979, 3
        %s981 = smul.addr %s980, 8
        %s982 = scalar_lea.vmem %s0, %s981
        %p983 = scmp.lt.s32.totalorder %s46, 0
        %s984 = scalar_select %p983, %s46, 0
        %s985 = smul.addr %s984, 32
        %s986 = smul.addr %s985, 8
        %s987 = scalar_lea.vmem %s7, %s986
        %p988 = scmp.lt.s32.totalorder %s46, 0
        %s989 = scalar_select %p988, %s46, 0
        %s990 = smul.addr %s989, 32
        %s991 = smul.addr %s990, 8
        %s992 = scalar_lea.vmem %s8, %s991
        %p993 = scmp.lt.s32.totalorder %s46, 0
        %s994 = scalar_select %p993, %s46, 0
        %s995 = smul.addr %s994, 32
        %s996 = smul.addr %s995, 8
        %s997 = scalar_lea.vmem %s9, %s996
        %p998 = scmp.lt.s32.totalorder %s46, 0
        %s999 = scalar_select %p998, %s46, 0
        %s1000 = smul.addr %s999, 32
        %s1001 = smul.addr %s1000, 8
        %s1002 = scalar_lea.vmem %s10, %s1001
        %p1003 = scmp.lt.s32.totalorder %s46, 0
        %s1004 = scalar_select %p1003, %s46, 0
        %s1005 = smul.addr %s1004, 2
        %s1006 = scalar_lea.vmem %s11, %s1005
        %p1007 = scmp.lt.s32.totalorder %s46, 0
        %s1008 = scalar_select %p1007, %s46, 0
        %s1009 = smul.addr %s1008, 32
        %s1010 = smul.addr %s1009, 8
        %s1011 = scalar_lea.vmem %s12, %s1010
        %p1012 = scmp.lt.s32.totalorder %s46, 0
        %s1013 = scalar_select %p1012, %s46, 0
        %s1014 = smul.addr %s1013, 32
        %s1015 = smul.addr %s1014, 8
        %s1016 = scalar_lea.vmem %s13, %s1015
        %p1017 = scmp.lt.s32.totalorder %s46, 0
        %s1018 = scalar_select %p1017, %s46, 0
        %s1019 = smul.addr %s1018, 32
        %s1020 = smul.addr %s1019, 8
        %s1021 = scalar_lea.vmem %s14, %s1020
        %p1022 = scmp.lt.s32.totalorder %s46, 0
        %s1023 = scalar_select %p1022, %s46, 0
        %s1024 = smul.addr %s1023, 32
        %s1025 = smul.addr %s1024, 8
        %s1026 = scalar_lea.vmem %s15, %s1025
        %p1027 = scmp.lt.s32.totalorder %s46, 0
        %s1028 = scalar_select %p1027, %s46, 0
        %s1029 = smul.addr %s1028, 2
        %s1030 = scalar_lea.vmem %s16, %s1029
        %p1031 = scmp.lt.s32.totalorder %s46, 0
        %s1032 = scalar_select %p1031, %s46, 0
        %s1033 = smul.addr %s1032, 8
        %s1034 = smul.addr %s1033, 8
        %s1035 = scalar_lea.vmem %s17, %s1034
        %p1036 = scmp.lt.s32.totalorder %s46, 0
        %s1037 = scalar_select %p1036, %s46, 0
        %s1038 = smul.addr %s1037, 8
        %s1039 = smul.addr %s1038, 8
        %s1040 = scalar_lea.vmem %s18, %s1039
        %p1041 = scmp.lt.s32.totalorder %s46, 0
        %s1042 = scalar_select %p1041, %s46, 0
        %s1043 = smul.addr %s1042, 8
        %s1044 = smul.addr %s1043, 8
        %s1045 = scalar_lea.vmem %s19, %s1044
        %p1046 = scmp.lt.s32.totalorder %s46, 0
        %s1047 = scalar_select %p1046, %s46, 0
        %s1048 = smul.addr %s1047, 8
        %s1049 = smul.addr %s1048, 8
        %s1050 = scalar_lea.vmem %s20, %s1049
        %p1051 = scmp.eq.s32.totalorder %s46, 0
        // Predicated region
        $region121: #{tpu_custom_call.1} parent=119 // pred_check
          %p1052 = pneg %p1051
        $region122: #{tpu_custom_call.1} parent=119 // pred_check_branch
          %1054 = sbr.rel (%p1052) target = $region124
        $region123: #{tpu_custom_call.1} parent=119 // pred_region
          %v1055 = vld [vmem:[%s982] sm:$0xff]
          %v1056 = vld [vmem:[%s982 + $0x8] sm:$0xff]
          %v1057 = vld [vmem:[%s982 + $0x10] sm:$0x7f]
          %v1058 = vld [vmem:[%s1] sm:$0xff]
          %v1059 = vld [vmem:[%s1 + $0x8] sm:$0xff]
          %v1060 = vld [vmem:[%s1 + $0x10] sm:$0xff]
          %v1061 = vld [vmem:[%s1 + $0x18] sm:$0xff]
          %v1062 = vld [vmem:[%s1 + $0x20] sm:$0xff]
          %v1063 = vld [vmem:[%s1 + $0x28] sm:$0xff]
          %v1064 = vld [vmem:[%s1 + $0x30] sm:$0xff]
          %v1065 = vld [vmem:[%s1 + $0x38] sm:$0xff]
          %v1066 = vld [vmem:[%s2] sm:$0xff]
          %v1067 = vld [vmem:[%s2 + $0x8] sm:$0xff]
          %v1068 = vld [vmem:[%s2 + $0x10] sm:$0xff]
          %v1069 = vld [vmem:[%s2 + $0x18] sm:$0xff]
          %v1070 = vld [vmem:[%s2 + $0x20] sm:$0xff]
          %v1071 = vld [vmem:[%s2 + $0x28] sm:$0xff]
          %v1072 = vld [vmem:[%s2 + $0x30] sm:$0xff]
          %v1073 = vld [vmem:[%s2 + $0x38] sm:$0xff]
          %vm1077 = vcmask 1046528
          %v1078 = vrot.slane %v1055, 1
          %v1079 = vrot.slane %v1056, 1
          %v1080 = vsel %vm1077, %v1078, %v1079
          %v1081 = vrot.slane %v1057, 1
          %v1082 = vsel %vm1077, %v1079, %v1081
          %vm1083 = vcmask 64512
          %v1085 = vsel %vm1083, %v1066, 0
          %v1088 = vsel %vm1083, %v1067, 0
          %v1091 = vsel %vm1083, %v1068, 0
          %v1094 = vsel %vm1083, %v1069, 0
          %v1097 = vsel %vm1083, %v1070, 0
          %v1100 = vsel %vm1083, %v1071, 0
          %v1103 = vsel %vm1083, %v1072, 0
          %v1106 = vsel %vm1083, %v1073, 0
          %v1108 = vsel %vm1083, %v1080, 0
          %v1110 = vsel %vm1083, %v1082, 0
          %v1112 = vsel %vm1083, %v1081, 0
          %1114 = vmatprep.subr.mxu0 0.0
          %1115 = vmatpush1.xpose.msra.mxu0 0.0
          %1116 = vmatprep.subr.mxu0 0.0
          %1117 = vmatpush1.xpose.msra.mxu0 0.0
          %1118 = vmatprep.subr.mxu0 0.0
          %1119 = vmatpush1.xpose.msra.mxu0 0.0
          %1120 = vmatprep.subr.mxu0 0.0
          %1121 = vmatpush1.xpose.msra.mxu0 0.0
          %1122 = vmatprep.subr.mxu0 0.0
          %1123 = vmatpush1.xpose.msra.mxu0 0.0
          %1124 = vmatprep.subr.mxu0 0.0
          %1125 = vmatpush1.xpose.msra.mxu0 0.0
          %1126 = vmatprep.subr.mxu0 0.0
          %1127 = vmatpush1.xpose.msra.mxu0 0.0
          %1128 = vmatprep.subr.mxu0 0.0
          %1129 = vmatpush1.xpose.msra.mxu0 0.0
          %1130 = vmatprep.subr.mxu0 0.0
          %1131 = vmatpush1.xpose.msra.mxu0 0.0
          %1132 = vmatprep.subr.mxu0 0.0
          %1133 = vmatpush1.xpose.msra.mxu0 0.0
          %1134 = vmatprep.subr.mxu0 0.0
          %1135 = vmatpush1.xpose.msra.mxu0 0.0
          %1136 = vmatprep.subr.mxu0 0.0
          %1137 = vmatpush1.xpose.msra.mxu0 0.0
          %1138 = vmatprep.subr.mxu0 0.0
          %1139 = vmatpush1.xpose.msra.mxu0 0.0
          %1140 = vmatprep.subr.mxu0 0.0
          %1141 = vmatpush1.xpose.msra.mxu0 %v1112
          %1142 = vmatprep.subr.mxu0 0.0
          %1143 = vmatpush1.xpose.msra.mxu0 %v1110
          %1144 = vmatprep.subr.mxu0 0.0
          %1145 = vmatpush1.xpose.msra.mxu0 %v1108
          %1146 = vmatprep.subr.mxu0 0.0
          %1147 = vmatpush2.xpose.msra.mxu0 0.0
          %1148 = vmatprep.subr.mxu0 0.0
          %1149 = vmatpush2.xpose.msra.mxu0 0.0
          %1150 = vmatprep.subr.mxu0 0.0
          %1151 = vmatpush2.xpose.msra.mxu0 0.0
          %1152 = vmatprep.subr.mxu0 0.0
          %1153 = vmatpush2.xpose.msra.mxu0 0.0
          %1154 = vmatprep.subr.mxu0 0.0
          %1155 = vmatpush2.xpose.msra.mxu0 0.0
          %1156 = vmatprep.subr.mxu0 0.0
          %1157 = vmatpush2.xpose.msra.mxu0 0.0
          %1158 = vmatprep.subr.mxu0 0.0
          %1159 = vmatpush2.xpose.msra.mxu0 0.0
          %1160 = vmatprep.subr.mxu0 0.0
          %1161 = vmatpush2.xpose.msra.mxu0 0.0
          %1162 = vmatprep.subr.mxu0 0.0
          %1163 = vmatpush2.xpose.msra.mxu0 0.0
          %1164 = vmatprep.subr.mxu0 0.0
          %1165 = vmatpush2.xpose.msra.mxu0 0.0
          %1166 = vmatprep.subr.mxu0 0.0
          %1167 = vmatpush2.xpose.msra.mxu0 0.0
          %1168 = vmatprep.subr.mxu0 0.0
          %1169 = vmatpush2.xpose.msra.mxu0 0.0
          %1170 = vmatprep.subr.mxu0 0.0
          %1171 = vmatpush2.xpose.msra.mxu0 0.0
          %1172 = vmatprep.subr.mxu0 0.0
          %1173 = vmatpush2.xpose.msra.mxu0 0.0
          %1174 = vmatprep.subr.mxu0 0.0
          %1175 = vmatpush2.xpose.msra.mxu0 0.0
          %1176 = vmatprep.subr.mxu0 0.0
          %1177 = vmatpush2.xpose.msra.mxu0 0.0
          %1178 = vmatprep.mubr.f32.mxu0 0.0
          %1179 = vmatmul.mubr.f32.gmra.mxu0 %v1085
          %v1180 = vpop.f32.mrf.mxu0
          %v1181 = vadd.f32 0.0, %v1180
          %v1182 = vpop.f32.mrf.mxu0
          %1183 = vmatprep.mubr.f32.mxu0 0.0
          %1184 = vmatmul.mubr.f32.gmra.mxu0 %v1088
          %v1185 = vpop.f32.mrf.mxu0
          %v1186 = vadd.f32 0.0, %v1185
          %v1187 = vpop.f32.mrf.mxu0
          %1188 = vmatprep.mubr.f32.mxu0 0.0
          %1189 = vmatmul.mubr.f32.gmra.mxu0 %v1091
          %v1190 = vpop.f32.mrf.mxu0
          %v1191 = vadd.f32 0.0, %v1190
          %v1192 = vpop.f32.mrf.mxu0
          %1193 = vmatprep.mubr.f32.mxu0 0.0
          %1194 = vmatmul.mubr.f32.gmra.mxu0 %v1094
          %v1195 = vpop.f32.mrf.mxu0
          %v1196 = vadd.f32 0.0, %v1195
          %v1197 = vpop.f32.mrf.mxu0
          %1198 = vmatprep.mubr.f32.mxu0 0.0
          %1199 = vmatmul.mubr.f32.gmra.mxu0 %v1097
          %v1200 = vpop.f32.mrf.mxu0
          %v1201 = vadd.f32 0.0, %v1200
          %v1202 = vpop.f32.mrf.mxu0
          %1203 = vmatprep.mubr.f32.mxu0 0.0
          %1204 = vmatmul.mubr.f32.gmra.mxu0 %v1100
          %v1205 = vpop.f32.mrf.mxu0
          %v1206 = vadd.f32 0.0, %v1205
          %v1207 = vpop.f32.mrf.mxu0
          %1208 = vmatprep.mubr.f32.mxu0 0.0
          %1209 = vmatmul.mubr.f32.gmra.mxu0 %v1103
          %v1210 = vpop.f32.mrf.mxu0
          %v1211 = vadd.f32 0.0, %v1210
          %v1212 = vpop.f32.mrf.mxu0
          %1213 = vmatprep.mubr.f32.mxu0 0.0
          %1214 = vmatmul.mubr.f32.gmra.mxu0 %v1106
          %v1215 = vpop.f32.mrf.mxu0
          %v1216 = vadd.f32 0.0, %v1215
          %v1217 = vpop.f32.mrf.mxu0
          %1218 = vdwg.mxu0
          %v1220 = vsel %vm1083, %v1058, 0
          %v1223 = vsel %vm1083, %v1059, 0
          %v1226 = vsel %vm1083, %v1060, 0
          %v1229 = vsel %vm1083, %v1061, 0
          %v1232 = vsel %vm1083, %v1062, 0
          %v1235 = vsel %vm1083, %v1063, 0
          %v1238 = vsel %vm1083, %v1064, 0
          %v1241 = vsel %vm1083, %v1065, 0
          %v1243 = vsel %vm1083, %v1055, 0
          %v1245 = vsel %vm1083, %v1056, 0
          %v1247 = vsel %vm1083, %v1057, 0
          %1249 = vmatprep.subr.mxu0 0.0
          %1250 = vmatpush1.xpose.msra.mxu0 0.0
          %1251 = vmatprep.subr.mxu0 0.0
          %1252 = vmatpush1.xpose.msra.mxu0 0.0
          %1253 = vmatprep.subr.mxu0 0.0
          %1254 = vmatpush1.xpose.msra.mxu0 0.0
          %1255 = vmatprep.subr.mxu0 0.0
          %1256 = vmatpush1.xpose.msra.mxu0 0.0
          %1257 = vmatprep.subr.mxu0 0.0
          %1258 = vmatpush1.xpose.msra.mxu0 0.0
          %1259 = vmatprep.subr.mxu0 0.0
          %1260 = vmatpush1.xpose.msra.mxu0 0.0
          %1261 = vmatprep.subr.mxu0 0.0
          %1262 = vmatpush1.xpose.msra.mxu0 0.0
          %1263 = vmatprep.subr.mxu0 0.0
          %1264 = vmatpush1.xpose.msra.mxu0 0.0
          %1265 = vmatprep.subr.mxu0 0.0
          %1266 = vmatpush1.xpose.msra.mxu0 0.0
          %1267 = vmatprep.subr.mxu0 0.0
          %1268 = vmatpush1.xpose.msra.mxu0 0.0
          %1269 = vmatprep.subr.mxu0 0.0
          %1270 = vmatpush1.xpose.msra.mxu0 0.0
          %1271 = vmatprep.subr.mxu0 0.0
          %1272 = vmatpush1.xpose.msra.mxu0 0.0
          %1273 = vmatprep.subr.mxu0 0.0
          %1274 = vmatpush1.xpose.msra.mxu0 0.0
          %1275 = vmatprep.subr.mxu0 0.0
          %1276 = vmatpush1.xpose.msra.mxu0 %v1247
          %1277 = vmatprep.subr.mxu0 0.0
          %1278 = vmatpush1.xpose.msra.mxu0 %v1245
          %1279 = vmatprep.subr.mxu0 0.0
          %1280 = vmatpush1.xpose.msra.mxu0 %v1243
          %1281 = vmatprep.subr.mxu0 0.0
          %1282 = vmatpush2.xpose.msra.mxu0 0.0
          %1283 = vmatprep.subr.mxu0 0.0
          %1284 = vmatpush2.xpose.msra.mxu0 0.0
          %1285 = vmatprep.subr.mxu0 0.0
          %1286 = vmatpush2.xpose.msra.mxu0 0.0
          %1287 = vmatprep.subr.mxu0 0.0
          %1288 = vmatpush2.xpose.msra.mxu0 0.0
          %1289 = vmatprep.subr.mxu0 0.0
          %1290 = vmatpush2.xpose.msra.mxu0 0.0
          %1291 = vmatprep.subr.mxu0 0.0
          %1292 = vmatpush2.xpose.msra.mxu0 0.0
          %1293 = vmatprep.subr.mxu0 0.0
          %1294 = vmatpush2.xpose.msra.mxu0 0.0
          %1295 = vmatprep.subr.mxu0 0.0
          %1296 = vmatpush2.xpose.msra.mxu0 0.0
          %1297 = vmatprep.subr.mxu0 0.0
          %1298 = vmatpush2.xpose.msra.mxu0 0.0
          %1299 = vmatprep.subr.mxu0 0.0
          %1300 = vmatpush2.xpose.msra.mxu0 0.0
          %1301 = vmatprep.subr.mxu0 0.0
          %1302 = vmatpush2.xpose.msra.mxu0 0.0
          %1303 = vmatprep.subr.mxu0 0.0
          %1304 = vmatpush2.xpose.msra.mxu0 0.0
          %1305 = vmatprep.subr.mxu0 0.0
          %1306 = vmatpush2.xpose.msra.mxu0 0.0
          %1307 = vmatprep.subr.mxu0 0.0
          %1308 = vmatpush2.xpose.msra.mxu0 0.0
          %1309 = vmatprep.subr.mxu0 0.0
          %1310 = vmatpush2.xpose.msra.mxu0 0.0
          %1311 = vmatprep.subr.mxu0 0.0
          %1312 = vmatpush2.xpose.msra.mxu0 0.0
          %1313 = vmatprep.mubr.f32.mxu0 0.0
          %1314 = vmatmul.mubr.f32.gmra.mxu0 %v1220
          %v1315 = vpop.f32.mrf.mxu0
          %v1316 = vadd.f32 %v1181, %v1315
          %v1317 = vpop.f32.mrf.mxu0
          %1318 = vmatprep.mubr.f32.mxu0 0.0
          %1319 = vmatmul.mubr.f32.gmra.mxu0 %v1223
          %v1320 = vpop.f32.mrf.mxu0
          %v1321 = vadd.f32 %v1186, %v1320
          %v1322 = vpop.f32.mrf.mxu0
          %1323 = vmatprep.mubr.f32.mxu0 0.0
          %1324 = vmatmul.mubr.f32.gmra.mxu0 %v1226
          %v1325 = vpop.f32.mrf.mxu0
          %v1326 = vadd.f32 %v1191, %v1325
          %v1327 = vpop.f32.mrf.mxu0
          %1328 = vmatprep.mubr.f32.mxu0 0.0
          %1329 = vmatmul.mubr.f32.gmra.mxu0 %v1229
          %v1330 = vpop.f32.mrf.mxu0
          %v1331 = vadd.f32 %v1196, %v1330
          %v1332 = vpop.f32.mrf.mxu0
          %1333 = vmatprep.mubr.f32.mxu0 0.0
          %1334 = vmatmul.mubr.f32.gmra.mxu0 %v1232
          %v1335 = vpop.f32.mrf.mxu0
          %v1336 = vadd.f32 %v1201, %v1335
          %v1337 = vpop.f32.mrf.mxu0
          %1338 = vmatprep.mubr.f32.mxu0 0.0
          %1339 = vmatmul.mubr.f32.gmra.mxu0 %v1235
          %v1340 = vpop.f32.mrf.mxu0
          %v1341 = vadd.f32 %v1206, %v1340
          %v1342 = vpop.f32.mrf.mxu0
          %1343 = vmatprep.mubr.f32.mxu0 0.0
          %1344 = vmatmul.mubr.f32.gmra.mxu0 %v1238
          %v1345 = vpop.f32.mrf.mxu0
          %v1346 = vadd.f32 %v1211, %v1345
          %v1347 = vpop.f32.mrf.mxu0
          %1348 = vmatprep.mubr.f32.mxu0 0.0
          %1349 = vmatmul.mubr.f32.gmra.mxu0 %v1241
          %v1350 = vpop.f32.mrf.mxu0
          %v1351 = vadd.f32 %v1216, %v1350
          %v1352 = vpop.f32.mrf.mxu0
          %1353 = vdwg.mxu0
          %vm1354 = vcmask 179200
          %1355 = vst.msk [vmem:[#allocation2] sm:$0xff] %vm1354, %v1316
          %1356 = vst.msk [vmem:[#allocation2 + $0x8] sm:$0xff] %vm1354, %v1321
          %1357 = vst.msk [vmem:[#allocation2 + $0x10] sm:$0xff] %vm1354, %v1326
          %1358 = vst.msk [vmem:[#allocation2 + $0x18] sm:$0xff] %vm1354, %v1331
          %1359 = vst.msk [vmem:[#allocation2 + $0x20] sm:$0xff] %vm1354, %v1336
          %1360 = vst.msk [vmem:[#allocation2 + $0x28] sm:$0xff] %vm1354, %v1341
          %1361 = vst.msk [vmem:[#allocation2 + $0x30] sm:$0xff] %vm1354, %v1346
          %1362 = vst.msk [vmem:[#allocation2 + $0x38] sm:$0xff] %vm1354, %v1351
          %v1363 = vld [vmem:[%s3] sm:$0xff]
          %v1364 = vld [vmem:[%s3 + $0x8] sm:$0xff]
          %v1365 = vld [vmem:[%s3 + $0x10] sm:$0xff]
          %v1366 = vld [vmem:[%s3 + $0x18] sm:$0xff]
          %v1367 = vld [vmem:[%s3 + $0x20] sm:$0xff]
          %v1368 = vld [vmem:[%s3 + $0x28] sm:$0xff]
          %v1369 = vld [vmem:[%s3 + $0x30] sm:$0xff]
          %v1370 = vld [vmem:[%s3 + $0x38] sm:$0xff]
          %v1371 = vld [vmem:[%s4] sm:$0xff]
          %v1372 = vld [vmem:[%s4 + $0x8] sm:$0xff]
          %v1373 = vld [vmem:[%s4 + $0x10] sm:$0xff]
          %v1374 = vld [vmem:[%s4 + $0x18] sm:$0xff]
          %v1375 = vld [vmem:[%s4 + $0x20] sm:$0xff]
          %v1376 = vld [vmem:[%s4 + $0x28] sm:$0xff]
          %v1377 = vld [vmem:[%s4 + $0x30] sm:$0xff]
          %v1378 = vld [vmem:[%s4 + $0x38] sm:$0xff]
          %v1379 = vsel %vm1354, %v1316, 0.0
          %v1380 = vsel %vm1354, %v1321, 0.0
          %v1381 = vadd.f32 %v1379, %v1380
          %v1382 = vsel %vm1354, %v1326, 0.0
          %v1383 = vadd.f32 %v1381, %v1382
          %v1384 = vsel %vm1354, %v1331, 0.0
          %v1385 = vadd.f32 %v1383, %v1384
          %v1386 = vsel %vm1354, %v1336, 0.0
          %v1387 = vadd.f32 %v1385, %v1386
          %v1388 = vsel %vm1354, %v1341, 0.0
          %v1389 = vadd.f32 %v1387, %v1388
          %v1390 = vsel %vm1354, %v1346, 0.0
          %v1391 = vadd.f32 %v1389, %v1390
          %v1392 = vsel %vm1354, %v1351, 0.0
          %v1393 = vadd.f32 %v1391, %v1392
          %1394 = vadd.xlane.f32.xlu0 %v1393
          %v1395 = vpop.xlane.xlu0 %1394
          %v1396 = vrot.slane %v1395, 4
          %v1397 = vadd.f32 %v1395, %v1396
          %v1398 = vrot.slane %v1397, 2
          %v1399 = vadd.f32 %v1397, %v1398
          %v1400 = vrot.slane %v1399, 1
          %v1401 = vadd.f32 %v1399, %v1400
          %s1402 = vtos %v1401
          %v1403 = vrcp.pop 1408.0
          %s1404 = vtos %v1403
          %s1405 = smul.f32 %s1402, %s1404
          %v1406 = vstv %s1405
          %v1407 = vsub.f32 %v1316, %v1406
          %v1408 = vsub.f32 %v1321, %v1406
          %v1409 = vsub.f32 %v1326, %v1406
          %v1410 = vsub.f32 %v1331, %v1406
          %v1411 = vsub.f32 %v1336, %v1406
          %v1412 = vsub.f32 %v1341, %v1406
          %v1413 = vsub.f32 %v1346, %v1406
          %v1414 = vsub.f32 %v1351, %v1406
          %v1415 = vmul.f32 %v1407, %v1407
          %v1416 = vmul.f32 %v1408, %v1408
          %v1417 = vmul.f32 %v1409, %v1409
          %v1418 = vmul.f32 %v1410, %v1410
          %v1419 = vmul.f32 %v1411, %v1411
          %v1420 = vmul.f32 %v1412, %v1412
          %v1421 = vmul.f32 %v1413, %v1413
          %v1422 = vmul.f32 %v1414, %v1414
          %v1423 = vsel %vm1354, %v1415, 0.0
          %v1424 = vsel %vm1354, %v1416, 0.0
          %v1425 = vadd.f32 %v1423, %v1424
          %v1426 = vsel %vm1354, %v1417, 0.0
          %v1427 = vadd.f32 %v1425, %v1426
          %v1428 = vsel %vm1354, %v1418, 0.0
          %v1429 = vadd.f32 %v1427, %v1428
          %v1430 = vsel %vm1354, %v1419, 0.0
          %v1431 = vadd.f32 %v1429, %v1430
          %v1432 = vsel %vm1354, %v1420, 0.0
          %v1433 = vadd.f32 %v1431, %v1432
          %v1434 = vsel %vm1354, %v1421, 0.0
          %v1435 = vadd.f32 %v1433, %v1434
          %v1436 = vsel %vm1354, %v1422, 0.0
          %v1437 = vadd.f32 %v1435, %v1436
          %1438 = vadd.xlane.f32.xlu0 %v1437
          %v1439 = vpop.xlane.xlu0 %1438
          %v1440 = vrot.slane %v1439, 4
          %v1441 = vadd.f32 %v1439, %v1440
          %v1442 = vrot.slane %v1441, 2
          %v1443 = vadd.f32 %v1441, %v1442
          %v1444 = vrot.slane %v1443, 1
          %v1445 = vadd.f32 %v1443, %v1444
          %s1446 = vtos %v1445
          %v1447 = vrcp.pop 1408.0
          %s1448 = vtos %v1447
          %s1449 = smul.f32 %s1446, %s1448
          %s1450 = sadd.f32 %s1449, 1e-08
          %v1451 = vstv %s1450
          %v1452 = vrsqrt.pop %v1451
          %s1453 = vtos %v1452
          %v1454 = vstv %s1453
          %v1455 = vmul.f32 %v1407, %v1454
          %v1456 = vmul.f32 %v1408, %v1454
          %v1457 = vmul.f32 %v1409, %v1454
          %v1458 = vmul.f32 %v1410, %v1454
          %v1459 = vmul.f32 %v1411, %v1454
          %v1460 = vmul.f32 %v1412, %v1454
          %v1461 = vmul.f32 %v1413, %v1454
          %v1462 = vmul.f32 %v1414, %v1454
          %1464 = vset.pattern.permute.xlu0 0
          %1465 = vperm.xlu0 %1464, %v1363
          %v1466 = vpop.permute.xlu0 %1465
          %1469 = vset.pattern.permute.xlu0 0
          %1470 = vperm.xlu0 %1469, %v1364
          %v1471 = vpop.permute.xlu0 %1470
          %1474 = vset.pattern.permute.xlu0 0
          %1475 = vperm.xlu0 %1474, %v1365
          %v1476 = vpop.permute.xlu0 %1475
          %1479 = vset.pattern.permute.xlu0 0
          %1480 = vperm.xlu0 %1479, %v1366
          %v1481 = vpop.permute.xlu0 %1480
          %1484 = vset.pattern.permute.xlu0 0
          %1485 = vperm.xlu0 %1484, %v1367
          %v1486 = vpop.permute.xlu0 %1485
          %1489 = vset.pattern.permute.xlu0 0
          %1490 = vperm.xlu0 %1489, %v1368
          %v1491 = vpop.permute.xlu0 %1490
          %1494 = vset.pattern.permute.xlu0 0
          %1495 = vperm.xlu0 %1494, %v1369
          %v1496 = vpop.permute.xlu0 %1495
          %1499 = vset.pattern.permute.xlu0 0
          %1500 = vperm.xlu0 %1499, %v1370
          %v1501 = vpop.permute.xlu0 %1500
          %v1503 = vmul.f32 %v1455, %v1466
          %v1504 = vmul.f32 %v1456, %v1471
          %v1505 = vmul.f32 %v1457, %v1476
          %v1506 = vmul.f32 %v1458, %v1481
          %v1507 = vmul.f32 %v1459, %v1486
          %v1508 = vmul.f32 %v1460, %v1491
          %v1509 = vmul.f32 %v1461, %v1496
          %v1510 = vmul.f32 %v1462, %v1501
          %1512 = vset.pattern.permute.xlu0 0
          %1513 = vperm.xlu0 %1512, %v1371
          %v1514 = vpop.permute.xlu0 %1513
          %1517 = vset.pattern.permute.xlu0 0
          %1518 = vperm.xlu0 %1517, %v1372
          %v1519 = vpop.permute.xlu0 %1518
          %1522 = vset.pattern.permute.xlu0 0
          %1523 = vperm.xlu0 %1522, %v1373
          %v1524 = vpop.permute.xlu0 %1523
          %1527 = vset.pattern.permute.xlu0 0
          %1528 = vperm.xlu0 %1527, %v1374
          %v1529 = vpop.permute.xlu0 %1528
          %1532 = vset.pattern.permute.xlu0 0
          %1533 = vperm.xlu0 %1532, %v1375
          %v1534 = vpop.permute.xlu0 %1533
          %1537 = vset.pattern.permute.xlu0 0
          %1538 = vperm.xlu0 %1537, %v1376
          %v1539 = vpop.permute.xlu0 %1538
          %1542 = vset.pattern.permute.xlu0 0
          %1543 = vperm.xlu0 %1542, %v1377
          %v1544 = vpop.permute.xlu0 %1543
          %1547 = vset.pattern.permute.xlu0 0
          %1548 = vperm.xlu0 %1547, %v1378
          %v1549 = vpop.permute.xlu0 %1548
          %v1551 = vadd.f32 %v1503, %v1514
          %v1552 = vadd.f32 %v1504, %v1519
          %v1553 = vadd.f32 %v1505, %v1524
          %v1554 = vadd.f32 %v1506, %v1529
          %v1555 = vadd.f32 %v1507, %v1534
          %v1556 = vadd.f32 %v1508, %v1539
          %v1557 = vadd.f32 %v1509, %v1544
          %v1558 = vadd.f32 %v1510, %v1549
          %v1559 = vld [vmem:[%s5] sm:$0xff]
          %v1560 = vld [vmem:[%s5 + $0x8] sm:$0xff]
          %v1561 = vld [vmem:[%s5 + $0x10] sm:$0xff]
          %v1562 = vld [vmem:[%s5 + $0x18] sm:$0xff]
          %v1563 = vld [vmem:[%s6] sm:$0xff]
          %v1564 = vld [vmem:[%s6 + $0x8] sm:$0xff]
          %v1565 = vld [vmem:[%s6 + $0x10] sm:$0xff]
          %v1566 = vld [vmem:[%s6 + $0x18] sm:$0xff]
          %1568 = vset.pattern.permute.xlu0 0
          %1569 = vperm.xlu0 %1568, %v1563
          %v1570 = vpop.permute.xlu0 %1569
          %1573 = vset.pattern.permute.xlu0 0
          %1574 = vperm.xlu0 %1573, %v1564
          %v1575 = vpop.permute.xlu0 %1574
          %1578 = vset.pattern.permute.xlu0 0
          %1579 = vperm.xlu0 %1578, %v1565
          %v1580 = vpop.permute.xlu0 %1579
          %1583 = vset.pattern.permute.xlu0 0
          %1584 = vperm.xlu0 %1583, %v1566
          %v1585 = vpop.permute.xlu0 %1584
          %vm1587 = vcmask 523264
          %v1589 = vsel %vm1587, %v1559, 0
          %v1592 = vsel %vm1587, %v1560, 0
          %v1595 = vsel %vm1587, %v1561, 0
          %v1598 = vsel %vm1587, %v1562, 0
          %1600 = vmatprep.subr.mxu0 0.0
          %1601 = vmatpush1.msra.mxu0 0.0
          %1602 = vmatprep.subr.mxu0 0.0
          %1603 = vmatpush1.msra.mxu0 0.0
          %1604 = vmatprep.subr.mxu0 0.0
          %1605 = vmatpush1.msra.mxu0 0.0
          %1606 = vmatprep.subr.mxu0 0.0
          %1607 = vmatpush1.msra.mxu0 0.0
          %1608 = vmatprep.subr.mxu0 0.0
          %1609 = vmatpush1.msra.mxu0 0.0
          %1610 = vmatprep.subr.mxu0 0.0
          %1611 = vmatpush1.msra.mxu0 0.0
          %1612 = vmatprep.subr.mxu0 0.0
          %1613 = vmatpush1.msra.mxu0 0.0
          %1614 = vmatprep.subr.mxu0 0.0
          %1615 = vmatpush1.msra.mxu0 0.0
          %1616 = vmatprep.subr.mxu0 0.0
          %1617 = vmatpush1.msra.mxu0 %v1558
          %1618 = vmatprep.subr.mxu0 0.0
          %1619 = vmatpush1.msra.mxu0 %v1557
          %1620 = vmatprep.subr.mxu0 0.0
          %1621 = vmatpush1.msra.mxu0 %v1556
          %1622 = vmatprep.subr.mxu0 0.0
          %1623 = vmatpush1.msra.mxu0 %v1555
          %1624 = vmatprep.subr.mxu0 0.0
          %1625 = vmatpush1.msra.mxu0 %v1554
          %1626 = vmatprep.subr.mxu0 0.0
          %1627 = vmatpush1.msra.mxu0 %v1553
          %1628 = vmatprep.subr.mxu0 0.0
          %1629 = vmatpush1.msra.mxu0 %v1552
          %1630 = vmatprep.subr.mxu0 0.0
          %1631 = vmatpush1.msra.mxu0 %v1551
          %1632 = vmatprep.subr.mxu0 0.0
          %1633 = vmatpush2.msra.mxu0 0.0
          %1634 = vmatprep.subr.mxu0 0.0
          %1635 = vmatpush2.msra.mxu0 0.0
          %1636 = vmatprep.subr.mxu0 0.0
          %1637 = vmatpush2.msra.mxu0 0.0
          %1638 = vmatprep.subr.mxu0 0.0
          %1639 = vmatpush2.msra.mxu0 0.0
          %1640 = vmatprep.subr.mxu0 0.0
          %1641 = vmatpush2.msra.mxu0 0.0
          %1642 = vmatprep.subr.mxu0 0.0
          %1643 = vmatpush2.msra.mxu0 0.0
          %1644 = vmatprep.subr.mxu0 0.0
          %1645 = vmatpush2.msra.mxu0 0.0
          %1646 = vmatprep.subr.mxu0 0.0
          %1647 = vmatpush2.msra.mxu0 0.0
          %1648 = vmatprep.subr.mxu0 0.0
          %1649 = vmatpush2.msra.mxu0 0.0
          %1650 = vmatprep.subr.mxu0 0.0
          %1651 = vmatpush2.msra.mxu0 0.0
          %1652 = vmatprep.subr.mxu0 0.0
          %1653 = vmatpush2.msra.mxu0 0.0
          %1654 = vmatprep.subr.mxu0 0.0
          %1655 = vmatpush2.msra.mxu0 0.0
          %1656 = vmatprep.subr.mxu0 0.0
          %1657 = vmatpush2.msra.mxu0 0.0
          %1658 = vmatprep.subr.mxu0 0.0
          %1659 = vmatpush2.msra.mxu0 0.0
          %1660 = vmatprep.subr.mxu0 0.0
          %1661 = vmatpush2.msra.mxu0 0.0
          %1662 = vmatprep.subr.mxu0 0.0
          %1663 = vmatpush2.msra.mxu0 0.0
          %1664 = vmatprep.mubr.f32.mxu0 0.0
          %1665 = vmatmul.mubr.f32.gmra.mxu0 %v1589
          %v1666 = vpop.f32.mrf.mxu0
          %v1667 = vadd.f32 %v1570, %v1666
          %v1668 = vpop.f32.mrf.mxu0
          %1669 = vmatprep.mubr.f32.mxu0 0.0
          %1670 = vmatmul.mubr.f32.gmra.mxu0 %v1592
          %v1671 = vpop.f32.mrf.mxu0
          %v1672 = vadd.f32 %v1575, %v1671
          %v1673 = vpop.f32.mrf.mxu0
          %1674 = vmatprep.mubr.f32.mxu0 0.0
          %1675 = vmatmul.mubr.f32.gmra.mxu0 %v1595
          %v1676 = vpop.f32.mrf.mxu0
          %v1677 = vadd.f32 %v1580, %v1676
          %v1678 = vpop.f32.mrf.mxu0
          %1679 = vmatprep.mubr.f32.mxu0 0.0
          %1680 = vmatmul.mubr.f32.gmra.mxu0 %v1598
          %v1681 = vpop.f32.mrf.mxu0
          %v1682 = vadd.f32 %v1585, %v1681
          %v1683 = vpop.f32.mrf.mxu0
          %1684 = vdwg.mxu0
          %1685 = vst.msk [vmem:[#allocation3] sm:$0xff] %vm1354, %v1667
          %1686 = vst.msk [vmem:[#allocation3 + $0x8] sm:$0xff] %vm1354, %v1672
          %1687 = vst.msk [vmem:[#allocation3 + $0x10] sm:$0xff] %vm1354, %v1677
          %1688 = vst.msk [vmem:[#allocation3 + $0x18] sm:$0xff] %vm1354, %v1682
          %1689 = vst.msk [vmem:[#allocation4] sm:$0xff] %vm1354, 0.0
          %1690 = vst.msk [vmem:[#allocation4 + $0x8] sm:$0xff] %vm1354, 0.0
          %1691 = vst.msk [vmem:[#allocation4 + $0x10] sm:$0xff] %vm1354, 0.0
          %1692 = vst.msk [vmem:[#allocation4 + $0x18] sm:$0xff] %vm1354, 0.0
        $region124: #{tpu_custom_call.1} parent=119 // pred_fallthru
          _
        %v1693 = vld [vmem:[#allocation3] sm:$0xff]
        %v1694 = vld [vmem:[#allocation3 + $0x8] sm:$0xff]
        %v1695 = vld [vmem:[#allocation3 + $0x10] sm:$0xff]
        %v1696 = vld [vmem:[#allocation3 + $0x18] sm:$0xff]
        %v1697 = vld [vmem:[%s987] sm:$0xff]
        %v1698 = vld [vmem:[%s987 + $0x8] sm:$0xff]
        %v1699 = vld [vmem:[%s987 + $0x10] sm:$0xff]
        %v1700 = vld [vmem:[%s987 + $0x18] sm:$0xff]
        %v1701 = vld [vmem:[%s987 + $0x20] sm:$0xff]
        %v1702 = vld [vmem:[%s987 + $0x28] sm:$0xff]
        %v1703 = vld [vmem:[%s987 + $0x30] sm:$0xff]
        %v1704 = vld [vmem:[%s987 + $0x38] sm:$0xff]
        %v1705 = vld [vmem:[%s987 + $0x40] sm:$0xff]
        %v1706 = vld [vmem:[%s987 + $0x48] sm:$0xff]
        %v1707 = vld [vmem:[%s987 + $0x50] sm:$0xff]
        %v1708 = vld [vmem:[%s987 + $0x58] sm:$0xff]
        %v1709 = vld [vmem:[%s987 + $0x60] sm:$0xff]
        %v1710 = vld [vmem:[%s987 + $0x68] sm:$0xff]
        %v1711 = vld [vmem:[%s987 + $0x70] sm:$0xff]
        %v1712 = vld [vmem:[%s987 + $0x78] sm:$0xff]
        %v1713 = vld [vmem:[%s992] sm:$0xff]
        %v1714 = vld [vmem:[%s992 + $0x8] sm:$0xff]
        %v1715 = vld [vmem:[%s992 + $0x10] sm:$0xff]
        %v1716 = vld [vmem:[%s992 + $0x18] sm:$0xff]
        %v1717 = vld [vmem:[%s992 + $0x20] sm:$0xff]
        %v1718 = vld [vmem:[%s992 + $0x28] sm:$0xff]
        %v1719 = vld [vmem:[%s992 + $0x30] sm:$0xff]
        %v1720 = vld [vmem:[%s992 + $0x38] sm:$0xff]
        %v1721 = vld [vmem:[%s992 + $0x40] sm:$0xff]
        %v1722 = vld [vmem:[%s992 + $0x48] sm:$0xff]
        %v1723 = vld [vmem:[%s992 + $0x50] sm:$0xff]
        %v1724 = vld [vmem:[%s992 + $0x58] sm:$0xff]
        %v1725 = vld [vmem:[%s992 + $0x60] sm:$0xff]
        %v1726 = vld [vmem:[%s992 + $0x68] sm:$0xff]
        %v1727 = vld [vmem:[%s992 + $0x70] sm:$0xff]
        %v1728 = vld [vmem:[%s992 + $0x78] sm:$0xff]
        %1730 = vset.pattern.permute.xlu0 0
        %1731 = vperm.xlu0 %1730, %v1713
        %v1732 = vpop.permute.xlu0 %1731
        %1735 = vset.pattern.permute.xlu0 0
        %1736 = vperm.xlu0 %1735, %v1714
        %v1737 = vpop.permute.xlu0 %1736
        %1740 = vset.pattern.permute.xlu0 0
        %1741 = vperm.xlu0 %1740, %v1715
        %v1742 = vpop.permute.xlu0 %1741
        %1745 = vset.pattern.permute.xlu0 0
        %1746 = vperm.xlu0 %1745, %v1716
        %v1747 = vpop.permute.xlu0 %1746
        %1750 = vset.pattern.permute.xlu0 0
        %1751 = vperm.xlu0 %1750, %v1717
        %v1752 = vpop.permute.xlu0 %1751
        %1755 = vset.pattern.permute.xlu0 0
        %1756 = vperm.xlu0 %1755, %v1718
        %v1757 = vpop.permute.xlu0 %1756
        %1760 = vset.pattern.permute.xlu0 0
        %1761 = vperm.xlu0 %1760, %v1719
        %v1762 = vpop.permute.xlu0 %1761
        %1765 = vset.pattern.permute.xlu0 0
        %1766 = vperm.xlu0 %1765, %v1720
        %v1767 = vpop.permute.xlu0 %1766
        %1770 = vset.pattern.permute.xlu0 0
        %1771 = vperm.xlu0 %1770, %v1721
        %v1772 = vpop.permute.xlu0 %1771
        %1775 = vset.pattern.permute.xlu0 0
        %1776 = vperm.xlu0 %1775, %v1722
        %v1777 = vpop.permute.xlu0 %1776
        %1780 = vset.pattern.permute.xlu0 0
        %1781 = vperm.xlu0 %1780, %v1723
        %v1782 = vpop.permute.xlu0 %1781
        %1785 = vset.pattern.permute.xlu0 0
        %1786 = vperm.xlu0 %1785, %v1724
        %v1787 = vpop.permute.xlu0 %1786
        %1790 = vset.pattern.permute.xlu0 0
        %1791 = vperm.xlu0 %1790, %v1725
        %v1792 = vpop.permute.xlu0 %1791
        %1795 = vset.pattern.permute.xlu0 0
        %1796 = vperm.xlu0 %1795, %v1726
        %v1797 = vpop.permute.xlu0 %1796
        %1800 = vset.pattern.permute.xlu0 0
        %1801 = vperm.xlu0 %1800, %v1727
        %v1802 = vpop.permute.xlu0 %1801
        %1805 = vset.pattern.permute.xlu0 0
        %1806 = vperm.xlu0 %1805, %v1728
        %v1807 = vpop.permute.xlu0 %1806
        %vm1809 = vcmask 261120
        %v1811 = vsel %vm1809, %v1697, 0
        %v1814 = vsel %vm1809, %v1698, 0
        %v1817 = vsel %vm1809, %v1699, 0
        %v1820 = vsel %vm1809, %v1700, 0
        %v1823 = vsel %vm1809, %v1701, 0
        %v1826 = vsel %vm1809, %v1702, 0
        %v1829 = vsel %vm1809, %v1703, 0
        %v1832 = vsel %vm1809, %v1704, 0
        %v1835 = vsel %vm1809, %v1705, 0
        %v1838 = vsel %vm1809, %v1706, 0
        %v1841 = vsel %vm1809, %v1707, 0
        %v1844 = vsel %vm1809, %v1708, 0
        %v1847 = vsel %vm1809, %v1709, 0
        %v1850 = vsel %vm1809, %v1710, 0
        %v1853 = vsel %vm1809, %v1711, 0
        %v1856 = vsel %vm1809, %v1712, 0
        %1858 = vmatprep.subr.mxu0 0.0
        %1859 = vmatpush1.msra.mxu0 0.0
        %1860 = vmatprep.subr.mxu0 0.0
        %1861 = vmatpush1.msra.mxu0 0.0
        %1862 = vmatprep.subr.mxu0 0.0
        %1863 = vmatpush1.msra.mxu0 0.0
        %1864 = vmatprep.subr.mxu0 0.0
        %1865 = vmatpush1.msra.mxu0 0.0
        %1866 = vmatprep.subr.mxu0 0.0
        %1867 = vmatpush1.msra.mxu0 0.0
        %1868 = vmatprep.subr.mxu0 0.0
        %1869 = vmatpush1.msra.mxu0 0.0
        %1870 = vmatprep.subr.mxu0 0.0
        %1871 = vmatpush1.msra.mxu0 0.0
        %1872 = vmatprep.subr.mxu0 0.0
        %1873 = vmatpush1.msra.mxu0 0.0
        %1874 = vmatprep.subr.mxu0 0.0
        %1875 = vmatpush1.msra.mxu0 0.0
        %1876 = vmatprep.subr.mxu0 0.0
        %1877 = vmatpush1.msra.mxu0 0.0
        %1878 = vmatprep.subr.mxu0 0.0
        %1879 = vmatpush1.msra.mxu0 0.0
        %1880 = vmatprep.subr.mxu0 0.0
        %1881 = vmatpush1.msra.mxu0 0.0
        %1882 = vmatprep.subr.mxu0 0.0
        %1883 = vmatpush1.msra.mxu0 %v1696
        %1884 = vmatprep.subr.mxu0 0.0
        %1885 = vmatpush1.msra.mxu0 %v1695
        %1886 = vmatprep.subr.mxu0 0.0
        %1887 = vmatpush1.msra.mxu0 %v1694
        %1888 = vmatprep.subr.mxu0 0.0
        %1889 = vmatpush1.msra.mxu0 %v1693
        %1890 = vmatprep.subr.mxu0 0.0
        %1891 = vmatpush2.msra.mxu0 0.0
        %1892 = vmatprep.subr.mxu0 0.0
        %1893 = vmatpush2.msra.mxu0 0.0
        %1894 = vmatprep.subr.mxu0 0.0
        %1895 = vmatpush2.msra.mxu0 0.0
        %1896 = vmatprep.subr.mxu0 0.0
        %1897 = vmatpush2.msra.mxu0 0.0
        %1898 = vmatprep.subr.mxu0 0.0
        %1899 = vmatpush2.msra.mxu0 0.0
        %1900 = vmatprep.subr.mxu0 0.0
        %1901 = vmatpush2.msra.mxu0 0.0
        %1902 = vmatprep.subr.mxu0 0.0
        %1903 = vmatpush2.msra.mxu0 0.0
        %1904 = vmatprep.subr.mxu0 0.0
        %1905 = vmatpush2.msra.mxu0 0.0
        %1906 = vmatprep.subr.mxu0 0.0
        %1907 = vmatpush2.msra.mxu0 0.0
        %1908 = vmatprep.subr.mxu0 0.0
        %1909 = vmatpush2.msra.mxu0 0.0
        %1910 = vmatprep.subr.mxu0 0.0
        %1911 = vmatpush2.msra.mxu0 0.0
        %1912 = vmatprep.subr.mxu0 0.0
        %1913 = vmatpush2.msra.mxu0 0.0
        %1914 = vmatprep.subr.mxu0 0.0
        %1915 = vmatpush2.msra.mxu0 0.0
        %1916 = vmatprep.subr.mxu0 0.0
        %1917 = vmatpush2.msra.mxu0 0.0
        %1918 = vmatprep.subr.mxu0 0.0
        %1919 = vmatpush2.msra.mxu0 0.0
        %1920 = vmatprep.subr.mxu0 0.0
        %1921 = vmatpush2.msra.mxu0 0.0
        %1922 = vmatprep.mubr.f32.mxu0 0.0
        %1923 = vmatmul.mubr.f32.gmra.mxu0 %v1811
        %v1924 = vpop.f32.mrf.mxu0
        %v1925 = vadd.f32 %v1732, %v1924
        %v1926 = vpop.f32.mrf.mxu0
        %1927 = vmatprep.mubr.f32.mxu0 0.0
        %1928 = vmatmul.mubr.f32.gmra.mxu0 %v1814
        %v1929 = vpop.f32.mrf.mxu0
        %v1930 = vadd.f32 %v1737, %v1929
        %v1931 = vpop.f32.mrf.mxu0
        %1932 = vmatprep.mubr.f32.mxu0 0.0
        %1933 = vmatmul.mubr.f32.gmra.mxu0 %v1817
        %v1934 = vpop.f32.mrf.mxu0
        %v1935 = vadd.f32 %v1742, %v1934
        %v1936 = vpop.f32.mrf.mxu0
        %1937 = vmatprep.mubr.f32.mxu0 0.0
        %1938 = vmatmul.mubr.f32.gmra.mxu0 %v1820
        %v1939 = vpop.f32.mrf.mxu0
        %v1940 = vadd.f32 %v1747, %v1939
        %v1941 = vpop.f32.mrf.mxu0
        %1942 = vmatprep.mubr.f32.mxu0 0.0
        %1943 = vmatmul.mubr.f32.gmra.mxu0 %v1823
        %v1944 = vpop.f32.mrf.mxu0
        %v1945 = vadd.f32 %v1752, %v1944
        %v1946 = vpop.f32.mrf.mxu0
        %1947 = vmatprep.mubr.f32.mxu0 0.0
        %1948 = vmatmul.mubr.f32.gmra.mxu0 %v1826
        %v1949 = vpop.f32.mrf.mxu0
        %v1950 = vadd.f32 %v1757, %v1949
        %v1951 = vpop.f32.mrf.mxu0
        %1952 = vmatprep.mubr.f32.mxu0 0.0
        %1953 = vmatmul.mubr.f32.gmra.mxu0 %v1829
        %v1954 = vpop.f32.mrf.mxu0
        %v1955 = vadd.f32 %v1762, %v1954
        %v1956 = vpop.f32.mrf.mxu0
        %1957 = vmatprep.mubr.f32.mxu0 0.0
        %1958 = vmatmul.mubr.f32.gmra.mxu0 %v1832
        %v1959 = vpop.f32.mrf.mxu0
        %v1960 = vadd.f32 %v1767, %v1959
        %v1961 = vpop.f32.mrf.mxu0
        %1962 = vmatprep.mubr.f32.mxu0 0.0
        %1963 = vmatmul.mubr.f32.gmra.mxu0 %v1835
        %v1964 = vpop.f32.mrf.mxu0
        %v1965 = vadd.f32 %v1772, %v1964
        %v1966 = vpop.f32.mrf.mxu0
        %1967 = vmatprep.mubr.f32.mxu0 0.0
        %1968 = vmatmul.mubr.f32.gmra.mxu0 %v1838
        %v1969 = vpop.f32.mrf.mxu0
        %v1970 = vadd.f32 %v1777, %v1969
        %v1971 = vpop.f32.mrf.mxu0
        %1972 = vmatprep.mubr.f32.mxu0 0.0
        %1973 = vmatmul.mubr.f32.gmra.mxu0 %v1841
        %v1974 = vpop.f32.mrf.mxu0
        %v1975 = vadd.f32 %v1782, %v1974
        %v1976 = vpop.f32.mrf.mxu0
        %1977 = vmatprep.mubr.f32.mxu0 0.0
        %1978 = vmatmul.mubr.f32.gmra.mxu0 %v1844
        %v1979 = vpop.f32.mrf.mxu0
        %v1980 = vadd.f32 %v1787, %v1979
        %v1981 = vpop.f32.mrf.mxu0
        %1982 = vmatprep.mubr.f32.mxu0 0.0
        %1983 = vmatmul.mubr.f32.gmra.mxu0 %v1847
        %v1984 = vpop.f32.mrf.mxu0
        %v1985 = vadd.f32 %v1792, %v1984
        %v1986 = vpop.f32.mrf.mxu0
        %1987 = vmatprep.mubr.f32.mxu0 0.0
        %1988 = vmatmul.mubr.f32.gmra.mxu0 %v1850
        %v1989 = vpop.f32.mrf.mxu0
        %v1990 = vadd.f32 %v1797, %v1989
        %v1991 = vpop.f32.mrf.mxu0
        %1992 = vmatprep.mubr.f32.mxu0 0.0
        %1993 = vmatmul.mubr.f32.gmra.mxu0 %v1853
        %v1994 = vpop.f32.mrf.mxu0
        %v1995 = vadd.f32 %v1802, %v1994
        %v1996 = vpop.f32.mrf.mxu0
        %1997 = vmatprep.mubr.f32.mxu0 0.0
        %1998 = vmatmul.mubr.f32.gmra.mxu0 %v1856
        %v1999 = vpop.f32.mrf.mxu0
        %v2000 = vadd.f32 %v1807, %v1999
        %v2001 = vpop.f32.mrf.mxu0
        %2002 = vdwg.mxu0
        %v2003 = vld [vmem:[%s1006] sm:$0x1]
        %vm2004 = vcmp.ge.f32.partialorder %v1925, 0.0
        %vm2005 = vcmp.ge.f32.partialorder %v1930, 0.0
        %vm2006 = vcmp.ge.f32.partialorder %v1935, 0.0
        %vm2007 = vcmp.ge.f32.partialorder %v1940, 0.0
        %vm2008 = vcmp.ge.f32.partialorder %v1945, 0.0
        %vm2009 = vcmp.ge.f32.partialorder %v1950, 0.0
        %vm2010 = vcmp.ge.f32.partialorder %v1955, 0.0
        %vm2011 = vcmp.ge.f32.partialorder %v1960, 0.0
        %vm2012 = vcmp.ge.f32.partialorder %v1965, 0.0
        %vm2013 = vcmp.ge.f32.partialorder %v1970, 0.0
        %vm2014 = vcmp.ge.f32.partialorder %v1975, 0.0
        %vm2015 = vcmp.ge.f32.partialorder %v1980, 0.0
        %vm2016 = vcmp.ge.f32.partialorder %v1985, 0.0
        %vm2017 = vcmp.ge.f32.partialorder %v1990, 0.0
        %vm2018 = vcmp.ge.f32.partialorder %v1995, 0.0
        %vm2019 = vcmp.ge.f32.partialorder %v2000, 0.0
        %v2021 = vlaneseq
        %v2022 = vshrl.u32 %v2021, 7
        %v2023 = vsub.s32 0, %v2022
        %v2024 = vrot.slane %v2003, %v2023
        %2025 = vset.pattern.permute.xlu0 0
        %2026 = vperm.xlu0 %2025, %v2024
        %v2027 = vpop.permute.xlu0 %2026
        %v2029 = vmul.f32 %v2027, %v1925
        %v2030 = vmul.f32 %v2027, %v1930
        %v2031 = vmul.f32 %v2027, %v1935
        %v2032 = vmul.f32 %v2027, %v1940
        %v2033 = vmul.f32 %v2027, %v1945
        %v2034 = vmul.f32 %v2027, %v1950
        %v2035 = vmul.f32 %v2027, %v1955
        %v2036 = vmul.f32 %v2027, %v1960
        %v2037 = vmul.f32 %v2027, %v1965
        %v2038 = vmul.f32 %v2027, %v1970
        %v2039 = vmul.f32 %v2027, %v1975
        %v2040 = vmul.f32 %v2027, %v1980
        %v2041 = vmul.f32 %v2027, %v1985
        %v2042 = vmul.f32 %v2027, %v1990
        %v2043 = vmul.f32 %v2027, %v1995
        %v2044 = vmul.f32 %v2027, %v2000
        %v2045 = vsel %vm2004, %v1925, %v2029
        %v2046 = vsel %vm2005, %v1930, %v2030
        %v2047 = vsel %vm2006, %v1935, %v2031
        %v2048 = vsel %vm2007, %v1940, %v2032
        %v2049 = vsel %vm2008, %v1945, %v2033
        %v2050 = vsel %vm2009, %v1950, %v2034
        %v2051 = vsel %vm2010, %v1955, %v2035
        %v2052 = vsel %vm2011, %v1960, %v2036
        %v2053 = vsel %vm2012, %v1965, %v2037
        %v2054 = vsel %vm2013, %v1970, %v2038
        %v2055 = vsel %vm2014, %v1975, %v2039
        %v2056 = vsel %vm2015, %v1980, %v2040
        %v2057 = vsel %vm2016, %v1985, %v2041
        %v2058 = vsel %vm2017, %v1990, %v2042
        %v2059 = vsel %vm2018, %v1995, %v2043
        %v2060 = vsel %vm2019, %v2000, %v2044
        %v2061 = vld [vmem:[%s997] sm:$0xff]
        %v2062 = vld [vmem:[%s997 + $0x8] sm:$0xff]
        %v2063 = vld [vmem:[%s997 + $0x10] sm:$0xff]
        %v2064 = vld [vmem:[%s997 + $0x18] sm:$0xff]
        %v2065 = vld [vmem:[%s997 + $0x20] sm:$0xff]
        %v2066 = vld [vmem:[%s997 + $0x28] sm:$0xff]
        %v2067 = vld [vmem:[%s997 + $0x30] sm:$0xff]
        %v2068 = vld [vmem:[%s997 + $0x38] sm:$0xff]
        %v2069 = vld [vmem:[%s997 + $0x40] sm:$0xff]
        %v2070 = vld [vmem:[%s997 + $0x48] sm:$0xff]
        %v2071 = vld [vmem:[%s997 + $0x50] sm:$0xff]
        %v2072 = vld [vmem:[%s997 + $0x58] sm:$0xff]
        %v2073 = vld [vmem:[%s997 + $0x60] sm:$0xff]
        %v2074 = vld [vmem:[%s997 + $0x68] sm:$0xff]
        %v2075 = vld [vmem:[%s997 + $0x70] sm:$0xff]
        %v2076 = vld [vmem:[%s997 + $0x78] sm:$0xff]
        %v2077 = vld [vmem:[%s1002] sm:$0xff]
        %v2078 = vld [vmem:[%s1002 + $0x8] sm:$0xff]
        %v2079 = vld [vmem:[%s1002 + $0x10] sm:$0xff]
        %v2080 = vld [vmem:[%s1002 + $0x18] sm:$0xff]
        %v2081 = vld [vmem:[%s1002 + $0x20] sm:$0xff]
        %v2082 = vld [vmem:[%s1002 + $0x28] sm:$0xff]
        %v2083 = vld [vmem:[%s1002 + $0x30] sm:$0xff]
        %v2084 = vld [vmem:[%s1002 + $0x38] sm:$0xff]
        %v2085 = vld [vmem:[%s1002 + $0x40] sm:$0xff]
        %v2086 = vld [vmem:[%s1002 + $0x48] sm:$0xff]
        %v2087 = vld [vmem:[%s1002 + $0x50] sm:$0xff]
        %v2088 = vld [vmem:[%s1002 + $0x58] sm:$0xff]
        %v2089 = vld [vmem:[%s1002 + $0x60] sm:$0xff]
        %v2090 = vld [vmem:[%s1002 + $0x68] sm:$0xff]
        %v2091 = vld [vmem:[%s1002 + $0x70] sm:$0xff]
        %v2092 = vld [vmem:[%s1002 + $0x78] sm:$0xff]
        %vm2093 = vcmask 179200
        %v2094 = vsel %vm2093, %v2045, 0.0
        %v2095 = vsel %vm2093, %v2046, 0.0
        %v2096 = vadd.f32 %v2094, %v2095
        %v2097 = vsel %vm2093, %v2047, 0.0
        %v2098 = vadd.f32 %v2096, %v2097
        %v2099 = vsel %vm2093, %v2048, 0.0
        %v2100 = vadd.f32 %v2098, %v2099
        %v2101 = vsel %vm2093, %v2049, 0.0
        %v2102 = vadd.f32 %v2100, %v2101
        %v2103 = vsel %vm2093, %v2050, 0.0
        %v2104 = vadd.f32 %v2102, %v2103
        %v2105 = vsel %vm2093, %v2051, 0.0
        %v2106 = vadd.f32 %v2104, %v2105
        %v2107 = vsel %vm2093, %v2052, 0.0
        %v2108 = vadd.f32 %v2106, %v2107
        %v2109 = vsel %vm2093, %v2053, 0.0
        %v2110 = vadd.f32 %v2108, %v2109
        %v2111 = vsel %vm2093, %v2054, 0.0
        %v2112 = vadd.f32 %v2110, %v2111
        %v2113 = vsel %vm2093, %v2055, 0.0
        %v2114 = vadd.f32 %v2112, %v2113
        %v2115 = vsel %vm2093, %v2056, 0.0
        %v2116 = vadd.f32 %v2114, %v2115
        %v2117 = vsel %vm2093, %v2057, 0.0
        %v2118 = vadd.f32 %v2116, %v2117
        %v2119 = vsel %vm2093, %v2058, 0.0
        %v2120 = vadd.f32 %v2118, %v2119
        %v2121 = vsel %vm2093, %v2059, 0.0
        %v2122 = vadd.f32 %v2120, %v2121
        %v2123 = vsel %vm2093, %v2060, 0.0
        %v2124 = vadd.f32 %v2122, %v2123
        %2125 = vadd.xlane.f32.xlu0 %v2124
        %v2126 = vpop.xlane.xlu0 %2125
        %v2127 = vrot.slane %v2126, 4
        %v2128 = vadd.f32 %v2126, %v2127
        %v2129 = vrot.slane %v2128, 2
        %v2130 = vadd.f32 %v2128, %v2129
        %v2131 = vrot.slane %v2130, 1
        %v2132 = vadd.f32 %v2130, %v2131
        %s2133 = vtos %v2132
        %v2134 = vrcp.pop 2816.0
        %s2135 = vtos %v2134
        %s2136 = smul.f32 %s2133, %s2135
        %v2137 = vstv %s2136
        %v2138 = vsub.f32 %v2045, %v2137
        %v2139 = vsub.f32 %v2046, %v2137
        %v2140 = vsub.f32 %v2047, %v2137
        %v2141 = vsub.f32 %v2048, %v2137
        %v2142 = vsub.f32 %v2049, %v2137
        %v2143 = vsub.f32 %v2050, %v2137
        %v2144 = vsub.f32 %v2051, %v2137
        %v2145 = vsub.f32 %v2052, %v2137
        %v2146 = vsub.f32 %v2053, %v2137
        %v2147 = vsub.f32 %v2054, %v2137
        %v2148 = vsub.f32 %v2055, %v2137
        %v2149 = vsub.f32 %v2056, %v2137
        %v2150 = vsub.f32 %v2057, %v2137
        %v2151 = vsub.f32 %v2058, %v2137
        %v2152 = vsub.f32 %v2059, %v2137
        %v2153 = vsub.f32 %v2060, %v2137
        %v2154 = vmul.f32 %v2138, %v2138
        %v2155 = vmul.f32 %v2139, %v2139
        %v2156 = vmul.f32 %v2140, %v2140
        %v2157 = vmul.f32 %v2141, %v2141
        %v2158 = vmul.f32 %v2142, %v2142
        %v2159 = vmul.f32 %v2143, %v2143
        %v2160 = vmul.f32 %v2144, %v2144
        %v2161 = vmul.f32 %v2145, %v2145
        %v2162 = vmul.f32 %v2146, %v2146
        %v2163 = vmul.f32 %v2147, %v2147
        %v2164 = vmul.f32 %v2148, %v2148
        %v2165 = vmul.f32 %v2149, %v2149
        %v2166 = vmul.f32 %v2150, %v2150
        %v2167 = vmul.f32 %v2151, %v2151
        %v2168 = vmul.f32 %v2152, %v2152
        %v2169 = vmul.f32 %v2153, %v2153
        %v2170 = vsel %vm2093, %v2154, 0.0
        %v2171 = vsel %vm2093, %v2155, 0.0
        %v2172 = vadd.f32 %v2170, %v2171
        %v2173 = vsel %vm2093, %v2156, 0.0
        %v2174 = vadd.f32 %v2172, %v2173
        %v2175 = vsel %vm2093, %v2157, 0.0
        %v2176 = vadd.f32 %v2174, %v2175
        %v2177 = vsel %vm2093, %v2158, 0.0
        %v2178 = vadd.f32 %v2176, %v2177
        %v2179 = vsel %vm2093, %v2159, 0.0
        %v2180 = vadd.f32 %v2178, %v2179
        %v2181 = vsel %vm2093, %v2160, 0.0
        %v2182 = vadd.f32 %v2180, %v2181
        %v2183 = vsel %vm2093, %v2161, 0.0
        %v2184 = vadd.f32 %v2182, %v2183
        %v2185 = vsel %vm2093, %v2162, 0.0
        %v2186 = vadd.f32 %v2184, %v2185
        %v2187 = vsel %vm2093, %v2163, 0.0
        %v2188 = vadd.f32 %v2186, %v2187
        %v2189 = vsel %vm2093, %v2164, 0.0
        %v2190 = vadd.f32 %v2188, %v2189
        %v2191 = vsel %vm2093, %v2165, 0.0
        %v2192 = vadd.f32 %v2190, %v2191
        %v2193 = vsel %vm2093, %v2166, 0.0
        %v2194 = vadd.f32 %v2192, %v2193
        %v2195 = vsel %vm2093, %v2167, 0.0
        %v2196 = vadd.f32 %v2194, %v2195
        %v2197 = vsel %vm2093, %v2168, 0.0
        %v2198 = vadd.f32 %v2196, %v2197
        %v2199 = vsel %vm2093, %v2169, 0.0
        %v2200 = vadd.f32 %v2198, %v2199
        %2201 = vadd.xlane.f32.xlu0 %v2200
        %v2202 = vpop.xlane.xlu0 %2201
        %v2203 = vrot.slane %v2202, 4
        %v2204 = vadd.f32 %v2202, %v2203
        %v2205 = vrot.slane %v2204, 2
        %v2206 = vadd.f32 %v2204, %v2205
        %v2207 = vrot.slane %v2206, 1
        %v2208 = vadd.f32 %v2206, %v2207
        %s2209 = vtos %v2208
        %v2210 = vrcp.pop 2816.0
        %s2211 = vtos %v2210
        %s2212 = smul.f32 %s2209, %s2211
        %s2213 = sadd.f32 %s2212, 1e-08
        %v2214 = vstv %s2213
        %v2215 = vrsqrt.pop %v2214
        %s2216 = vtos %v2215
        %v2217 = vstv %s2216
        %v2218 = vmul.f32 %v2138, %v2217
        %v2219 = vmul.f32 %v2139, %v2217
        %v2220 = vmul.f32 %v2140, %v2217
        %v2221 = vmul.f32 %v2141, %v2217
        %v2222 = vmul.f32 %v2142, %v2217
        %v2223 = vmul.f32 %v2143, %v2217
        %v2224 = vmul.f32 %v2144, %v2217
        %v2225 = vmul.f32 %v2145, %v2217
        %v2226 = vmul.f32 %v2146, %v2217
        %v2227 = vmul.f32 %v2147, %v2217
        %v2228 = vmul.f32 %v2148, %v2217
        %v2229 = vmul.f32 %v2149, %v2217
        %v2230 = vmul.f32 %v2150, %v2217
        %v2231 = vmul.f32 %v2151, %v2217
        %v2232 = vmul.f32 %v2152, %v2217
        %v2233 = vmul.f32 %v2153, %v2217
        %2235 = vset.pattern.permute.xlu0 0
        %2236 = vperm.xlu0 %2235, %v2061
        %v2237 = vpop.permute.xlu0 %2236
        %2240 = vset.pattern.permute.xlu0 0
        %2241 = vperm.xlu0 %2240, %v2062
        %v2242 = vpop.permute.xlu0 %2241
        %2245 = vset.pattern.permute.xlu0 0
        %2246 = vperm.xlu0 %2245, %v2063
        %v2247 = vpop.permute.xlu0 %2246
        %2250 = vset.pattern.permute.xlu0 0
        %2251 = vperm.xlu0 %2250, %v2064
        %v2252 = vpop.permute.xlu0 %2251
        %2255 = vset.pattern.permute.xlu0 0
        %2256 = vperm.xlu0 %2255, %v2065
        %v2257 = vpop.permute.xlu0 %2256
        %2260 = vset.pattern.permute.xlu0 0
        %2261 = vperm.xlu0 %2260, %v2066
        %v2262 = vpop.permute.xlu0 %2261
        %2265 = vset.pattern.permute.xlu0 0
        %2266 = vperm.xlu0 %2265, %v2067
        %v2267 = vpop.permute.xlu0 %2266
        %2270 = vset.pattern.permute.xlu0 0
        %2271 = vperm.xlu0 %2270, %v2068
        %v2272 = vpop.permute.xlu0 %2271
        %2275 = vset.pattern.permute.xlu0 0
        %2276 = vperm.xlu0 %2275, %v2069
        %v2277 = vpop.permute.xlu0 %2276
        %2280 = vset.pattern.permute.xlu0 0
        %2281 = vperm.xlu0 %2280, %v2070
        %v2282 = vpop.permute.xlu0 %2281
        %2285 = vset.pattern.permute.xlu0 0
        %2286 = vperm.xlu0 %2285, %v2071
        %v2287 = vpop.permute.xlu0 %2286
        %2290 = vset.pattern.permute.xlu0 0
        %2291 = vperm.xlu0 %2290, %v2072
        %v2292 = vpop.permute.xlu0 %2291
        %2295 = vset.pattern.permute.xlu0 0
        %2296 = vperm.xlu0 %2295, %v2073
        %v2297 = vpop.permute.xlu0 %2296
        %2300 = vset.pattern.permute.xlu0 0
        %2301 = vperm.xlu0 %2300, %v2074
        %v2302 = vpop.permute.xlu0 %2301
        %2305 = vset.pattern.permute.xlu0 0
        %2306 = vperm.xlu0 %2305, %v2075
        %v2307 = vpop.permute.xlu0 %2306
        %2310 = vset.pattern.permute.xlu0 0
        %2311 = vperm.xlu0 %2310, %v2076
        %v2312 = vpop.permute.xlu0 %2311
        %v2314 = vmul.f32 %v2218, %v2237
        %v2315 = vmul.f32 %v2219, %v2242
        %v2316 = vmul.f32 %v2220, %v2247
        %v2317 = vmul.f32 %v2221, %v2252
        %v2318 = vmul.f32 %v2222, %v2257
        %v2319 = vmul.f32 %v2223, %v2262
        %v2320 = vmul.f32 %v2224, %v2267
        %v2321 = vmul.f32 %v2225, %v2272
        %v2322 = vmul.f32 %v2226, %v2277
        %v2323 = vmul.f32 %v2227, %v2282
        %v2324 = vmul.f32 %v2228, %v2287
        %v2325 = vmul.f32 %v2229, %v2292
        %v2326 = vmul.f32 %v2230, %v2297
        %v2327 = vmul.f32 %v2231, %v2302
        %v2328 = vmul.f32 %v2232, %v2307
        %v2329 = vmul.f32 %v2233, %v2312
        %2331 = vset.pattern.permute.xlu0 0
        %2332 = vperm.xlu0 %2331, %v2077
        %v2333 = vpop.permute.xlu0 %2332
        %2336 = vset.pattern.permute.xlu0 0
        %2337 = vperm.xlu0 %2336, %v2078
        %v2338 = vpop.permute.xlu0 %2337
        %2341 = vset.pattern.permute.xlu0 0
        %2342 = vperm.xlu0 %2341, %v2079
        %v2343 = vpop.permute.xlu0 %2342
        %2346 = vset.pattern.permute.xlu0 0
        %2347 = vperm.xlu0 %2346, %v2080
        %v2348 = vpop.permute.xlu0 %2347
        %2351 = vset.pattern.permute.xlu0 0
        %2352 = vperm.xlu0 %2351, %v2081
        %v2353 = vpop.permute.xlu0 %2352
        %2356 = vset.pattern.permute.xlu0 0
        %2357 = vperm.xlu0 %2356, %v2082
        %v2358 = vpop.permute.xlu0 %2357
        %2361 = vset.pattern.permute.xlu0 0
        %2362 = vperm.xlu0 %2361, %v2083
        %v2363 = vpop.permute.xlu0 %2362
        %2366 = vset.pattern.permute.xlu0 0
        %2367 = vperm.xlu0 %2366, %v2084
        %v2368 = vpop.permute.xlu0 %2367
        %2371 = vset.pattern.permute.xlu0 0
        %2372 = vperm.xlu0 %2371, %v2085
        %v2373 = vpop.permute.xlu0 %2372
        %2376 = vset.pattern.permute.xlu0 0
        %2377 = vperm.xlu0 %2376, %v2086
        %v2378 = vpop.permute.xlu0 %2377
        %2381 = vset.pattern.permute.xlu0 0
        %2382 = vperm.xlu0 %2381, %v2087
        %v2383 = vpop.permute.xlu0 %2382
        %2386 = vset.pattern.permute.xlu0 0
        %2387 = vperm.xlu0 %2386, %v2088
        %v2388 = vpop.permute.xlu0 %2387
        %2391 = vset.pattern.permute.xlu0 0
        %2392 = vperm.xlu0 %2391, %v2089
        %v2393 = vpop.permute.xlu0 %2392
        %2396 = vset.pattern.permute.xlu0 0
        %2397 = vperm.xlu0 %2396, %v2090
        %v2398 = vpop.permute.xlu0 %2397
        %2401 = vset.pattern.permute.xlu0 0
        %2402 = vperm.xlu0 %2401, %v2091
        %v2403 = vpop.permute.xlu0 %2402
        %2406 = vset.pattern.permute.xlu0 0
        %2407 = vperm.xlu0 %2406, %v2092
        %v2408 = vpop.permute.xlu0 %2407
        %v2410 = vadd.f32 %v2314, %v2333
        %v2411 = vadd.f32 %v2315, %v2338
        %v2412 = vadd.f32 %v2316, %v2343
        %v2413 = vadd.f32 %v2317, %v2348
        %v2414 = vadd.f32 %v2318, %v2353
        %v2415 = vadd.f32 %v2319, %v2358
        %v2416 = vadd.f32 %v2320, %v2363
        %v2417 = vadd.f32 %v2321, %v2368
        %v2418 = vadd.f32 %v2322, %v2373
        %v2419 = vadd.f32 %v2323, %v2378
        %v2420 = vadd.f32 %v2324, %v2383
        %v2421 = vadd.f32 %v2325, %v2388
        %v2422 = vadd.f32 %v2326, %v2393
        %v2423 = vadd.f32 %v2327, %v2398
        %v2424 = vadd.f32 %v2328, %v2403
        %v2425 = vadd.f32 %v2329, %v2408
        %v2426 = vld [vmem:[%s1011] sm:$0xff]
        %v2427 = vld [vmem:[%s1011 + $0x8] sm:$0xff]
        %v2428 = vld [vmem:[%s1011 + $0x10] sm:$0xff]
        %v2429 = vld [vmem:[%s1011 + $0x18] sm:$0xff]
        %v2430 = vld [vmem:[%s1011 + $0x20] sm:$0xff]
        %v2431 = vld [vmem:[%s1011 + $0x28] sm:$0xff]
        %v2432 = vld [vmem:[%s1011 + $0x30] sm:$0xff]
        %v2433 = vld [vmem:[%s1011 + $0x38] sm:$0xff]
        %v2434 = vld [vmem:[%s1011 + $0x40] sm:$0xff]
        %v2435 = vld [vmem:[%s1011 + $0x48] sm:$0xff]
        %v2436 = vld [vmem:[%s1011 + $0x50] sm:$0xff]
        %v2437 = vld [vmem:[%s1011 + $0x58] sm:$0xff]
        %v2438 = vld [vmem:[%s1011 + $0x60] sm:$0xff]
        %v2439 = vld [vmem:[%s1011 + $0x68] sm:$0xff]
        %v2440 = vld [vmem:[%s1011 + $0x70] sm:$0xff]
        %v2441 = vld [vmem:[%s1011 + $0x78] sm:$0xff]
        %vm2442 = vcmask 1047728
        %2443 = vrot.lane.b32.xlu0 %v2410, 22
        %v2444 = vpop.permute.xlu0 %2443
        %v2445 = vsel %vm2442, %v2444, %v2410
        %2446 = vrot.lane.b32.xlu0 %v2411, 22
        %v2447 = vpop.permute.xlu0 %2446
        %v2448 = vsel %vm2442, %v2447, %v2411
        %2449 = vrot.lane.b32.xlu0 %v2412, 22
        %v2450 = vpop.permute.xlu0 %2449
        %v2451 = vsel %vm2442, %v2450, %v2412
        %2452 = vrot.lane.b32.xlu0 %v2413, 22
        %v2453 = vpop.permute.xlu0 %2452
        %v2454 = vsel %vm2442, %v2453, %v2413
        %2455 = vrot.lane.b32.xlu0 %v2414, 22
        %v2456 = vpop.permute.xlu0 %2455
        %v2457 = vsel %vm2442, %v2456, %v2414
        %2458 = vrot.lane.b32.xlu0 %v2415, 22
        %v2459 = vpop.permute.xlu0 %2458
        %v2460 = vsel %vm2442, %v2459, %v2415
        %2461 = vrot.lane.b32.xlu0 %v2416, 22
        %v2462 = vpop.permute.xlu0 %2461
        %v2463 = vsel %vm2442, %v2462, %v2416
        %2464 = vrot.lane.b32.xlu0 %v2417, 22
        %v2465 = vpop.permute.xlu0 %2464
        %v2466 = vsel %vm2442, %v2465, %v2417
        %2467 = vrot.lane.b32.xlu0 %v2418, 22
        %v2468 = vpop.permute.xlu0 %2467
        %v2469 = vsel %vm2442, %v2468, %v2418
        %2470 = vrot.lane.b32.xlu0 %v2419, 22
        %v2471 = vpop.permute.xlu0 %2470
        %v2472 = vsel %vm2442, %v2471, %v2419
        %2473 = vrot.lane.b32.xlu0 %v2420, 22
        %v2474 = vpop.permute.xlu0 %2473
        %v2475 = vsel %vm2442, %v2474, %v2420
        %2476 = vrot.lane.b32.xlu0 %v2421, 22
        %v2477 = vpop.permute.xlu0 %2476
        %v2478 = vsel %vm2442, %v2477, %v2421
        %2479 = vrot.lane.b32.xlu0 %v2422, 22
        %v2480 = vpop.permute.xlu0 %2479
        %v2481 = vsel %vm2442, %v2480, %v2422
        %2482 = vrot.lane.b32.xlu0 %v2423, 22
        %v2483 = vpop.permute.xlu0 %2482
        %v2484 = vsel %vm2442, %v2483, %v2423
        %2485 = vrot.lane.b32.xlu0 %v2424, 22
        %v2486 = vpop.permute.xlu0 %2485
        %v2487 = vsel %vm2442, %v2486, %v2424
        %2488 = vrot.lane.b32.xlu0 %v2425, 22
        %v2489 = vpop.permute.xlu0 %2488
        %v2490 = vsel %vm2442, %v2489, %v2425
        %2491 = vrot.lane.b32.xlu0 %v2445, 22
        %v2492 = vpop.permute.xlu0 %2491
        %2493 = vrot.lane.b32.xlu0 %v2448, 22
        %v2494 = vpop.permute.xlu0 %2493
        %2495 = vrot.lane.b32.xlu0 %v2451, 22
        %v2496 = vpop.permute.xlu0 %2495
        %2497 = vrot.lane.b32.xlu0 %v2454, 22
        %v2498 = vpop.permute.xlu0 %2497
        %2499 = vrot.lane.b32.xlu0 %v2457, 22
        %v2500 = vpop.permute.xlu0 %2499
        %2501 = vrot.lane.b32.xlu0 %v2460, 22
        %v2502 = vpop.permute.xlu0 %2501
        %2503 = vrot.lane.b32.xlu0 %v2463, 22
        %v2504 = vpop.permute.xlu0 %2503
        %2505 = vrot.lane.b32.xlu0 %v2466, 22
        %v2506 = vpop.permute.xlu0 %2505
        %2507 = vrot.lane.b32.xlu0 %v2469, 22
        %v2508 = vpop.permute.xlu0 %2507
        %2509 = vrot.lane.b32.xlu0 %v2472, 22
        %v2510 = vpop.permute.xlu0 %2509
        %2511 = vrot.lane.b32.xlu0 %v2475, 22
        %v2512 = vpop.permute.xlu0 %2511
        %2513 = vrot.lane.b32.xlu0 %v2478, 22
        %v2514 = vpop.permute.xlu0 %2513
        %2515 = vrot.lane.b32.xlu0 %v2481, 22
        %v2516 = vpop.permute.xlu0 %2515
        %2517 = vrot.lane.b32.xlu0 %v2484, 22
        %v2518 = vpop.permute.xlu0 %2517
        %2519 = vrot.lane.b32.xlu0 %v2487, 22
        %v2520 = vpop.permute.xlu0 %2519
        %2521 = vrot.lane.b32.xlu0 %v2490, 22
        %v2522 = vpop.permute.xlu0 %2521
        %v2523 = vsel %vm2442, %v2492, %v2410
        %v2524 = vsel %vm2442, %v2494, %v2411
        %v2525 = vsel %vm2442, %v2496, %v2412
        %v2526 = vsel %vm2442, %v2498, %v2413
        %v2527 = vsel %vm2442, %v2500, %v2414
        %v2528 = vsel %vm2442, %v2502, %v2415
        %v2529 = vsel %vm2442, %v2504, %v2416
        %v2530 = vsel %vm2442, %v2506, %v2417
        %v2531 = vsel %vm2442, %v2508, %v2418
        %v2532 = vsel %vm2442, %v2510, %v2419
        %v2533 = vsel %vm2442, %v2512, %v2420
        %v2534 = vsel %vm2442, %v2514, %v2421
        %v2535 = vsel %vm2442, %v2516, %v2422
        %v2536 = vsel %vm2442, %v2518, %v2423
        %v2537 = vsel %vm2442, %v2520, %v2424
        %v2538 = vsel %vm2442, %v2522, %v2425
        %v2539 = vlaneseq
        %v2540 = vand.u32 %v2539, 127
        %vm2541 = vcmp.ge.s32.totalorder %v2540, 1
        %2558 = vrot.lane.b32.xlu0 %v2523, 107
        %v2559 = vpop.permute.xlu0 %2558
        %2560 = vrot.lane.b32.xlu0 %v2524, 107
        %v2561 = vpop.permute.xlu0 %2560
        %2562 = vrot.lane.b32.xlu0 %v2525, 107
        %v2563 = vpop.permute.xlu0 %2562
        %2564 = vrot.lane.b32.xlu0 %v2526, 107
        %v2565 = vpop.permute.xlu0 %2564
        %2566 = vrot.lane.b32.xlu0 %v2527, 107
        %v2567 = vpop.permute.xlu0 %2566
        %2568 = vrot.lane.b32.xlu0 %v2528, 107
        %v2569 = vpop.permute.xlu0 %2568
        %2570 = vrot.lane.b32.xlu0 %v2529, 107
        %v2571 = vpop.permute.xlu0 %2570
        %2572 = vrot.lane.b32.xlu0 %v2530, 107
        %v2573 = vpop.permute.xlu0 %2572
        %2574 = vrot.lane.b32.xlu0 %v2531, 107
        %v2575 = vpop.permute.xlu0 %2574
        %2576 = vrot.lane.b32.xlu0 %v2532, 107
        %v2577 = vpop.permute.xlu0 %2576
        %2578 = vrot.lane.b32.xlu0 %v2533, 107
        %v2579 = vpop.permute.xlu0 %2578
        %2580 = vrot.lane.b32.xlu0 %v2534, 107
        %v2581 = vpop.permute.xlu0 %2580
        %2582 = vrot.lane.b32.xlu0 %v2535, 107
        %v2583 = vpop.permute.xlu0 %2582
        %2584 = vrot.lane.b32.xlu0 %v2536, 107
        %v2585 = vpop.permute.xlu0 %2584
        %2586 = vrot.lane.b32.xlu0 %v2537, 107
        %v2587 = vpop.permute.xlu0 %2586
        %2588 = vrot.lane.b32.xlu0 %v2538, 107
        %v2589 = vpop.permute.xlu0 %2588
        %v2606 = vsel %vm2541, %v2559, 0.0
        %v2607 = vsel %vm2541, %v2561, 0.0
        %v2608 = vsel %vm2541, %v2563, 0.0
        %v2609 = vsel %vm2541, %v2565, 0.0
        %v2610 = vsel %vm2541, %v2567, 0.0
        %v2611 = vsel %vm2541, %v2569, 0.0
        %v2612 = vsel %vm2541, %v2571, 0.0
        %v2613 = vsel %vm2541, %v2573, 0.0
        %v2614 = vsel %vm2541, %v2575, 0.0
        %v2615 = vsel %vm2541, %v2577, 0.0
        %v2616 = vsel %vm2541, %v2579, 0.0
        %v2617 = vsel %vm2541, %v2581, 0.0
        %v2618 = vsel %vm2541, %v2583, 0.0
        %v2619 = vsel %vm2541, %v2585, 0.0
        %v2620 = vsel %vm2541, %v2587, 0.0
        %v2621 = vsel %vm2541, %v2589, 0.0
        %2623 = vset.pattern.permute.xlu0 0
        %2624 = vperm.xlu0 %2623, %v2426
        %v2625 = vpop.permute.xlu0 %2624
        %2628 = vset.pattern.permute.xlu0 0
        %2629 = vperm.xlu0 %2628, %v2427
        %v2630 = vpop.permute.xlu0 %2629
        %2633 = vset.pattern.permute.xlu0 0
        %2634 = vperm.xlu0 %2633, %v2428
        %v2635 = vpop.permute.xlu0 %2634
        %2638 = vset.pattern.permute.xlu0 0
        %2639 = vperm.xlu0 %2638, %v2429
        %v2640 = vpop.permute.xlu0 %2639
        %2643 = vset.pattern.permute.xlu0 0
        %2644 = vperm.xlu0 %2643, %v2430
        %v2645 = vpop.permute.xlu0 %2644
        %2648 = vset.pattern.permute.xlu0 0
        %2649 = vperm.xlu0 %2648, %v2431
        %v2650 = vpop.permute.xlu0 %2649
        %2653 = vset.pattern.permute.xlu0 0
        %2654 = vperm.xlu0 %2653, %v2432
        %v2655 = vpop.permute.xlu0 %2654
        %2658 = vset.pattern.permute.xlu0 0
        %2659 = vperm.xlu0 %2658, %v2433
        %v2660 = vpop.permute.xlu0 %2659
        %2663 = vset.pattern.permute.xlu0 0
        %2664 = vperm.xlu0 %2663, %v2434
        %v2665 = vpop.permute.xlu0 %2664
        %2668 = vset.pattern.permute.xlu0 0
        %2669 = vperm.xlu0 %2668, %v2435
        %v2670 = vpop.permute.xlu0 %2669
        %2673 = vset.pattern.permute.xlu0 0
        %2674 = vperm.xlu0 %2673, %v2436
        %v2675 = vpop.permute.xlu0 %2674
        %2678 = vset.pattern.permute.xlu0 0
        %2679 = vperm.xlu0 %2678, %v2437
        %v2680 = vpop.permute.xlu0 %2679
        %2683 = vset.pattern.permute.xlu0 0
        %2684 = vperm.xlu0 %2683, %v2438
        %v2685 = vpop.permute.xlu0 %2684
        %2688 = vset.pattern.permute.xlu0 0
        %2689 = vperm.xlu0 %2688, %v2439
        %v2690 = vpop.permute.xlu0 %2689
        %2693 = vset.pattern.permute.xlu0 0
        %2694 = vperm.xlu0 %2693, %v2440
        %v2695 = vpop.permute.xlu0 %2694
        %2698 = vset.pattern.permute.xlu0 0
        %2699 = vperm.xlu0 %2698, %v2441
        %v2700 = vpop.permute.xlu0 %2699
        %v2702 = vmul.f32 %v2625, %v2606
        %v2703 = vmul.f32 %v2630, %v2607
        %v2704 = vmul.f32 %v2635, %v2608
        %v2705 = vmul.f32 %v2640, %v2609
        %v2706 = vmul.f32 %v2645, %v2610
        %v2707 = vmul.f32 %v2650, %v2611
        %v2708 = vmul.f32 %v2655, %v2612
        %v2709 = vmul.f32 %v2660, %v2613
        %v2710 = vmul.f32 %v2665, %v2614
        %v2711 = vmul.f32 %v2670, %v2615
        %v2712 = vmul.f32 %v2675, %v2616
        %v2713 = vmul.f32 %v2680, %v2617
        %v2714 = vmul.f32 %v2685, %v2618
        %v2715 = vmul.f32 %v2690, %v2619
        %v2716 = vmul.f32 %v2695, %v2620
        %v2717 = vmul.f32 %v2700, %v2621
        %2718 = vset.pattern.permute.xlu0 1
        %2719 = vperm.xlu0 %2718, %v2426
        %v2720 = vpop.permute.xlu0 %2719
        %2722 = vset.pattern.permute.xlu0 1
        %2723 = vperm.xlu0 %2722, %v2427
        %v2724 = vpop.permute.xlu0 %2723
        %2726 = vset.pattern.permute.xlu0 1
        %2727 = vperm.xlu0 %2726, %v2428
        %v2728 = vpop.permute.xlu0 %2727
        %2730 = vset.pattern.permute.xlu0 1
        %2731 = vperm.xlu0 %2730, %v2429
        %v2732 = vpop.permute.xlu0 %2731
        %2734 = vset.pattern.permute.xlu0 1
        %2735 = vperm.xlu0 %2734, %v2430
        %v2736 = vpop.permute.xlu0 %2735
        %2738 = vset.pattern.permute.xlu0 1
        %2739 = vperm.xlu0 %2738, %v2431
        %v2740 = vpop.permute.xlu0 %2739
        %2742 = vset.pattern.permute.xlu0 1
        %2743 = vperm.xlu0 %2742, %v2432
        %v2744 = vpop.permute.xlu0 %2743
        %2746 = vset.pattern.permute.xlu0 1
        %2747 = vperm.xlu0 %2746, %v2433
        %v2748 = vpop.permute.xlu0 %2747
        %2750 = vset.pattern.permute.xlu0 1
        %2751 = vperm.xlu0 %2750, %v2434
        %v2752 = vpop.permute.xlu0 %2751
        %2754 = vset.pattern.permute.xlu0 1
        %2755 = vperm.xlu0 %2754, %v2435
        %v2756 = vpop.permute.xlu0 %2755
        %2758 = vset.pattern.permute.xlu0 1
        %2759 = vperm.xlu0 %2758, %v2436
        %v2760 = vpop.permute.xlu0 %2759
        %2762 = vset.pattern.permute.xlu0 1
        %2763 = vperm.xlu0 %2762, %v2437
        %v2764 = vpop.permute.xlu0 %2763
        %2766 = vset.pattern.permute.xlu0 1
        %2767 = vperm.xlu0 %2766, %v2438
        %v2768 = vpop.permute.xlu0 %2767
        %2770 = vset.pattern.permute.xlu0 1
        %2771 = vperm.xlu0 %2770, %v2439
        %v2772 = vpop.permute.xlu0 %2771
        %2774 = vset.pattern.permute.xlu0 1
        %2775 = vperm.xlu0 %2774, %v2440
        %v2776 = vpop.permute.xlu0 %2775
        %2778 = vset.pattern.permute.xlu0 1
        %2779 = vperm.xlu0 %2778, %v2441
        %v2780 = vpop.permute.xlu0 %2779
        %v2782 = vmul.f32 %v2720, %v2410
        %v2783 = vmul.f32 %v2724, %v2411
        %v2784 = vmul.f32 %v2728, %v2412
        %v2785 = vmul.f32 %v2732, %v2413
        %v2786 = vmul.f32 %v2736, %v2414
        %v2787 = vmul.f32 %v2740, %v2415
        %v2788 = vmul.f32 %v2744, %v2416
        %v2789 = vmul.f32 %v2748, %v2417
        %v2790 = vmul.f32 %v2752, %v2418
        %v2791 = vmul.f32 %v2756, %v2419
        %v2792 = vmul.f32 %v2760, %v2420
        %v2793 = vmul.f32 %v2764, %v2421
        %v2794 = vmul.f32 %v2768, %v2422
        %v2795 = vmul.f32 %v2772, %v2423
        %v2796 = vmul.f32 %v2776, %v2424
        %v2797 = vmul.f32 %v2780, %v2425
        %v2798 = vadd.f32 %v2702, %v2782
        %v2799 = vadd.f32 %v2703, %v2783
        %v2800 = vadd.f32 %v2704, %v2784
        %v2801 = vadd.f32 %v2705, %v2785
        %v2802 = vadd.f32 %v2706, %v2786
        %v2803 = vadd.f32 %v2707, %v2787
        %v2804 = vadd.f32 %v2708, %v2788
        %v2805 = vadd.f32 %v2709, %v2789
        %v2806 = vadd.f32 %v2710, %v2790
        %v2807 = vadd.f32 %v2711, %v2791
        %v2808 = vadd.f32 %v2712, %v2792
        %v2809 = vadd.f32 %v2713, %v2793
        %v2810 = vadd.f32 %v2714, %v2794
        %v2811 = vadd.f32 %v2715, %v2795
        %v2812 = vadd.f32 %v2716, %v2796
        %v2813 = vadd.f32 %v2717, %v2797
        %vm2814 = vcmp.lt.s32.totalorder %v2540, 21
        %2815 = vrot.lane.b32.xlu0 %v2523, 127
        %v2816 = vpop.permute.xlu0 %2815
        %2817 = vrot.lane.b32.xlu0 %v2524, 127
        %v2818 = vpop.permute.xlu0 %2817
        %2819 = vrot.lane.b32.xlu0 %v2525, 127
        %v2820 = vpop.permute.xlu0 %2819
        %2821 = vrot.lane.b32.xlu0 %v2526, 127
        %v2822 = vpop.permute.xlu0 %2821
        %2823 = vrot.lane.b32.xlu0 %v2527, 127
        %v2824 = vpop.permute.xlu0 %2823
        %2825 = vrot.lane.b32.xlu0 %v2528, 127
        %v2826 = vpop.permute.xlu0 %2825
        %2827 = vrot.lane.b32.xlu0 %v2529, 127
        %v2828 = vpop.permute.xlu0 %2827
        %2829 = vrot.lane.b32.xlu0 %v2530, 127
        %v2830 = vpop.permute.xlu0 %2829
        %2831 = vrot.lane.b32.xlu0 %v2531, 127
        %v2832 = vpop.permute.xlu0 %2831
        %2833 = vrot.lane.b32.xlu0 %v2532, 127
        %v2834 = vpop.permute.xlu0 %2833
        %2835 = vrot.lane.b32.xlu0 %v2533, 127
        %v2836 = vpop.permute.xlu0 %2835
        %2837 = vrot.lane.b32.xlu0 %v2534, 127
        %v2838 = vpop.permute.xlu0 %2837
        %2839 = vrot.lane.b32.xlu0 %v2535, 127
        %v2840 = vpop.permute.xlu0 %2839
        %2841 = vrot.lane.b32.xlu0 %v2536, 127
        %v2842 = vpop.permute.xlu0 %2841
        %2843 = vrot.lane.b32.xlu0 %v2537, 127
        %v2844 = vpop.permute.xlu0 %2843
        %2845 = vrot.lane.b32.xlu0 %v2538, 127
        %v2846 = vpop.permute.xlu0 %2845
        %v2863 = vsel %vm2814, %v2816, 0.0
        %v2864 = vsel %vm2814, %v2818, 0.0
        %v2865 = vsel %vm2814, %v2820, 0.0
        %v2866 = vsel %vm2814, %v2822, 0.0
        %v2867 = vsel %vm2814, %v2824, 0.0
        %v2868 = vsel %vm2814, %v2826, 0.0
        %v2869 = vsel %vm2814, %v2828, 0.0
        %v2870 = vsel %vm2814, %v2830, 0.0
        %v2871 = vsel %vm2814, %v2832, 0.0
        %v2872 = vsel %vm2814, %v2834, 0.0
        %v2873 = vsel %vm2814, %v2836, 0.0
        %v2874 = vsel %vm2814, %v2838, 0.0
        %v2875 = vsel %vm2814, %v2840, 0.0
        %v2876 = vsel %vm2814, %v2842, 0.0
        %v2877 = vsel %vm2814, %v2844, 0.0
        %v2878 = vsel %vm2814, %v2846, 0.0
        %2879 = vset.pattern.permute.xlu0 2
        %2880 = vperm.xlu0 %2879, %v2426
        %v2881 = vpop.permute.xlu0 %2880
        %2883 = vset.pattern.permute.xlu0 2
        %2884 = vperm.xlu0 %2883, %v2427
        %v2885 = vpop.permute.xlu0 %2884
        %2887 = vset.pattern.permute.xlu0 2
        %2888 = vperm.xlu0 %2887, %v2428
        %v2889 = vpop.permute.xlu0 %2888
        %2891 = vset.pattern.permute.xlu0 2
        %2892 = vperm.xlu0 %2891, %v2429
        %v2893 = vpop.permute.xlu0 %2892
        %2895 = vset.pattern.permute.xlu0 2
        %2896 = vperm.xlu0 %2895, %v2430
        %v2897 = vpop.permute.xlu0 %2896
        %2899 = vset.pattern.permute.xlu0 2
        %2900 = vperm.xlu0 %2899, %v2431
        %v2901 = vpop.permute.xlu0 %2900
        %2903 = vset.pattern.permute.xlu0 2
        %2904 = vperm.xlu0 %2903, %v2432
        %v2905 = vpop.permute.xlu0 %2904
        %2907 = vset.pattern.permute.xlu0 2
        %2908 = vperm.xlu0 %2907, %v2433
        %v2909 = vpop.permute.xlu0 %2908
        %2911 = vset.pattern.permute.xlu0 2
        %2912 = vperm.xlu0 %2911, %v2434
        %v2913 = vpop.permute.xlu0 %2912
        %2915 = vset.pattern.permute.xlu0 2
        %2916 = vperm.xlu0 %2915, %v2435
        %v2917 = vpop.permute.xlu0 %2916
        %2919 = vset.pattern.permute.xlu0 2
        %2920 = vperm.xlu0 %2919, %v2436
        %v2921 = vpop.permute.xlu0 %2920
        %2923 = vset.pattern.permute.xlu0 2
        %2924 = vperm.xlu0 %2923, %v2437
        %v2925 = vpop.permute.xlu0 %2924
        %2927 = vset.pattern.permute.xlu0 2
        %2928 = vperm.xlu0 %2927, %v2438
        %v2929 = vpop.permute.xlu0 %2928
        %2931 = vset.pattern.permute.xlu0 2
        %2932 = vperm.xlu0 %2931, %v2439
        %v2933 = vpop.permute.xlu0 %2932
        %2935 = vset.pattern.permute.xlu0 2
        %2936 = vperm.xlu0 %2935, %v2440
        %v2937 = vpop.permute.xlu0 %2936
        %2939 = vset.pattern.permute.xlu0 2
        %2940 = vperm.xlu0 %2939, %v2441
        %v2941 = vpop.permute.xlu0 %2940
        %v2943 = vmul.f32 %v2881, %v2863
        %v2944 = vmul.f32 %v2885, %v2864
        %v2945 = vmul.f32 %v2889, %v2865
        %v2946 = vmul.f32 %v2893, %v2866
        %v2947 = vmul.f32 %v2897, %v2867
        %v2948 = vmul.f32 %v2901, %v2868
        %v2949 = vmul.f32 %v2905, %v2869
        %v2950 = vmul.f32 %v2909, %v2870
        %v2951 = vmul.f32 %v2913, %v2871
        %v2952 = vmul.f32 %v2917, %v2872
        %v2953 = vmul.f32 %v2921, %v2873
        %v2954 = vmul.f32 %v2925, %v2874
        %v2955 = vmul.f32 %v2929, %v2875
        %v2956 = vmul.f32 %v2933, %v2876
        %v2957 = vmul.f32 %v2937, %v2877
        %v2958 = vmul.f32 %v2941, %v2878
        %v2959 = vadd.f32 %v2798, %v2943
        %v2960 = vadd.f32 %v2799, %v2944
        %v2961 = vadd.f32 %v2800, %v2945
        %v2962 = vadd.f32 %v2801, %v2946
        %v2963 = vadd.f32 %v2802, %v2947
        %v2964 = vadd.f32 %v2803, %v2948
        %v2965 = vadd.f32 %v2804, %v2949
        %v2966 = vadd.f32 %v2805, %v2950
        %v2967 = vadd.f32 %v2806, %v2951
        %v2968 = vadd.f32 %v2807, %v2952
        %v2969 = vadd.f32 %v2808, %v2953
        %v2970 = vadd.f32 %v2809, %v2954
        %v2971 = vadd.f32 %v2810, %v2955
        %v2972 = vadd.f32 %v2811, %v2956
        %v2973 = vadd.f32 %v2812, %v2957
        %v2974 = vadd.f32 %v2813, %v2958
        %v2975 = vld [vmem:[%s1016] sm:$0xff]
        %v2976 = vld [vmem:[%s1016 + $0x8] sm:$0xff]
        %v2977 = vld [vmem:[%s1016 + $0x10] sm:$0xff]
        %v2978 = vld [vmem:[%s1016 + $0x18] sm:$0xff]
        %v2979 = vld [vmem:[%s1016 + $0x20] sm:$0xff]
        %v2980 = vld [vmem:[%s1016 + $0x28] sm:$0xff]
        %v2981 = vld [vmem:[%s1016 + $0x30] sm:$0xff]
        %v2982 = vld [vmem:[%s1016 + $0x38] sm:$0xff]
        %v2983 = vld [vmem:[%s1016 + $0x40] sm:$0xff]
        %v2984 = vld [vmem:[%s1016 + $0x48] sm:$0xff]
        %v2985 = vld [vmem:[%s1016 + $0x50] sm:$0xff]
        %v2986 = vld [vmem:[%s1016 + $0x58] sm:$0xff]
        %v2987 = vld [vmem:[%s1016 + $0x60] sm:$0xff]
        %v2988 = vld [vmem:[%s1016 + $0x68] sm:$0xff]
        %v2989 = vld [vmem:[%s1016 + $0x70] sm:$0xff]
        %v2990 = vld [vmem:[%s1016 + $0x78] sm:$0xff]
        %2992 = vset.pattern.permute.xlu0 0
        %2993 = vperm.xlu0 %2992, %v2975
        %v2994 = vpop.permute.xlu0 %2993
        %2997 = vset.pattern.permute.xlu0 0
        %2998 = vperm.xlu0 %2997, %v2976
        %v2999 = vpop.permute.xlu0 %2998
        %3002 = vset.pattern.permute.xlu0 0
        %3003 = vperm.xlu0 %3002, %v2977
        %v3004 = vpop.permute.xlu0 %3003
        %3007 = vset.pattern.permute.xlu0 0
        %3008 = vperm.xlu0 %3007, %v2978
        %v3009 = vpop.permute.xlu0 %3008
        %3012 = vset.pattern.permute.xlu0 0
        %3013 = vperm.xlu0 %3012, %v2979
        %v3014 = vpop.permute.xlu0 %3013
        %3017 = vset.pattern.permute.xlu0 0
        %3018 = vperm.xlu0 %3017, %v2980
        %v3019 = vpop.permute.xlu0 %3018
        %3022 = vset.pattern.permute.xlu0 0
        %3023 = vperm.xlu0 %3022, %v2981
        %v3024 = vpop.permute.xlu0 %3023
        %3027 = vset.pattern.permute.xlu0 0
        %3028 = vperm.xlu0 %3027, %v2982
        %v3029 = vpop.permute.xlu0 %3028
        %3032 = vset.pattern.permute.xlu0 0
        %3033 = vperm.xlu0 %3032, %v2983
        %v3034 = vpop.permute.xlu0 %3033
        %3037 = vset.pattern.permute.xlu0 0
        %3038 = vperm.xlu0 %3037, %v2984
        %v3039 = vpop.permute.xlu0 %3038
        %3042 = vset.pattern.permute.xlu0 0
        %3043 = vperm.xlu0 %3042, %v2985
        %v3044 = vpop.permute.xlu0 %3043
        %3047 = vset.pattern.permute.xlu0 0
        %3048 = vperm.xlu0 %3047, %v2986
        %v3049 = vpop.permute.xlu0 %3048
        %3052 = vset.pattern.permute.xlu0 0
        %3053 = vperm.xlu0 %3052, %v2987
        %v3054 = vpop.permute.xlu0 %3053
        %3057 = vset.pattern.permute.xlu0 0
        %3058 = vperm.xlu0 %3057, %v2988
        %v3059 = vpop.permute.xlu0 %3058
        %3062 = vset.pattern.permute.xlu0 0
        %3063 = vperm.xlu0 %3062, %v2989
        %v3064 = vpop.permute.xlu0 %3063
        %3067 = vset.pattern.permute.xlu0 0
        %3068 = vperm.xlu0 %3067, %v2990
        %v3069 = vpop.permute.xlu0 %3068
        %v3071 = vadd.f32 %v2959, %v2994
        %v3072 = vadd.f32 %v2960, %v2999
        %v3073 = vadd.f32 %v2961, %v3004
        %v3074 = vadd.f32 %v2962, %v3009
        %v3075 = vadd.f32 %v2963, %v3014
        %v3076 = vadd.f32 %v2964, %v3019
        %v3077 = vadd.f32 %v2965, %v3024
        %v3078 = vadd.f32 %v2966, %v3029
        %v3079 = vadd.f32 %v2967, %v3034
        %v3080 = vadd.f32 %v2968, %v3039
        %v3081 = vadd.f32 %v2969, %v3044
        %v3082 = vadd.f32 %v2970, %v3049
        %v3083 = vadd.f32 %v2971, %v3054
        %v3084 = vadd.f32 %v2972, %v3059
        %v3085 = vadd.f32 %v2973, %v3064
        %v3086 = vadd.f32 %v2974, %v3069
        %v3087 = vld [vmem:[%s1030] sm:$0x1]
        %vm3088 = vcmp.ge.f32.partialorder %v3071, 0.0
        %vm3089 = vcmp.ge.f32.partialorder %v3072, 0.0
        %vm3090 = vcmp.ge.f32.partialorder %v3073, 0.0
        %vm3091 = vcmp.ge.f32.partialorder %v3074, 0.0
        %vm3092 = vcmp.ge.f32.partialorder %v3075, 0.0
        %vm3093 = vcmp.ge.f32.partialorder %v3076, 0.0
        %vm3094 = vcmp.ge.f32.partialorder %v3077, 0.0
        %vm3095 = vcmp.ge.f32.partialorder %v3078, 0.0
        %vm3096 = vcmp.ge.f32.partialorder %v3079, 0.0
        %vm3097 = vcmp.ge.f32.partialorder %v3080, 0.0
        %vm3098 = vcmp.ge.f32.partialorder %v3081, 0.0
        %vm3099 = vcmp.ge.f32.partialorder %v3082, 0.0
        %vm3100 = vcmp.ge.f32.partialorder %v3083, 0.0
        %vm3101 = vcmp.ge.f32.partialorder %v3084, 0.0
        %vm3102 = vcmp.ge.f32.partialorder %v3085, 0.0
        %vm3103 = vcmp.ge.f32.partialorder %v3086, 0.0
        %v3105 = vlaneseq
        %v3106 = vshrl.u32 %v3105, 7
        %v3107 = vsub.s32 0, %v3106
        %v3108 = vrot.slane %v3087, %v3107
        %3109 = vset.pattern.permute.xlu0 0
        %3110 = vperm.xlu0 %3109, %v3108
        %v3111 = vpop.permute.xlu0 %3110
        %v3113 = vmul.f32 %v3111, %v3071
        %v3114 = vmul.f32 %v3111, %v3072
        %v3115 = vmul.f32 %v3111, %v3073
        %v3116 = vmul.f32 %v3111, %v3074
        %v3117 = vmul.f32 %v3111, %v3075
        %v3118 = vmul.f32 %v3111, %v3076
        %v3119 = vmul.f32 %v3111, %v3077
        %v3120 = vmul.f32 %v3111, %v3078
        %v3121 = vmul.f32 %v3111, %v3079
        %v3122 = vmul.f32 %v3111, %v3080
        %v3123 = vmul.f32 %v3111, %v3081
        %v3124 = vmul.f32 %v3111, %v3082
        %v3125 = vmul.f32 %v3111, %v3083
        %v3126 = vmul.f32 %v3111, %v3084
        %v3127 = vmul.f32 %v3111, %v3085
        %v3128 = vmul.f32 %v3111, %v3086
        %v3129 = vsel %vm3088, %v3071, %v3113
        %v3130 = vsel %vm3089, %v3072, %v3114
        %v3131 = vsel %vm3090, %v3073, %v3115
        %v3132 = vsel %vm3091, %v3074, %v3116
        %v3133 = vsel %vm3092, %v3075, %v3117
        %v3134 = vsel %vm3093, %v3076, %v3118
        %v3135 = vsel %vm3094, %v3077, %v3119
        %v3136 = vsel %vm3095, %v3078, %v3120
        %v3137 = vsel %vm3096, %v3079, %v3121
        %v3138 = vsel %vm3097, %v3080, %v3122
        %v3139 = vsel %vm3098, %v3081, %v3123
        %v3140 = vsel %vm3099, %v3082, %v3124
        %v3141 = vsel %vm3100, %v3083, %v3125
        %v3142 = vsel %vm3101, %v3084, %v3126
        %v3143 = vsel %vm3102, %v3085, %v3127
        %v3144 = vsel %vm3103, %v3086, %v3128
        %v3145 = vld [vmem:[%s1021] sm:$0xff]
        %v3146 = vld [vmem:[%s1021 + $0x8] sm:$0xff]
        %v3147 = vld [vmem:[%s1021 + $0x10] sm:$0xff]
        %v3148 = vld [vmem:[%s1021 + $0x18] sm:$0xff]
        %v3149 = vld [vmem:[%s1021 + $0x20] sm:$0xff]
        %v3150 = vld [vmem:[%s1021 + $0x28] sm:$0xff]
        %v3151 = vld [vmem:[%s1021 + $0x30] sm:$0xff]
        %v3152 = vld [vmem:[%s1021 + $0x38] sm:$0xff]
        %v3153 = vld [vmem:[%s1021 + $0x40] sm:$0xff]
        %v3154 = vld [vmem:[%s1021 + $0x48] sm:$0xff]
        %v3155 = vld [vmem:[%s1021 + $0x50] sm:$0xff]
        %v3156 = vld [vmem:[%s1021 + $0x58] sm:$0xff]
        %v3157 = vld [vmem:[%s1021 + $0x60] sm:$0xff]
        %v3158 = vld [vmem:[%s1021 + $0x68] sm:$0xff]
        %v3159 = vld [vmem:[%s1021 + $0x70] sm:$0xff]
        %v3160 = vld [vmem:[%s1021 + $0x78] sm:$0xff]
        %v3161 = vld [vmem:[%s1026] sm:$0xff]
        %v3162 = vld [vmem:[%s1026 + $0x8] sm:$0xff]
        %v3163 = vld [vmem:[%s1026 + $0x10] sm:$0xff]
        %v3164 = vld [vmem:[%s1026 + $0x18] sm:$0xff]
        %v3165 = vld [vmem:[%s1026 + $0x20] sm:$0xff]
        %v3166 = vld [vmem:[%s1026 + $0x28] sm:$0xff]
        %v3167 = vld [vmem:[%s1026 + $0x30] sm:$0xff]
        %v3168 = vld [vmem:[%s1026 + $0x38] sm:$0xff]
        %v3169 = vld [vmem:[%s1026 + $0x40] sm:$0xff]
        %v3170 = vld [vmem:[%s1026 + $0x48] sm:$0xff]
        %v3171 = vld [vmem:[%s1026 + $0x50] sm:$0xff]
        %v3172 = vld [vmem:[%s1026 + $0x58] sm:$0xff]
        %v3173 = vld [vmem:[%s1026 + $0x60] sm:$0xff]
        %v3174 = vld [vmem:[%s1026 + $0x68] sm:$0xff]
        %v3175 = vld [vmem:[%s1026 + $0x70] sm:$0xff]
        %v3176 = vld [vmem:[%s1026 + $0x78] sm:$0xff]
        %v3177 = vsel %vm2093, %v3129, 0.0
        %v3178 = vsel %vm2093, %v3130, 0.0
        %v3179 = vadd.f32 %v3177, %v3178
        %v3180 = vsel %vm2093, %v3131, 0.0
        %v3181 = vadd.f32 %v3179, %v3180
        %v3182 = vsel %vm2093, %v3132, 0.0
        %v3183 = vadd.f32 %v3181, %v3182
        %v3184 = vsel %vm2093, %v3133, 0.0
        %v3185 = vadd.f32 %v3183, %v3184
        %v3186 = vsel %vm2093, %v3134, 0.0
        %v3187 = vadd.f32 %v3185, %v3186
        %v3188 = vsel %vm2093, %v3135, 0.0
        %v3189 = vadd.f32 %v3187, %v3188
        %v3190 = vsel %vm2093, %v3136, 0.0
        %v3191 = vadd.f32 %v3189, %v3190
        %v3192 = vsel %vm2093, %v3137, 0.0
        %v3193 = vadd.f32 %v3191, %v3192
        %v3194 = vsel %vm2093, %v3138, 0.0
        %v3195 = vadd.f32 %v3193, %v3194
        %v3196 = vsel %vm2093, %v3139, 0.0
        %v3197 = vadd.f32 %v3195, %v3196
        %v3198 = vsel %vm2093, %v3140, 0.0
        %v3199 = vadd.f32 %v3197, %v3198
        %v3200 = vsel %vm2093, %v3141, 0.0
        %v3201 = vadd.f32 %v3199, %v3200
        %v3202 = vsel %vm2093, %v3142, 0.0
        %v3203 = vadd.f32 %v3201, %v3202
        %v3204 = vsel %vm2093, %v3143, 0.0
        %v3205 = vadd.f32 %v3203, %v3204
        %v3206 = vsel %vm2093, %v3144, 0.0
        %v3207 = vadd.f32 %v3205, %v3206
        %3208 = vadd.xlane.f32.xlu0 %v3207
        %v3209 = vpop.xlane.xlu0 %3208
        %v3210 = vrot.slane %v3209, 4
        %v3211 = vadd.f32 %v3209, %v3210
        %v3212 = vrot.slane %v3211, 2
        %v3213 = vadd.f32 %v3211, %v3212
        %v3214 = vrot.slane %v3213, 1
        %v3215 = vadd.f32 %v3213, %v3214
        %s3216 = vtos %v3215
        %v3217 = vrcp.pop 2816.0
        %s3218 = vtos %v3217
        %s3219 = smul.f32 %s3216, %s3218
        %v3220 = vstv %s3219
        %v3221 = vsub.f32 %v3129, %v3220
        %v3222 = vsub.f32 %v3130, %v3220
        %v3223 = vsub.f32 %v3131, %v3220
        %v3224 = vsub.f32 %v3132, %v3220
        %v3225 = vsub.f32 %v3133, %v3220
        %v3226 = vsub.f32 %v3134, %v3220
        %v3227 = vsub.f32 %v3135, %v3220
        %v3228 = vsub.f32 %v3136, %v3220
        %v3229 = vsub.f32 %v3137, %v3220
        %v3230 = vsub.f32 %v3138, %v3220
        %v3231 = vsub.f32 %v3139, %v3220
        %v3232 = vsub.f32 %v3140, %v3220
        %v3233 = vsub.f32 %v3141, %v3220
        %v3234 = vsub.f32 %v3142, %v3220
        %v3235 = vsub.f32 %v3143, %v3220
        %v3236 = vsub.f32 %v3144, %v3220
        %v3237 = vmul.f32 %v3221, %v3221
        %v3238 = vmul.f32 %v3222, %v3222
        %v3239 = vmul.f32 %v3223, %v3223
        %v3240 = vmul.f32 %v3224, %v3224
        %v3241 = vmul.f32 %v3225, %v3225
        %v3242 = vmul.f32 %v3226, %v3226
        %v3243 = vmul.f32 %v3227, %v3227
        %v3244 = vmul.f32 %v3228, %v3228
        %v3245 = vmul.f32 %v3229, %v3229
        %v3246 = vmul.f32 %v3230, %v3230
        %v3247 = vmul.f32 %v3231, %v3231
        %v3248 = vmul.f32 %v3232, %v3232
        %v3249 = vmul.f32 %v3233, %v3233
        %v3250 = vmul.f32 %v3234, %v3234
        %v3251 = vmul.f32 %v3235, %v3235
        %v3252 = vmul.f32 %v3236, %v3236
        %v3253 = vsel %vm2093, %v3237, 0.0
        %v3254 = vsel %vm2093, %v3238, 0.0
        %v3255 = vadd.f32 %v3253, %v3254
        %v3256 = vsel %vm2093, %v3239, 0.0
        %v3257 = vadd.f32 %v3255, %v3256
        %v3258 = vsel %vm2093, %v3240, 0.0
        %v3259 = vadd.f32 %v3257, %v3258
        %v3260 = vsel %vm2093, %v3241, 0.0
        %v3261 = vadd.f32 %v3259, %v3260
        %v3262 = vsel %vm2093, %v3242, 0.0
        %v3263 = vadd.f32 %v3261, %v3262
        %v3264 = vsel %vm2093, %v3243, 0.0
        %v3265 = vadd.f32 %v3263, %v3264
        %v3266 = vsel %vm2093, %v3244, 0.0
        %v3267 = vadd.f32 %v3265, %v3266
        %v3268 = vsel %vm2093, %v3245, 0.0
        %v3269 = vadd.f32 %v3267, %v3268
        %v3270 = vsel %vm2093, %v3246, 0.0
        %v3271 = vadd.f32 %v3269, %v3270
        %v3272 = vsel %vm2093, %v3247, 0.0
        %v3273 = vadd.f32 %v3271, %v3272
        %v3274 = vsel %vm2093, %v3248, 0.0
        %v3275 = vadd.f32 %v3273, %v3274
        %v3276 = vsel %vm2093, %v3249, 0.0
        %v3277 = vadd.f32 %v3275, %v3276
        %v3278 = vsel %vm2093, %v3250, 0.0
        %v3279 = vadd.f32 %v3277, %v3278
        %v3280 = vsel %vm2093, %v3251, 0.0
        %v3281 = vadd.f32 %v3279, %v3280
        %v3282 = vsel %vm2093, %v3252, 0.0
        %v3283 = vadd.f32 %v3281, %v3282
        %3284 = vadd.xlane.f32.xlu0 %v3283
        %v3285 = vpop.xlane.xlu0 %3284
        %v3286 = vrot.slane %v3285, 4
        %v3287 = vadd.f32 %v3285, %v3286
        %v3288 = vrot.slane %v3287, 2
        %v3289 = vadd.f32 %v3287, %v3288
        %v3290 = vrot.slane %v3289, 1
        %v3291 = vadd.f32 %v3289, %v3290
        %s3292 = vtos %v3291
        %v3293 = vrcp.pop 2816.0
        %s3294 = vtos %v3293
        %s3295 = smul.f32 %s3292, %s3294
        %s3296 = sadd.f32 %s3295, 1e-08
        %v3297 = vstv %s3296
        %v3298 = vrsqrt.pop %v3297
        %s3299 = vtos %v3298
        %v3300 = vstv %s3299
        %v3301 = vmul.f32 %v3221, %v3300
        %v3302 = vmul.f32 %v3222, %v3300
        %v3303 = vmul.f32 %v3223, %v3300
        %v3304 = vmul.f32 %v3224, %v3300
        %v3305 = vmul.f32 %v3225, %v3300
        %v3306 = vmul.f32 %v3226, %v3300
        %v3307 = vmul.f32 %v3227, %v3300
        %v3308 = vmul.f32 %v3228, %v3300
        %v3309 = vmul.f32 %v3229, %v3300
        %v3310 = vmul.f32 %v3230, %v3300
        %v3311 = vmul.f32 %v3231, %v3300
        %v3312 = vmul.f32 %v3232, %v3300
        %v3313 = vmul.f32 %v3233, %v3300
        %v3314 = vmul.f32 %v3234, %v3300
        %v3315 = vmul.f32 %v3235, %v3300
        %v3316 = vmul.f32 %v3236, %v3300
        %3318 = vset.pattern.permute.xlu0 0
        %3319 = vperm.xlu0 %3318, %v3145
        %v3320 = vpop.permute.xlu0 %3319
        %3323 = vset.pattern.permute.xlu0 0
        %3324 = vperm.xlu0 %3323, %v3146
        %v3325 = vpop.permute.xlu0 %3324
        %3328 = vset.pattern.permute.xlu0 0
        %3329 = vperm.xlu0 %3328, %v3147
        %v3330 = vpop.permute.xlu0 %3329
        %3333 = vset.pattern.permute.xlu0 0
        %3334 = vperm.xlu0 %3333, %v3148
        %v3335 = vpop.permute.xlu0 %3334
        %3338 = vset.pattern.permute.xlu0 0
        %3339 = vperm.xlu0 %3338, %v3149
        %v3340 = vpop.permute.xlu0 %3339
        %3343 = vset.pattern.permute.xlu0 0
        %3344 = vperm.xlu0 %3343, %v3150
        %v3345 = vpop.permute.xlu0 %3344
        %3348 = vset.pattern.permute.xlu0 0
        %3349 = vperm.xlu0 %3348, %v3151
        %v3350 = vpop.permute.xlu0 %3349
        %3353 = vset.pattern.permute.xlu0 0
        %3354 = vperm.xlu0 %3353, %v3152
        %v3355 = vpop.permute.xlu0 %3354
        %3358 = vset.pattern.permute.xlu0 0
        %3359 = vperm.xlu0 %3358, %v3153
        %v3360 = vpop.permute.xlu0 %3359
        %3363 = vset.pattern.permute.xlu0 0
        %3364 = vperm.xlu0 %3363, %v3154
        %v3365 = vpop.permute.xlu0 %3364
        %3368 = vset.pattern.permute.xlu0 0
        %3369 = vperm.xlu0 %3368, %v3155
        %v3370 = vpop.permute.xlu0 %3369
        %3373 = vset.pattern.permute.xlu0 0
        %3374 = vperm.xlu0 %3373, %v3156
        %v3375 = vpop.permute.xlu0 %3374
        %3378 = vset.pattern.permute.xlu0 0
        %3379 = vperm.xlu0 %3378, %v3157
        %v3380 = vpop.permute.xlu0 %3379
        %3383 = vset.pattern.permute.xlu0 0
        %3384 = vperm.xlu0 %3383, %v3158
        %v3385 = vpop.permute.xlu0 %3384
        %3388 = vset.pattern.permute.xlu0 0
        %3389 = vperm.xlu0 %3388, %v3159
        %v3390 = vpop.permute.xlu0 %3389
        %3393 = vset.pattern.permute.xlu0 0
        %3394 = vperm.xlu0 %3393, %v3160
        %v3395 = vpop.permute.xlu0 %3394
        %v3397 = vmul.f32 %v3301, %v3320
        %v3398 = vmul.f32 %v3302, %v3325
        %v3399 = vmul.f32 %v3303, %v3330
        %v3400 = vmul.f32 %v3304, %v3335
        %v3401 = vmul.f32 %v3305, %v3340
        %v3402 = vmul.f32 %v3306, %v3345
        %v3403 = vmul.f32 %v3307, %v3350
        %v3404 = vmul.f32 %v3308, %v3355
        %v3405 = vmul.f32 %v3309, %v3360
        %v3406 = vmul.f32 %v3310, %v3365
        %v3407 = vmul.f32 %v3311, %v3370
        %v3408 = vmul.f32 %v3312, %v3375
        %v3409 = vmul.f32 %v3313, %v3380
        %v3410 = vmul.f32 %v3314, %v3385
        %v3411 = vmul.f32 %v3315, %v3390
        %v3412 = vmul.f32 %v3316, %v3395
        %3414 = vset.pattern.permute.xlu0 0
        %3415 = vperm.xlu0 %3414, %v3161
        %v3416 = vpop.permute.xlu0 %3415
        %3419 = vset.pattern.permute.xlu0 0
        %3420 = vperm.xlu0 %3419, %v3162
        %v3421 = vpop.permute.xlu0 %3420
        %3424 = vset.pattern.permute.xlu0 0
        %3425 = vperm.xlu0 %3424, %v3163
        %v3426 = vpop.permute.xlu0 %3425
        %3429 = vset.pattern.permute.xlu0 0
        %3430 = vperm.xlu0 %3429, %v3164
        %v3431 = vpop.permute.xlu0 %3430
        %3434 = vset.pattern.permute.xlu0 0
        %3435 = vperm.xlu0 %3434, %v3165
        %v3436 = vpop.permute.xlu0 %3435
        %3439 = vset.pattern.permute.xlu0 0
        %3440 = vperm.xlu0 %3439, %v3166
        %v3441 = vpop.permute.xlu0 %3440
        %3444 = vset.pattern.permute.xlu0 0
        %3445 = vperm.xlu0 %3444, %v3167
        %v3446 = vpop.permute.xlu0 %3445
        %3449 = vset.pattern.permute.xlu0 0
        %3450 = vperm.xlu0 %3449, %v3168
        %v3451 = vpop.permute.xlu0 %3450
        %3454 = vset.pattern.permute.xlu0 0
        %3455 = vperm.xlu0 %3454, %v3169
        %v3456 = vpop.permute.xlu0 %3455
        %3459 = vset.pattern.permute.xlu0 0
        %3460 = vperm.xlu0 %3459, %v3170
        %v3461 = vpop.permute.xlu0 %3460
        %3464 = vset.pattern.permute.xlu0 0
        %3465 = vperm.xlu0 %3464, %v3171
        %v3466 = vpop.permute.xlu0 %3465
        %3469 = vset.pattern.permute.xlu0 0
        %3470 = vperm.xlu0 %3469, %v3172
        %v3471 = vpop.permute.xlu0 %3470
        %3474 = vset.pattern.permute.xlu0 0
        %3475 = vperm.xlu0 %3474, %v3173
        %v3476 = vpop.permute.xlu0 %3475
        %3479 = vset.pattern.permute.xlu0 0
        %3480 = vperm.xlu0 %3479, %v3174
        %v3481 = vpop.permute.xlu0 %3480
        %3484 = vset.pattern.permute.xlu0 0
        %3485 = vperm.xlu0 %3484, %v3175
        %v3486 = vpop.permute.xlu0 %3485
        %3489 = vset.pattern.permute.xlu0 0
        %3490 = vperm.xlu0 %3489, %v3176
        %v3491 = vpop.permute.xlu0 %3490
        %v3493 = vadd.f32 %v3397, %v3416
        %v3494 = vadd.f32 %v3398, %v3421
        %v3495 = vadd.f32 %v3399, %v3426
        %v3496 = vadd.f32 %v3400, %v3431
        %v3497 = vadd.f32 %v3401, %v3436
        %v3498 = vadd.f32 %v3402, %v3441
        %v3499 = vadd.f32 %v3403, %v3446
        %v3500 = vadd.f32 %v3404, %v3451
        %v3501 = vadd.f32 %v3405, %v3456
        %v3502 = vadd.f32 %v3406, %v3461
        %v3503 = vadd.f32 %v3407, %v3466
        %v3504 = vadd.f32 %v3408, %v3471
        %v3505 = vadd.f32 %v3409, %v3476
        %v3506 = vadd.f32 %v3410, %v3481
        %v3507 = vadd.f32 %v3411, %v3486
        %v3508 = vadd.f32 %v3412, %v3491
        %v3509 = vld [vmem:[%s1035] sm:$0xff]
        %v3510 = vld [vmem:[%s1035 + $0x8] sm:$0xff]
        %v3511 = vld [vmem:[%s1035 + $0x10] sm:$0xff]
        %v3512 = vld [vmem:[%s1035 + $0x18] sm:$0xff]
        %v3513 = vld [vmem:[%s1040] sm:$0xff]
        %v3514 = vld [vmem:[%s1040 + $0x8] sm:$0xff]
        %v3515 = vld [vmem:[%s1040 + $0x10] sm:$0xff]
        %v3516 = vld [vmem:[%s1040 + $0x18] sm:$0xff]
        %3518 = vset.pattern.permute.xlu0 0
        %3519 = vperm.xlu0 %3518, %v3513
        %v3520 = vpop.permute.xlu0 %3519
        %3523 = vset.pattern.permute.xlu0 0
        %3524 = vperm.xlu0 %3523, %v3514
        %v3525 = vpop.permute.xlu0 %3524
        %3528 = vset.pattern.permute.xlu0 0
        %3529 = vperm.xlu0 %3528, %v3515
        %v3530 = vpop.permute.xlu0 %3529
        %3533 = vset.pattern.permute.xlu0 0
        %3534 = vperm.xlu0 %3533, %v3516
        %v3535 = vpop.permute.xlu0 %3534
        %3537 = vmatprep.subr.mxu0 0.0
        %3538 = vmatpush1.msra.mxu0 %v3508
        %3539 = vmatprep.subr.mxu0 0.0
        %3540 = vmatpush1.msra.mxu0 %v3507
        %3541 = vmatprep.subr.mxu0 0.0
        %3542 = vmatpush1.msra.mxu0 %v3506
        %3543 = vmatprep.subr.mxu0 0.0
        %3544 = vmatpush1.msra.mxu0 %v3505
        %3545 = vmatprep.subr.mxu0 0.0
        %3546 = vmatpush1.msra.mxu0 %v3504
        %3547 = vmatprep.subr.mxu0 0.0
        %3548 = vmatpush1.msra.mxu0 %v3503
        %3549 = vmatprep.subr.mxu0 0.0
        %3550 = vmatpush1.msra.mxu0 %v3502
        %3551 = vmatprep.subr.mxu0 0.0
        %3552 = vmatpush1.msra.mxu0 %v3501
        %3553 = vmatprep.subr.mxu0 0.0
        %3554 = vmatpush1.msra.mxu0 %v3500
        %3555 = vmatprep.subr.mxu0 0.0
        %3556 = vmatpush1.msra.mxu0 %v3499
        %3557 = vmatprep.subr.mxu0 0.0
        %3558 = vmatpush1.msra.mxu0 %v3498
        %3559 = vmatprep.subr.mxu0 0.0
        %3560 = vmatpush1.msra.mxu0 %v3497
        %3561 = vmatprep.subr.mxu0 0.0
        %3562 = vmatpush1.msra.mxu0 %v3496
        %3563 = vmatprep.subr.mxu0 0.0
        %3564 = vmatpush1.msra.mxu0 %v3495
        %3565 = vmatprep.subr.mxu0 0.0
        %3566 = vmatpush1.msra.mxu0 %v3494
        %3567 = vmatprep.subr.mxu0 0.0
        %3568 = vmatpush1.msra.mxu0 %v3493
        %3569 = vmatprep.subr.mxu0 0.0
        %3570 = vmatpush2.msra.mxu0 0.0
        %3571 = vmatprep.subr.mxu0 0.0
        %3572 = vmatpush2.msra.mxu0 0.0
        %3573 = vmatprep.subr.mxu0 0.0
        %3574 = vmatpush2.msra.mxu0 0.0
        %3575 = vmatprep.subr.mxu0 0.0
        %3576 = vmatpush2.msra.mxu0 0.0
        %3577 = vmatprep.subr.mxu0 0.0
        %3578 = vmatpush2.msra.mxu0 0.0
        %3579 = vmatprep.subr.mxu0 0.0
        %3580 = vmatpush2.msra.mxu0 0.0
        %3581 = vmatprep.subr.mxu0 0.0
        %3582 = vmatpush2.msra.mxu0 0.0
        %3583 = vmatprep.subr.mxu0 0.0
        %3584 = vmatpush2.msra.mxu0 0.0
        %3585 = vmatprep.subr.mxu0 0.0
        %3586 = vmatpush2.msra.mxu0 0.0
        %3587 = vmatprep.subr.mxu0 0.0
        %3588 = vmatpush2.msra.mxu0 0.0
        %3589 = vmatprep.subr.mxu0 0.0
        %3590 = vmatpush2.msra.mxu0 0.0
        %3591 = vmatprep.subr.mxu0 0.0
        %3592 = vmatpush2.msra.mxu0 0.0
        %3593 = vmatprep.subr.mxu0 0.0
        %3594 = vmatpush2.msra.mxu0 0.0
        %3595 = vmatprep.subr.mxu0 0.0
        %3596 = vmatpush2.msra.mxu0 0.0
        %3597 = vmatprep.subr.mxu0 0.0
        %3598 = vmatpush2.msra.mxu0 0.0
        %3599 = vmatprep.subr.mxu0 0.0
        %3600 = vmatpush2.msra.mxu0 0.0
        %3601 = vmatprep.mubr.f32.mxu0 0.0
        %3602 = vmatmul.mubr.f32.gmra.mxu0 %v3509
        %v3603 = vpop.f32.mrf.mxu0
        %v3604 = vadd.f32 %v3520, %v3603
        %v3605 = vpop.f32.mrf.mxu0
        %3606 = vmatprep.mubr.f32.mxu0 0.0
        %3607 = vmatmul.mubr.f32.gmra.mxu0 %v3510
        %v3608 = vpop.f32.mrf.mxu0
        %v3609 = vadd.f32 %v3525, %v3608
        %v3610 = vpop.f32.mrf.mxu0
        %3611 = vmatprep.mubr.f32.mxu0 0.0
        %3612 = vmatmul.mubr.f32.gmra.mxu0 %v3511
        %v3613 = vpop.f32.mrf.mxu0
        %v3614 = vadd.f32 %v3530, %v3613
        %v3615 = vpop.f32.mrf.mxu0
        %3616 = vmatprep.mubr.f32.mxu0 0.0
        %3617 = vmatmul.mubr.f32.gmra.mxu0 %v3512
        %v3618 = vpop.f32.mrf.mxu0
        %v3619 = vadd.f32 %v3535, %v3618
        %v3620 = vpop.f32.mrf.mxu0
        %3621 = vdwg.mxu0
        %v3622 = vadd.f32 %v1693, %v3604
        %v3623 = vadd.f32 %v1694, %v3609
        %v3624 = vadd.f32 %v1695, %v3614
        %v3625 = vadd.f32 %v1696, %v3619
        %3626 = vst.msk [vmem:[#allocation3] sm:$0xff] %vm2093, %v3622
        %3627 = vst.msk [vmem:[#allocation3 + $0x8] sm:$0xff] %vm2093, %v3623
        %3628 = vst.msk [vmem:[#allocation3 + $0x10] sm:$0xff] %vm2093, %v3624
        %3629 = vst.msk [vmem:[#allocation3 + $0x18] sm:$0xff] %vm2093, %v3625
        %v3630 = vld [vmem:[#allocation4] sm:$0xff]
        %v3631 = vld [vmem:[#allocation4 + $0x8] sm:$0xff]
        %v3632 = vld [vmem:[#allocation4 + $0x10] sm:$0xff]
        %v3633 = vld [vmem:[#allocation4 + $0x18] sm:$0xff]
        %v3634 = vld [vmem:[%s1045] sm:$0xff]
        %v3635 = vld [vmem:[%s1045 + $0x8] sm:$0xff]
        %v3636 = vld [vmem:[%s1045 + $0x10] sm:$0xff]
        %v3637 = vld [vmem:[%s1045 + $0x18] sm:$0xff]
        %v3638 = vld [vmem:[%s1050] sm:$0xff]
        %v3639 = vld [vmem:[%s1050 + $0x8] sm:$0xff]
        %v3640 = vld [vmem:[%s1050 + $0x10] sm:$0xff]
        %v3641 = vld [vmem:[%s1050 + $0x18] sm:$0xff]
        %3643 = vset.pattern.permute.xlu0 0
        %3644 = vperm.xlu0 %3643, %v3638
        %v3645 = vpop.permute.xlu0 %3644
        %3648 = vset.pattern.permute.xlu0 0
        %3649 = vperm.xlu0 %3648, %v3639
        %v3650 = vpop.permute.xlu0 %3649
        %3653 = vset.pattern.permute.xlu0 0
        %3654 = vperm.xlu0 %3653, %v3640
        %v3655 = vpop.permute.xlu0 %3654
        %3658 = vset.pattern.permute.xlu0 0
        %3659 = vperm.xlu0 %3658, %v3641
        %v3660 = vpop.permute.xlu0 %3659
        %3662 = vmatprep.subr.mxu0 0.0
        %3663 = vmatpush1.msra.mxu0 %v3508
        %3664 = vmatprep.subr.mxu0 0.0
        %3665 = vmatpush1.msra.mxu0 %v3507
        %3666 = vmatprep.subr.mxu0 0.0
        %3667 = vmatpush1.msra.mxu0 %v3506
        %3668 = vmatprep.subr.mxu0 0.0
        %3669 = vmatpush1.msra.mxu0 %v3505
        %3670 = vmatprep.subr.mxu0 0.0
        %3671 = vmatpush1.msra.mxu0 %v3504
        %3672 = vmatprep.subr.mxu0 0.0
        %3673 = vmatpush1.msra.mxu0 %v3503
        %3674 = vmatprep.subr.mxu0 0.0
        %3675 = vmatpush1.msra.mxu0 %v3502
        %3676 = vmatprep.subr.mxu0 0.0
        %3677 = vmatpush1.msra.mxu0 %v3501
        %3678 = vmatprep.subr.mxu0 0.0
        %3679 = vmatpush1.msra.mxu0 %v3500
        %3680 = vmatprep.subr.mxu0 0.0
        %3681 = vmatpush1.msra.mxu0 %v3499
        %3682 = vmatprep.subr.mxu0 0.0
        %3683 = vmatpush1.msra.mxu0 %v3498
        %3684 = vmatprep.subr.mxu0 0.0
        %3685 = vmatpush1.msra.mxu0 %v3497
        %3686 = vmatprep.subr.mxu0 0.0
        %3687 = vmatpush1.msra.mxu0 %v3496
        %3688 = vmatprep.subr.mxu0 0.0
        %3689 = vmatpush1.msra.mxu0 %v3495
        %3690 = vmatprep.subr.mxu0 0.0
        %3691 = vmatpush1.msra.mxu0 %v3494
        %3692 = vmatprep.subr.mxu0 0.0
        %3693 = vmatpush1.msra.mxu0 %v3493
        %3694 = vmatprep.subr.mxu0 0.0
        %3695 = vmatpush2.msra.mxu0 0.0
        %3696 = vmatprep.subr.mxu0 0.0
        %3697 = vmatpush2.msra.mxu0 0.0
        %3698 = vmatprep.subr.mxu0 0.0
        %3699 = vmatpush2.msra.mxu0 0.0
        %3700 = vmatprep.subr.mxu0 0.0
        %3701 = vmatpush2.msra.mxu0 0.0
        %3702 = vmatprep.subr.mxu0 0.0
        %3703 = vmatpush2.msra.mxu0 0.0
        %3704 = vmatprep.subr.mxu0 0.0
        %3705 = vmatpush2.msra.mxu0 0.0
        %3706 = vmatprep.subr.mxu0 0.0
        %3707 = vmatpush2.msra.mxu0 0.0
        %3708 = vmatprep.subr.mxu0 0.0
        %3709 = vmatpush2.msra.mxu0 0.0
        %3710 = vmatprep.subr.mxu0 0.0
        %3711 = vmatpush2.msra.mxu0 0.0
        %3712 = vmatprep.subr.mxu0 0.0
        %3713 = vmatpush2.msra.mxu0 0.0
        %3714 = vmatprep.subr.mxu0 0.0
        %3715 = vmatpush2.msra.mxu0 0.0
        %3716 = vmatprep.subr.mxu0 0.0
        %3717 = vmatpush2.msra.mxu0 0.0
        %3718 = vmatprep.subr.mxu0 0.0
        %3719 = vmatpush2.msra.mxu0 0.0
        %3720 = vmatprep.subr.mxu0 0.0
        %3721 = vmatpush2.msra.mxu0 0.0
        %3722 = vmatprep.subr.mxu0 0.0
        %3723 = vmatpush2.msra.mxu0 0.0
        %3724 = vmatprep.subr.mxu0 0.0
        %3725 = vmatpush2.msra.mxu0 0.0
        %3726 = vmatprep.mubr.f32.mxu0 0.0
        %3727 = vmatmul.mubr.f32.gmra.mxu0 %v3634
        %v3728 = vpop.f32.mrf.mxu0
        %v3729 = vadd.f32 %v3645, %v3728
        %v3730 = vpop.f32.mrf.mxu0
        %3731 = vmatprep.mubr.f32.mxu0 0.0
        %3732 = vmatmul.mubr.f32.gmra.mxu0 %v3635
        %v3733 = vpop.f32.mrf.mxu0
        %v3734 = vadd.f32 %v3650, %v3733
        %v3735 = vpop.f32.mrf.mxu0
        %3736 = vmatprep.mubr.f32.mxu0 0.0
        %3737 = vmatmul.mubr.f32.gmra.mxu0 %v3636
        %v3738 = vpop.f32.mrf.mxu0
        %v3739 = vadd.f32 %v3655, %v3738
        %v3740 = vpop.f32.mrf.mxu0
        %3741 = vmatprep.mubr.f32.mxu0 0.0
        %3742 = vmatmul.mubr.f32.gmra.mxu0 %v3637
        %v3743 = vpop.f32.mrf.mxu0
        %v3744 = vadd.f32 %v3660, %v3743
        %v3745 = vpop.f32.mrf.mxu0
        %3746 = vdwg.mxu0
        %v3747 = vadd.f32 %v3630, %v3729
        %v3748 = vadd.f32 %v3631, %v3734
        %v3749 = vadd.f32 %v3632, %v3739
        %v3750 = vadd.f32 %v3633, %v3744
        %3751 = vst.msk [vmem:[#allocation4] sm:$0xff] %vm2093, %v3747
        %3752 = vst.msk [vmem:[#allocation4 + $0x8] sm:$0xff] %vm2093, %v3748
        %3753 = vst.msk [vmem:[#allocation4 + $0x10] sm:$0xff] %vm2093, %v3749
        %3754 = vst.msk [vmem:[#allocation4 + $0x18] sm:$0xff] %vm2093, %v3750
        %v3755 = vld [vmem:[#allocation3] sm:$0xff]
        %v3756 = vld [vmem:[#allocation3 + $0x8] sm:$0xff]
        %v3757 = vld [vmem:[#allocation3 + $0x10] sm:$0xff]
        %v3758 = vld [vmem:[#allocation3 + $0x18] sm:$0xff]
        %s3759 = scalar_lea.vmem %s987, 128
        %v3760 = vld [vmem:[%s3759] sm:$0xff]
        %v3761 = vld [vmem:[%s3759 + $0x8] sm:$0xff]
        %v3762 = vld [vmem:[%s3759 + $0x10] sm:$0xff]
        %v3763 = vld [vmem:[%s3759 + $0x18] sm:$0xff]
        %v3764 = vld [vmem:[%s3759 + $0x20] sm:$0xff]
        %v3765 = vld [vmem:[%s3759 + $0x28] sm:$0xff]
        %v3766 = vld [vmem:[%s3759 + $0x30] sm:$0xff]
        %v3767 = vld [vmem:[%s3759 + $0x38] sm:$0xff]
        %v3768 = vld [vmem:[%s3759 + $0x40] sm:$0xff]
        %v3769 = vld [vmem:[%s3759 + $0x48] sm:$0xff]
        %v3770 = vld [vmem:[%s3759 + $0x50] sm:$0xff]
        %v3771 = vld [vmem:[%s3759 + $0x58] sm:$0xff]
        %v3772 = vld [vmem:[%s3759 + $0x60] sm:$0xff]
        %v3773 = vld [vmem:[%s3759 + $0x68] sm:$0xff]
        %v3774 = vld [vmem:[%s3759 + $0x70] sm:$0xff]
        %v3775 = vld [vmem:[%s3759 + $0x78] sm:$0xff]
        %s3776 = scalar_lea.vmem %s992, 128
        %v3777 = vld [vmem:[%s3776] sm:$0xff]
        %v3778 = vld [vmem:[%s3776 + $0x8] sm:$0xff]
        %v3779 = vld [vmem:[%s3776 + $0x10] sm:$0xff]
        %v3780 = vld [vmem:[%s3776 + $0x18] sm:$0xff]
        %v3781 = vld [vmem:[%s3776 + $0x20] sm:$0xff]
        %v3782 = vld [vmem:[%s3776 + $0x28] sm:$0xff]
        %v3783 = vld [vmem:[%s3776 + $0x30] sm:$0xff]
        %v3784 = vld [vmem:[%s3776 + $0x38] sm:$0xff]
        %v3785 = vld [vmem:[%s3776 + $0x40] sm:$0xff]
        %v3786 = vld [vmem:[%s3776 + $0x48] sm:$0xff]
        %v3787 = vld [vmem:[%s3776 + $0x50] sm:$0xff]
        %v3788 = vld [vmem:[%s3776 + $0x58] sm:$0xff]
        %v3789 = vld [vmem:[%s3776 + $0x60] sm:$0xff]
        %v3790 = vld [vmem:[%s3776 + $0x68] sm:$0xff]
        %v3791 = vld [vmem:[%s3776 + $0x70] sm:$0xff]
        %v3792 = vld [vmem:[%s3776 + $0x78] sm:$0xff]
        %3794 = vset.pattern.permute.xlu0 0
        %3795 = vperm.xlu0 %3794, %v3777
        %v3796 = vpop.permute.xlu0 %3795
        %3799 = vset.pattern.permute.xlu0 0
        %3800 = vperm.xlu0 %3799, %v3778
        %v3801 = vpop.permute.xlu0 %3800
        %3804 = vset.pattern.permute.xlu0 0
        %3805 = vperm.xlu0 %3804, %v3779
        %v3806 = vpop.permute.xlu0 %3805
        %3809 = vset.pattern.permute.xlu0 0
        %3810 = vperm.xlu0 %3809, %v3780
        %v3811 = vpop.permute.xlu0 %3810
        %3814 = vset.pattern.permute.xlu0 0
        %3815 = vperm.xlu0 %3814, %v3781
        %v3816 = vpop.permute.xlu0 %3815
        %3819 = vset.pattern.permute.xlu0 0
        %3820 = vperm.xlu0 %3819, %v3782
        %v3821 = vpop.permute.xlu0 %3820
        %3824 = vset.pattern.permute.xlu0 0
        %3825 = vperm.xlu0 %3824, %v3783
        %v3826 = vpop.permute.xlu0 %3825
        %3829 = vset.pattern.permute.xlu0 0
        %3830 = vperm.xlu0 %3829, %v3784
        %v3831 = vpop.permute.xlu0 %3830
        %3834 = vset.pattern.permute.xlu0 0
        %3835 = vperm.xlu0 %3834, %v3785
        %v3836 = vpop.permute.xlu0 %3835
        %3839 = vset.pattern.permute.xlu0 0
        %3840 = vperm.xlu0 %3839, %v3786
        %v3841 = vpop.permute.xlu0 %3840
        %3844 = vset.pattern.permute.xlu0 0
        %3845 = vperm.xlu0 %3844, %v3787
        %v3846 = vpop.permute.xlu0 %3845
        %3849 = vset.pattern.permute.xlu0 0
        %3850 = vperm.xlu0 %3849, %v3788
        %v3851 = vpop.permute.xlu0 %3850
        %3854 = vset.pattern.permute.xlu0 0
        %3855 = vperm.xlu0 %3854, %v3789
        %v3856 = vpop.permute.xlu0 %3855
        %3859 = vset.pattern.permute.xlu0 0
        %3860 = vperm.xlu0 %3859, %v3790
        %v3861 = vpop.permute.xlu0 %3860
        %3864 = vset.pattern.permute.xlu0 0
        %3865 = vperm.xlu0 %3864, %v3791
        %v3866 = vpop.permute.xlu0 %3865
        %3869 = vset.pattern.permute.xlu0 0
        %3870 = vperm.xlu0 %3869, %v3792
        %v3871 = vpop.permute.xlu0 %3870
        %v3874 = vsel %vm1809, %v3760, 0
        %v3877 = vsel %vm1809, %v3761, 0
        %v3880 = vsel %vm1809, %v3762, 0
        %v3883 = vsel %vm1809, %v3763, 0
        %v3886 = vsel %vm1809, %v3764, 0
        %v3889 = vsel %vm1809, %v3765, 0
        %v3892 = vsel %vm1809, %v3766, 0
        %v3895 = vsel %vm1809, %v3767, 0
        %v3898 = vsel %vm1809, %v3768, 0
        %v3901 = vsel %vm1809, %v3769, 0
        %v3904 = vsel %vm1809, %v3770, 0
        %v3907 = vsel %vm1809, %v3771, 0
        %v3910 = vsel %vm1809, %v3772, 0
        %v3913 = vsel %vm1809, %v3773, 0
        %v3916 = vsel %vm1809, %v3774, 0
        %v3919 = vsel %vm1809, %v3775, 0
        %3921 = vmatprep.subr.mxu0 0.0
        %3922 = vmatpush1.msra.mxu0 0.0
        %3923 = vmatprep.subr.mxu0 0.0
        %3924 = vmatpush1.msra.mxu0 0.0
        %3925 = vmatprep.subr.mxu0 0.0
        %3926 = vmatpush1.msra.mxu0 0.0
        %3927 = vmatprep.subr.mxu0 0.0
        %3928 = vmatpush1.msra.mxu0 0.0
        %3929 = vmatprep.subr.mxu0 0.0
        %3930 = vmatpush1.msra.mxu0 0.0
        %3931 = vmatprep.subr.mxu0 0.0
        %3932 = vmatpush1.msra.mxu0 0.0
        %3933 = vmatprep.subr.mxu0 0.0
        %3934 = vmatpush1.msra.mxu0 0.0
        %3935 = vmatprep.subr.mxu0 0.0
        %3936 = vmatpush1.msra.mxu0 0.0
        %3937 = vmatprep.subr.mxu0 0.0
        %3938 = vmatpush1.msra.mxu0 0.0
        %3939 = vmatprep.subr.mxu0 0.0
        %3940 = vmatpush1.msra.mxu0 0.0
        %3941 = vmatprep.subr.mxu0 0.0
        %3942 = vmatpush1.msra.mxu0 0.0
        %3943 = vmatprep.subr.mxu0 0.0
        %3944 = vmatpush1.msra.mxu0 0.0
        %3945 = vmatprep.subr.mxu0 0.0
        %3946 = vmatpush1.msra.mxu0 %v3758
        %3947 = vmatprep.subr.mxu0 0.0
        %3948 = vmatpush1.msra.mxu0 %v3757
        %3949 = vmatprep.subr.mxu0 0.0
        %3950 = vmatpush1.msra.mxu0 %v3756
        %3951 = vmatprep.subr.mxu0 0.0
        %3952 = vmatpush1.msra.mxu0 %v3755
        %3953 = vmatprep.subr.mxu0 0.0
        %3954 = vmatpush2.msra.mxu0 0.0
        %3955 = vmatprep.subr.mxu0 0.0
        %3956 = vmatpush2.msra.mxu0 0.0
        %3957 = vmatprep.subr.mxu0 0.0
        %3958 = vmatpush2.msra.mxu0 0.0
        %3959 = vmatprep.subr.mxu0 0.0
        %3960 = vmatpush2.msra.mxu0 0.0
        %3961 = vmatprep.subr.mxu0 0.0
        %3962 = vmatpush2.msra.mxu0 0.0
        %3963 = vmatprep.subr.mxu0 0.0
        %3964 = vmatpush2.msra.mxu0 0.0
        %3965 = vmatprep.subr.mxu0 0.0
        %3966 = vmatpush2.msra.mxu0 0.0
        %3967 = vmatprep.subr.mxu0 0.0
        %3968 = vmatpush2.msra.mxu0 0.0
        %3969 = vmatprep.subr.mxu0 0.0
        %3970 = vmatpush2.msra.mxu0 0.0
        %3971 = vmatprep.subr.mxu0 0.0
        %3972 = vmatpush2.msra.mxu0 0.0
        %3973 = vmatprep.subr.mxu0 0.0
        %3974 = vmatpush2.msra.mxu0 0.0
        %3975 = vmatprep.subr.mxu0 0.0
        %3976 = vmatpush2.msra.mxu0 0.0
        %3977 = vmatprep.subr.mxu0 0.0
        %3978 = vmatpush2.msra.mxu0 0.0
        %3979 = vmatprep.subr.mxu0 0.0
        %3980 = vmatpush2.msra.mxu0 0.0
        %3981 = vmatprep.subr.mxu0 0.0
        %3982 = vmatpush2.msra.mxu0 0.0
        %3983 = vmatprep.subr.mxu0 0.0
        %3984 = vmatpush2.msra.mxu0 0.0
        %3985 = vmatprep.mubr.f32.mxu0 0.0
        %3986 = vmatmul.mubr.f32.gmra.mxu0 %v3874
        %v3987 = vpop.f32.mrf.mxu0
        %v3988 = vadd.f32 %v3796, %v3987
        %v3989 = vpop.f32.mrf.mxu0
        %3990 = vmatprep.mubr.f32.mxu0 0.0
        %3991 = vmatmul.mubr.f32.gmra.mxu0 %v3877
        %v3992 = vpop.f32.mrf.mxu0
        %v3993 = vadd.f32 %v3801, %v3992
        %v3994 = vpop.f32.mrf.mxu0
        %3995 = vmatprep.mubr.f32.mxu0 0.0
        %3996 = vmatmul.mubr.f32.gmra.mxu0 %v3880
        %v3997 = vpop.f32.mrf.mxu0
        %v3998 = vadd.f32 %v3806, %v3997
        %v3999 = vpop.f32.mrf.mxu0
        %4000 = vmatprep.mubr.f32.mxu0 0.0
        %4001 = vmatmul.mubr.f32.gmra.mxu0 %v3883
        %v4002 = vpop.f32.mrf.mxu0
        %v4003 = vadd.f32 %v3811, %v4002
        %v4004 = vpop.f32.mrf.mxu0
        %4005 = vmatprep.mubr.f32.mxu0 0.0
        %4006 = vmatmul.mubr.f32.gmra.mxu0 %v3886
        %v4007 = vpop.f32.mrf.mxu0
        %v4008 = vadd.f32 %v3816, %v4007
        %v4009 = vpop.f32.mrf.mxu0
        %4010 = vmatprep.mubr.f32.mxu0 0.0
        %4011 = vmatmul.mubr.f32.gmra.mxu0 %v3889
        %v4012 = vpop.f32.mrf.mxu0
        %v4013 = vadd.f32 %v3821, %v4012
        %v4014 = vpop.f32.mrf.mxu0
        %4015 = vmatprep.mubr.f32.mxu0 0.0
        %4016 = vmatmul.mubr.f32.gmra.mxu0 %v3892
        %v4017 = vpop.f32.mrf.mxu0
        %v4018 = vadd.f32 %v3826, %v4017
        %v4019 = vpop.f32.mrf.mxu0
        %4020 = vmatprep.mubr.f32.mxu0 0.0
        %4021 = vmatmul.mubr.f32.gmra.mxu0 %v3895
        %v4022 = vpop.f32.mrf.mxu0
        %v4023 = vadd.f32 %v3831, %v4022
        %v4024 = vpop.f32.mrf.mxu0
        %4025 = vmatprep.mubr.f32.mxu0 0.0
        %4026 = vmatmul.mubr.f32.gmra.mxu0 %v3898
        %v4027 = vpop.f32.mrf.mxu0
        %v4028 = vadd.f32 %v3836, %v4027
        %v4029 = vpop.f32.mrf.mxu0
        %4030 = vmatprep.mubr.f32.mxu0 0.0
        %4031 = vmatmul.mubr.f32.gmra.mxu0 %v3901
        %v4032 = vpop.f32.mrf.mxu0
        %v4033 = vadd.f32 %v3841, %v4032
        %v4034 = vpop.f32.mrf.mxu0
        %4035 = vmatprep.mubr.f32.mxu0 0.0
        %4036 = vmatmul.mubr.f32.gmra.mxu0 %v3904
        %v4037 = vpop.f32.mrf.mxu0
        %v4038 = vadd.f32 %v3846, %v4037
        %v4039 = vpop.f32.mrf.mxu0
        %4040 = vmatprep.mubr.f32.mxu0 0.0
        %4041 = vmatmul.mubr.f32.gmra.mxu0 %v3907
        %v4042 = vpop.f32.mrf.mxu0
        %v4043 = vadd.f32 %v3851, %v4042
        %v4044 = vpop.f32.mrf.mxu0
        %4045 = vmatprep.mubr.f32.mxu0 0.0
        %4046 = vmatmul.mubr.f32.gmra.mxu0 %v3910
        %v4047 = vpop.f32.mrf.mxu0
        %v4048 = vadd.f32 %v3856, %v4047
        %v4049 = vpop.f32.mrf.mxu0
        %4050 = vmatprep.mubr.f32.mxu0 0.0
        %4051 = vmatmul.mubr.f32.gmra.mxu0 %v3913
        %v4052 = vpop.f32.mrf.mxu0
        %v4053 = vadd.f32 %v3861, %v4052
        %v4054 = vpop.f32.mrf.mxu0
        %4055 = vmatprep.mubr.f32.mxu0 0.0
        %4056 = vmatmul.mubr.f32.gmra.mxu0 %v3916
        %v4057 = vpop.f32.mrf.mxu0
        %v4058 = vadd.f32 %v3866, %v4057
        %v4059 = vpop.f32.mrf.mxu0
        %4060 = vmatprep.mubr.f32.mxu0 0.0
        %4061 = vmatmul.mubr.f32.gmra.mxu0 %v3919
        %v4062 = vpop.f32.mrf.mxu0
        %v4063 = vadd.f32 %v3871, %v4062
        %v4064 = vpop.f32.mrf.mxu0
        %4065 = vdwg.mxu0
        %s4066 = scalar_lea.vmem %s1006, 1
        %v4067 = vld [vmem:[%s4066] sm:$0x1]
        %vm4068 = vcmp.ge.f32.partialorder %v3988, 0.0
        %vm4069 = vcmp.ge.f32.partialorder %v3993, 0.0
        %vm4070 = vcmp.ge.f32.partialorder %v3998, 0.0
        %vm4071 = vcmp.ge.f32.partialorder %v4003, 0.0
        %vm4072 = vcmp.ge.f32.partialorder %v4008, 0.0
        %vm4073 = vcmp.ge.f32.partialorder %v4013, 0.0
        %vm4074 = vcmp.ge.f32.partialorder %v4018, 0.0
        %vm4075 = vcmp.ge.f32.partialorder %v4023, 0.0
        %vm4076 = vcmp.ge.f32.partialorder %v4028, 0.0
        %vm4077 = vcmp.ge.f32.partialorder %v4033, 0.0
        %vm4078 = vcmp.ge.f32.partialorder %v4038, 0.0
        %vm4079 = vcmp.ge.f32.partialorder %v4043, 0.0
        %vm4080 = vcmp.ge.f32.partialorder %v4048, 0.0
        %vm4081 = vcmp.ge.f32.partialorder %v4053, 0.0
        %vm4082 = vcmp.ge.f32.partialorder %v4058, 0.0
        %vm4083 = vcmp.ge.f32.partialorder %v4063, 0.0
        %v4085 = vlaneseq
        %v4086 = vshrl.u32 %v4085, 7
        %v4087 = vsub.s32 0, %v4086
        %v4088 = vrot.slane %v4067, %v4087
        %4089 = vset.pattern.permute.xlu0 0
        %4090 = vperm.xlu0 %4089, %v4088
        %v4091 = vpop.permute.xlu0 %4090
        %v4093 = vmul.f32 %v4091, %v3988
        %v4094 = vmul.f32 %v4091, %v3993
        %v4095 = vmul.f32 %v4091, %v3998
        %v4096 = vmul.f32 %v4091, %v4003
        %v4097 = vmul.f32 %v4091, %v4008
        %v4098 = vmul.f32 %v4091, %v4013
        %v4099 = vmul.f32 %v4091, %v4018
        %v4100 = vmul.f32 %v4091, %v4023
        %v4101 = vmul.f32 %v4091, %v4028
        %v4102 = vmul.f32 %v4091, %v4033
        %v4103 = vmul.f32 %v4091, %v4038
        %v4104 = vmul.f32 %v4091, %v4043
        %v4105 = vmul.f32 %v4091, %v4048
        %v4106 = vmul.f32 %v4091, %v4053
        %v4107 = vmul.f32 %v4091, %v4058
        %v4108 = vmul.f32 %v4091, %v4063
        %v4109 = vsel %vm4068, %v3988, %v4093
        %v4110 = vsel %vm4069, %v3993, %v4094
        %v4111 = vsel %vm4070, %v3998, %v4095
        %v4112 = vsel %vm4071, %v4003, %v4096
        %v4113 = vsel %vm4072, %v4008, %v4097
        %v4114 = vsel %vm4073, %v4013, %v4098
        %v4115 = vsel %vm4074, %v4018, %v4099
        %v4116 = vsel %vm4075, %v4023, %v4100
        %v4117 = vsel %vm4076, %v4028, %v4101
        %v4118 = vsel %vm4077, %v4033, %v4102
        %v4119 = vsel %vm4078, %v4038, %v4103
        %v4120 = vsel %vm4079, %v4043, %v4104
        %v4121 = vsel %vm4080, %v4048, %v4105
        %v4122 = vsel %vm4081, %v4053, %v4106
        %v4123 = vsel %vm4082, %v4058, %v4107
        %v4124 = vsel %vm4083, %v4063, %v4108
        %s4125 = scalar_lea.vmem %s997, 128
        %v4126 = vld [vmem:[%s4125] sm:$0xff]
        %v4127 = vld [vmem:[%s4125 + $0x8] sm:$0xff]
        %v4128 = vld [vmem:[%s4125 + $0x10] sm:$0xff]
        %v4129 = vld [vmem:[%s4125 + $0x18] sm:$0xff]
        %v4130 = vld [vmem:[%s4125 + $0x20] sm:$0xff]
        %v4131 = vld [vmem:[%s4125 + $0x28] sm:$0xff]
        %v4132 = vld [vmem:[%s4125 + $0x30] sm:$0xff]
        %v4133 = vld [vmem:[%s4125 + $0x38] sm:$0xff]
        %v4134 = vld [vmem:[%s4125 + $0x40] sm:$0xff]
        %v4135 = vld [vmem:[%s4125 + $0x48] sm:$0xff]
        %v4136 = vld [vmem:[%s4125 + $0x50] sm:$0xff]
        %v4137 = vld [vmem:[%s4125 + $0x58] sm:$0xff]
        %v4138 = vld [vmem:[%s4125 + $0x60] sm:$0xff]
        %v4139 = vld [vmem:[%s4125 + $0x68] sm:$0xff]
        %v4140 = vld [vmem:[%s4125 + $0x70] sm:$0xff]
        %v4141 = vld [vmem:[%s4125 + $0x78] sm:$0xff]
        %s4142 = scalar_lea.vmem %s1002, 128
        %v4143 = vld [vmem:[%s4142] sm:$0xff]
        %v4144 = vld [vmem:[%s4142 + $0x8] sm:$0xff]
        %v4145 = vld [vmem:[%s4142 + $0x10] sm:$0xff]
        %v4146 = vld [vmem:[%s4142 + $0x18] sm:$0xff]
        %v4147 = vld [vmem:[%s4142 + $0x20] sm:$0xff]
        %v4148 = vld [vmem:[%s4142 + $0x28] sm:$0xff]
        %v4149 = vld [vmem:[%s4142 + $0x30] sm:$0xff]
        %v4150 = vld [vmem:[%s4142 + $0x38] sm:$0xff]
        %v4151 = vld [vmem:[%s4142 + $0x40] sm:$0xff]
        %v4152 = vld [vmem:[%s4142 + $0x48] sm:$0xff]
        %v4153 = vld [vmem:[%s4142 + $0x50] sm:$0xff]
        %v4154 = vld [vmem:[%s4142 + $0x58] sm:$0xff]
        %v4155 = vld [vmem:[%s4142 + $0x60] sm:$0xff]
        %v4156 = vld [vmem:[%s4142 + $0x68] sm:$0xff]
        %v4157 = vld [vmem:[%s4142 + $0x70] sm:$0xff]
        %v4158 = vld [vmem:[%s4142 + $0x78] sm:$0xff]
        %v4159 = vsel %vm2093, %v4109, 0.0
        %v4160 = vsel %vm2093, %v4110, 0.0
        %v4161 = vadd.f32 %v4159, %v4160
        %v4162 = vsel %vm2093, %v4111, 0.0
        %v4163 = vadd.f32 %v4161, %v4162
        %v4164 = vsel %vm2093, %v4112, 0.0
        %v4165 = vadd.f32 %v4163, %v4164
        %v4166 = vsel %vm2093, %v4113, 0.0
        %v4167 = vadd.f32 %v4165, %v4166
        %v4168 = vsel %vm2093, %v4114, 0.0
        %v4169 = vadd.f32 %v4167, %v4168
        %v4170 = vsel %vm2093, %v4115, 0.0
        %v4171 = vadd.f32 %v4169, %v4170
        %v4172 = vsel %vm2093, %v4116, 0.0
        %v4173 = vadd.f32 %v4171, %v4172
        %v4174 = vsel %vm2093, %v4117, 0.0
        %v4175 = vadd.f32 %v4173, %v4174
        %v4176 = vsel %vm2093, %v4118, 0.0
        %v4177 = vadd.f32 %v4175, %v4176
        %v4178 = vsel %vm2093, %v4119, 0.0
        %v4179 = vadd.f32 %v4177, %v4178
        %v4180 = vsel %vm2093, %v4120, 0.0
        %v4181 = vadd.f32 %v4179, %v4180
        %v4182 = vsel %vm2093, %v4121, 0.0
        %v4183 = vadd.f32 %v4181, %v4182
        %v4184 = vsel %vm2093, %v4122, 0.0
        %v4185 = vadd.f32 %v4183, %v4184
        %v4186 = vsel %vm2093, %v4123, 0.0
        %v4187 = vadd.f32 %v4185, %v4186
        %v4188 = vsel %vm2093, %v4124, 0.0
        %v4189 = vadd.f32 %v4187, %v4188
        %4190 = vadd.xlane.f32.xlu0 %v4189
        %v4191 = vpop.xlane.xlu0 %4190
        %v4192 = vrot.slane %v4191, 4
        %v4193 = vadd.f32 %v4191, %v4192
        %v4194 = vrot.slane %v4193, 2
        %v4195 = vadd.f32 %v4193, %v4194
        %v4196 = vrot.slane %v4195, 1
        %v4197 = vadd.f32 %v4195, %v4196
        %s4198 = vtos %v4197
        %v4199 = vrcp.pop 2816.0
        %s4200 = vtos %v4199
        %s4201 = smul.f32 %s4198, %s4200
        %v4202 = vstv %s4201
        %v4203 = vsub.f32 %v4109, %v4202
        %v4204 = vsub.f32 %v4110, %v4202
        %v4205 = vsub.f32 %v4111, %v4202
        %v4206 = vsub.f32 %v4112, %v4202
        %v4207 = vsub.f32 %v4113, %v4202
        %v4208 = vsub.f32 %v4114, %v4202
        %v4209 = vsub.f32 %v4115, %v4202
        %v4210 = vsub.f32 %v4116, %v4202
        %v4211 = vsub.f32 %v4117, %v4202
        %v4212 = vsub.f32 %v4118, %v4202
        %v4213 = vsub.f32 %v4119, %v4202
        %v4214 = vsub.f32 %v4120, %v4202
        %v4215 = vsub.f32 %v4121, %v4202
        %v4216 = vsub.f32 %v4122, %v4202
        %v4217 = vsub.f32 %v4123, %v4202
        %v4218 = vsub.f32 %v4124, %v4202
        %v4219 = vmul.f32 %v4203, %v4203
        %v4220 = vmul.f32 %v4204, %v4204
        %v4221 = vmul.f32 %v4205, %v4205
        %v4222 = vmul.f32 %v4206, %v4206
        %v4223 = vmul.f32 %v4207, %v4207
        %v4224 = vmul.f32 %v4208, %v4208
        %v4225 = vmul.f32 %v4209, %v4209
        %v4226 = vmul.f32 %v4210, %v4210
        %v4227 = vmul.f32 %v4211, %v4211
        %v4228 = vmul.f32 %v4212, %v4212
        %v4229 = vmul.f32 %v4213, %v4213
        %v4230 = vmul.f32 %v4214, %v4214
        %v4231 = vmul.f32 %v4215, %v4215
        %v4232 = vmul.f32 %v4216, %v4216
        %v4233 = vmul.f32 %v4217, %v4217
        %v4234 = vmul.f32 %v4218, %v4218
        %v4235 = vsel %vm2093, %v4219, 0.0
        %v4236 = vsel %vm2093, %v4220, 0.0
        %v4237 = vadd.f32 %v4235, %v4236
        %v4238 = vsel %vm2093, %v4221, 0.0
        %v4239 = vadd.f32 %v4237, %v4238
        %v4240 = vsel %vm2093, %v4222, 0.0
        %v4241 = vadd.f32 %v4239, %v4240
        %v4242 = vsel %vm2093, %v4223, 0.0
        %v4243 = vadd.f32 %v4241, %v4242
        %v4244 = vsel %vm2093, %v4224, 0.0
        %v4245 = vadd.f32 %v4243, %v4244
        %v4246 = vsel %vm2093, %v4225, 0.0
        %v4247 = vadd.f32 %v4245, %v4246
        %v4248 = vsel %vm2093, %v4226, 0.0
        %v4249 = vadd.f32 %v4247, %v4248
        %v4250 = vsel %vm2093, %v4227, 0.0
        %v4251 = vadd.f32 %v4249, %v4250
        %v4252 = vsel %vm2093, %v4228, 0.0
        %v4253 = vadd.f32 %v4251, %v4252
        %v4254 = vsel %vm2093, %v4229, 0.0
        %v4255 = vadd.f32 %v4253, %v4254
        %v4256 = vsel %vm2093, %v4230, 0.0
        %v4257 = vadd.f32 %v4255, %v4256
        %v4258 = vsel %vm2093, %v4231, 0.0
        %v4259 = vadd.f32 %v4257, %v4258
        %v4260 = vsel %vm2093, %v4232, 0.0
        %v4261 = vadd.f32 %v4259, %v4260
        %v4262 = vsel %vm2093, %v4233, 0.0
        %v4263 = vadd.f32 %v4261, %v4262
        %v4264 = vsel %vm2093, %v4234, 0.0
        %v4265 = vadd.f32 %v4263, %v4264
        %4266 = vadd.xlane.f32.xlu0 %v4265
        %v4267 = vpop.xlane.xlu0 %4266
        %v4268 = vrot.slane %v4267, 4
        %v4269 = vadd.f32 %v4267, %v4268
        %v4270 = vrot.slane %v4269, 2
        %v4271 = vadd.f32 %v4269, %v4270
        %v4272 = vrot.slane %v4271, 1
        %v4273 = vadd.f32 %v4271, %v4272
        %s4274 = vtos %v4273
        %v4275 = vrcp.pop 2816.0
        %s4276 = vtos %v4275
        %s4277 = smul.f32 %s4274, %s4276
        %s4278 = sadd.f32 %s4277, 1e-08
        %v4279 = vstv %s4278
        %v4280 = vrsqrt.pop %v4279
        %s4281 = vtos %v4280
        %v4282 = vstv %s4281
        %v4283 = vmul.f32 %v4203, %v4282
        %v4284 = vmul.f32 %v4204, %v4282
        %v4285 = vmul.f32 %v4205, %v4282
        %v4286 = vmul.f32 %v4206, %v4282
        %v4287 = vmul.f32 %v4207, %v4282
        %v4288 = vmul.f32 %v4208, %v4282
        %v4289 = vmul.f32 %v4209, %v4282
        %v4290 = vmul.f32 %v4210, %v4282
        %v4291 = vmul.f32 %v4211, %v4282
        %v4292 = vmul.f32 %v4212, %v4282
        %v4293 = vmul.f32 %v4213, %v4282
        %v4294 = vmul.f32 %v4214, %v4282
        %v4295 = vmul.f32 %v4215, %v4282
        %v4296 = vmul.f32 %v4216, %v4282
        %v4297 = vmul.f32 %v4217, %v4282
        %v4298 = vmul.f32 %v4218, %v4282
        %4300 = vset.pattern.permute.xlu0 0
        %4301 = vperm.xlu0 %4300, %v4126
        %v4302 = vpop.permute.xlu0 %4301
        %4305 = vset.pattern.permute.xlu0 0
        %4306 = vperm.xlu0 %4305, %v4127
        %v4307 = vpop.permute.xlu0 %4306
        %4310 = vset.pattern.permute.xlu0 0
        %4311 = vperm.xlu0 %4310, %v4128
        %v4312 = vpop.permute.xlu0 %4311
        %4315 = vset.pattern.permute.xlu0 0
        %4316 = vperm.xlu0 %4315, %v4129
        %v4317 = vpop.permute.xlu0 %4316
        %4320 = vset.pattern.permute.xlu0 0
        %4321 = vperm.xlu0 %4320, %v4130
        %v4322 = vpop.permute.xlu0 %4321
        %4325 = vset.pattern.permute.xlu0 0
        %4326 = vperm.xlu0 %4325, %v4131
        %v4327 = vpop.permute.xlu0 %4326
        %4330 = vset.pattern.permute.xlu0 0
        %4331 = vperm.xlu0 %4330, %v4132
        %v4332 = vpop.permute.xlu0 %4331
        %4335 = vset.pattern.permute.xlu0 0
        %4336 = vperm.xlu0 %4335, %v4133
        %v4337 = vpop.permute.xlu0 %4336
        %4340 = vset.pattern.permute.xlu0 0
        %4341 = vperm.xlu0 %4340, %v4134
        %v4342 = vpop.permute.xlu0 %4341
        %4345 = vset.pattern.permute.xlu0 0
        %4346 = vperm.xlu0 %4345, %v4135
        %v4347 = vpop.permute.xlu0 %4346
        %4350 = vset.pattern.permute.xlu0 0
        %4351 = vperm.xlu0 %4350, %v4136
        %v4352 = vpop.permute.xlu0 %4351
        %4355 = vset.pattern.permute.xlu0 0
        %4356 = vperm.xlu0 %4355, %v4137
        %v4357 = vpop.permute.xlu0 %4356
        %4360 = vset.pattern.permute.xlu0 0
        %4361 = vperm.xlu0 %4360, %v4138
        %v4362 = vpop.permute.xlu0 %4361
        %4365 = vset.pattern.permute.xlu0 0
        %4366 = vperm.xlu0 %4365, %v4139
        %v4367 = vpop.permute.xlu0 %4366
        %4370 = vset.pattern.permute.xlu0 0
        %4371 = vperm.xlu0 %4370, %v4140
        %v4372 = vpop.permute.xlu0 %4371
        %4375 = vset.pattern.permute.xlu0 0
        %4376 = vperm.xlu0 %4375, %v4141
        %v4377 = vpop.permute.xlu0 %4376
        %v4379 = vmul.f32 %v4283, %v4302
        %v4380 = vmul.f32 %v4284, %v4307
        %v4381 = vmul.f32 %v4285, %v4312
        %v4382 = vmul.f32 %v4286, %v4317
        %v4383 = vmul.f32 %v4287, %v4322
        %v4384 = vmul.f32 %v4288, %v4327
        %v4385 = vmul.f32 %v4289, %v4332
        %v4386 = vmul.f32 %v4290, %v4337
        %v4387 = vmul.f32 %v4291, %v4342
        %v4388 = vmul.f32 %v4292, %v4347
        %v4389 = vmul.f32 %v4293, %v4352
        %v4390 = vmul.f32 %v4294, %v4357
        %v4391 = vmul.f32 %v4295, %v4362
        %v4392 = vmul.f32 %v4296, %v4367
        %v4393 = vmul.f32 %v4297, %v4372
        %v4394 = vmul.f32 %v4298, %v4377
        %4396 = vset.pattern.permute.xlu0 0
        %4397 = vperm.xlu0 %4396, %v4143
        %v4398 = vpop.permute.xlu0 %4397
        %4401 = vset.pattern.permute.xlu0 0
        %4402 = vperm.xlu0 %4401, %v4144
        %v4403 = vpop.permute.xlu0 %4402
        %4406 = vset.pattern.permute.xlu0 0
        %4407 = vperm.xlu0 %4406, %v4145
        %v4408 = vpop.permute.xlu0 %4407
        %4411 = vset.pattern.permute.xlu0 0
        %4412 = vperm.xlu0 %4411, %v4146
        %v4413 = vpop.permute.xlu0 %4412
        %4416 = vset.pattern.permute.xlu0 0
        %4417 = vperm.xlu0 %4416, %v4147
        %v4418 = vpop.permute.xlu0 %4417
        %4421 = vset.pattern.permute.xlu0 0
        %4422 = vperm.xlu0 %4421, %v4148
        %v4423 = vpop.permute.xlu0 %4422
        %4426 = vset.pattern.permute.xlu0 0
        %4427 = vperm.xlu0 %4426, %v4149
        %v4428 = vpop.permute.xlu0 %4427
        %4431 = vset.pattern.permute.xlu0 0
        %4432 = vperm.xlu0 %4431, %v4150
        %v4433 = vpop.permute.xlu0 %4432
        %4436 = vset.pattern.permute.xlu0 0
        %4437 = vperm.xlu0 %4436, %v4151
        %v4438 = vpop.permute.xlu0 %4437
        %4441 = vset.pattern.permute.xlu0 0
        %4442 = vperm.xlu0 %4441, %v4152
        %v4443 = vpop.permute.xlu0 %4442
        %4446 = vset.pattern.permute.xlu0 0
        %4447 = vperm.xlu0 %4446, %v4153
        %v4448 = vpop.permute.xlu0 %4447
        %4451 = vset.pattern.permute.xlu0 0
        %4452 = vperm.xlu0 %4451, %v4154
        %v4453 = vpop.permute.xlu0 %4452
        %4456 = vset.pattern.permute.xlu0 0
        %4457 = vperm.xlu0 %4456, %v4155
        %v4458 = vpop.permute.xlu0 %4457
        %4461 = vset.pattern.permute.xlu0 0
        %4462 = vperm.xlu0 %4461, %v4156
        %v4463 = vpop.permute.xlu0 %4462
        %4466 = vset.pattern.permute.xlu0 0
        %4467 = vperm.xlu0 %4466, %v4157
        %v4468 = vpop.permute.xlu0 %4467
        %4471 = vset.pattern.permute.xlu0 0
        %4472 = vperm.xlu0 %4471, %v4158
        %v4473 = vpop.permute.xlu0 %4472
        %v4475 = vadd.f32 %v4379, %v4398
        %v4476 = vadd.f32 %v4380, %v4403
        %v4477 = vadd.f32 %v4381, %v4408
        %v4478 = vadd.f32 %v4382, %v4413
        %v4479 = vadd.f32 %v4383, %v4418
        %v4480 = vadd.f32 %v4384, %v4423
        %v4481 = vadd.f32 %v4385, %v4428
        %v4482 = vadd.f32 %v4386, %v4433
        %v4483 = vadd.f32 %v4387, %v4438
        %v4484 = vadd.f32 %v4388, %v4443
        %v4485 = vadd.f32 %v4389, %v4448
        %v4486 = vadd.f32 %v4390, %v4453
        %v4487 = vadd.f32 %v4391, %v4458
        %v4488 = vadd.f32 %v4392, %v4463
        %v4489 = vadd.f32 %v4393, %v4468
        %v4490 = vadd.f32 %v4394, %v4473
        %s4491 = scalar_lea.vmem %s1011, 128
        %v4492 = vld [vmem:[%s4491] sm:$0xff]
        %v4493 = vld [vmem:[%s4491 + $0x8] sm:$0xff]
        %v4494 = vld [vmem:[%s4491 + $0x10] sm:$0xff]
        %v4495 = vld [vmem:[%s4491 + $0x18] sm:$0xff]
        %v4496 = vld [vmem:[%s4491 + $0x20] sm:$0xff]
        %v4497 = vld [vmem:[%s4491 + $0x28] sm:$0xff]
        %v4498 = vld [vmem:[%s4491 + $0x30] sm:$0xff]
        %v4499 = vld [vmem:[%s4491 + $0x38] sm:$0xff]
        %v4500 = vld [vmem:[%s4491 + $0x40] sm:$0xff]
        %v4501 = vld [vmem:[%s4491 + $0x48] sm:$0xff]
        %v4502 = vld [vmem:[%s4491 + $0x50] sm:$0xff]
        %v4503 = vld [vmem:[%s4491 + $0x58] sm:$0xff]
        %v4504 = vld [vmem:[%s4491 + $0x60] sm:$0xff]
        %v4505 = vld [vmem:[%s4491 + $0x68] sm:$0xff]
        %v4506 = vld [vmem:[%s4491 + $0x70] sm:$0xff]
        %v4507 = vld [vmem:[%s4491 + $0x78] sm:$0xff]
        %4508 = vrot.lane.b32.xlu0 %v4475, 22
        %v4509 = vpop.permute.xlu0 %4508
        %v4510 = vsel %vm2442, %v4509, %v4475
        %4511 = vrot.lane.b32.xlu0 %v4476, 22
        %v4512 = vpop.permute.xlu0 %4511
        %v4513 = vsel %vm2442, %v4512, %v4476
        %4514 = vrot.lane.b32.xlu0 %v4477, 22
        %v4515 = vpop.permute.xlu0 %4514
        %v4516 = vsel %vm2442, %v4515, %v4477
        %4517 = vrot.lane.b32.xlu0 %v4478, 22
        %v4518 = vpop.permute.xlu0 %4517
        %v4519 = vsel %vm2442, %v4518, %v4478
        %4520 = vrot.lane.b32.xlu0 %v4479, 22
        %v4521 = vpop.permute.xlu0 %4520
        %v4522 = vsel %vm2442, %v4521, %v4479
        %4523 = vrot.lane.b32.xlu0 %v4480, 22
        %v4524 = vpop.permute.xlu0 %4523
        %v4525 = vsel %vm2442, %v4524, %v4480
        %4526 = vrot.lane.b32.xlu0 %v4481, 22
        %v4527 = vpop.permute.xlu0 %4526
        %v4528 = vsel %vm2442, %v4527, %v4481
        %4529 = vrot.lane.b32.xlu0 %v4482, 22
        %v4530 = vpop.permute.xlu0 %4529
        %v4531 = vsel %vm2442, %v4530, %v4482
        %4532 = vrot.lane.b32.xlu0 %v4483, 22
        %v4533 = vpop.permute.xlu0 %4532
        %v4534 = vsel %vm2442, %v4533, %v4483
        %4535 = vrot.lane.b32.xlu0 %v4484, 22
        %v4536 = vpop.permute.xlu0 %4535
        %v4537 = vsel %vm2442, %v4536, %v4484
        %4538 = vrot.lane.b32.xlu0 %v4485, 22
        %v4539 = vpop.permute.xlu0 %4538
        %v4540 = vsel %vm2442, %v4539, %v4485
        %4541 = vrot.lane.b32.xlu0 %v4486, 22
        %v4542 = vpop.permute.xlu0 %4541
        %v4543 = vsel %vm2442, %v4542, %v4486
        %4544 = vrot.lane.b32.xlu0 %v4487, 22
        %v4545 = vpop.permute.xlu0 %4544
        %v4546 = vsel %vm2442, %v4545, %v4487
        %4547 = vrot.lane.b32.xlu0 %v4488, 22
        %v4548 = vpop.permute.xlu0 %4547
        %v4549 = vsel %vm2442, %v4548, %v4488
        %4550 = vrot.lane.b32.xlu0 %v4489, 22
        %v4551 = vpop.permute.xlu0 %4550
        %v4552 = vsel %vm2442, %v4551, %v4489
        %4553 = vrot.lane.b32.xlu0 %v4490, 22
        %v4554 = vpop.permute.xlu0 %4553
        %v4555 = vsel %vm2442, %v4554, %v4490
        %4556 = vrot.lane.b32.xlu0 %v4510, 22
        %v4557 = vpop.permute.xlu0 %4556
        %4558 = vrot.lane.b32.xlu0 %v4513, 22
        %v4559 = vpop.permute.xlu0 %4558
        %4560 = vrot.lane.b32.xlu0 %v4516, 22
        %v4561 = vpop.permute.xlu0 %4560
        %4562 = vrot.lane.b32.xlu0 %v4519, 22
        %v4563 = vpop.permute.xlu0 %4562
        %4564 = vrot.lane.b32.xlu0 %v4522, 22
        %v4565 = vpop.permute.xlu0 %4564
        %4566 = vrot.lane.b32.xlu0 %v4525, 22
        %v4567 = vpop.permute.xlu0 %4566
        %4568 = vrot.lane.b32.xlu0 %v4528, 22
        %v4569 = vpop.permute.xlu0 %4568
        %4570 = vrot.lane.b32.xlu0 %v4531, 22
        %v4571 = vpop.permute.xlu0 %4570
        %4572 = vrot.lane.b32.xlu0 %v4534, 22
        %v4573 = vpop.permute.xlu0 %4572
        %4574 = vrot.lane.b32.xlu0 %v4537, 22
        %v4575 = vpop.permute.xlu0 %4574
        %4576 = vrot.lane.b32.xlu0 %v4540, 22
        %v4577 = vpop.permute.xlu0 %4576
        %4578 = vrot.lane.b32.xlu0 %v4543, 22
        %v4579 = vpop.permute.xlu0 %4578
        %4580 = vrot.lane.b32.xlu0 %v4546, 22
        %v4581 = vpop.permute.xlu0 %4580
        %4582 = vrot.lane.b32.xlu0 %v4549, 22
        %v4583 = vpop.permute.xlu0 %4582
        %4584 = vrot.lane.b32.xlu0 %v4552, 22
        %v4585 = vpop.permute.xlu0 %4584
        %4586 = vrot.lane.b32.xlu0 %v4555, 22
        %v4587 = vpop.permute.xlu0 %4586
        %v4588 = vsel %vm2442, %v4557, %v4475
        %v4589 = vsel %vm2442, %v4559, %v4476
        %v4590 = vsel %vm2442, %v4561, %v4477
        %v4591 = vsel %vm2442, %v4563, %v4478
        %v4592 = vsel %vm2442, %v4565, %v4479
        %v4593 = vsel %vm2442, %v4567, %v4480
        %v4594 = vsel %vm2442, %v4569, %v4481
        %v4595 = vsel %vm2442, %v4571, %v4482
        %v4596 = vsel %vm2442, %v4573, %v4483
        %v4597 = vsel %vm2442, %v4575, %v4484
        %v4598 = vsel %vm2442, %v4577, %v4485
        %v4599 = vsel %vm2442, %v4579, %v4486
        %v4600 = vsel %vm2442, %v4581, %v4487
        %v4601 = vsel %vm2442, %v4583, %v4488
        %v4602 = vsel %vm2442, %v4585, %v4489
        %v4603 = vsel %vm2442, %v4587, %v4490
        %vm4604 = vcmp.ge.s32.totalorder %v2540, 2
        %4621 = vrot.lane.b32.xlu0 %v4588, 108
        %v4622 = vpop.permute.xlu0 %4621
        %4623 = vrot.lane.b32.xlu0 %v4589, 108
        %v4624 = vpop.permute.xlu0 %4623
        %4625 = vrot.lane.b32.xlu0 %v4590, 108
        %v4626 = vpop.permute.xlu0 %4625
        %4627 = vrot.lane.b32.xlu0 %v4591, 108
        %v4628 = vpop.permute.xlu0 %4627
        %4629 = vrot.lane.b32.xlu0 %v4592, 108
        %v4630 = vpop.permute.xlu0 %4629
        %4631 = vrot.lane.b32.xlu0 %v4593, 108
        %v4632 = vpop.permute.xlu0 %4631
        %4633 = vrot.lane.b32.xlu0 %v4594, 108
        %v4634 = vpop.permute.xlu0 %4633
        %4635 = vrot.lane.b32.xlu0 %v4595, 108
        %v4636 = vpop.permute.xlu0 %4635
        %4637 = vrot.lane.b32.xlu0 %v4596, 108
        %v4638 = vpop.permute.xlu0 %4637
        %4639 = vrot.lane.b32.xlu0 %v4597, 108
        %v4640 = vpop.permute.xlu0 %4639
        %4641 = vrot.lane.b32.xlu0 %v4598, 108
        %v4642 = vpop.permute.xlu0 %4641
        %4643 = vrot.lane.b32.xlu0 %v4599, 108
        %v4644 = vpop.permute.xlu0 %4643
        %4645 = vrot.lane.b32.xlu0 %v4600, 108
        %v4646 = vpop.permute.xlu0 %4645
        %4647 = vrot.lane.b32.xlu0 %v4601, 108
        %v4648 = vpop.permute.xlu0 %4647
        %4649 = vrot.lane.b32.xlu0 %v4602, 108
        %v4650 = vpop.permute.xlu0 %4649
        %4651 = vrot.lane.b32.xlu0 %v4603, 108
        %v4652 = vpop.permute.xlu0 %4651
        %v4669 = vsel %vm4604, %v4622, 0.0
        %v4670 = vsel %vm4604, %v4624, 0.0
        %v4671 = vsel %vm4604, %v4626, 0.0
        %v4672 = vsel %vm4604, %v4628, 0.0
        %v4673 = vsel %vm4604, %v4630, 0.0
        %v4674 = vsel %vm4604, %v4632, 0.0
        %v4675 = vsel %vm4604, %v4634, 0.0
        %v4676 = vsel %vm4604, %v4636, 0.0
        %v4677 = vsel %vm4604, %v4638, 0.0
        %v4678 = vsel %vm4604, %v4640, 0.0
        %v4679 = vsel %vm4604, %v4642, 0.0
        %v4680 = vsel %vm4604, %v4644, 0.0
        %v4681 = vsel %vm4604, %v4646, 0.0
        %v4682 = vsel %vm4604, %v4648, 0.0
        %v4683 = vsel %vm4604, %v4650, 0.0
        %v4684 = vsel %vm4604, %v4652, 0.0
        %4686 = vset.pattern.permute.xlu0 0
        %4687 = vperm.xlu0 %4686, %v4492
        %v4688 = vpop.permute.xlu0 %4687
        %4691 = vset.pattern.permute.xlu0 0
        %4692 = vperm.xlu0 %4691, %v4493
        %v4693 = vpop.permute.xlu0 %4692
        %4696 = vset.pattern.permute.xlu0 0
        %4697 = vperm.xlu0 %4696, %v4494
        %v4698 = vpop.permute.xlu0 %4697
        %4701 = vset.pattern.permute.xlu0 0
        %4702 = vperm.xlu0 %4701, %v4495
        %v4703 = vpop.permute.xlu0 %4702
        %4706 = vset.pattern.permute.xlu0 0
        %4707 = vperm.xlu0 %4706, %v4496
        %v4708 = vpop.permute.xlu0 %4707
        %4711 = vset.pattern.permute.xlu0 0
        %4712 = vperm.xlu0 %4711, %v4497
        %v4713 = vpop.permute.xlu0 %4712
        %4716 = vset.pattern.permute.xlu0 0
        %4717 = vperm.xlu0 %4716, %v4498
        %v4718 = vpop.permute.xlu0 %4717
        %4721 = vset.pattern.permute.xlu0 0
        %4722 = vperm.xlu0 %4721, %v4499
        %v4723 = vpop.permute.xlu0 %4722
        %4726 = vset.pattern.permute.xlu0 0
        %4727 = vperm.xlu0 %4726, %v4500
        %v4728 = vpop.permute.xlu0 %4727
        %4731 = vset.pattern.permute.xlu0 0
        %4732 = vperm.xlu0 %4731, %v4501
        %v4733 = vpop.permute.xlu0 %4732
        %4736 = vset.pattern.permute.xlu0 0
        %4737 = vperm.xlu0 %4736, %v4502
        %v4738 = vpop.permute.xlu0 %4737
        %4741 = vset.pattern.permute.xlu0 0
        %4742 = vperm.xlu0 %4741, %v4503
        %v4743 = vpop.permute.xlu0 %4742
        %4746 = vset.pattern.permute.xlu0 0
        %4747 = vperm.xlu0 %4746, %v4504
        %v4748 = vpop.permute.xlu0 %4747
        %4751 = vset.pattern.permute.xlu0 0
        %4752 = vperm.xlu0 %4751, %v4505
        %v4753 = vpop.permute.xlu0 %4752
        %4756 = vset.pattern.permute.xlu0 0
        %4757 = vperm.xlu0 %4756, %v4506
        %v4758 = vpop.permute.xlu0 %4757
        %4761 = vset.pattern.permute.xlu0 0
        %4762 = vperm.xlu0 %4761, %v4507
        %v4763 = vpop.permute.xlu0 %4762
        %v4765 = vmul.f32 %v4688, %v4669
        %v4766 = vmul.f32 %v4693, %v4670
        %v4767 = vmul.f32 %v4698, %v4671
        %v4768 = vmul.f32 %v4703, %v4672
        %v4769 = vmul.f32 %v4708, %v4673
        %v4770 = vmul.f32 %v4713, %v4674
        %v4771 = vmul.f32 %v4718, %v4675
        %v4772 = vmul.f32 %v4723, %v4676
        %v4773 = vmul.f32 %v4728, %v4677
        %v4774 = vmul.f32 %v4733, %v4678
        %v4775 = vmul.f32 %v4738, %v4679
        %v4776 = vmul.f32 %v4743, %v4680
        %v4777 = vmul.f32 %v4748, %v4681
        %v4778 = vmul.f32 %v4753, %v4682
        %v4779 = vmul.f32 %v4758, %v4683
        %v4780 = vmul.f32 %v4763, %v4684
        %4781 = vset.pattern.permute.xlu0 1
        %4782 = vperm.xlu0 %4781, %v4492
        %v4783 = vpop.permute.xlu0 %4782
        %4785 = vset.pattern.permute.xlu0 1
        %4786 = vperm.xlu0 %4785, %v4493
        %v4787 = vpop.permute.xlu0 %4786
        %4789 = vset.pattern.permute.xlu0 1
        %4790 = vperm.xlu0 %4789, %v4494
        %v4791 = vpop.permute.xlu0 %4790
        %4793 = vset.pattern.permute.xlu0 1
        %4794 = vperm.xlu0 %4793, %v4495
        %v4795 = vpop.permute.xlu0 %4794
        %4797 = vset.pattern.permute.xlu0 1
        %4798 = vperm.xlu0 %4797, %v4496
        %v4799 = vpop.permute.xlu0 %4798
        %4801 = vset.pattern.permute.xlu0 1
        %4802 = vperm.xlu0 %4801, %v4497
        %v4803 = vpop.permute.xlu0 %4802
        %4805 = vset.pattern.permute.xlu0 1
        %4806 = vperm.xlu0 %4805, %v4498
        %v4807 = vpop.permute.xlu0 %4806
        %4809 = vset.pattern.permute.xlu0 1
        %4810 = vperm.xlu0 %4809, %v4499
        %v4811 = vpop.permute.xlu0 %4810
        %4813 = vset.pattern.permute.xlu0 1
        %4814 = vperm.xlu0 %4813, %v4500
        %v4815 = vpop.permute.xlu0 %4814
        %4817 = vset.pattern.permute.xlu0 1
        %4818 = vperm.xlu0 %4817, %v4501
        %v4819 = vpop.permute.xlu0 %4818
        %4821 = vset.pattern.permute.xlu0 1
        %4822 = vperm.xlu0 %4821, %v4502
        %v4823 = vpop.permute.xlu0 %4822
        %4825 = vset.pattern.permute.xlu0 1
        %4826 = vperm.xlu0 %4825, %v4503
        %v4827 = vpop.permute.xlu0 %4826
        %4829 = vset.pattern.permute.xlu0 1
        %4830 = vperm.xlu0 %4829, %v4504
        %v4831 = vpop.permute.xlu0 %4830
        %4833 = vset.pattern.permute.xlu0 1
        %4834 = vperm.xlu0 %4833, %v4505
        %v4835 = vpop.permute.xlu0 %4834
        %4837 = vset.pattern.permute.xlu0 1
        %4838 = vperm.xlu0 %4837, %v4506
        %v4839 = vpop.permute.xlu0 %4838
        %4841 = vset.pattern.permute.xlu0 1
        %4842 = vperm.xlu0 %4841, %v4507
        %v4843 = vpop.permute.xlu0 %4842
        %v4845 = vmul.f32 %v4783, %v4475
        %v4846 = vmul.f32 %v4787, %v4476
        %v4847 = vmul.f32 %v4791, %v4477
        %v4848 = vmul.f32 %v4795, %v4478
        %v4849 = vmul.f32 %v4799, %v4479
        %v4850 = vmul.f32 %v4803, %v4480
        %v4851 = vmul.f32 %v4807, %v4481
        %v4852 = vmul.f32 %v4811, %v4482
        %v4853 = vmul.f32 %v4815, %v4483
        %v4854 = vmul.f32 %v4819, %v4484
        %v4855 = vmul.f32 %v4823, %v4485
        %v4856 = vmul.f32 %v4827, %v4486
        %v4857 = vmul.f32 %v4831, %v4487
        %v4858 = vmul.f32 %v4835, %v4488
        %v4859 = vmul.f32 %v4839, %v4489
        %v4860 = vmul.f32 %v4843, %v4490
        %v4861 = vadd.f32 %v4765, %v4845
        %v4862 = vadd.f32 %v4766, %v4846
        %v4863 = vadd.f32 %v4767, %v4847
        %v4864 = vadd.f32 %v4768, %v4848
        %v4865 = vadd.f32 %v4769, %v4849
        %v4866 = vadd.f32 %v4770, %v4850
        %v4867 = vadd.f32 %v4771, %v4851
        %v4868 = vadd.f32 %v4772, %v4852
        %v4869 = vadd.f32 %v4773, %v4853
        %v4870 = vadd.f32 %v4774, %v4854
        %v4871 = vadd.f32 %v4775, %v4855
        %v4872 = vadd.f32 %v4776, %v4856
        %v4873 = vadd.f32 %v4777, %v4857
        %v4874 = vadd.f32 %v4778, %v4858
        %v4875 = vadd.f32 %v4779, %v4859
        %v4876 = vadd.f32 %v4780, %v4860
        %vm4877 = vcmp.lt.s32.totalorder %v2540, 20
        %4878 = vrot.lane.b32.xlu0 %v4588, 126
        %v4879 = vpop.permute.xlu0 %4878
        %4880 = vrot.lane.b32.xlu0 %v4589, 126
        %v4881 = vpop.permute.xlu0 %4880
        %4882 = vrot.lane.b32.xlu0 %v4590, 126
        %v4883 = vpop.permute.xlu0 %4882
        %4884 = vrot.lane.b32.xlu0 %v4591, 126
        %v4885 = vpop.permute.xlu0 %4884
        %4886 = vrot.lane.b32.xlu0 %v4592, 126
        %v4887 = vpop.permute.xlu0 %4886
        %4888 = vrot.lane.b32.xlu0 %v4593, 126
        %v4889 = vpop.permute.xlu0 %4888
        %4890 = vrot.lane.b32.xlu0 %v4594, 126
        %v4891 = vpop.permute.xlu0 %4890
        %4892 = vrot.lane.b32.xlu0 %v4595, 126
        %v4893 = vpop.permute.xlu0 %4892
        %4894 = vrot.lane.b32.xlu0 %v4596, 126
        %v4895 = vpop.permute.xlu0 %4894
        %4896 = vrot.lane.b32.xlu0 %v4597, 126
        %v4897 = vpop.permute.xlu0 %4896
        %4898 = vrot.lane.b32.xlu0 %v4598, 126
        %v4899 = vpop.permute.xlu0 %4898
        %4900 = vrot.lane.b32.xlu0 %v4599, 126
        %v4901 = vpop.permute.xlu0 %4900
        %4902 = vrot.lane.b32.xlu0 %v4600, 126
        %v4903 = vpop.permute.xlu0 %4902
        %4904 = vrot.lane.b32.xlu0 %v4601, 126
        %v4905 = vpop.permute.xlu0 %4904
        %4906 = vrot.lane.b32.xlu0 %v4602, 126
        %v4907 = vpop.permute.xlu0 %4906
        %4908 = vrot.lane.b32.xlu0 %v4603, 126
        %v4909 = vpop.permute.xlu0 %4908
        %v4926 = vsel %vm4877, %v4879, 0.0
        %v4927 = vsel %vm4877, %v4881, 0.0
        %v4928 = vsel %vm4877, %v4883, 0.0
        %v4929 = vsel %vm4877, %v4885, 0.0
        %v4930 = vsel %vm4877, %v4887, 0.0
        %v4931 = vsel %vm4877, %v4889, 0.0
        %v4932 = vsel %vm4877, %v4891, 0.0
        %v4933 = vsel %vm4877, %v4893, 0.0
        %v4934 = vsel %vm4877, %v4895, 0.0
        %v4935 = vsel %vm4877, %v4897, 0.0
        %v4936 = vsel %vm4877, %v4899, 0.0
        %v4937 = vsel %vm4877, %v4901, 0.0
        %v4938 = vsel %vm4877, %v4903, 0.0
        %v4939 = vsel %vm4877, %v4905, 0.0
        %v4940 = vsel %vm4877, %v4907, 0.0
        %v4941 = vsel %vm4877, %v4909, 0.0
        %4942 = vset.pattern.permute.xlu0 2
        %4943 = vperm.xlu0 %4942, %v4492
        %v4944 = vpop.permute.xlu0 %4943
        %4946 = vset.pattern.permute.xlu0 2
        %4947 = vperm.xlu0 %4946, %v4493
        %v4948 = vpop.permute.xlu0 %4947
        %4950 = vset.pattern.permute.xlu0 2
        %4951 = vperm.xlu0 %4950, %v4494
        %v4952 = vpop.permute.xlu0 %4951
        %4954 = vset.pattern.permute.xlu0 2
        %4955 = vperm.xlu0 %4954, %v4495
        %v4956 = vpop.permute.xlu0 %4955
        %4958 = vset.pattern.permute.xlu0 2
        %4959 = vperm.xlu0 %4958, %v4496
        %v4960 = vpop.permute.xlu0 %4959
        %4962 = vset.pattern.permute.xlu0 2
        %4963 = vperm.xlu0 %4962, %v4497
        %v4964 = vpop.permute.xlu0 %4963
        %4966 = vset.pattern.permute.xlu0 2
        %4967 = vperm.xlu0 %4966, %v4498
        %v4968 = vpop.permute.xlu0 %4967
        %4970 = vset.pattern.permute.xlu0 2
        %4971 = vperm.xlu0 %4970, %v4499
        %v4972 = vpop.permute.xlu0 %4971
        %4974 = vset.pattern.permute.xlu0 2
        %4975 = vperm.xlu0 %4974, %v4500
        %v4976 = vpop.permute.xlu0 %4975
        %4978 = vset.pattern.permute.xlu0 2
        %4979 = vperm.xlu0 %4978, %v4501
        %v4980 = vpop.permute.xlu0 %4979
        %4982 = vset.pattern.permute.xlu0 2
        %4983 = vperm.xlu0 %4982, %v4502
        %v4984 = vpop.permute.xlu0 %4983
        %4986 = vset.pattern.permute.xlu0 2
        %4987 = vperm.xlu0 %4986, %v4503
        %v4988 = vpop.permute.xlu0 %4987
        %4990 = vset.pattern.permute.xlu0 2
        %4991 = vperm.xlu0 %4990, %v4504
        %v4992 = vpop.permute.xlu0 %4991
        %4994 = vset.pattern.permute.xlu0 2
        %4995 = vperm.xlu0 %4994, %v4505
        %v4996 = vpop.permute.xlu0 %4995
        %4998 = vset.pattern.permute.xlu0 2
        %4999 = vperm.xlu0 %4998, %v4506
        %v5000 = vpop.permute.xlu0 %4999
        %5002 = vset.pattern.permute.xlu0 2
        %5003 = vperm.xlu0 %5002, %v4507
        %v5004 = vpop.permute.xlu0 %5003
        %v5006 = vmul.f32 %v4944, %v4926
        %v5007 = vmul.f32 %v4948, %v4927
        %v5008 = vmul.f32 %v4952, %v4928
        %v5009 = vmul.f32 %v4956, %v4929
        %v5010 = vmul.f32 %v4960, %v4930
        %v5011 = vmul.f32 %v4964, %v4931
        %v5012 = vmul.f32 %v4968, %v4932
        %v5013 = vmul.f32 %v4972, %v4933
        %v5014 = vmul.f32 %v4976, %v4934
        %v5015 = vmul.f32 %v4980, %v4935
        %v5016 = vmul.f32 %v4984, %v4936
        %v5017 = vmul.f32 %v4988, %v4937
        %v5018 = vmul.f32 %v4992, %v4938
        %v5019 = vmul.f32 %v4996, %v4939
        %v5020 = vmul.f32 %v5000, %v4940
        %v5021 = vmul.f32 %v5004, %v4941
        %v5022 = vadd.f32 %v4861, %v5006
        %v5023 = vadd.f32 %v4862, %v5007
        %v5024 = vadd.f32 %v4863, %v5008
        %v5025 = vadd.f32 %v4864, %v5009
        %v5026 = vadd.f32 %v4865, %v5010
        %v5027 = vadd.f32 %v4866, %v5011
        %v5028 = vadd.f32 %v4867, %v5012
        %v5029 = vadd.f32 %v4868, %v5013
        %v5030 = vadd.f32 %v4869, %v5014
        %v5031 = vadd.f32 %v4870, %v5015
        %v5032 = vadd.f32 %v4871, %v5016
        %v5033 = vadd.f32 %v4872, %v5017
        %v5034 = vadd.f32 %v4873, %v5018
        %v5035 = vadd.f32 %v4874, %v5019
        %v5036 = vadd.f32 %v4875, %v5020
        %v5037 = vadd.f32 %v4876, %v5021
        %s5038 = scalar_lea.vmem %s1016, 128
        %v5039 = vld [vmem:[%s5038] sm:$0xff]
        %v5040 = vld [vmem:[%s5038 + $0x8] sm:$0xff]
        %v5041 = vld [vmem:[%s5038 + $0x10] sm:$0xff]
        %v5042 = vld [vmem:[%s5038 + $0x18] sm:$0xff]
        %v5043 = vld [vmem:[%s5038 + $0x20] sm:$0xff]
        %v5044 = vld [vmem:[%s5038 + $0x28] sm:$0xff]
        %v5045 = vld [vmem:[%s5038 + $0x30] sm:$0xff]
        %v5046 = vld [vmem:[%s5038 + $0x38] sm:$0xff]
        %v5047 = vld [vmem:[%s5038 + $0x40] sm:$0xff]
        %v5048 = vld [vmem:[%s5038 + $0x48] sm:$0xff]
        %v5049 = vld [vmem:[%s5038 + $0x50] sm:$0xff]
        %v5050 = vld [vmem:[%s5038 + $0x58] sm:$0xff]
        %v5051 = vld [vmem:[%s5038 + $0x60] sm:$0xff]
        %v5052 = vld [vmem:[%s5038 + $0x68] sm:$0xff]
        %v5053 = vld [vmem:[%s5038 + $0x70] sm:$0xff]
        %v5054 = vld [vmem:[%s5038 + $0x78] sm:$0xff]
        %5056 = vset.pattern.permute.xlu0 0
        %5057 = vperm.xlu0 %5056, %v5039
        %v5058 = vpop.permute.xlu0 %5057
        %5061 = vset.pattern.permute.xlu0 0
        %5062 = vperm.xlu0 %5061, %v5040
        %v5063 = vpop.permute.xlu0 %5062
        %5066 = vset.pattern.permute.xlu0 0
        %5067 = vperm.xlu0 %5066, %v5041
        %v5068 = vpop.permute.xlu0 %5067
        %5071 = vset.pattern.permute.xlu0 0
        %5072 = vperm.xlu0 %5071, %v5042
        %v5073 = vpop.permute.xlu0 %5072
        %5076 = vset.pattern.permute.xlu0 0
        %5077 = vperm.xlu0 %5076, %v5043
        %v5078 = vpop.permute.xlu0 %5077
        %5081 = vset.pattern.permute.xlu0 0
        %5082 = vperm.xlu0 %5081, %v5044
        %v5083 = vpop.permute.xlu0 %5082
        %5086 = vset.pattern.permute.xlu0 0
        %5087 = vperm.xlu0 %5086, %v5045
        %v5088 = vpop.permute.xlu0 %5087
        %5091 = vset.pattern.permute.xlu0 0
        %5092 = vperm.xlu0 %5091, %v5046
        %v5093 = vpop.permute.xlu0 %5092
        %5096 = vset.pattern.permute.xlu0 0
        %5097 = vperm.xlu0 %5096, %v5047
        %v5098 = vpop.permute.xlu0 %5097
        %5101 = vset.pattern.permute.xlu0 0
        %5102 = vperm.xlu0 %5101, %v5048
        %v5103 = vpop.permute.xlu0 %5102
        %5106 = vset.pattern.permute.xlu0 0
        %5107 = vperm.xlu0 %5106, %v5049
        %v5108 = vpop.permute.xlu0 %5107
        %5111 = vset.pattern.permute.xlu0 0
        %5112 = vperm.xlu0 %5111, %v5050
        %v5113 = vpop.permute.xlu0 %5112
        %5116 = vset.pattern.permute.xlu0 0
        %5117 = vperm.xlu0 %5116, %v5051
        %v5118 = vpop.permute.xlu0 %5117
        %5121 = vset.pattern.permute.xlu0 0
        %5122 = vperm.xlu0 %5121, %v5052
        %v5123 = vpop.permute.xlu0 %5122
        %5126 = vset.pattern.permute.xlu0 0
        %5127 = vperm.xlu0 %5126, %v5053
        %v5128 = vpop.permute.xlu0 %5127
        %5131 = vset.pattern.permute.xlu0 0
        %5132 = vperm.xlu0 %5131, %v5054
        %v5133 = vpop.permute.xlu0 %5132
        %v5135 = vadd.f32 %v5022, %v5058
        %v5136 = vadd.f32 %v5023, %v5063
        %v5137 = vadd.f32 %v5024, %v5068
        %v5138 = vadd.f32 %v5025, %v5073
        %v5139 = vadd.f32 %v5026, %v5078
        %v5140 = vadd.f32 %v5027, %v5083
        %v5141 = vadd.f32 %v5028, %v5088
        %v5142 = vadd.f32 %v5029, %v5093
        %v5143 = vadd.f32 %v5030, %v5098
        %v5144 = vadd.f32 %v5031, %v5103
        %v5145 = vadd.f32 %v5032, %v5108
        %v5146 = vadd.f32 %v5033, %v5113
        %v5147 = vadd.f32 %v5034, %v5118
        %v5148 = vadd.f32 %v5035, %v5123
        %v5149 = vadd.f32 %v5036, %v5128
        %v5150 = vadd.f32 %v5037, %v5133
        %s5151 = scalar_lea.vmem %s1030, 1
        %v5152 = vld [vmem:[%s5151] sm:$0x1]
        %vm5153 = vcmp.ge.f32.partialorder %v5135, 0.0
        %vm5154 = vcmp.ge.f32.partialorder %v5136, 0.0
        %vm5155 = vcmp.ge.f32.partialorder %v5137, 0.0
        %vm5156 = vcmp.ge.f32.partialorder %v5138, 0.0
        %vm5157 = vcmp.ge.f32.partialorder %v5139, 0.0
        %vm5158 = vcmp.ge.f32.partialorder %v5140, 0.0
        %vm5159 = vcmp.ge.f32.partialorder %v5141, 0.0
        %vm5160 = vcmp.ge.f32.partialorder %v5142, 0.0
        %vm5161 = vcmp.ge.f32.partialorder %v5143, 0.0
        %vm5162 = vcmp.ge.f32.partialorder %v5144, 0.0
        %vm5163 = vcmp.ge.f32.partialorder %v5145, 0.0
        %vm5164 = vcmp.ge.f32.partialorder %v5146, 0.0
        %vm5165 = vcmp.ge.f32.partialorder %v5147, 0.0
        %vm5166 = vcmp.ge.f32.partialorder %v5148, 0.0
        %vm5167 = vcmp.ge.f32.partialorder %v5149, 0.0
        %vm5168 = vcmp.ge.f32.partialorder %v5150, 0.0
        %v5170 = vlaneseq
        %v5171 = vshrl.u32 %v5170, 7
        %v5172 = vsub.s32 0, %v5171
        %v5173 = vrot.slane %v5152, %v5172
        %5174 = vset.pattern.permute.xlu0 0
        %5175 = vperm.xlu0 %5174, %v5173
        %v5176 = vpop.permute.xlu0 %5175
        %v5178 = vmul.f32 %v5176, %v5135
        %v5179 = vmul.f32 %v5176, %v5136
        %v5180 = vmul.f32 %v5176, %v5137
        %v5181 = vmul.f32 %v5176, %v5138
        %v5182 = vmul.f32 %v5176, %v5139
        %v5183 = vmul.f32 %v5176, %v5140
        %v5184 = vmul.f32 %v5176, %v5141
        %v5185 = vmul.f32 %v5176, %v5142
        %v5186 = vmul.f32 %v5176, %v5143
        %v5187 = vmul.f32 %v5176, %v5144
        %v5188 = vmul.f32 %v5176, %v5145
        %v5189 = vmul.f32 %v5176, %v5146
        %v5190 = vmul.f32 %v5176, %v5147
        %v5191 = vmul.f32 %v5176, %v5148
        %v5192 = vmul.f32 %v5176, %v5149
        %v5193 = vmul.f32 %v5176, %v5150
        %v5194 = vsel %vm5153, %v5135, %v5178
        %v5195 = vsel %vm5154, %v5136, %v5179
        %v5196 = vsel %vm5155, %v5137, %v5180
        %v5197 = vsel %vm5156, %v5138, %v5181
        %v5198 = vsel %vm5157, %v5139, %v5182
        %v5199 = vsel %vm5158, %v5140, %v5183
        %v5200 = vsel %vm5159, %v5141, %v5184
        %v5201 = vsel %vm5160, %v5142, %v5185
        %v5202 = vsel %vm5161, %v5143, %v5186
        %v5203 = vsel %vm5162, %v5144, %v5187
        %v5204 = vsel %vm5163, %v5145, %v5188
        %v5205 = vsel %vm5164, %v5146, %v5189
        %v5206 = vsel %vm5165, %v5147, %v5190
        %v5207 = vsel %vm5166, %v5148, %v5191
        %v5208 = vsel %vm5167, %v5149, %v5192
        %v5209 = vsel %vm5168, %v5150, %v5193
        %s5210 = scalar_lea.vmem %s1021, 128
        %v5211 = vld [vmem:[%s5210] sm:$0xff]
        %v5212 = vld [vmem:[%s5210 + $0x8] sm:$0xff]
        %v5213 = vld [vmem:[%s5210 + $0x10] sm:$0xff]
        %v5214 = vld [vmem:[%s5210 + $0x18] sm:$0xff]
        %v5215 = vld [vmem:[%s5210 + $0x20] sm:$0xff]
        %v5216 = vld [vmem:[%s5210 + $0x28] sm:$0xff]
        %v5217 = vld [vmem:[%s5210 + $0x30] sm:$0xff]
        %v5218 = vld [vmem:[%s5210 + $0x38] sm:$0xff]
        %v5219 = vld [vmem:[%s5210 + $0x40] sm:$0xff]
        %v5220 = vld [vmem:[%s5210 + $0x48] sm:$0xff]
        %v5221 = vld [vmem:[%s5210 + $0x50] sm:$0xff]
        %v5222 = vld [vmem:[%s5210 + $0x58] sm:$0xff]
        %v5223 = vld [vmem:[%s5210 + $0x60] sm:$0xff]
        %v5224 = vld [vmem:[%s5210 + $0x68] sm:$0xff]
        %v5225 = vld [vmem:[%s5210 + $0x70] sm:$0xff]
        %v5226 = vld [vmem:[%s5210 + $0x78] sm:$0xff]
        %s5227 = scalar_lea.vmem %s1026, 128
        %v5228 = vld [vmem:[%s5227] sm:$0xff]
        %v5229 = vld [vmem:[%s5227 + $0x8] sm:$0xff]
        %v5230 = vld [vmem:[%s5227 + $0x10] sm:$0xff]
        %v5231 = vld [vmem:[%s5227 + $0x18] sm:$0xff]
        %v5232 = vld [vmem:[%s5227 + $0x20] sm:$0xff]
        %v5233 = vld [vmem:[%s5227 + $0x28] sm:$0xff]
        %v5234 = vld [vmem:[%s5227 + $0x30] sm:$0xff]
        %v5235 = vld [vmem:[%s5227 + $0x38] sm:$0xff]
        %v5236 = vld [vmem:[%s5227 + $0x40] sm:$0xff]
        %v5237 = vld [vmem:[%s5227 + $0x48] sm:$0xff]
        %v5238 = vld [vmem:[%s5227 + $0x50] sm:$0xff]
        %v5239 = vld [vmem:[%s5227 + $0x58] sm:$0xff]
        %v5240 = vld [vmem:[%s5227 + $0x60] sm:$0xff]
        %v5241 = vld [vmem:[%s5227 + $0x68] sm:$0xff]
        %v5242 = vld [vmem:[%s5227 + $0x70] sm:$0xff]
        %v5243 = vld [vmem:[%s5227 + $0x78] sm:$0xff]
        %v5244 = vsel %vm2093, %v5194, 0.0
        %v5245 = vsel %vm2093, %v5195, 0.0
        %v5246 = vadd.f32 %v5244, %v5245
        %v5247 = vsel %vm2093, %v5196, 0.0
        %v5248 = vadd.f32 %v5246, %v5247
        %v5249 = vsel %vm2093, %v5197, 0.0
        %v5250 = vadd.f32 %v5248, %v5249
        %v5251 = vsel %vm2093, %v5198, 0.0
        %v5252 = vadd.f32 %v5250, %v5251
        %v5253 = vsel %vm2093, %v5199, 0.0
        %v5254 = vadd.f32 %v5252, %v5253
        %v5255 = vsel %vm2093, %v5200, 0.0
        %v5256 = vadd.f32 %v5254, %v5255
        %v5257 = vsel %vm2093, %v5201, 0.0
        %v5258 = vadd.f32 %v5256, %v5257
        %v5259 = vsel %vm2093, %v5202, 0.0
        %v5260 = vadd.f32 %v5258, %v5259
        %v5261 = vsel %vm2093, %v5203, 0.0
        %v5262 = vadd.f32 %v5260, %v5261
        %v5263 = vsel %vm2093, %v5204, 0.0
        %v5264 = vadd.f32 %v5262, %v5263
        %v5265 = vsel %vm2093, %v5205, 0.0
        %v5266 = vadd.f32 %v5264, %v5265
        %v5267 = vsel %vm2093, %v5206, 0.0
        %v5268 = vadd.f32 %v5266, %v5267
        %v5269 = vsel %vm2093, %v5207, 0.0
        %v5270 = vadd.f32 %v5268, %v5269
        %v5271 = vsel %vm2093, %v5208, 0.0
        %v5272 = vadd.f32 %v5270, %v5271
        %v5273 = vsel %vm2093, %v5209, 0.0
        %v5274 = vadd.f32 %v5272, %v5273
        %5275 = vadd.xlane.f32.xlu0 %v5274
        %v5276 = vpop.xlane.xlu0 %5275
        %v5277 = vrot.slane %v5276, 4
        %v5278 = vadd.f32 %v5276, %v5277
        %v5279 = vrot.slane %v5278, 2
        %v5280 = vadd.f32 %v5278, %v5279
        %v5281 = vrot.slane %v5280, 1
        %v5282 = vadd.f32 %v5280, %v5281
        %s5283 = vtos %v5282
        %v5284 = vrcp.pop 2816.0
        %s5285 = vtos %v5284
        %s5286 = smul.f32 %s5283, %s5285
        %v5287 = vstv %s5286
        %v5288 = vsub.f32 %v5194, %v5287
        %v5289 = vsub.f32 %v5195, %v5287
        %v5290 = vsub.f32 %v5196, %v5287
        %v5291 = vsub.f32 %v5197, %v5287
        %v5292 = vsub.f32 %v5198, %v5287
        %v5293 = vsub.f32 %v5199, %v5287
        %v5294 = vsub.f32 %v5200, %v5287
        %v5295 = vsub.f32 %v5201, %v5287
        %v5296 = vsub.f32 %v5202, %v5287
        %v5297 = vsub.f32 %v5203, %v5287
        %v5298 = vsub.f32 %v5204, %v5287
        %v5299 = vsub.f32 %v5205, %v5287
        %v5300 = vsub.f32 %v5206, %v5287
        %v5301 = vsub.f32 %v5207, %v5287
        %v5302 = vsub.f32 %v5208, %v5287
        %v5303 = vsub.f32 %v5209, %v5287
        %v5304 = vmul.f32 %v5288, %v5288
        %v5305 = vmul.f32 %v5289, %v5289
        %v5306 = vmul.f32 %v5290, %v5290
        %v5307 = vmul.f32 %v5291, %v5291
        %v5308 = vmul.f32 %v5292, %v5292
        %v5309 = vmul.f32 %v5293, %v5293
        %v5310 = vmul.f32 %v5294, %v5294
        %v5311 = vmul.f32 %v5295, %v5295
        %v5312 = vmul.f32 %v5296, %v5296
        %v5313 = vmul.f32 %v5297, %v5297
        %v5314 = vmul.f32 %v5298, %v5298
        %v5315 = vmul.f32 %v5299, %v5299
        %v5316 = vmul.f32 %v5300, %v5300
        %v5317 = vmul.f32 %v5301, %v5301
        %v5318 = vmul.f32 %v5302, %v5302
        %v5319 = vmul.f32 %v5303, %v5303
        %v5320 = vsel %vm2093, %v5304, 0.0
        %v5321 = vsel %vm2093, %v5305, 0.0
        %v5322 = vadd.f32 %v5320, %v5321
        %v5323 = vsel %vm2093, %v5306, 0.0
        %v5324 = vadd.f32 %v5322, %v5323
        %v5325 = vsel %vm2093, %v5307, 0.0
        %v5326 = vadd.f32 %v5324, %v5325
        %v5327 = vsel %vm2093, %v5308, 0.0
        %v5328 = vadd.f32 %v5326, %v5327
        %v5329 = vsel %vm2093, %v5309, 0.0
        %v5330 = vadd.f32 %v5328, %v5329
        %v5331 = vsel %vm2093, %v5310, 0.0
        %v5332 = vadd.f32 %v5330, %v5331
        %v5333 = vsel %vm2093, %v5311, 0.0
        %v5334 = vadd.f32 %v5332, %v5333
        %v5335 = vsel %vm2093, %v5312, 0.0
        %v5336 = vadd.f32 %v5334, %v5335
        %v5337 = vsel %vm2093, %v5313, 0.0
        %v5338 = vadd.f32 %v5336, %v5337
        %v5339 = vsel %vm2093, %v5314, 0.0
        %v5340 = vadd.f32 %v5338, %v5339
        %v5341 = vsel %vm2093, %v5315, 0.0
        %v5342 = vadd.f32 %v5340, %v5341
        %v5343 = vsel %vm2093, %v5316, 0.0
        %v5344 = vadd.f32 %v5342, %v5343
        %v5345 = vsel %vm2093, %v5317, 0.0
        %v5346 = vadd.f32 %v5344, %v5345
        %v5347 = vsel %vm2093, %v5318, 0.0
        %v5348 = vadd.f32 %v5346, %v5347
        %v5349 = vsel %vm2093, %v5319, 0.0
        %v5350 = vadd.f32 %v5348, %v5349
        %5351 = vadd.xlane.f32.xlu0 %v5350
        %v5352 = vpop.xlane.xlu0 %5351
        %v5353 = vrot.slane %v5352, 4
        %v5354 = vadd.f32 %v5352, %v5353
        %v5355 = vrot.slane %v5354, 2
        %v5356 = vadd.f32 %v5354, %v5355
        %v5357 = vrot.slane %v5356, 1
        %v5358 = vadd.f32 %v5356, %v5357
        %s5359 = vtos %v5358
        %v5360 = vrcp.pop 2816.0
        %s5361 = vtos %v5360
        %s5362 = smul.f32 %s5359, %s5361
        %s5363 = sadd.f32 %s5362, 1e-08
        %v5364 = vstv %s5363
        %v5365 = vrsqrt.pop %v5364
        %s5366 = vtos %v5365
        %v5367 = vstv %s5366
        %v5368 = vmul.f32 %v5288, %v5367
        %v5369 = vmul.f32 %v5289, %v5367
        %v5370 = vmul.f32 %v5290, %v5367
        %v5371 = vmul.f32 %v5291, %v5367
        %v5372 = vmul.f32 %v5292, %v5367
        %v5373 = vmul.f32 %v5293, %v5367
        %v5374 = vmul.f32 %v5294, %v5367
        %v5375 = vmul.f32 %v5295, %v5367
        %v5376 = vmul.f32 %v5296, %v5367
        %v5377 = vmul.f32 %v5297, %v5367
        %v5378 = vmul.f32 %v5298, %v5367
        %v5379 = vmul.f32 %v5299, %v5367
        %v5380 = vmul.f32 %v5300, %v5367
        %v5381 = vmul.f32 %v5301, %v5367
        %v5382 = vmul.f32 %v5302, %v5367
        %v5383 = vmul.f32 %v5303, %v5367
        %5385 = vset.pattern.permute.xlu0 0
        %5386 = vperm.xlu0 %5385, %v5211
        %v5387 = vpop.permute.xlu0 %5386
        %5390 = vset.pattern.permute.xlu0 0
        %5391 = vperm.xlu0 %5390, %v5212
        %v5392 = vpop.permute.xlu0 %5391
        %5395 = vset.pattern.permute.xlu0 0
        %5396 = vperm.xlu0 %5395, %v5213
        %v5397 = vpop.permute.xlu0 %5396
        %5400 = vset.pattern.permute.xlu0 0
        %5401 = vperm.xlu0 %5400, %v5214
        %v5402 = vpop.permute.xlu0 %5401
        %5405 = vset.pattern.permute.xlu0 0
        %5406 = vperm.xlu0 %5405, %v5215
        %v5407 = vpop.permute.xlu0 %5406
        %5410 = vset.pattern.permute.xlu0 0
        %5411 = vperm.xlu0 %5410, %v5216
        %v5412 = vpop.permute.xlu0 %5411
        %5415 = vset.pattern.permute.xlu0 0
        %5416 = vperm.xlu0 %5415, %v5217
        %v5417 = vpop.permute.xlu0 %5416
        %5420 = vset.pattern.permute.xlu0 0
        %5421 = vperm.xlu0 %5420, %v5218
        %v5422 = vpop.permute.xlu0 %5421
        %5425 = vset.pattern.permute.xlu0 0
        %5426 = vperm.xlu0 %5425, %v5219
        %v5427 = vpop.permute.xlu0 %5426
        %5430 = vset.pattern.permute.xlu0 0
        %5431 = vperm.xlu0 %5430, %v5220
        %v5432 = vpop.permute.xlu0 %5431
        %5435 = vset.pattern.permute.xlu0 0
        %5436 = vperm.xlu0 %5435, %v5221
        %v5437 = vpop.permute.xlu0 %5436
        %5440 = vset.pattern.permute.xlu0 0
        %5441 = vperm.xlu0 %5440, %v5222
        %v5442 = vpop.permute.xlu0 %5441
        %5445 = vset.pattern.permute.xlu0 0
        %5446 = vperm.xlu0 %5445, %v5223
        %v5447 = vpop.permute.xlu0 %5446
        %5450 = vset.pattern.permute.xlu0 0
        %5451 = vperm.xlu0 %5450, %v5224
        %v5452 = vpop.permute.xlu0 %5451
        %5455 = vset.pattern.permute.xlu0 0
        %5456 = vperm.xlu0 %5455, %v5225
        %v5457 = vpop.permute.xlu0 %5456
        %5460 = vset.pattern.permute.xlu0 0
        %5461 = vperm.xlu0 %5460, %v5226
        %v5462 = vpop.permute.xlu0 %5461
        %v5464 = vmul.f32 %v5368, %v5387
        %v5465 = vmul.f32 %v5369, %v5392
        %v5466 = vmul.f32 %v5370, %v5397
        %v5467 = vmul.f32 %v5371, %v5402
        %v5468 = vmul.f32 %v5372, %v5407
        %v5469 = vmul.f32 %v5373, %v5412
        %v5470 = vmul.f32 %v5374, %v5417
        %v5471 = vmul.f32 %v5375, %v5422
        %v5472 = vmul.f32 %v5376, %v5427
        %v5473 = vmul.f32 %v5377, %v5432
        %v5474 = vmul.f32 %v5378, %v5437
        %v5475 = vmul.f32 %v5379, %v5442
        %v5476 = vmul.f32 %v5380, %v5447
        %v5477 = vmul.f32 %v5381, %v5452
        %v5478 = vmul.f32 %v5382, %v5457
        %v5479 = vmul.f32 %v5383, %v5462
        %5481 = vset.pattern.permute.xlu0 0
        %5482 = vperm.xlu0 %5481, %v5228
        %v5483 = vpop.permute.xlu0 %5482
        %5486 = vset.pattern.permute.xlu0 0
        %5487 = vperm.xlu0 %5486, %v5229
        %v5488 = vpop.permute.xlu0 %5487
        %5491 = vset.pattern.permute.xlu0 0
        %5492 = vperm.xlu0 %5491, %v5230
        %v5493 = vpop.permute.xlu0 %5492
        %5496 = vset.pattern.permute.xlu0 0
        %5497 = vperm.xlu0 %5496, %v5231
        %v5498 = vpop.permute.xlu0 %5497
        %5501 = vset.pattern.permute.xlu0 0
        %5502 = vperm.xlu0 %5501, %v5232
        %v5503 = vpop.permute.xlu0 %5502
        %5506 = vset.pattern.permute.xlu0 0
        %5507 = vperm.xlu0 %5506, %v5233
        %v5508 = vpop.permute.xlu0 %5507
        %5511 = vset.pattern.permute.xlu0 0
        %5512 = vperm.xlu0 %5511, %v5234
        %v5513 = vpop.permute.xlu0 %5512
        %5516 = vset.pattern.permute.xlu0 0
        %5517 = vperm.xlu0 %5516, %v5235
        %v5518 = vpop.permute.xlu0 %5517
        %5521 = vset.pattern.permute.xlu0 0
        %5522 = vperm.xlu0 %5521, %v5236
        %v5523 = vpop.permute.xlu0 %5522
        %5526 = vset.pattern.permute.xlu0 0
        %5527 = vperm.xlu0 %5526, %v5237
        %v5528 = vpop.permute.xlu0 %5527
        %5531 = vset.pattern.permute.xlu0 0
        %5532 = vperm.xlu0 %5531, %v5238
        %v5533 = vpop.permute.xlu0 %5532
        %5536 = vset.pattern.permute.xlu0 0
        %5537 = vperm.xlu0 %5536, %v5239
        %v5538 = vpop.permute.xlu0 %5537
        %5541 = vset.pattern.permute.xlu0 0
        %5542 = vperm.xlu0 %5541, %v5240
        %v5543 = vpop.permute.xlu0 %5542
        %5546 = vset.pattern.permute.xlu0 0
        %5547 = vperm.xlu0 %5546, %v5241
        %v5548 = vpop.permute.xlu0 %5547
        %5551 = vset.pattern.permute.xlu0 0
        %5552 = vperm.xlu0 %5551, %v5242
        %v5553 = vpop.permute.xlu0 %5552
        %5556 = vset.pattern.permute.xlu0 0
        %5557 = vperm.xlu0 %5556, %v5243
        %v5558 = vpop.permute.xlu0 %5557
        %v5560 = vadd.f32 %v5464, %v5483
        %v5561 = vadd.f32 %v5465, %v5488
        %v5562 = vadd.f32 %v5466, %v5493
        %v5563 = vadd.f32 %v5467, %v5498
        %v5564 = vadd.f32 %v5468, %v5503
        %v5565 = vadd.f32 %v5469, %v5508
        %v5566 = vadd.f32 %v5470, %v5513
        %v5567 = vadd.f32 %v5471, %v5518
        %v5568 = vadd.f32 %v5472, %v5523
        %v5569 = vadd.f32 %v5473, %v5528
        %v5570 = vadd.f32 %v5474, %v5533
        %v5571 = vadd.f32 %v5475, %v5538
        %v5572 = vadd.f32 %v5476, %v5543
        %v5573 = vadd.f32 %v5477, %v5548
        %v5574 = vadd.f32 %v5478, %v5553
        %v5575 = vadd.f32 %v5479, %v5558
        %s5576 = scalar_lea.vmem %s1035, 32
        %v5577 = vld [vmem:[%s5576] sm:$0xff]
        %v5578 = vld [vmem:[%s5576 + $0x8] sm:$0xff]
        %v5579 = vld [vmem:[%s5576 + $0x10] sm:$0xff]
        %v5580 = vld [vmem:[%s5576 + $0x18] sm:$0xff]
        %s5581 = scalar_lea.vmem %s1040, 32
        %v5582 = vld [vmem:[%s5581] sm:$0xff]
        %v5583 = vld [vmem:[%s5581 + $0x8] sm:$0xff]
        %v5584 = vld [vmem:[%s5581 + $0x10] sm:$0xff]
        %v5585 = vld [vmem:[%s5581 + $0x18] sm:$0xff]
        %5587 = vset.pattern.permute.xlu0 0
        %5588 = vperm.xlu0 %5587, %v5582
        %v5589 = vpop.permute.xlu0 %5588
        %5592 = vset.pattern.permute.xlu0 0
        %5593 = vperm.xlu0 %5592, %v5583
        %v5594 = vpop.permute.xlu0 %5593
        %5597 = vset.pattern.permute.xlu0 0
        %5598 = vperm.xlu0 %5597, %v5584
        %v5599 = vpop.permute.xlu0 %5598
        %5602 = vset.pattern.permute.xlu0 0
        %5603 = vperm.xlu0 %5602, %v5585
        %v5604 = vpop.permute.xlu0 %5603
        %5606 = vmatprep.subr.mxu0 0.0
        %5607 = vmatpush1.msra.mxu0 %v5575
        %5608 = vmatprep.subr.mxu0 0.0
        %5609 = vmatpush1.msra.mxu0 %v5574
        %5610 = vmatprep.subr.mxu0 0.0
        %5611 = vmatpush1.msra.mxu0 %v5573
        %5612 = vmatprep.subr.mxu0 0.0
        %5613 = vmatpush1.msra.mxu0 %v5572
        %5614 = vmatprep.subr.mxu0 0.0
        %5615 = vmatpush1.msra.mxu0 %v5571
        %5616 = vmatprep.subr.mxu0 0.0
        %5617 = vmatpush1.msra.mxu0 %v5570
        %5618 = vmatprep.subr.mxu0 0.0
        %5619 = vmatpush1.msra.mxu0 %v5569
        %5620 = vmatprep.subr.mxu0 0.0
        %5621 = vmatpush1.msra.mxu0 %v5568
        %5622 = vmatprep.subr.mxu0 0.0
        %5623 = vmatpush1.msra.mxu0 %v5567
        %5624 = vmatprep.subr.mxu0 0.0
        %5625 = vmatpush1.msra.mxu0 %v5566
        %5626 = vmatprep.subr.mxu0 0.0
        %5627 = vmatpush1.msra.mxu0 %v5565
        %5628 = vmatprep.subr.mxu0 0.0
        %5629 = vmatpush1.msra.mxu0 %v5564
        %5630 = vmatprep.subr.mxu0 0.0
        %5631 = vmatpush1.msra.mxu0 %v5563
        %5632 = vmatprep.subr.mxu0 0.0
        %5633 = vmatpush1.msra.mxu0 %v5562
        %5634 = vmatprep.subr.mxu0 0.0
        %5635 = vmatpush1.msra.mxu0 %v5561
        %5636 = vmatprep.subr.mxu0 0.0
        %5637 = vmatpush1.msra.mxu0 %v5560
        %5638 = vmatprep.subr.mxu0 0.0
        %5639 = vmatpush2.msra.mxu0 0.0
        %5640 = vmatprep.subr.mxu0 0.0
        %5641 = vmatpush2.msra.mxu0 0.0
        %5642 = vmatprep.subr.mxu0 0.0
        %5643 = vmatpush2.msra.mxu0 0.0
        %5644 = vmatprep.subr.mxu0 0.0
        %5645 = vmatpush2.msra.mxu0 0.0
        %5646 = vmatprep.subr.mxu0 0.0
        %5647 = vmatpush2.msra.mxu0 0.0
        %5648 = vmatprep.subr.mxu0 0.0
        %5649 = vmatpush2.msra.mxu0 0.0
        %5650 = vmatprep.subr.mxu0 0.0
        %5651 = vmatpush2.msra.mxu0 0.0
        %5652 = vmatprep.subr.mxu0 0.0
        %5653 = vmatpush2.msra.mxu0 0.0
        %5654 = vmatprep.subr.mxu0 0.0
        %5655 = vmatpush2.msra.mxu0 0.0
        %5656 = vmatprep.subr.mxu0 0.0
        %5657 = vmatpush2.msra.mxu0 0.0
        %5658 = vmatprep.subr.mxu0 0.0
        %5659 = vmatpush2.msra.mxu0 0.0
        %5660 = vmatprep.subr.mxu0 0.0
        %5661 = vmatpush2.msra.mxu0 0.0
        %5662 = vmatprep.subr.mxu0 0.0
        %5663 = vmatpush2.msra.mxu0 0.0
        %5664 = vmatprep.subr.mxu0 0.0
        %5665 = vmatpush2.msra.mxu0 0.0
        %5666 = vmatprep.subr.mxu0 0.0
        %5667 = vmatpush2.msra.mxu0 0.0
        %5668 = vmatprep.subr.mxu0 0.0
        %5669 = vmatpush2.msra.mxu0 0.0
        %5670 = vmatprep.mubr.f32.mxu0 0.0
        %5671 = vmatmul.mubr.f32.gmra.mxu0 %v5577
        %v5672 = vpop.f32.mrf.mxu0
        %v5673 = vadd.f32 %v5589, %v5672
        %v5674 = vpop.f32.mrf.mxu0
        %5675 = vmatprep.mubr.f32.mxu0 0.0
        %5676 = vmatmul.mubr.f32.gmra.mxu0 %v5578
        %v5677 = vpop.f32.mrf.mxu0
        %v5678 = vadd.f32 %v5594, %v5677
        %v5679 = vpop.f32.mrf.mxu0
        %5680 = vmatprep.mubr.f32.mxu0 0.0
        %5681 = vmatmul.mubr.f32.gmra.mxu0 %v5579
        %v5682 = vpop.f32.mrf.mxu0
        %v5683 = vadd.f32 %v5599, %v5682
        %v5684 = vpop.f32.mrf.mxu0
        %5685 = vmatprep.mubr.f32.mxu0 0.0
        %5686 = vmatmul.mubr.f32.gmra.mxu0 %v5580
        %v5687 = vpop.f32.mrf.mxu0
        %v5688 = vadd.f32 %v5604, %v5687
        %v5689 = vpop.f32.mrf.mxu0
        %5690 = vdwg.mxu0
        %v5691 = vadd.f32 %v3755, %v5673
        %v5692 = vadd.f32 %v3756, %v5678
        %v5693 = vadd.f32 %v3757, %v5683
        %v5694 = vadd.f32 %v3758, %v5688
        %5695 = vst.msk [vmem:[#allocation3] sm:$0xff] %vm2093, %v5691
        %5696 = vst.msk [vmem:[#allocation3 + $0x8] sm:$0xff] %vm2093, %v5692
        %5697 = vst.msk [vmem:[#allocation3 + $0x10] sm:$0xff] %vm2093, %v5693
        %5698 = vst.msk [vmem:[#allocation3 + $0x18] sm:$0xff] %vm2093, %v5694
        %v5699 = vld [vmem:[#allocation4] sm:$0xff]
        %v5700 = vld [vmem:[#allocation4 + $0x8] sm:$0xff]
        %v5701 = vld [vmem:[#allocation4 + $0x10] sm:$0xff]
        %v5702 = vld [vmem:[#allocation4 + $0x18] sm:$0xff]
        %s5703 = scalar_lea.vmem %s1045, 32
        %v5704 = vld [vmem:[%s5703] sm:$0xff]
        %v5705 = vld [vmem:[%s5703 + $0x8] sm:$0xff]
        %v5706 = vld [vmem:[%s5703 + $0x10] sm:$0xff]
        %v5707 = vld [vmem:[%s5703 + $0x18] sm:$0xff]
        %s5708 = scalar_lea.vmem %s1050, 32
        %v5709 = vld [vmem:[%s5708] sm:$0xff]
        %v5710 = vld [vmem:[%s5708 + $0x8] sm:$0xff]
        %v5711 = vld [vmem:[%s5708 + $0x10] sm:$0xff]
        %v5712 = vld [vmem:[%s5708 + $0x18] sm:$0xff]
        %5714 = vset.pattern.permute.xlu0 0
        %5715 = vperm.xlu0 %5714, %v5709
        %v5716 = vpop.permute.xlu0 %5715
        %5719 = vset.pattern.permute.xlu0 0
        %5720 = vperm.xlu0 %5719, %v5710
        %v5721 = vpop.permute.xlu0 %5720
        %5724 = vset.pattern.permute.xlu0 0
        %5725 = vperm.xlu0 %5724, %v5711
        %v5726 = vpop.permute.xlu0 %5725
        %5729 = vset.pattern.permute.xlu0 0
        %5730 = vperm.xlu0 %5729, %v5712
        %v5731 = vpop.permute.xlu0 %5730
        %5733 = vmatprep.subr.mxu0 0.0
        %5734 = vmatpush1.msra.mxu0 %v5575
        %5735 = vmatprep.subr.mxu0 0.0
        %5736 = vmatpush1.msra.mxu0 %v5574
        %5737 = vmatprep.subr.mxu0 0.0
        %5738 = vmatpush1.msra.mxu0 %v5573
        %5739 = vmatprep.subr.mxu0 0.0
        %5740 = vmatpush1.msra.mxu0 %v5572
        %5741 = vmatprep.subr.mxu0 0.0
        %5742 = vmatpush1.msra.mxu0 %v5571
        %5743 = vmatprep.subr.mxu0 0.0
        %5744 = vmatpush1.msra.mxu0 %v5570
        %5745 = vmatprep.subr.mxu0 0.0
        %5746 = vmatpush1.msra.mxu0 %v5569
        %5747 = vmatprep.subr.mxu0 0.0
        %5748 = vmatpush1.msra.mxu0 %v5568
        %5749 = vmatprep.subr.mxu0 0.0
        %5750 = vmatpush1.msra.mxu0 %v5567
        %5751 = vmatprep.subr.mxu0 0.0
        %5752 = vmatpush1.msra.mxu0 %v5566
        %5753 = vmatprep.subr.mxu0 0.0
        %5754 = vmatpush1.msra.mxu0 %v5565
        %5755 = vmatprep.subr.mxu0 0.0
        %5756 = vmatpush1.msra.mxu0 %v5564
        %5757 = vmatprep.subr.mxu0 0.0
        %5758 = vmatpush1.msra.mxu0 %v5563
        %5759 = vmatprep.subr.mxu0 0.0
        %5760 = vmatpush1.msra.mxu0 %v5562
        %5761 = vmatprep.subr.mxu0 0.0
        %5762 = vmatpush1.msra.mxu0 %v5561
        %5763 = vmatprep.subr.mxu0 0.0
        %5764 = vmatpush1.msra.mxu0 %v5560
        %5765 = vmatprep.subr.mxu0 0.0
        %5766 = vmatpush2.msra.mxu0 0.0
        %5767 = vmatprep.subr.mxu0 0.0
        %5768 = vmatpush2.msra.mxu0 0.0
        %5769 = vmatprep.subr.mxu0 0.0
        %5770 = vmatpush2.msra.mxu0 0.0
        %5771 = vmatprep.subr.mxu0 0.0
        %5772 = vmatpush2.msra.mxu0 0.0
        %5773 = vmatprep.subr.mxu0 0.0
        %5774 = vmatpush2.msra.mxu0 0.0
        %5775 = vmatprep.subr.mxu0 0.0
        %5776 = vmatpush2.msra.mxu0 0.0
        %5777 = vmatprep.subr.mxu0 0.0
        %5778 = vmatpush2.msra.mxu0 0.0
        %5779 = vmatprep.subr.mxu0 0.0
        %5780 = vmatpush2.msra.mxu0 0.0
        %5781 = vmatprep.subr.mxu0 0.0
        %5782 = vmatpush2.msra.mxu0 0.0
        %5783 = vmatprep.subr.mxu0 0.0
        %5784 = vmatpush2.msra.mxu0 0.0
        %5785 = vmatprep.subr.mxu0 0.0
        %5786 = vmatpush2.msra.mxu0 0.0
        %5787 = vmatprep.subr.mxu0 0.0
        %5788 = vmatpush2.msra.mxu0 0.0
        %5789 = vmatprep.subr.mxu0 0.0
        %5790 = vmatpush2.msra.mxu0 0.0
        %5791 = vmatprep.subr.mxu0 0.0
        %5792 = vmatpush2.msra.mxu0 0.0
        %5793 = vmatprep.subr.mxu0 0.0
        %5794 = vmatpush2.msra.mxu0 0.0
        %5795 = vmatprep.subr.mxu0 0.0
        %5796 = vmatpush2.msra.mxu0 0.0
        %5797 = vmatprep.mubr.f32.mxu0 0.0
        %5798 = vmatmul.mubr.f32.gmra.mxu0 %v5704
        %v5799 = vpop.f32.mrf.mxu0
        %v5800 = vadd.f32 %v5716, %v5799
        %v5801 = vpop.f32.mrf.mxu0
        %5802 = vmatprep.mubr.f32.mxu0 0.0
        %5803 = vmatmul.mubr.f32.gmra.mxu0 %v5705
        %v5804 = vpop.f32.mrf.mxu0
        %v5805 = vadd.f32 %v5721, %v5804
        %v5806 = vpop.f32.mrf.mxu0
        %5807 = vmatprep.mubr.f32.mxu0 0.0
        %5808 = vmatmul.mubr.f32.gmra.mxu0 %v5706
        %v5809 = vpop.f32.mrf.mxu0
        %v5810 = vadd.f32 %v5726, %v5809
        %v5811 = vpop.f32.mrf.mxu0
        %5812 = vmatprep.mubr.f32.mxu0 0.0
        %5813 = vmatmul.mubr.f32.gmra.mxu0 %v5707
        %v5814 = vpop.f32.mrf.mxu0
        %v5815 = vadd.f32 %v5731, %v5814
        %v5816 = vpop.f32.mrf.mxu0
        %5817 = vdwg.mxu0
        %v5818 = vadd.f32 %v5699, %v5800
        %v5819 = vadd.f32 %v5700, %v5805
        %v5820 = vadd.f32 %v5701, %v5810
        %v5821 = vadd.f32 %v5702, %v5815
        %5822 = vst.msk [vmem:[#allocation4] sm:$0xff] %vm2093, %v5818
        %5823 = vst.msk [vmem:[#allocation4 + $0x8] sm:$0xff] %vm2093, %v5819
        %5824 = vst.msk [vmem:[#allocation4 + $0x10] sm:$0xff] %vm2093, %v5820
        %5825 = vst.msk [vmem:[#allocation4 + $0x18] sm:$0xff] %vm2093, %v5821
        // Predicated region
        $region125: #{tpu_custom_call.1} parent=119 // pred_check
          %p5826 = pneg %p1051
        $region126: #{tpu_custom_call.1} parent=119 // pred_check_branch
          %5828 = sbr.rel (%p5826) target = $region128
        $region127: #{tpu_custom_call.1} parent=119 // pred_region
          %v5829 = vld [vmem:[#allocation4] sm:$0xff]
          %v5830 = vld [vmem:[#allocation4 + $0x8] sm:$0xff]
          %v5831 = vld [vmem:[#allocation4 + $0x10] sm:$0xff]
          %v5832 = vld [vmem:[#allocation4 + $0x18] sm:$0xff]
          %v5833 = vld [vmem:[#allocation5] sm:$0x1]
          %vm5834 = vcmp.ge.f32.partialorder %v5829, 0.0
          %vm5835 = vcmp.ge.f32.partialorder %v5830, 0.0
          %vm5836 = vcmp.ge.f32.partialorder %v5831, 0.0
          %vm5837 = vcmp.ge.f32.partialorder %v5832, 0.0
          %v5839 = vlaneseq
          %v5840 = vshrl.u32 %v5839, 7
          %v5841 = vsub.s32 0, %v5840
          %v5842 = vrot.slane %v5833, %v5841
          %5843 = vset.pattern.permute.xlu0 0
          %5844 = vperm.xlu0 %5843, %v5842
          %v5845 = vpop.permute.xlu0 %5844
          %v5847 = vmul.f32 %v5845, %v5829
          %v5848 = vmul.f32 %v5845, %v5830
          %v5849 = vmul.f32 %v5845, %v5831
          %v5850 = vmul.f32 %v5845, %v5832
          %v5851 = vsel %vm5834, %v5829, %v5847
          %v5852 = vsel %vm5835, %v5830, %v5848
          %v5853 = vsel %vm5836, %v5831, %v5849
          %v5854 = vsel %vm5837, %v5832, %v5850
          %v5855 = vld [vmem:[%s21] sm:$0xff]
          %v5856 = vld [vmem:[%s21 + $0x8] sm:$0xff]
          %v5857 = vld [vmem:[%s21 + $0x10] sm:$0xff]
          %v5858 = vld [vmem:[%s21 + $0x18] sm:$0xff]
          %v5859 = vld [vmem:[%s21 + $0x20] sm:$0xff]
          %v5860 = vld [vmem:[%s21 + $0x28] sm:$0xff]
          %v5861 = vld [vmem:[%s21 + $0x30] sm:$0xff]
          %v5862 = vld [vmem:[%s21 + $0x38] sm:$0xff]
          %v5863 = vld [vmem:[%s21 + $0x40] sm:$0xff]
          %v5864 = vld [vmem:[%s21 + $0x48] sm:$0xff]
          %v5865 = vld [vmem:[%s21 + $0x50] sm:$0xff]
          %v5866 = vld [vmem:[%s21 + $0x58] sm:$0xff]
          %v5867 = vld [vmem:[%s21 + $0x60] sm:$0xff]
          %v5868 = vld [vmem:[%s21 + $0x68] sm:$0xff]
          %v5869 = vld [vmem:[%s21 + $0x70] sm:$0xff]
          %v5870 = vld [vmem:[%s21 + $0x78] sm:$0xff]
          %v5871 = vld [vmem:[%s22] sm:$0xff]
          %v5872 = vld [vmem:[%s22 + $0x8] sm:$0xff]
          %v5873 = vld [vmem:[%s22 + $0x10] sm:$0xff]
          %v5874 = vld [vmem:[%s22 + $0x18] sm:$0xff]
          %v5875 = vld [vmem:[%s22 + $0x20] sm:$0xff]
          %v5876 = vld [vmem:[%s22 + $0x28] sm:$0xff]
          %v5877 = vld [vmem:[%s22 + $0x30] sm:$0xff]
          %v5878 = vld [vmem:[%s22 + $0x38] sm:$0xff]
          %v5879 = vld [vmem:[%s22 + $0x40] sm:$0xff]
          %v5880 = vld [vmem:[%s22 + $0x48] sm:$0xff]
          %v5881 = vld [vmem:[%s22 + $0x50] sm:$0xff]
          %v5882 = vld [vmem:[%s22 + $0x58] sm:$0xff]
          %v5883 = vld [vmem:[%s22 + $0x60] sm:$0xff]
          %v5884 = vld [vmem:[%s22 + $0x68] sm:$0xff]
          %v5885 = vld [vmem:[%s22 + $0x70] sm:$0xff]
          %v5886 = vld [vmem:[%s22 + $0x78] sm:$0xff]
          %5888 = vset.pattern.permute.xlu0 0
          %5889 = vperm.xlu0 %5888, %v5871
          %v5890 = vpop.permute.xlu0 %5889
          %5893 = vset.pattern.permute.xlu0 0
          %5894 = vperm.xlu0 %5893, %v5872
          %v5895 = vpop.permute.xlu0 %5894
          %5898 = vset.pattern.permute.xlu0 0
          %5899 = vperm.xlu0 %5898, %v5873
          %v5900 = vpop.permute.xlu0 %5899
          %5903 = vset.pattern.permute.xlu0 0
          %5904 = vperm.xlu0 %5903, %v5874
          %v5905 = vpop.permute.xlu0 %5904
          %5908 = vset.pattern.permute.xlu0 0
          %5909 = vperm.xlu0 %5908, %v5875
          %v5910 = vpop.permute.xlu0 %5909
          %5913 = vset.pattern.permute.xlu0 0
          %5914 = vperm.xlu0 %5913, %v5876
          %v5915 = vpop.permute.xlu0 %5914
          %5918 = vset.pattern.permute.xlu0 0
          %5919 = vperm.xlu0 %5918, %v5877
          %v5920 = vpop.permute.xlu0 %5919
          %5923 = vset.pattern.permute.xlu0 0
          %5924 = vperm.xlu0 %5923, %v5878
          %v5925 = vpop.permute.xlu0 %5924
          %5928 = vset.pattern.permute.xlu0 0
          %5929 = vperm.xlu0 %5928, %v5879
          %v5930 = vpop.permute.xlu0 %5929
          %5933 = vset.pattern.permute.xlu0 0
          %5934 = vperm.xlu0 %5933, %v5880
          %v5935 = vpop.permute.xlu0 %5934
          %5938 = vset.pattern.permute.xlu0 0
          %5939 = vperm.xlu0 %5938, %v5881
          %v5940 = vpop.permute.xlu0 %5939
          %5943 = vset.pattern.permute.xlu0 0
          %5944 = vperm.xlu0 %5943, %v5882
          %v5945 = vpop.permute.xlu0 %5944
          %5948 = vset.pattern.permute.xlu0 0
          %5949 = vperm.xlu0 %5948, %v5883
          %v5950 = vpop.permute.xlu0 %5949
          %5953 = vset.pattern.permute.xlu0 0
          %5954 = vperm.xlu0 %5953, %v5884
          %v5955 = vpop.permute.xlu0 %5954
          %5958 = vset.pattern.permute.xlu0 0
          %5959 = vperm.xlu0 %5958, %v5885
          %v5960 = vpop.permute.xlu0 %5959
          %5963 = vset.pattern.permute.xlu0 0
          %5964 = vperm.xlu0 %5963, %v5886
          %v5965 = vpop.permute.xlu0 %5964
          %v5968 = vsel %vm1809, %v5855, 0
          %v5971 = vsel %vm1809, %v5856, 0
          %v5974 = vsel %vm1809, %v5857, 0
          %v5977 = vsel %vm1809, %v5858, 0
          %v5980 = vsel %vm1809, %v5859, 0
          %v5983 = vsel %vm1809, %v5860, 0
          %v5986 = vsel %vm1809, %v5861, 0
          %v5989 = vsel %vm1809, %v5862, 0
          %v5992 = vsel %vm1809, %v5863, 0
          %v5995 = vsel %vm1809, %v5864, 0
          %v5998 = vsel %vm1809, %v5865, 0
          %v6001 = vsel %vm1809, %v5866, 0
          %v6004 = vsel %vm1809, %v5867, 0
          %v6007 = vsel %vm1809, %v5868, 0
          %v6010 = vsel %vm1809, %v5869, 0
          %v6013 = vsel %vm1809, %v5870, 0
          %6015 = vmatprep.subr.mxu0 0.0
          %6016 = vmatpush1.msra.mxu0 0.0
          %6017 = vmatprep.subr.mxu0 0.0
          %6018 = vmatpush1.msra.mxu0 0.0
          %6019 = vmatprep.subr.mxu0 0.0
          %6020 = vmatpush1.msra.mxu0 0.0
          %6021 = vmatprep.subr.mxu0 0.0
          %6022 = vmatpush1.msra.mxu0 0.0
          %6023 = vmatprep.subr.mxu0 0.0
          %6024 = vmatpush1.msra.mxu0 0.0
          %6025 = vmatprep.subr.mxu0 0.0
          %6026 = vmatpush1.msra.mxu0 0.0
          %6027 = vmatprep.subr.mxu0 0.0
          %6028 = vmatpush1.msra.mxu0 0.0
          %6029 = vmatprep.subr.mxu0 0.0
          %6030 = vmatpush1.msra.mxu0 0.0
          %6031 = vmatprep.subr.mxu0 0.0
          %6032 = vmatpush1.msra.mxu0 0.0
          %6033 = vmatprep.subr.mxu0 0.0
          %6034 = vmatpush1.msra.mxu0 0.0
          %6035 = vmatprep.subr.mxu0 0.0
          %6036 = vmatpush1.msra.mxu0 0.0
          %6037 = vmatprep.subr.mxu0 0.0
          %6038 = vmatpush1.msra.mxu0 0.0
          %6039 = vmatprep.subr.mxu0 0.0
          %6040 = vmatpush1.msra.mxu0 %v5854
          %6041 = vmatprep.subr.mxu0 0.0
          %6042 = vmatpush1.msra.mxu0 %v5853
          %6043 = vmatprep.subr.mxu0 0.0
          %6044 = vmatpush1.msra.mxu0 %v5852
          %6045 = vmatprep.subr.mxu0 0.0
          %6046 = vmatpush1.msra.mxu0 %v5851
          %6047 = vmatprep.subr.mxu0 0.0
          %6048 = vmatpush2.msra.mxu0 0.0
          %6049 = vmatprep.subr.mxu0 0.0
          %6050 = vmatpush2.msra.mxu0 0.0
          %6051 = vmatprep.subr.mxu0 0.0
          %6052 = vmatpush2.msra.mxu0 0.0
          %6053 = vmatprep.subr.mxu0 0.0
          %6054 = vmatpush2.msra.mxu0 0.0
          %6055 = vmatprep.subr.mxu0 0.0
          %6056 = vmatpush2.msra.mxu0 0.0
          %6057 = vmatprep.subr.mxu0 0.0
          %6058 = vmatpush2.msra.mxu0 0.0
          %6059 = vmatprep.subr.mxu0 0.0
          %6060 = vmatpush2.msra.mxu0 0.0
          %6061 = vmatprep.subr.mxu0 0.0
          %6062 = vmatpush2.msra.mxu0 0.0
          %6063 = vmatprep.subr.mxu0 0.0
          %6064 = vmatpush2.msra.mxu0 0.0
          %6065 = vmatprep.subr.mxu0 0.0
          %6066 = vmatpush2.msra.mxu0 0.0
          %6067 = vmatprep.subr.mxu0 0.0
          %6068 = vmatpush2.msra.mxu0 0.0
          %6069 = vmatprep.subr.mxu0 0.0
          %6070 = vmatpush2.msra.mxu0 0.0
          %6071 = vmatprep.subr.mxu0 0.0
          %6072 = vmatpush2.msra.mxu0 0.0
          %6073 = vmatprep.subr.mxu0 0.0
          %6074 = vmatpush2.msra.mxu0 0.0
          %6075 = vmatprep.subr.mxu0 0.0
          %6076 = vmatpush2.msra.mxu0 0.0
          %6077 = vmatprep.subr.mxu0 0.0
          %6078 = vmatpush2.msra.mxu0 0.0
          %6079 = vmatprep.mubr.f32.mxu0 0.0
          %6080 = vmatmul.mubr.f32.gmra.mxu0 %v5968
          %v6081 = vpop.f32.mrf.mxu0
          %v6082 = vadd.f32 %v5890, %v6081
          %v6083 = vpop.f32.mrf.mxu0
          %6084 = vmatprep.mubr.f32.mxu0 0.0
          %6085 = vmatmul.mubr.f32.gmra.mxu0 %v5971
          %v6086 = vpop.f32.mrf.mxu0
          %v6087 = vadd.f32 %v5895, %v6086
          %v6088 = vpop.f32.mrf.mxu0
          %6089 = vmatprep.mubr.f32.mxu0 0.0
          %6090 = vmatmul.mubr.f32.gmra.mxu0 %v5974
          %v6091 = vpop.f32.mrf.mxu0
          %v6092 = vadd.f32 %v5900, %v6091
          %v6093 = vpop.f32.mrf.mxu0
          %6094 = vmatprep.mubr.f32.mxu0 0.0
          %6095 = vmatmul.mubr.f32.gmra.mxu0 %v5977
          %v6096 = vpop.f32.mrf.mxu0
          %v6097 = vadd.f32 %v5905, %v6096
          %v6098 = vpop.f32.mrf.mxu0
          %6099 = vmatprep.mubr.f32.mxu0 0.0
          %6100 = vmatmul.mubr.f32.gmra.mxu0 %v5980
          %v6101 = vpop.f32.mrf.mxu0
          %v6102 = vadd.f32 %v5910, %v6101
          %v6103 = vpop.f32.mrf.mxu0
          %6104 = vmatprep.mubr.f32.mxu0 0.0
          %6105 = vmatmul.mubr.f32.gmra.mxu0 %v5983
          %v6106 = vpop.f32.mrf.mxu0
          %v6107 = vadd.f32 %v5915, %v6106
          %v6108 = vpop.f32.mrf.mxu0
          %6109 = vmatprep.mubr.f32.mxu0 0.0
          %6110 = vmatmul.mubr.f32.gmra.mxu0 %v5986
          %v6111 = vpop.f32.mrf.mxu0
          %v6112 = vadd.f32 %v5920, %v6111
          %v6113 = vpop.f32.mrf.mxu0
          %6114 = vmatprep.mubr.f32.mxu0 0.0
          %6115 = vmatmul.mubr.f32.gmra.mxu0 %v5989
          %v6116 = vpop.f32.mrf.mxu0
          %v6117 = vadd.f32 %v5925, %v6116
          %v6118 = vpop.f32.mrf.mxu0
          %6119 = vmatprep.mubr.f32.mxu0 0.0
          %6120 = vmatmul.mubr.f32.gmra.mxu0 %v5992
          %v6121 = vpop.f32.mrf.mxu0
          %v6122 = vadd.f32 %v5930, %v6121
          %v6123 = vpop.f32.mrf.mxu0
          %6124 = vmatprep.mubr.f32.mxu0 0.0
          %6125 = vmatmul.mubr.f32.gmra.mxu0 %v5995
          %v6126 = vpop.f32.mrf.mxu0
          %v6127 = vadd.f32 %v5935, %v6126
          %v6128 = vpop.f32.mrf.mxu0
          %6129 = vmatprep.mubr.f32.mxu0 0.0
          %6130 = vmatmul.mubr.f32.gmra.mxu0 %v5998
          %v6131 = vpop.f32.mrf.mxu0
          %v6132 = vadd.f32 %v5940, %v6131
          %v6133 = vpop.f32.mrf.mxu0
          %6134 = vmatprep.mubr.f32.mxu0 0.0
          %6135 = vmatmul.mubr.f32.gmra.mxu0 %v6001
          %v6136 = vpop.f32.mrf.mxu0
          %v6137 = vadd.f32 %v5945, %v6136
          %v6138 = vpop.f32.mrf.mxu0
          %6139 = vmatprep.mubr.f32.mxu0 0.0
          %6140 = vmatmul.mubr.f32.gmra.mxu0 %v6004
          %v6141 = vpop.f32.mrf.mxu0
          %v6142 = vadd.f32 %v5950, %v6141
          %v6143 = vpop.f32.mrf.mxu0
          %6144 = vmatprep.mubr.f32.mxu0 0.0
          %6145 = vmatmul.mubr.f32.gmra.mxu0 %v6007
          %v6146 = vpop.f32.mrf.mxu0
          %v6147 = vadd.f32 %v5955, %v6146
          %v6148 = vpop.f32.mrf.mxu0
          %6149 = vmatprep.mubr.f32.mxu0 0.0
          %6150 = vmatmul.mubr.f32.gmra.mxu0 %v6010
          %v6151 = vpop.f32.mrf.mxu0
          %v6152 = vadd.f32 %v5960, %v6151
          %v6153 = vpop.f32.mrf.mxu0
          %6154 = vmatprep.mubr.f32.mxu0 0.0
          %6155 = vmatmul.mubr.f32.gmra.mxu0 %v6013
          %v6156 = vpop.f32.mrf.mxu0
          %v6157 = vadd.f32 %v5965, %v6156
          %v6158 = vpop.f32.mrf.mxu0
          %6159 = vdwg.mxu0
          %v6160 = vxor.u32 %v6082, 2147483648
          %v6161 = vxor.u32 %v6087, 2147483648
          %v6162 = vxor.u32 %v6092, 2147483648
          %v6163 = vxor.u32 %v6097, 2147483648
          %v6164 = vxor.u32 %v6102, 2147483648
          %v6165 = vxor.u32 %v6107, 2147483648
          %v6166 = vxor.u32 %v6112, 2147483648
          %v6167 = vxor.u32 %v6117, 2147483648
          %v6168 = vxor.u32 %v6122, 2147483648
          %v6169 = vxor.u32 %v6127, 2147483648
          %v6170 = vxor.u32 %v6132, 2147483648
          %v6171 = vxor.u32 %v6137, 2147483648
          %v6172 = vxor.u32 %v6142, 2147483648
          %v6173 = vxor.u32 %v6147, 2147483648
          %v6174 = vxor.u32 %v6152, 2147483648
          %v6175 = vxor.u32 %v6157, 2147483648
          %v6176 = vmul.f32 %v6160, 1.442695
          %v6177 = vpow.pop %v6176
          %v6178 = vmul.f32 %v6161, 1.442695
          %v6179 = vpow.pop %v6178
          %v6180 = vmul.f32 %v6162, 1.442695
          %v6181 = vpow.pop %v6180
          %v6182 = vmul.f32 %v6163, 1.442695
          %v6183 = vpow.pop %v6182
          %v6184 = vmul.f32 %v6164, 1.442695
          %v6185 = vpow.pop %v6184
          %v6186 = vmul.f32 %v6165, 1.442695
          %v6187 = vpow.pop %v6186
          %v6188 = vmul.f32 %v6166, 1.442695
          %v6189 = vpow.pop %v6188
          %v6190 = vmul.f32 %v6167, 1.442695
          %v6191 = vpow.pop %v6190
          %v6192 = vmul.f32 %v6168, 1.442695
          %v6193 = vpow.pop %v6192
          %v6194 = vmul.f32 %v6169, 1.442695
          %v6195 = vpow.pop %v6194
          %v6196 = vmul.f32 %v6170, 1.442695
          %v6197 = vpow.pop %v6196
          %v6198 = vmul.f32 %v6171, 1.442695
          %v6199 = vpow.pop %v6198
          %v6200 = vmul.f32 %v6172, 1.442695
          %v6201 = vpow.pop %v6200
          %v6202 = vmul.f32 %v6173, 1.442695
          %v6203 = vpow.pop %v6202
          %v6204 = vmul.f32 %v6174, 1.442695
          %v6205 = vpow.pop %v6204
          %v6206 = vmul.f32 %v6175, 1.442695
          %v6207 = vpow.pop %v6206
          %v6208 = vadd.f32 %v6177, 1.0
          %v6209 = vadd.f32 %v6179, 1.0
          %v6210 = vadd.f32 %v6181, 1.0
          %v6211 = vadd.f32 %v6183, 1.0
          %v6212 = vadd.f32 %v6185, 1.0
          %v6213 = vadd.f32 %v6187, 1.0
          %v6214 = vadd.f32 %v6189, 1.0
          %v6215 = vadd.f32 %v6191, 1.0
          %v6216 = vadd.f32 %v6193, 1.0
          %v6217 = vadd.f32 %v6195, 1.0
          %v6218 = vadd.f32 %v6197, 1.0
          %v6219 = vadd.f32 %v6199, 1.0
          %v6220 = vadd.f32 %v6201, 1.0
          %v6221 = vadd.f32 %v6203, 1.0
          %v6222 = vadd.f32 %v6205, 1.0
          %v6223 = vadd.f32 %v6207, 1.0
          %v6224 = vrcp.pop %v6208
          %v6225 = vmul.f32 1.0, %v6224
          %v6226 = vrcp.pop %v6209
          %v6227 = vmul.f32 1.0, %v6226
          %v6228 = vrcp.pop %v6210
          %v6229 = vmul.f32 1.0, %v6228
          %v6230 = vrcp.pop %v6211
          %v6231 = vmul.f32 1.0, %v6230
          %v6232 = vrcp.pop %v6212
          %v6233 = vmul.f32 1.0, %v6232
          %v6234 = vrcp.pop %v6213
          %v6235 = vmul.f32 1.0, %v6234
          %v6236 = vrcp.pop %v6214
          %v6237 = vmul.f32 1.0, %v6236
          %v6238 = vrcp.pop %v6215
          %v6239 = vmul.f32 1.0, %v6238
          %v6240 = vrcp.pop %v6216
          %v6241 = vmul.f32 1.0, %v6240
          %v6242 = vrcp.pop %v6217
          %v6243 = vmul.f32 1.0, %v6242
          %v6244 = vrcp.pop %v6218
          %v6245 = vmul.f32 1.0, %v6244
          %v6246 = vrcp.pop %v6219
          %v6247 = vmul.f32 1.0, %v6246
          %v6248 = vrcp.pop %v6220
          %v6249 = vmul.f32 1.0, %v6248
          %v6250 = vrcp.pop %v6221
          %v6251 = vmul.f32 1.0, %v6250
          %v6252 = vrcp.pop %v6222
          %v6253 = vmul.f32 1.0, %v6252
          %v6254 = vrcp.pop %v6223
          %v6255 = vmul.f32 1.0, %v6254
          %v6256 = vld [vmem:[#allocation2] sm:$0xff]
          %v6257 = vld [vmem:[#allocation2 + $0x8] sm:$0xff]
          %v6258 = vld [vmem:[#allocation2 + $0x10] sm:$0xff]
          %v6259 = vld [vmem:[#allocation2 + $0x18] sm:$0xff]
          %v6260 = vld [vmem:[#allocation2 + $0x20] sm:$0xff]
          %v6261 = vld [vmem:[#allocation2 + $0x28] sm:$0xff]
          %v6262 = vld [vmem:[#allocation2 + $0x30] sm:$0xff]
          %v6263 = vld [vmem:[#allocation2 + $0x38] sm:$0xff]
          %v6264 = vmul.f32 %v6256, %v6225
          %v6265 = vmul.f32 %v6257, %v6227
          %v6266 = vmul.f32 %v6258, %v6229
          %v6267 = vmul.f32 %v6259, %v6231
          %v6268 = vmul.f32 %v6260, %v6233
          %v6269 = vmul.f32 %v6261, %v6235
          %v6270 = vmul.f32 %v6262, %v6237
          %v6271 = vmul.f32 %v6263, %v6239
          %v6272 = vld [vmem:[%s24] sm:$0xff]
          %v6273 = vld [vmem:[%s24 + $0x8] sm:$0xff]
          %vm6274 = vcmask 523264
          %v6276 = vsel %vm6274, %v6272, 0
          %v6279 = vsel %vm6274, %v6273, 0
          %6281 = vmatprep.subr.mxu0 0.0
          %6282 = vmatpush1.msra.mxu0 0.0
          %6283 = vmatprep.subr.mxu0 0.0
          %6284 = vmatpush1.msra.mxu0 0.0
          %6285 = vmatprep.subr.mxu0 0.0
          %6286 = vmatpush1.msra.mxu0 0.0
          %6287 = vmatprep.subr.mxu0 0.0
          %6288 = vmatpush1.msra.mxu0 0.0
          %6289 = vmatprep.subr.mxu0 0.0
          %6290 = vmatpush1.msra.mxu0 0.0
          %6291 = vmatprep.subr.mxu0 0.0
          %6292 = vmatpush1.msra.mxu0 0.0
          %6293 = vmatprep.subr.mxu0 0.0
          %6294 = vmatpush1.msra.mxu0 0.0
          %6295 = vmatprep.subr.mxu0 0.0
          %6296 = vmatpush1.msra.mxu0 0.0
          %6297 = vmatprep.subr.mxu0 0.0
          %6298 = vmatpush1.msra.mxu0 %v6271
          %6299 = vmatprep.subr.mxu0 0.0
          %6300 = vmatpush1.msra.mxu0 %v6270
          %6301 = vmatprep.subr.mxu0 0.0
          %6302 = vmatpush1.msra.mxu0 %v6269
          %6303 = vmatprep.subr.mxu0 0.0
          %6304 = vmatpush1.msra.mxu0 %v6268
          %6305 = vmatprep.subr.mxu0 0.0
          %6306 = vmatpush1.msra.mxu0 %v6267
          %6307 = vmatprep.subr.mxu0 0.0
          %6308 = vmatpush1.msra.mxu0 %v6266
          %6309 = vmatprep.subr.mxu0 0.0
          %6310 = vmatpush1.msra.mxu0 %v6265
          %6311 = vmatprep.subr.mxu0 0.0
          %6312 = vmatpush1.msra.mxu0 %v6264
          %6313 = vmatprep.subr.mxu0 0.0
          %6314 = vmatpush2.msra.mxu0 0.0
          %6315 = vmatprep.subr.mxu0 0.0
          %6316 = vmatpush2.msra.mxu0 0.0
          %6317 = vmatprep.subr.mxu0 0.0
          %6318 = vmatpush2.msra.mxu0 0.0
          %6319 = vmatprep.subr.mxu0 0.0
          %6320 = vmatpush2.msra.mxu0 0.0
          %6321 = vmatprep.subr.mxu0 0.0
          %6322 = vmatpush2.msra.mxu0 0.0
          %6323 = vmatprep.subr.mxu0 0.0
          %6324 = vmatpush2.msra.mxu0 0.0
          %6325 = vmatprep.subr.mxu0 0.0
          %6326 = vmatpush2.msra.mxu0 0.0
          %6327 = vmatprep.subr.mxu0 0.0
          %6328 = vmatpush2.msra.mxu0 0.0
          %6329 = vmatprep.subr.mxu0 0.0
          %6330 = vmatpush2.msra.mxu0 0.0
          %6331 = vmatprep.subr.mxu0 0.0
          %6332 = vmatpush2.msra.mxu0 0.0
          %6333 = vmatprep.subr.mxu0 0.0
          %6334 = vmatpush2.msra.mxu0 0.0
          %6335 = vmatprep.subr.mxu0 0.0
          %6336 = vmatpush2.msra.mxu0 0.0
          %6337 = vmatprep.subr.mxu0 0.0
          %6338 = vmatpush2.msra.mxu0 0.0
          %6339 = vmatprep.subr.mxu0 0.0
          %6340 = vmatpush2.msra.mxu0 0.0
          %6341 = vmatprep.subr.mxu0 0.0
          %6342 = vmatpush2.msra.mxu0 0.0
          %6343 = vmatprep.subr.mxu0 0.0
          %6344 = vmatpush2.msra.mxu0 0.0
          %6345 = vmatprep.mubr.f32.mxu0 0.0
          %6346 = vmatmul.mubr.f32.gmra.mxu0 %v6276
          %v6347 = vpop.f32.mrf.mxu0
          %v6348 = vadd.f32 0.0, %v6347
          %v6349 = vpop.f32.mrf.mxu0
          %6350 = vmatprep.mubr.f32.mxu0 0.0
          %6351 = vmatmul.mubr.f32.gmra.mxu0 %v6279
          %v6352 = vpop.f32.mrf.mxu0
          %v6353 = vadd.f32 0.0, %v6352
          %v6354 = vpop.f32.mrf.mxu0
          %6355 = vdwg.mxu0
          %v6356 = vsel %vm2093, %v6348, 0.0
          %6358 = vrot.lane.b32.xlu0 %v6353, 1
          %v6359 = vpop.permute.xlu0 %6358
          %vm6361 = vcmask 7168
          %v6362 = vsel %vm6361, 0.0, %v6359
          %v6363 = vadd.f32 %v6356, %v6362
          %vm6364 = vcmask 187392
          %6365 = vst.msk [vmem:[%s977] sm:$0xff] %vm6364, %v6363
          %v6366 = vmul.f32 %v6256, %v6241
          %v6367 = vmul.f32 %v6257, %v6243
          %v6368 = vmul.f32 %v6258, %v6245
          %v6369 = vmul.f32 %v6259, %v6247
          %v6370 = vmul.f32 %v6260, %v6249
          %v6371 = vmul.f32 %v6261, %v6251
          %v6372 = vmul.f32 %v6262, %v6253
          %v6373 = vmul.f32 %v6263, %v6255
          %v6374 = vld [vmem:[%s24] sm:$0xff]
          %v6375 = vld [vmem:[%s24 + $0x8] sm:$0xff]
          %v6377 = vsel %vm6274, %v6374, 0
          %v6380 = vsel %vm6274, %v6375, 0
          %6382 = vmatprep.subr.mxu0 0.0
          %6383 = vmatpush1.msra.mxu0 0.0
          %6384 = vmatprep.subr.mxu0 0.0
          %6385 = vmatpush1.msra.mxu0 0.0
          %6386 = vmatprep.subr.mxu0 0.0
          %6387 = vmatpush1.msra.mxu0 0.0
          %6388 = vmatprep.subr.mxu0 0.0
          %6389 = vmatpush1.msra.mxu0 0.0
          %6390 = vmatprep.subr.mxu0 0.0
          %6391 = vmatpush1.msra.mxu0 0.0
          %6392 = vmatprep.subr.mxu0 0.0
          %6393 = vmatpush1.msra.mxu0 0.0
          %6394 = vmatprep.subr.mxu0 0.0
          %6395 = vmatpush1.msra.mxu0 0.0
          %6396 = vmatprep.subr.mxu0 0.0
          %6397 = vmatpush1.msra.mxu0 0.0
          %6398 = vmatprep.subr.mxu0 0.0
          %6399 = vmatpush1.msra.mxu0 %v6373
          %6400 = vmatprep.subr.mxu0 0.0
          %6401 = vmatpush1.msra.mxu0 %v6372
          %6402 = vmatprep.subr.mxu0 0.0
          %6403 = vmatpush1.msra.mxu0 %v6371
          %6404 = vmatprep.subr.mxu0 0.0
          %6405 = vmatpush1.msra.mxu0 %v6370
          %6406 = vmatprep.subr.mxu0 0.0
          %6407 = vmatpush1.msra.mxu0 %v6369
          %6408 = vmatprep.subr.mxu0 0.0
          %6409 = vmatpush1.msra.mxu0 %v6368
          %6410 = vmatprep.subr.mxu0 0.0
          %6411 = vmatpush1.msra.mxu0 %v6367
          %6412 = vmatprep.subr.mxu0 0.0
          %6413 = vmatpush1.msra.mxu0 %v6366
          %6414 = vmatprep.subr.mxu0 0.0
          %6415 = vmatpush2.msra.mxu0 0.0
          %6416 = vmatprep.subr.mxu0 0.0
          %6417 = vmatpush2.msra.mxu0 0.0
          %6418 = vmatprep.subr.mxu0 0.0
          %6419 = vmatpush2.msra.mxu0 0.0
          %6420 = vmatprep.subr.mxu0 0.0
          %6421 = vmatpush2.msra.mxu0 0.0
          %6422 = vmatprep.subr.mxu0 0.0
          %6423 = vmatpush2.msra.mxu0 0.0
          %6424 = vmatprep.subr.mxu0 0.0
          %6425 = vmatpush2.msra.mxu0 0.0
          %6426 = vmatprep.subr.mxu0 0.0
          %6427 = vmatpush2.msra.mxu0 0.0
          %6428 = vmatprep.subr.mxu0 0.0
          %6429 = vmatpush2.msra.mxu0 0.0
          %6430 = vmatprep.subr.mxu0 0.0
          %6431 = vmatpush2.msra.mxu0 0.0
          %6432 = vmatprep.subr.mxu0 0.0
          %6433 = vmatpush2.msra.mxu0 0.0
          %6434 = vmatprep.subr.mxu0 0.0
          %6435 = vmatpush2.msra.mxu0 0.0
          %6436 = vmatprep.subr.mxu0 0.0
          %6437 = vmatpush2.msra.mxu0 0.0
          %6438 = vmatprep.subr.mxu0 0.0
          %6439 = vmatpush2.msra.mxu0 0.0
          %6440 = vmatprep.subr.mxu0 0.0
          %6441 = vmatpush2.msra.mxu0 0.0
          %6442 = vmatprep.subr.mxu0 0.0
          %6443 = vmatpush2.msra.mxu0 0.0
          %6444 = vmatprep.subr.mxu0 0.0
          %6445 = vmatpush2.msra.mxu0 0.0
          %6446 = vmatprep.mubr.f32.mxu0 0.0
          %6447 = vmatmul.mubr.f32.gmra.mxu0 %v6377
          %v6448 = vpop.f32.mrf.mxu0
          %v6449 = vadd.f32 0.0, %v6448
          %v6450 = vpop.f32.mrf.mxu0
          %6451 = vmatprep.mubr.f32.mxu0 0.0
          %6452 = vmatmul.mubr.f32.gmra.mxu0 %v6380
          %v6453 = vpop.f32.mrf.mxu0
          %v6454 = vadd.f32 0.0, %v6453
          %v6455 = vpop.f32.mrf.mxu0
          %6456 = vdwg.mxu0
          %v6457 = vsel %vm2093, %v6449, 0.0
          %6459 = vrot.lane.b32.xlu0 %v6454, 1
          %v6460 = vpop.permute.xlu0 %6459
          %v6462 = vsel %vm6361, 0.0, %v6460
          %v6463 = vadd.f32 %v6457, %v6462
          %6464 = vst.msk [vmem:[%s977 + $0x8] sm:$0xff] %vm6364, %v6463
        $region128: #{tpu_custom_call.1} parent=119 // pred_fallthru
          _
        %s6465 = sand.u32 %s661, 1
        %s6466 = scalar_lea.sflag [#allocation7], %s6465
        %s6467 = sand.u32 %s661, 1
        %s6468 = smul.addr %s6467, 16
        %s6469 = scalar_lea.vmem [#allocation6], %s6468
        // Predicated region
        $region129: #{tpu_custom_call.1} parent=119 // pred_check
          %p6470 = pneg %p671
        $region130: #{tpu_custom_call.1} parent=119 // pred_check_branch
          %6472 = sbr.rel (%p6470) target = $region132
        $region131: #{tpu_custom_call.1} parent=119 // pred_region
          %s6474 = ssub.s32 256, 256
          %6475 = vsyncadd %s6466, %s6474
          %s6476 = smul.addr %s45, 2
          %s6477 = smul.addr %s6476, 128
          %s6478 = scalar_lea.hbm %s25, %s6477
          %s6479 = sshll.u32 %s6469, 4
          %s6480 = int_to_ptr.vmem [resolvable:$true] %s6479
          %6485 = dma.vmem_to_hbm [thread:$0]  %s6480, 256, %s6478, %s6466, 128, 128, 8
        $region132: #{tpu_custom_call.1} parent=119 // pred_fallthru
          _
      $region120: #{tpu_custom_call.1} parent=5 // pred_fallthru
        _
      %p6486 = scmp.le.s32.totalorder 2, %s36
      // Predicated region
      $region133: #{tpu_custom_call.1} parent=5 // pred_check
        %p6487 = pneg %p6486
      $region134: #{tpu_custom_call.1} parent=5 // pred_check_branch
        %6489 = sbr.rel (%p6487) target = $region136
      $region135: #{tpu_custom_call.1} parent=5 // pred_region
        %s6490 = ssub.s32 %s36, 2
        // Predicated region
        $region137: #{tpu_custom_call.1} parent=135 // pred_check
          %p6491 = pneg %p677
        $region138: #{tpu_custom_call.1} parent=135 // pred_check_branch
          %6493 = sbr.rel (%p6491) target = $region140
        $region139: #{tpu_custom_call.1} parent=135 // pred_region
          %s6494 = sand.u32 %s662, 1
          %s6495 = scalar_lea.sflag [#allocation7], %s6494
          %s6496 = sand.u32 %s662, 1
          %s6497 = smul.addr %s6496, 16
          %s6498 = scalar_lea.vmem [#allocation6], %s6497
          %6499 = dma.done %s6495, 256
        $region140: #{tpu_custom_call.1} parent=135 // pred_fallthru
          _
      $region136: #{tpu_custom_call.1} parent=5 // pred_fallthru
        _
    $region6: #{tpu_custom_call.1} parent=1 // loop_footer
      %s40 = sadd.s32 1, %s36
    $region7: #{tpu_custom_call.1} parent=1 // loop_footer_branch
      %35 = sbr.rel target = $region3
    $region8: #{tpu_custom_call.1} parent=1 // loop_exit
      _
    %6500 = vsyncpa [#allocation7], 1
    %s6501 = scalar_lea.sflag [#allocation7], 1
    %6502 = vsyncpa %s6501, 1

</llo_original>
